<compile_context>
chip_gen: v7x
topology: tpu7x:2x2x1
jax: 0.10.0
libtpu: 0.0.40
codegen_flags: <defaults>
</compile_context>

<pallas_src>
import functools

import numpy as np
import jax
import jax.numpy as jnp
from jax import lax
from jax.experimental import pallas as pl
from jax.experimental.pallas import tpu as pltpu

EPS = 1e-5
LANE = 128


def _round_up(n, m):
    return ((n + m - 1) // m) * m


def _vmem_capacity_bytes():
    # Generation-aware: v5e/v6e have 128 MiB VMEM, v7x only 64 MiB.  Conservative fallback.
    try:
        info = pltpu.get_tpu_info()
        for attr in ("vmem_capacity_bytes", "vmem_size_bytes", "vmem_bytes"):
            v = getattr(info, attr, None)
            if v:
                return int(v)
    except Exception:
        pass
    return 64 * 1024 * 1024


def _vmem_budget_and_limit():
    cap = _vmem_capacity_bytes()
    budget = min(cap * 3 // 8, 48 * 1024 * 1024)   # per-step working-set target
    limit = min(cap * 3 // 4, 100 * 1024 * 1024)   # explicit scoped-VMEM limit
    return budget, limit


def _pick_rows(H, N, per_row_bytes, fixed_bytes, budget, halo=0):
    """Largest row tile TH dividing H that fits the budget, kept small enough that the
    grid has >= 4 steps (pipeline overlap + both v7x TensorCores)."""
    divs = [t for t in range(1, H + 1) if H % t == 0]
    fits = [t for t in divs if fixed_bytes + (t + halo) * per_row_bytes <= budget] or [1]
    th = max(fits)
    while N * (H // th) < 4:
        smaller = [t for t in fits if t < th]
        if not smaller:
            break
        th = max(smaller)
    return th


# ---------------------------------------------------------------------------------------
# Kernel 1: 3x3 'same' conv on a manually-DMA'd haloed row tile, with an optional fused
#           producer-BN+ReLU on the input, plus per-tile BN partial statistics.
# ---------------------------------------------------------------------------------------
def _conv3x3_kernel(x_hbm, w_ref, scale_ref, shift_ref, out_ref, stats_ref,
                    buf, sem, *, TH, W, Wq, H, nH, apply_act):
    # x_hbm:  (N, H, W, Cp) f32, untiled HBM ref (memory_space=pl.ANY)
    # w_ref:  (3, 3, Cp, Cop) f32 weights (full block, grid-invariant)
    # scale_ref/shift_ref: (1, Cp) folded BN affine of the *producer* layer (apply_act)
    # out_ref: (TH, W, Cop) raw conv output; stats_ref: (2, Cop) [sum, centred M2]
    # buf: VMEM scratch (TH+2, Wq, Cp) holding the zero-padded haloed input tile.
    n = pl.program_id(0)
    i = pl.program_id(1)
    r0 = i * TH

    # --- manual DMA straight from HBM: TH main rows + conditional 1-row halos ---------
    main = pltpu.make_async_copy(x_hbm.at[n, pl.ds(r0, TH)],
                                 buf.at[pl.ds(1, TH), pl.ds(0, W)], sem.at[0])
    main.start()

    @pl.when(i > 0)
    def _():
        pltpu.make_async_copy(x_hbm.at[n, pl.ds(r0 - 1, 1)],
                              buf.at[pl.ds(0, 1), pl.ds(0, W)], sem.at[1]).start()

    @pl.when(i < nH - 1)
    def _():
        pltpu.make_async_copy(x_hbm.at[n, pl.ds(r0 + TH, 1)],
                              buf.at[pl.ds(TH + 1, 1), pl.ds(0, W)], sem.at[2]).start()

    main.wait()

    @pl.when(i > 0)
    def _():
        pltpu.make_async_copy(x_hbm.at[n, pl.ds(r0 - 1, 1)],
                              buf.at[pl.ds(0, 1), pl.ds(0, W)], sem.at[1]).wait()

    @pl.when(i < nH - 1)
    def _():
        pltpu.make_async_copy(x_hbm.at[n, pl.ds(r0 + TH, 1)],
                              buf.at[pl.ds(TH + 1, 1), pl.ds(0, W)], sem.at[2]).wait()

    Cp = buf.shape[-1]
    Cop = out_ref.shape[-1]

    # --- fused producer BatchNorm + ReLU on the *input* tile (kills a streaming pass) --
    if apply_act:
        sc = scale_ref[...].reshape(1, 1, Cp)
        sh = shift_ref[...].reshape(1, 1, Cp)
        buf[...] = jnp.maximum(buf[...] * sc + sh, 0.0)

    # --- re-establish the 'same' zero padding AFTER the affine (relu(shift) != 0) and
    #     scrub stale scratch: right padding columns always, halo rows at image borders.
    buf[:, W:, :] = jnp.zeros((TH + 2, Wq - W, Cp), jnp.float32)

    @pl.when(i == 0)
    def _():
        buf[0:1, :, :] = jnp.zeros((1, Wq, Cp), jnp.float32)

    @pl.when(i == nH - 1)
    def _():
        buf[TH + 1:TH + 2, :, :] = jnp.zeros((1, Wq, Cp), jnp.float32)

    # --- 9 per-tap K=Cp matmuls on the MXU (f32 accumulate).  Every reshape/slice stays
    #     (8,128)-tile-aligned; the horizontal (dx) shift is applied to the matmul result
    #     with an XLU roll, and the wrapped elements land on zeroed padding columns. -----
    M = TH * Wq
    acc = None
    for dy in range(3):
        lhs = buf[dy:dy + TH].reshape(M, Cp)
        for dx in range(3):
            r = jnp.dot(lhs, w_ref[dy, dx], preferred_element_type=jnp.float32)
            shift_amt = (1 - dx) % M
            if shift_amt:
                r = pltpu.roll(r, shift_amt, axis=0)
            acc = r if acc is None else acc + r

    y = acc.reshape(TH, Wq, Cop)[:, :W, :]
    out_ref[...] = y.astype(out_ref.dtype)

    # --- per-tile BN partials: [sum, mean-centred M2] (robust parallel-variance combine)
    yf = y.reshape(TH * W, Cop)
    s = jnp.sum(yf, axis=0, keepdims=True)
    mu = s * (1.0 / (TH * W))
    d = yf - mu
    m2 = jnp.sum(d * d, axis=0, keepdims=True)
    stats_ref[...] = jnp.concatenate([s, m2], axis=0)


def _conv3x3(x, w_r, scale, shift, apply_act):
    """x: (N, H, W, Cp) f32; w_r: (3, 3, Cp, Cop) f32.
    Returns raw conv output (N, H, W, Cop) and per-tile stats (N, nH, 2, Cop)."""
    N, H, W, Cp = x.shape
    Cop = w_r.shape[-1]
    Wq = _round_up(W + 2, 8)                 # right-padded, sublane-aligned tile width

    budget, limit = _vmem_budget_and_limit()
    per_row = 4 * (2 * Wq * Cp + 3 * Wq * Cop + 2 * W * Cop)        # buf/lhs + matmul tmp + out x2
    fixed = 2 * 9 * Cp * Cop * 4 + 8 * Wq * Cp * 4                  # weights x2 (double-buffered) + halos
    TH = _pick_rows(H, N, per_row, fixed, budget, halo=2)
    nH = H // TH

    kernel = functools.partial(_conv3x3_kernel, TH=TH, W=W, Wq=Wq, H=H, nH=nH,
                               apply_act=apply_act)

    flops = 2 * N * H * W * 9 * Cp * Cop
    bytes_accessed = 4 * (N * H * W * (Cp + Cop) + 9 * Cp * Cop + N * nH * 2 * Cop)

    return pl.pallas_call(
        kernel,
        grid=(N, nH),
        in_specs=[
            pl.BlockSpec(memory_space=pl.ANY),                          # activation stays in HBM
            pl.BlockSpec((3, 3, Cp, Cop), lambda n, i: (0, 0, 0, 0)),   # weights (grid-invariant)
            pl.BlockSpec((1, Cp), lambda n, i: (0, 0)),
            pl.BlockSpec((1, Cp), lambda n, i: (0, 0)),
        ],
        out_specs=(
            pl.BlockSpec((None, TH, W, Cop), lambda n, i: (n, i, 0, 0)),
            pl.BlockSpec((None, None, 2, Cop), lambda n, i: (n, i, 0, 0)),
        ),
        out_shape=(
            jax.ShapeDtypeStruct((N, H, W, Cop), jnp.float32),
            jax.ShapeDtypeStruct((N, nH, 2, Cop), jnp.float32),
        ),
        scratch_shapes=[
            pltpu.VMEM((TH + 2, Wq, Cp), jnp.float32),
            pltpu.SemaphoreType.DMA((3,)),
        ],
        compiler_params=pltpu.CompilerParams(
            dimension_semantics=("parallel", "parallel"),
            vmem_limit_bytes=limit),
        cost_estimate=pl.CostEstimate(flops=flops, transcendentals=0,
                                      bytes_accessed=bytes_accessed),
    )(x, w_r, scale, shift)


# ---------------------------------------------------------------------------------------
# Kernel 2: final tiled BatchNorm (pre-folded scale/shift) + ReLU, fused with the channel
#           un-padding slice (only layer 2 needs a standalone pass).
# ---------------------------------------------------------------------------------------
def _bn_relu_kernel(x_ref, scale_ref, shift_ref, out_ref):
    c_out = out_ref.shape[-1]
    y = x_ref[...] * scale_ref[...].reshape(1, 1, -1) + shift_ref[...].reshape(1, 1, -1)
    y = jnp.maximum(y, 0.0)
    out_ref[...] = y[:, :, :c_out].astype(out_ref.dtype)


def _bn_relu(x, scale, shift, c_out):
    N, H, W, Cp = x.shape
    budget, limit = _vmem_budget_and_limit()
    per_row = 4 * W * (4 * Cp + 2 * c_out)
    TH = _pick_rows(H, N, per_row, 0, budget)
    nH = H // TH
    return pl.pallas_call(
        _bn_relu_kernel,
        grid=(N, nH),
        in_specs=[
            pl.BlockSpec((None, TH, W, Cp), lambda n, i: (n, i, 0, 0)),
            pl.BlockSpec((1, Cp), lambda n, i: (0, 0)),
            pl.BlockSpec((1, Cp), lambda n, i: (0, 0)),
        ],
        out_specs=pl.BlockSpec((None, TH, W, c_out), lambda n, i: (n, i, 0, 0)),
        out_shape=jax.ShapeDtypeStruct((N, H, W, c_out), jnp.float32),
        compiler_params=pltpu.CompilerParams(
            dimension_semantics=("parallel", "parallel"),
            vmem_limit_bytes=limit),
    )(x, scale, shift)


# ---------------------------------------------------------------------------------------
# Tiny per-channel glue (XLA): numerically-robust stats reduction -> folded BN scale/shift.
# ---------------------------------------------------------------------------------------
def _bn_fold(stats, gamma, beta, N, H, W, Cp):
    # stats: (N, nH, 2, Cp) per-tile [sum, centred M2]; training-mode (biased) variance.
    nH = stats.shape[1]
    tile_cnt = (H // nH) * W
    total = N * H * W
    sums = stats[:, :, 0, :]
    m2s = stats[:, :, 1, :]
    mean = jnp.sum(sums, axis=(0, 1)) / total
    tile_mean = sums / tile_cnt
    m2 = jnp.sum(m2s, axis=(0, 1)) + tile_cnt * jnp.sum((tile_mean - mean) ** 2, axis=(0, 1))
    var = jnp.maximum(m2 / total, 0.0)
    g = jnp.zeros((Cp,), jnp.float32).at[:gamma.shape[0]].set(gamma.astype(jnp.float32))
    b = jnp.zeros((Cp,), jnp.float32).at[:beta.shape[0]].set(beta.astype(jnp.float32))
    scale = g * lax.rsqrt(var + EPS)          # padded channels: gamma=0 -> scale=0, shift=0
    shift = b - mean * scale
    return scale.reshape(1, Cp), shift.reshape(1, Cp)


def _prep_weights(w_oihw, cin_p, cout_p):
    cout, cin, kh, kw = w_oihw.shape
    w = jnp.transpose(w_oihw, (2, 3, 1, 0)).astype(jnp.float32)       # OIHW -> (kh, kw, Cin, Cout)
    return jnp.pad(w, ((0, 0), (0, 0), (0, cin_p - cin), (0, cout_p - cout)))


def unet_conv_block(x_nchw, w1_oihw, g1, b1, w2_oihw, g2, b2):
    """NCHW in / NCHW out, matching the PyTorch UNetConvBlock forward."""
    N, Cin, H, W = x_nchw.shape
    C1 = w1_oihw.shape[0]
    C2 = w2_oihw.shape[0]
    cin_p = _round_up(Cin, LANE)
    c1_p = _round_up(C1, LANE)
    c2_p = _round_up(C2, LANE)

    x = jnp.transpose(x_nchw, (0, 2, 3, 1)).astype(jnp.float32)       # NHWC
    x = jnp.pad(x, ((0, 0), (0, 0), (0, 0), (0, cin_p - Cin)))        # lane-pad channels

    w1 = _prep_weights(w1_oihw, cin_p, c1_p)
    w2 = _prep_weights(w2_oihw, c1_p, c2_p)

    ident_s = jnp.ones((1, cin_p), jnp.float32)
    ident_b = jnp.zeros((1, cin_p), jnp.float32)

    # conv1 (+ BN1 partials).  BN1 + ReLU are fused into conv2's input load below.
    raw1, st1 = _conv3x3(x, w1, ident_s, ident_b, apply_act=False)
    scale1, shift1 = _bn_fold(st1, g1, b1, N, H, W, c1_p)

    # conv2 with fused (BN1+ReLU) on its input, plus BN2 partials.
    raw2, st2 = _conv3x3(raw1, w2, scale1, shift1, apply_act=True)
    scale2, shift2 = _bn_fold(st2, g2, b2, N, H, W, c2_p)

    # final BN2 + ReLU, fused with the channel un-padding slice.
    out = _bn_relu(raw2, scale2, shift2, C2)
    return jnp.transpose(out, (0, 3, 1, 2)).astype(x_nchw.dtype)      # back to NCHW


def reference(x_nchw, w1, g1, b1, w2, g2, b2):
    """Pure-JAX reference mirroring the PyTorch semantics (f32-accurate conv)."""
    def conv(x, w):
        return lax.conv_general_dilated(
            x, w, window_strides=(1, 1), padding='SAME',
            dimension_numbers=('NCHW', 'OIHW', 'NCHW'),
            precision=lax.Precision.HIGHEST)

    def bn_relu(x, g, b):
        mean = jnp.mean(x, axis=(0, 2, 3), keepdims=True)
        var = jnp.mean((x - mean) ** 2, axis=(0, 2, 3), keepdims=True)
        y = (x - mean) * lax.rsqrt(var + EPS)
        y = y * g.reshape(1, -1, 1, 1) + b.reshape(1, -1, 1, 1)
        return jnp.maximum(y, 0.0)

    h = bn_relu(conv(x_nchw, w1), g1, b1)
    return bn_relu(conv(h, w2), g2, b2)


if __name__ == "__main__":
    key = jax.random.PRNGKey(0)
    N, Cin, H, W = 2, 4, 16, 16
    C1, C2, K = 8, 8, 3

    k1, k2, kx = jax.random.split(key, 3)
    # init_conv_weights: weight ~ N(0, sqrt(2 / (in_channels * k * k))), no bias.
    std1 = float(np.sqrt(2.0 / (Cin * K * K)))
    std2 = float(np.sqrt(2.0 / (C1 * K * K)))
    w1 = jax.random.normal(k1, (C1, Cin, K, K), jnp.float32) * std1   # OIHW
    w2 = jax.random.normal(k2, (C2, C1, K, K), jnp.float32) * std2
    # BatchNorm2d default affine params: gamma=1, beta=0.
    g1 = jnp.ones((C1,), jnp.float32); b1 = jnp.zeros((C1,), jnp.float32)
    g2 = jnp.ones((C2,), jnp.float32); b2 = jnp.zeros((C2,), jnp.float32)

    x = jax.random.normal(kx, (N, Cin, H, W), jnp.float32)

    fn = jax.jit(unet_conv_block)
    out = jax.block_until_ready(fn(x, w1, g1, b1, w2, g2, b2))

    ref = reference(x, w1, g1, b1, w2, g2, b2)
    np.testing.assert_allclose(np.asarray(out), np.asarray(ref), atol=2e-3, rtol=2e-3)

    print("KERNEL_OK")
</pallas_src>

<mosaic_0001>
module attributes {stable_mosaic.version = 11 : i64} {
  func.func @_bn_relu_kernel(%arg0: i32, %arg1: i32, %arg2: memref<1x8x16x128xf32, #tpu.memory_space<vmem>>, %arg3: memref<1x128xf32, #tpu.memory_space<vmem>>, %arg4: memref<1x128xf32, #tpu.memory_space<vmem>>, %arg5: memref<1x8x16x8xf32, #tpu.memory_space<vmem>>) attributes {dimension_semantics = [#tpu.dimension_semantics<parallel>, #tpu.dimension_semantics<parallel>], iteration_bounds = array<i64: 2, 2>, scalar_prefetch = 0 : i64, scratch_operands = 0 : i64, tpu.core_type = #tpu.core_type<tc>, window_params = [{transform_indices = @transform_0, window_bounds = array<i64: 1, 8, 16, 128>}, {pipeline_mode = #tpu.pipeline_mode<synchronous>, transform_indices = @transform_1, window_bounds = array<i64: 1, 128>}, {pipeline_mode = #tpu.pipeline_mode<synchronous>, transform_indices = @transform_2, window_bounds = array<i64: 1, 128>}, {transform_indices = @transform_3, window_bounds = array<i64: 1, 8, 16, 8>}]} {
    %c0 = arith.constant 0 : index
    %c0_0 = arith.constant 0 : index
    %c0_1 = arith.constant 0 : index
    %c0_2 = arith.constant 0 : index
    %0 = vector.load %arg2[%c0, %c0_0, %c0_1, %c0_2] : memref<1x8x16x128xf32, #tpu.memory_space<vmem>>, vector<1x8x16x128xf32>
    %1 = vector.shape_cast %0 : vector<1x8x16x128xf32> to vector<8x16x128xf32>
    %c0_3 = arith.constant 0 : index
    %c0_4 = arith.constant 0 : index
    %2 = vector.load %arg3[%c0_3, %c0_4] : memref<1x128xf32, #tpu.memory_space<vmem>>, vector<1x128xf32>
    %3 = vector.shape_cast %2 : vector<1x128xf32> to vector<1x1x128xf32>
    %4 = vector.broadcast %3 : vector<1x1x128xf32> to vector<8x16x128xf32>
    %5 = arith.mulf %1, %4 : vector<8x16x128xf32>
    %c0_5 = arith.constant 0 : index
    %c0_6 = arith.constant 0 : index
    %6 = vector.load %arg4[%c0_5, %c0_6] : memref<1x128xf32, #tpu.memory_space<vmem>>, vector<1x128xf32>
    %7 = vector.shape_cast %6 : vector<1x128xf32> to vector<1x1x128xf32>
    %8 = vector.broadcast %7 : vector<1x1x128xf32> to vector<8x16x128xf32>
    %9 = arith.addf %5, %8 : vector<8x16x128xf32>
    %cst = arith.constant 0.000000e+00 : f32
    %10 = vector.broadcast %cst : f32 to vector<8x16x128xf32>
    %11 = arith.maximumf %9, %10 : vector<8x16x128xf32>
    %12 = vector.extract_strided_slice %11 {offsets = [0, 0, 0], sizes = [8, 16, 8], strides = [1, 1, 1]} : vector<8x16x128xf32> to vector<8x16x8xf32>
    %c0_7 = arith.constant 0 : index
    %c0_8 = arith.constant 0 : index
    %c0_9 = arith.constant 0 : index
    %c0_10 = arith.constant 0 : index
    %13 = vector.load %arg5[%c0_7, %c0_8, %c0_9, %c0_10] : memref<1x8x16x8xf32, #tpu.memory_space<vmem>>, vector<1x8x16x8xf32>
    %14 = vector.shape_cast %13 : vector<1x8x16x8xf32> to vector<8x16x8xf32>
    %15 = vector.shape_cast %12 : vector<8x16x8xf32> to vector<1x8x16x8xf32>
    tpu.vector_store %arg5[%c0_7, %c0_8, %c0_9, %c0_10], %15 {strides = array<i32>} : memref<1x8x16x8xf32, #tpu.memory_space<vmem>>, vector<1x8x16x8xf32>,
    return
  }
  func.func @transform_0(%arg0: i32, %arg1: i32) -> (i32, i32, i32, i32) {
    %c0_i32 = arith.constant 0 : i32
    %c0_i32_0 = arith.constant 0 : i32
    %c0_i32_1 = arith.constant 0 : i32
    return %arg0, %arg1, %c0_i32, %c0_i32_0 : i32, i32, i32, i32
  }
  func.func @transform_1(%arg0: i32, %arg1: i32) -> (i32, i32) {
    %c0_i32 = arith.constant 0 : i32
    %c0_i32_0 = arith.constant 0 : i32
    %c0_i32_1 = arith.constant 0 : i32
    return %c0_i32, %c0_i32_0 : i32, i32
  }
  func.func @transform_2(%arg0: i32, %arg1: i32) -> (i32, i32) {
    %c0_i32 = arith.constant 0 : i32
    %c0_i32_0 = arith.constant 0 : i32
    %c0_i32_1 = arith.constant 0 : i32
    return %c0_i32, %c0_i32_0 : i32, i32
  }
  func.func @transform_3(%arg0: i32, %arg1: i32) -> (i32, i32, i32, i32) {
    %c0_i32 = arith.constant 0 : i32
    %c0_i32_0 = arith.constant 0 : i32
    %c0_i32_1 = arith.constant 0 : i32
    return %arg0, %arg1, %c0_i32, %c0_i32_0 : i32, i32, i32, i32
  }
}

module attributes {stable_mosaic.version = 11 : i64} {
  func.func @_conv3x3_kernel(%arg0: i32, %arg1: i32, %arg2: memref<2x16x16x128xf32, #tpu.memory_space<any>>, %arg3: memref<3x3x128x128xf32, #tpu.memory_space<vmem>>, %arg4: memref<1x128xf32, #tpu.memory_space<vmem>>, %arg5: memref<1x128xf32, #tpu.memory_space<vmem>>, %arg6: memref<1x8x16x128xf32, #tpu.memory_space<vmem>>, %arg7: memref<1x1x2x128xf32, #tpu.memory_space<vmem>>, %arg8: memref<10x24x128xf32, #tpu.memory_space<vmem>>, %arg9: memref<3x!tpu.dma_semaphore, #tpu.memory_space<semaphore_mem>>) attributes {dimension_semantics = [#tpu.dimension_semantics<parallel>, #tpu.dimension_semantics<parallel>], iteration_bounds = array<i64: 2, 2>, scalar_prefetch = 0 : i64, scratch_operands = 2 : i64, tpu.core_type = #tpu.core_type<tc>, window_params = [{}, {pipeline_mode = #tpu.pipeline_mode<synchronous>, transform_indices = @transform_1, window_bounds = array<i64: 3, 3, 128, 128>}, {pipeline_mode = #tpu.pipeline_mode<synchronous>, transform_indices = @transform_2, window_bounds = array<i64: 1, 128>}, {pipeline_mode = #tpu.pipeline_mode<synchronous>, transform_indices = @transform_3, window_bounds = array<i64: 1, 128>}, {transform_indices = @transform_4, window_bounds = array<i64: 1, 8, 16, 128>}, {transform_indices = @transform_5, window_bounds = array<i64: 1, 1, 2, 128>}]} {
    %c8_i32 = arith.constant 8 : i32
    %0 = arith.muli %arg1, %c8_i32 : i32
    %c0_i32 = arith.constant 0 : i32
    %c0_i32_0 = arith.constant 0 : i32
    %c0_i32_1 = arith.constant 0 : i32
    %1 = tpu.memref_slice %arg2[%arg0, %0, %c0_i32_0, %c0_i32_1] : memref<2x16x16x128xf32, #tpu.memory_space<any>> -> memref<1x8x16x128xf32, #tpu.memory_space<any>>
    %2 = tpu.memref_squeeze %1 : memref<1x8x16x128xf32, #tpu.memory_space<any>> -> memref<8x16x128xf32, #tpu.memory_space<any>>
    %c1_i32 = arith.constant 1 : i32
    %c0_i32_2 = arith.constant 0 : i32
    %c0_i32_3 = arith.constant 0 : i32
    %3 = tpu.memref_slice %arg8[%c1_i32, %c0_i32_2, %c0_i32_3] : memref<10x24x128xf32, #tpu.memory_space<vmem>> -> memref<8x16x128xf32, #tpu.memory_space<vmem>>
    %4 = tpu.memref_slice %arg9[%c0_i32] : memref<3x!tpu.dma_semaphore, #tpu.memory_space<semaphore_mem>> -> memref<1x!tpu.dma_semaphore, #tpu.memory_space<semaphore_mem>>
    %5 = tpu.memref_squeeze %4 : memref<1x!tpu.dma_semaphore, #tpu.memory_space<semaphore_mem>> -> memref<!tpu.dma_semaphore, #tpu.memory_space<semaphore_mem>>
    tpu.enqueue_dma source(%2 : memref<8x16x128xf32, #tpu.memory_space<any>>) target(%3 : memref<8x16x128xf32, #tpu.memory_space<vmem>>) target_semaphore(%5 : memref<!tpu.dma_semaphore, #tpu.memory_space<semaphore_mem>>)
    %c0_i32_4 = arith.constant 0 : i32
    %6 = arith.cmpi sgt, %arg1, %c0_i32_4 : i32
    %7 = arith.extui %6 : i1 to i32
    %c0_i32_5 = arith.constant 0 : i32
    %8 = arith.cmpi ne, %7, %c0_i32_5 : i32
    scf.if %8 {
      %c1_i32_91 = arith.constant 1 : i32
      %97 = arith.subi %0, %c1_i32_91 : i32
      %c1_i32_92 = arith.constant 1 : i32
      %c0_i32_93 = arith.constant 0 : i32
      %c0_i32_94 = arith.constant 0 : i32
      %98 = tpu.memref_slice %arg2[%arg0, %97, %c0_i32_93, %c0_i32_94] : memref<2x16x16x128xf32, #tpu.memory_space<any>> -> memref<1x1x16x128xf32, #tpu.memory_space<any>>
      %99 = tpu.memref_squeeze %98 : memref<1x1x16x128xf32, #tpu.memory_space<any>> -> memref<1x16x128xf32, #tpu.memory_space<any>>
      %c0_i32_95 = arith.constant 0 : i32
      %c0_i32_96 = arith.constant 0 : i32
      %c0_i32_97 = arith.constant 0 : i32
      %100 = tpu.memref_slice %arg8[%c0_i32_95, %c0_i32_96, %c0_i32_97] : memref<10x24x128xf32, #tpu.memory_space<vmem>> -> memref<1x16x128xf32, #tpu.memory_space<vmem>>
      %101 = tpu.memref_slice %arg9[%c1_i32_92] : memref<3x!tpu.dma_semaphore, #tpu.memory_space<semaphore_mem>> -> memref<1x!tpu.dma_semaphore, #tpu.memory_space<semaphore_mem>>
      %102 = tpu.memref_squeeze %101 : memref<1x!tpu.dma_semaphore, #tpu.memory_space<semaphore_mem>> -> memref<!tpu.dma_semaphore, #tpu.memory_space<semaphore_mem>>
      tpu.enqueue_dma source(%99 : memref<1x16x128xf32, #tpu.memory_space<any>>) target(%100 : memref<1x16x128xf32, #tpu.memory_space<vmem>>) target_semaphore(%102 : memref<!tpu.dma_semaphore, #tpu.memory_space<semaphore_mem>>)
    } else {
    }
    %c1_i32_6 = arith.constant 1 : i32
    %9 = arith.cmpi slt, %arg1, %c1_i32_6 : i32
    %10 = arith.extui %9 : i1 to i32
    %c0_i32_7 = arith.constant 0 : i32
    %11 = arith.cmpi ne, %10, %c0_i32_7 : i32
    scf.if %11 {
      %c8_i32_91 = arith.constant 8 : i32
      %97 = arith.addi %0, %c8_i32_91 : i32
      %c2_i32 = arith.constant 2 : i32
      %c0_i32_92 = arith.constant 0 : i32
      %c0_i32_93 = arith.constant 0 : i32
      %98 = tpu.memref_slice %arg2[%arg0, %97, %c0_i32_92, %c0_i32_93] : memref<2x16x16x128xf32, #tpu.memory_space<any>> -> memref<1x1x16x128xf32, #tpu.memory_space<any>>
      %99 = tpu.memref_squeeze %98 : memref<1x1x16x128xf32, #tpu.memory_space<any>> -> memref<1x16x128xf32, #tpu.memory_space<any>>
      %c9_i32 = arith.constant 9 : i32
      %c0_i32_94 = arith.constant 0 : i32
      %c0_i32_95 = arith.constant 0 : i32
      %100 = tpu.memref_slice %arg8[%c9_i32, %c0_i32_94, %c0_i32_95] : memref<10x24x128xf32, #tpu.memory_space<vmem>> -> memref<1x16x128xf32, #tpu.memory_space<vmem>>
      %101 = tpu.memref_slice %arg9[%c2_i32] : memref<3x!tpu.dma_semaphore, #tpu.memory_space<semaphore_mem>> -> memref<1x!tpu.dma_semaphore, #tpu.memory_space<semaphore_mem>>
      %102 = tpu.memref_squeeze %101 : memref<1x!tpu.dma_semaphore, #tpu.memory_space<semaphore_mem>> -> memref<!tpu.dma_semaphore, #tpu.memory_space<semaphore_mem>>
      tpu.enqueue_dma source(%99 : memref<1x16x128xf32, #tpu.memory_space<any>>) target(%100 : memref<1x16x128xf32, #tpu.memory_space<vmem>>) target_semaphore(%102 : memref<!tpu.dma_semaphore, #tpu.memory_space<semaphore_mem>>)
    } else {
    }
    %c0_i32_8 = arith.constant 0 : i32
    %c0_i32_9 = arith.constant 0 : i32
    %c0_i32_10 = arith.constant 0 : i32
    %12 = tpu.memref_slice %arg2[%arg0, %0, %c0_i32_9, %c0_i32_10] : memref<2x16x16x128xf32, #tpu.memory_space<any>> -> memref<1x8x16x128xf32, #tpu.memory_space<any>>
    %13 = tpu.memref_squeeze %12 : memref<1x8x16x128xf32, #tpu.memory_space<any>> -> memref<8x16x128xf32, #tpu.memory_space<any>>
    %c1_i32_11 = arith.constant 1 : i32
    %c0_i32_12 = arith.constant 0 : i32
    %c0_i32_13 = arith.constant 0 : i32
    %14 = tpu.memref_slice %arg8[%c1_i32_11, %c0_i32_12, %c0_i32_13] : memref<10x24x128xf32, #tpu.memory_space<vmem>> -> memref<8x16x128xf32, #tpu.memory_space<vmem>>
    %15 = tpu.memref_slice %arg9[%c0_i32_8] : memref<3x!tpu.dma_semaphore, #tpu.memory_space<semaphore_mem>> -> memref<1x!tpu.dma_semaphore, #tpu.memory_space<semaphore_mem>>
    %16 = tpu.memref_squeeze %15 : memref<1x!tpu.dma_semaphore, #tpu.memory_space<semaphore_mem>> -> memref<!tpu.dma_semaphore, #tpu.memory_space<semaphore_mem>>
    tpu.wait_dma2 semaphore(%16 : memref<!tpu.dma_semaphore, #tpu.memory_space<semaphore_mem>>) src(%13 : memref<8x16x128xf32, #tpu.memory_space<any>>) dst(%14 : memref<8x16x128xf32, #tpu.memory_space<vmem>>)
    %c0_i32_14 = arith.constant 0 : i32
    %17 = arith.cmpi sgt, %arg1, %c0_i32_14 : i32
    %18 = arith.extui %17 : i1 to i32
    %c0_i32_15 = arith.constant 0 : i32
    %19 = arith.cmpi ne, %18, %c0_i32_15 : i32
    scf.if %19 {
      %c1_i32_91 = arith.constant 1 : i32
      %97 = arith.subi %0, %c1_i32_91 : i32
      %c1_i32_92 = arith.constant 1 : i32
      %c0_i32_93 = arith.constant 0 : i32
      %c0_i32_94 = arith.constant 0 : i32
      %98 = tpu.memref_slice %arg2[%arg0, %97, %c0_i32_93, %c0_i32_94] : memref<2x16x16x128xf32, #tpu.memory_space<any>> -> memref<1x1x16x128xf32, #tpu.memory_space<any>>
      %99 = tpu.memref_squeeze %98 : memref<1x1x16x128xf32, #tpu.memory_space<any>> -> memref<1x16x128xf32, #tpu.memory_space<any>>
      %c0_i32_95 = arith.constant 0 : i32
      %c0_i32_96 = arith.constant 0 : i32
      %c0_i32_97 = arith.constant 0 : i32
      %100 = tpu.memref_slice %arg8[%c0_i32_95, %c0_i32_96, %c0_i32_97] : memref<10x24x128xf32, #tpu.memory_space<vmem>> -> memref<1x16x128xf32, #tpu.memory_space<vmem>>
      %101 = tpu.memref_slice %arg9[%c1_i32_92] : memref<3x!tpu.dma_semaphore, #tpu.memory_space<semaphore_mem>> -> memref<1x!tpu.dma_semaphore, #tpu.memory_space<semaphore_mem>>
      %102 = tpu.memref_squeeze %101 : memref<1x!tpu.dma_semaphore, #tpu.memory_space<semaphore_mem>> -> memref<!tpu.dma_semaphore, #tpu.memory_space<semaphore_mem>>
      tpu.wait_dma2 semaphore(%102 : memref<!tpu.dma_semaphore, #tpu.memory_space<semaphore_mem>>) src(%99 : memref<1x16x128xf32, #tpu.memory_space<any>>) dst(%100 : memref<1x16x128xf32, #tpu.memory_space<vmem>>)
    } else {
    }
    %c1_i32_16 = arith.constant 1 : i32
    %20 = arith.cmpi slt, %arg1, %c1_i32_16 : i32
    %21 = arith.extui %20 : i1 to i32
    %c0_i32_17 = arith.constant 0 : i32
    %22 = arith.cmpi ne, %21, %c0_i32_17 : i32
    scf.if %22 {
      %c8_i32_91 = arith.constant 8 : i32
      %97 = arith.addi %0, %c8_i32_91 : i32
      %c2_i32 = arith.constant 2 : i32
      %c0_i32_92 = arith.constant 0 : i32
      %c0_i32_93 = arith.constant 0 : i32
      %98 = tpu.memref_slice %arg2[%arg0, %97, %c0_i32_92, %c0_i32_93] : memref<2x16x16x128xf32, #tpu.memory_space<any>> -> memref<1x1x16x128xf32, #tpu.memory_space<any>>
      %99 = tpu.memref_squeeze %98 : memref<1x1x16x128xf32, #tpu.memory_space<any>> -> memref<1x16x128xf32, #tpu.memory_space<any>>
      %c9_i32 = arith.constant 9 : i32
      %c0_i32_94 = arith.constant 0 : i32
      %c0_i32_95 = arith.constant 0 : i32
      %100 = tpu.memref_slice %arg8[%c9_i32, %c0_i32_94, %c0_i32_95] : memref<10x24x128xf32, #tpu.memory_space<vmem>> -> memref<1x16x128xf32, #tpu.memory_space<vmem>>
      %101 = tpu.memref_slice %arg9[%c2_i32] : memref<3x!tpu.dma_semaphore, #tpu.memory_space<semaphore_mem>> -> memref<1x!tpu.dma_semaphore, #tpu.memory_space<semaphore_mem>>
      %102 = tpu.memref_squeeze %101 : memref<1x!tpu.dma_semaphore, #tpu.memory_space<semaphore_mem>> -> memref<!tpu.dma_semaphore, #tpu.memory_space<semaphore_mem>>
      tpu.wait_dma2 semaphore(%102 : memref<!tpu.dma_semaphore, #tpu.memory_space<semaphore_mem>>) src(%99 : memref<1x16x128xf32, #tpu.memory_space<any>>) dst(%100 : memref<1x16x128xf32, #tpu.memory_space<vmem>>)
    } else {
    }
    %cst = arith.constant 0.000000e+00 : f32
    %23 = vector.broadcast %cst : f32 to vector<10x8x128xf32>
    %c0 = arith.constant 0 : index
    %c16 = arith.constant 16 : index
    %c0_18 = arith.constant 0 : index
    %24 = vector.load %arg8[%c0, %c16, %c0_18] : memref<10x24x128xf32, #tpu.memory_space<vmem>>, vector<10x8x128xf32>
    tpu.vector_store %arg8[%c0, %c16, %c0_18], %23 {strides = array<i32>} : memref<10x24x128xf32, #tpu.memory_space<vmem>>, vector<10x8x128xf32>,
    %c0_i32_19 = arith.constant 0 : i32
    %25 = arith.cmpi eq, %arg1, %c0_i32_19 : i32
    %26 = arith.extui %25 : i1 to i32
    %c0_i32_20 = arith.constant 0 : i32
    %27 = arith.cmpi ne, %26, %c0_i32_20 : i32
    scf.if %27 {
      %cst_91 = arith.constant 0.000000e+00 : f32
      %97 = vector.broadcast %cst_91 : f32 to vector<1x24x128xf32>
      %c0_92 = arith.constant 0 : index
      %c0_93 = arith.constant 0 : index
      %c0_94 = arith.constant 0 : index
      %98 = vector.load %arg8[%c0_92, %c0_93, %c0_94] : memref<10x24x128xf32, #tpu.memory_space<vmem>>, vector<1x24x128xf32>
      tpu.vector_store %arg8[%c0_92, %c0_93, %c0_94], %97 {strides = array<i32>} : memref<10x24x128xf32, #tpu.memory_space<vmem>>, vector<1x24x128xf32>,
    } else {
    }
    %c1_i32_21 = arith.constant 1 : i32
    %28 = arith.cmpi eq, %arg1, %c1_i32_21 : i32
    %29 = arith.extui %28 : i1 to i32
    %c0_i32_22 = arith.constant 0 : i32
    %30 = arith.cmpi ne, %29, %c0_i32_22 : i32
    scf.if %30 {
      %cst_91 = arith.constant 0.000000e+00 : f32
      %97 = vector.broadcast %cst_91 : f32 to vector<1x24x128xf32>
      %c9 = arith.constant 9 : index
      %c0_92 = arith.constant 0 : index
      %c0_93 = arith.constant 0 : index
      %98 = vector.load %arg8[%c9, %c0_92, %c0_93] : memref<10x24x128xf32, #tpu.memory_space<vmem>>, vector<1x24x128xf32>
      tpu.vector_store %arg8[%c9, %c0_92, %c0_93], %97 {strides = array<i32>} : memref<10x24x128xf32, #tpu.memory_space<vmem>>, vector<1x24x128xf32>,
    } else {
    }
    %c0_23 = arith.constant 0 : index
    %c0_24 = arith.constant 0 : index
    %c0_25 = arith.constant 0 : index
    %31 = vector.load %arg8[%c0_23, %c0_24, %c0_25] : memref<10x24x128xf32, #tpu.memory_space<vmem>>, vector<8x24x128xf32>
    %32 = vector.shape_cast %31 : vector<8x24x128xf32> to vector<192x128xf32>
    %c0_26 = arith.constant 0 : index
    %c0_27 = arith.constant 0 : index
    %c0_28 = arith.constant 0 : index
    %c0_29 = arith.constant 0 : index
    %33 = vector.load %arg3[%c0_26, %c0_27, %c0_28, %c0_29] : memref<3x3x128x128xf32, #tpu.memory_space<vmem>>, vector<1x1x128x128xf32>
    %34 = vector.shape_cast %33 : vector<1x1x128x128xf32> to vector<128x128xf32>
    %cst_30 = arith.constant dense<0.000000e+00> : vector<192x128xf32>
    %35 = tpu.matmul %32, %34, %cst_30 {dimension_numbers = #tpu.dot_dimension_numbers<[1], [0], [0], [1], [0, 0, 1, 1], [], []>} : vector<192x128xf32>, vector<128x128xf32>, vector<192x128xf32> -> vector<192x128xf32>
    %c1_i32_31 = arith.constant 1 : i32
    %36 = tpu.dynamic_rotate %35 by %c1_i32_31 dim 0 : vector<192x128xf32>, i32 -> vector<192x128xf32>
    %c0_32 = arith.constant 0 : index
    %c1 = arith.constant 1 : index
    %c0_33 = arith.constant 0 : index
    %c0_34 = arith.constant 0 : index
    %37 = vector.load %arg3[%c0_32, %c1, %c0_33, %c0_34] : memref<3x3x128x128xf32, #tpu.memory_space<vmem>>, vector<1x1x128x128xf32>
    %38 = vector.shape_cast %37 : vector<1x1x128x128xf32> to vector<128x128xf32>
    %cst_35 = arith.constant dense<0.000000e+00> : vector<192x128xf32>
    %39 = tpu.matmul %32, %38, %cst_35 {dimension_numbers = #tpu.dot_dimension_numbers<[1], [0], [0], [1], [0, 0, 1, 1], [], []>} : vector<192x128xf32>, vector<128x128xf32>, vector<192x128xf32> -> vector<192x128xf32>
    %40 = arith.addf %36, %39 : vector<192x128xf32>
    %c0_36 = arith.constant 0 : index
    %c2 = arith.constant 2 : index
    %c0_37 = arith.constant 0 : index
    %c0_38 = arith.constant 0 : index
    %41 = vector.load %arg3[%c0_36, %c2, %c0_37, %c0_38] : memref<3x3x128x128xf32, #tpu.memory_space<vmem>>, vector<1x1x128x128xf32>
    %42 = vector.shape_cast %41 : vector<1x1x128x128xf32> to vector<128x128xf32>
    %cst_39 = arith.constant dense<0.000000e+00> : vector<192x128xf32>
    %43 = tpu.matmul %32, %42, %cst_39 {dimension_numbers = #tpu.dot_dimension_numbers<[1], [0], [0], [1], [0, 0, 1, 1], [], []>} : vector<192x128xf32>, vector<128x128xf32>, vector<192x128xf32> -> vector<192x128xf32>
    %c191_i32 = arith.constant 191 : i32
    %44 = tpu.dynamic_rotate %43 by %c191_i32 dim 0 : vector<192x128xf32>, i32 -> vector<192x128xf32>
    %45 = arith.addf %40, %44 : vector<192x128xf32>
    %c1_40 = arith.constant 1 : index
    %c0_41 = arith.constant 0 : index
    %c0_42 = arith.constant 0 : index
    %46 = vector.load %arg8[%c1_40, %c0_41, %c0_42] : memref<10x24x128xf32, #tpu.memory_space<vmem>>, vector<8x24x128xf32>
    %47 = vector.shape_cast %46 : vector<8x24x128xf32> to vector<192x128xf32>
    %c1_43 = arith.constant 1 : index
    %c0_44 = arith.constant 0 : index
    %c0_45 = arith.constant 0 : index
    %c0_46 = arith.constant 0 : index
    %48 = vector.load %arg3[%c1_43, %c0_44, %c0_45, %c0_46] : memref<3x3x128x128xf32, #tpu.memory_space<vmem>>, vector<1x1x128x128xf32>
    %49 = vector.shape_cast %48 : vector<1x1x128x128xf32> to vector<128x128xf32>
    %cst_47 = arith.constant dense<0.000000e+00> : vector<192x128xf32>
    %50 = tpu.matmul %47, %49, %cst_47 {dimension_numbers = #tpu.dot_dimension_numbers<[1], [0], [0], [1], [0, 0, 1, 1], [], []>} : vector<192x128xf32>, vector<128x128xf32>, vector<192x128xf32> -> vector<192x128xf32>
    %c1_i32_48 = arith.constant 1 : i32
    %51 = tpu.dynamic_rotate %50 by %c1_i32_48 dim 0 : vector<192x128xf32>, i32 -> vector<192x128xf32>
    %52 = arith.addf %45, %51 : vector<192x128xf32>
    %c1_49 = arith.constant 1 : index
    %c1_50 = arith.constant 1 : index
    %c0_51 = arith.constant 0 : index
    %c0_52 = arith.constant 0 : index
    %53 = vector.load %arg3[%c1_49, %c1_50, %c0_51, %c0_52] : memref<3x3x128x128xf32, #tpu.memory_space<vmem>>, vector<1x1x128x128xf32>
    %54 = vector.shape_cast %53 : vector<1x1x128x128xf32> to vector<128x128xf32>
    %cst_53 = arith.constant dense<0.000000e+00> : vector<192x128xf32>
    %55 = tpu.matmul %47, %54, %cst_53 {dimension_numbers = #tpu.dot_dimension_numbers<[1], [0], [0], [1], [0, 0, 1, 1], [], []>} : vector<192x128xf32>, vector<128x128xf32>, vector<192x128xf32> -> vector<192x128xf32>
    %56 = arith.addf %52, %55 : vector<192x128xf32>
    %c1_54 = arith.constant 1 : index
    %c2_55 = arith.constant 2 : index
    %c0_56 = arith.constant 0 : index
    %c0_57 = arith.constant 0 : index
    %57 = vector.load %arg3[%c1_54, %c2_55, %c0_56, %c0_57] : memref<3x3x128x128xf32, #tpu.memory_space<vmem>>, vector<1x1x128x128xf32>
    %58 = vector.shape_cast %57 : vector<1x1x128x128xf32> to vector<128x128xf32>
    %cst_58 = arith.constant dense<0.000000e+00> : vector<192x128xf32>
    %59 = tpu.matmul %47, %58, %cst_58 {dimension_numbers = #tpu.dot_dimension_numbers<[1], [0], [0], [1], [0, 0, 1, 1], [], []>} : vector<192x128xf32>, vector<128x128xf32>, vector<192x128xf32> -> vector<192x128xf32>
    %c191_i32_59 = arith.constant 191 : i32
    %60 = tpu.dynamic_rotate %59 by %c191_i32_59 dim 0 : vector<192x128xf32>, i32 -> vector<192x128xf32>
    %61 = arith.addf %56, %60 : vector<192x128xf32>
    %c2_60 = arith.constant 2 : index
    %c0_61 = arith.constant 0 : index
    %c0_62 = arith.constant 0 : index
    %62 = vector.load %arg8[%c2_60, %c0_61, %c0_62] : memref<10x24x128xf32, #tpu.memory_space<vmem>>, vector<8x24x128xf32>
    %63 = vector.shape_cast %62 : vector<8x24x128xf32> to vector<192x128xf32>
    %c2_63 = arith.constant 2 : index
    %c0_64 = arith.constant 0 : index
    %c0_65 = arith.constant 0 : index
    %c0_66 = arith.constant 0 : index
    %64 = vector.load %arg3[%c2_63, %c0_64, %c0_65, %c0_66] : memref<3x3x128x128xf32, #tpu.memory_space<vmem>>, vector<1x1x128x128xf32>
    %65 = vector.shape_cast %64 : vector<1x1x128x128xf32> to vector<128x128xf32>
    %cst_67 = arith.constant dense<0.000000e+00> : vector<192x128xf32>
    %66 = tpu.matmul %63, %65, %cst_67 {dimension_numbers = #tpu.dot_dimension_numbers<[1], [0], [0], [1], [0, 0, 1, 1], [], []>} : vector<192x128xf32>, vector<128x128xf32>, vector<192x128xf32> -> vector<192x128xf32>
    %c1_i32_68 = arith.constant 1 : i32
    %67 = tpu.dynamic_rotate %66 by %c1_i32_68 dim 0 : vector<192x128xf32>, i32 -> vector<192x128xf32>
    %68 = arith.addf %61, %67 : vector<192x128xf32>
    %c2_69 = arith.constant 2 : index
    %c1_70 = arith.constant 1 : index
    %c0_71 = arith.constant 0 : index
    %c0_72 = arith.constant 0 : index
    %69 = vector.load %arg3[%c2_69, %c1_70, %c0_71, %c0_72] : memref<3x3x128x128xf32, #tpu.memory_space<vmem>>, vector<1x1x128x128xf32>
    %70 = vector.shape_cast %69 : vector<1x1x128x128xf32> to vector<128x128xf32>
    %cst_73 = arith.constant dense<0.000000e+00> : vector<192x128xf32>
    %71 = tpu.matmul %63, %70, %cst_73 {dimension_numbers = #tpu.dot_dimension_numbers<[1], [0], [0], [1], [0, 0, 1, 1], [], []>} : vector<192x128xf32>, vector<128x128xf32>, vector<192x128xf32> -> vector<192x128xf32>
    %72 = arith.addf %68, %71 : vector<192x128xf32>
    %c2_74 = arith.constant 2 : index
    %c2_75 = arith.constant 2 : index
    %c0_76 = arith.constant 0 : index
    %c0_77 = arith.constant 0 : index
    %73 = vector.load %arg3[%c2_74, %c2_75, %c0_76, %c0_77] : memref<3x3x128x128xf32, #tpu.memory_space<vmem>>, vector<1x1x128x128xf32>
    %74 = vector.shape_cast %73 : vector<1x1x128x128xf32> to vector<128x128xf32>
    %cst_78 = arith.constant dense<0.000000e+00> : vector<192x128xf32>
    %75 = tpu.matmul %63, %74, %cst_78 {dimension_numbers = #tpu.dot_dimension_numbers<[1], [0], [0], [1], [0, 0, 1, 1], [], []>} : vector<192x128xf32>, vector<128x128xf32>, vector<192x128xf32> -> vector<192x128xf32>
    %c191_i32_79 = arith.constant 191 : i32
    %76 = tpu.dynamic_rotate %75 by %c191_i32_79 dim 0 : vector<192x128xf32>, i32 -> vector<192x128xf32>
    %77 = arith.addf %72, %76 : vector<192x128xf32>
    %78 = vector.shape_cast %77 : vector<192x128xf32> to vector<8x24x128xf32>
    %79 = vector.extract_strided_slice %78 {offsets = [0, 0, 0], sizes = [8, 16, 128], strides = [1, 1, 1]} : vector<8x24x128xf32> to vector<8x16x128xf32>
    %c0_80 = arith.constant 0 : index
    %c0_81 = arith.constant 0 : index
    %c0_82 = arith.constant 0 : index
    %c0_83 = arith.constant 0 : index
    %80 = vector.load %arg6[%c0_80, %c0_81, %c0_82, %c0_83] : memref<1x8x16x128xf32, #tpu.memory_space<vmem>>, vector<1x8x16x128xf32>
    %81 = vector.shape_cast %80 : vector<1x8x16x128xf32> to vector<8x16x128xf32>
    %82 = vector.shape_cast %79 : vector<8x16x128xf32> to vector<1x8x16x128xf32>
    tpu.vector_store %arg6[%c0_80, %c0_81, %c0_82, %c0_83], %82 {strides = array<i32>} : memref<1x8x16x128xf32, #tpu.memory_space<vmem>>, vector<1x8x16x128xf32>,
    %83 = vector.shape_cast %79 : vector<8x16x128xf32> to vector<128x128xf32>
    %cst_84 = arith.constant dense<0.000000e+00> : vector<128xf32>
    %84 = vector.multi_reduction <add>, %83, %cst_84 [0] : vector<128x128xf32> to vector<128xf32>
    %85 = vector.shape_cast %84 : vector<128xf32> to vector<1x128xf32>
    %cst_85 = arith.constant 7.812500e-03 : f32
    %86 = vector.broadcast %cst_85 : f32 to vector<1x128xf32>
    %87 = arith.mulf %85, %86 : vector<1x128xf32>
    %88 = vector.broadcast %87 : vector<1x128xf32> to vector<128x128xf32>
    %89 = arith.subf %83, %88 : vector<128x128xf32>
    %90 = arith.mulf %89, %89 : vector<128x128xf32>
    %cst_86 = arith.constant dense<0.000000e+00> : vector<128xf32>
    %91 = vector.multi_reduction <add>, %90, %cst_86 [0] : vector<128x128xf32> to vector<128xf32>
    %92 = vector.shape_cast %91 : vector<128xf32> to vector<1x128xf32>
    %93 = tpu.concatenate %85, %92 in 0 : vector<1x128xf32>, vector<1x128xf32> -> vector<2x128xf32>
    %c0_87 = arith.constant 0 : index
    %c0_88 = arith.constant 0 : index
    %c0_89 = arith.constant 0 : index
    %c0_90 = arith.constant 0 : index
    %94 = vector.load %arg7[%c0_87, %c0_88, %c0_89, %c0_90] : memref<1x1x2x128xf32, #tpu.memory_space<vmem>>, vector<1x1x2x128xf32>
    %95 = vector.shape_cast %94 : vector<1x1x2x128xf32> to vector<2x128xf32>
    %96 = vector.shape_cast %93 : vector<2x128xf32> to vector<1x1x2x128xf32>
    tpu.vector_store %arg7[%c0_87, %c0_88, %c0_89, %c0_90], %96 {strides = array<i32>} : memref<1x1x2x128xf32, #tpu.memory_space<vmem>>, vector<1x1x2x128xf32>,
    return
  }
  func.func @transform_1(%arg0: i32, %arg1: i32) -> (i32, i32, i32, i32) {
    %c0_i32 = arith.constant 0 : i32
    %c0_i32_0 = arith.constant 0 : i32
    %c0_i32_1 = arith.constant 0 : i32
    %c0_i32_2 = arith.constant 0 : i32
    %c0_i32_3 = arith.constant 0 : i32
    return %c0_i32, %c0_i32_0, %c0_i32_1, %c0_i32_2 : i32, i32, i32, i32
  }
  func.func @transform_2(%arg0: i32, %arg1: i32) -> (i32, i32) {
    %c0_i32 = arith.constant 0 : i32
    %c0_i32_0 = arith.constant 0 : i32
    %c0_i32_1 = arith.constant 0 : i32
    return %c0_i32, %c0_i32_0 : i32, i32
  }
  func.func @transform_3(%arg0: i32, %arg1: i32) -> (i32, i32) {
    %c0_i32 = arith.constant 0 : i32
    %c0_i32_0 = arith.constant 0 : i32
    %c0_i32_1 = arith.constant 0 : i32
    return %c0_i32, %c0_i32_0 : i32, i32
  }
  func.func @transform_4(%arg0: i32, %arg1: i32) -> (i32, i32, i32, i32) {
    %c0_i32 = arith.constant 0 : i32
    %c0_i32_0 = arith.constant 0 : i32
    %c0_i32_1 = arith.constant 0 : i32
    return %arg0, %arg1, %c0_i32, %c0_i32_0 : i32, i32, i32, i32
  }
  func.func @transform_5(%arg0: i32, %arg1: i32) -> (i32, i32, i32, i32) {
    %c0_i32 = arith.constant 0 : i32
    %c0_i32_0 = arith.constant 0 : i32
    %c0_i32_1 = arith.constant 0 : i32
    return %arg0, %arg1, %c0_i32, %c0_i32_0 : i32, i32, i32, i32
  }
}

module attributes {stable_mosaic.version = 11 : i64} {
  func.func @_conv3x3_kernel(%arg0: i32, %arg1: i32, %arg2: memref<2x16x16x128xf32, #tpu.memory_space<any>>, %arg3: memref<3x3x128x128xf32, #tpu.memory_space<vmem>>, %arg4: memref<1x128xf32, #tpu.memory_space<vmem>>, %arg5: memref<1x128xf32, #tpu.memory_space<vmem>>, %arg6: memref<1x8x16x128xf32, #tpu.memory_space<vmem>>, %arg7: memref<1x1x2x128xf32, #tpu.memory_space<vmem>>, %arg8: memref<10x24x128xf32, #tpu.memory_space<vmem>>, %arg9: memref<3x!tpu.dma_semaphore, #tpu.memory_space<semaphore_mem>>) attributes {dimension_semantics = [#tpu.dimension_semantics<parallel>, #tpu.dimension_semantics<parallel>], iteration_bounds = array<i64: 2, 2>, scalar_prefetch = 0 : i64, scratch_operands = 2 : i64, tpu.core_type = #tpu.core_type<tc>, window_params = [{}, {pipeline_mode = #tpu.pipeline_mode<synchronous>, transform_indices = @transform_1, window_bounds = array<i64: 3, 3, 128, 128>}, {pipeline_mode = #tpu.pipeline_mode<synchronous>, transform_indices = @transform_2, window_bounds = array<i64: 1, 128>}, {pipeline_mode = #tpu.pipeline_mode<synchronous>, transform_indices = @transform_3, window_bounds = array<i64: 1, 128>}, {transform_indices = @transform_4, window_bounds = array<i64: 1, 8, 16, 128>}, {transform_indices = @transform_5, window_bounds = array<i64: 1, 1, 2, 128>}]} {
    %c8_i32 = arith.constant 8 : i32
    %0 = arith.muli %arg1, %c8_i32 : i32
    %c0_i32 = arith.constant 0 : i32
    %c0_i32_0 = arith.constant 0 : i32
    %c0_i32_1 = arith.constant 0 : i32
    %1 = tpu.memref_slice %arg2[%arg0, %0, %c0_i32_0, %c0_i32_1] : memref<2x16x16x128xf32, #tpu.memory_space<any>> -> memref<1x8x16x128xf32, #tpu.memory_space<any>>
    %2 = tpu.memref_squeeze %1 : memref<1x8x16x128xf32, #tpu.memory_space<any>> -> memref<8x16x128xf32, #tpu.memory_space<any>>
    %c1_i32 = arith.constant 1 : i32
    %c0_i32_2 = arith.constant 0 : i32
    %c0_i32_3 = arith.constant 0 : i32
    %3 = tpu.memref_slice %arg8[%c1_i32, %c0_i32_2, %c0_i32_3] : memref<10x24x128xf32, #tpu.memory_space<vmem>> -> memref<8x16x128xf32, #tpu.memory_space<vmem>>
    %4 = tpu.memref_slice %arg9[%c0_i32] : memref<3x!tpu.dma_semaphore, #tpu.memory_space<semaphore_mem>> -> memref<1x!tpu.dma_semaphore, #tpu.memory_space<semaphore_mem>>
    %5 = tpu.memref_squeeze %4 : memref<1x!tpu.dma_semaphore, #tpu.memory_space<semaphore_mem>> -> memref<!tpu.dma_semaphore, #tpu.memory_space<semaphore_mem>>
    tpu.enqueue_dma source(%2 : memref<8x16x128xf32, #tpu.memory_space<any>>) target(%3 : memref<8x16x128xf32, #tpu.memory_space<vmem>>) target_semaphore(%5 : memref<!tpu.dma_semaphore, #tpu.memory_space<semaphore_mem>>)
    %c0_i32_4 = arith.constant 0 : i32
    %6 = arith.cmpi sgt, %arg1, %c0_i32_4 : i32
    %7 = arith.extui %6 : i1 to i32
    %c0_i32_5 = arith.constant 0 : i32
    %8 = arith.cmpi ne, %7, %c0_i32_5 : i32
    scf.if %8 {
      %c1_i32_102 = arith.constant 1 : i32
      %109 = arith.subi %0, %c1_i32_102 : i32
      %c1_i32_103 = arith.constant 1 : i32
      %c0_i32_104 = arith.constant 0 : i32
      %c0_i32_105 = arith.constant 0 : i32
      %110 = tpu.memref_slice %arg2[%arg0, %109, %c0_i32_104, %c0_i32_105] : memref<2x16x16x128xf32, #tpu.memory_space<any>> -> memref<1x1x16x128xf32, #tpu.memory_space<any>>
      %111 = tpu.memref_squeeze %110 : memref<1x1x16x128xf32, #tpu.memory_space<any>> -> memref<1x16x128xf32, #tpu.memory_space<any>>
      %c0_i32_106 = arith.constant 0 : i32
      %c0_i32_107 = arith.constant 0 : i32
      %c0_i32_108 = arith.constant 0 : i32
      %112 = tpu.memref_slice %arg8[%c0_i32_106, %c0_i32_107, %c0_i32_108] : memref<10x24x128xf32, #tpu.memory_space<vmem>> -> memref<1x16x128xf32, #tpu.memory_space<vmem>>
      %113 = tpu.memref_slice %arg9[%c1_i32_103] : memref<3x!tpu.dma_semaphore, #tpu.memory_space<semaphore_mem>> -> memref<1x!tpu.dma_semaphore, #tpu.memory_space<semaphore_mem>>
      %114 = tpu.memref_squeeze %113 : memref<1x!tpu.dma_semaphore, #tpu.memory_space<semaphore_mem>> -> memref<!tpu.dma_semaphore, #tpu.memory_space<semaphore_mem>>
      tpu.enqueue_dma source(%111 : memref<1x16x128xf32, #tpu.memory_space<any>>) target(%112 : memref<1x16x128xf32, #tpu.memory_space<vmem>>) target_semaphore(%114 : memref<!tpu.dma_semaphore, #tpu.memory_space<semaphore_mem>>)
    } else {
    }
    %c1_i32_6 = arith.constant 1 : i32
    %9 = arith.cmpi slt, %arg1, %c1_i32_6 : i32
    %10 = arith.extui %9 : i1 to i32
    %c0_i32_7 = arith.constant 0 : i32
    %11 = arith.cmpi ne, %10, %c0_i32_7 : i32
    scf.if %11 {
      %c8_i32_102 = arith.constant 8 : i32
      %109 = arith.addi %0, %c8_i32_102 : i32
      %c2_i32 = arith.constant 2 : i32
      %c0_i32_103 = arith.constant 0 : i32
      %c0_i32_104 = arith.constant 0 : i32
      %110 = tpu.memref_slice %arg2[%arg0, %109, %c0_i32_103, %c0_i32_104] : memref<2x16x16x128xf32, #tpu.memory_space<any>> -> memref<1x1x16x128xf32, #tpu.memory_space<any>>
      %111 = tpu.memref_squeeze %110 : memref<1x1x16x128xf32, #tpu.memory_space<any>> -> memref<1x16x128xf32, #tpu.memory_space<any>>
      %c9_i32 = arith.constant 9 : i32
      %c0_i32_105 = arith.constant 0 : i32
      %c0_i32_106 = arith.constant 0 : i32
      %112 = tpu.memref_slice %arg8[%c9_i32, %c0_i32_105, %c0_i32_106] : memref<10x24x128xf32, #tpu.memory_space<vmem>> -> memref<1x16x128xf32, #tpu.memory_space<vmem>>
      %113 = tpu.memref_slice %arg9[%c2_i32] : memref<3x!tpu.dma_semaphore, #tpu.memory_space<semaphore_mem>> -> memref<1x!tpu.dma_semaphore, #tpu.memory_space<semaphore_mem>>
      %114 = tpu.memref_squeeze %113 : memref<1x!tpu.dma_semaphore, #tpu.memory_space<semaphore_mem>> -> memref<!tpu.dma_semaphore, #tpu.memory_space<semaphore_mem>>
      tpu.enqueue_dma source(%111 : memref<1x16x128xf32, #tpu.memory_space<any>>) target(%112 : memref<1x16x128xf32, #tpu.memory_space<vmem>>) target_semaphore(%114 : memref<!tpu.dma_semaphore, #tpu.memory_space<semaphore_mem>>)
    } else {
    }
    %c0_i32_8 = arith.constant 0 : i32
    %c0_i32_9 = arith.constant 0 : i32
    %c0_i32_10 = arith.constant 0 : i32
    %12 = tpu.memref_slice %arg2[%arg0, %0, %c0_i32_9, %c0_i32_10] : memref<2x16x16x128xf32, #tpu.memory_space<any>> -> memref<1x8x16x128xf32, #tpu.memory_space<any>>
    %13 = tpu.memref_squeeze %12 : memref<1x8x16x128xf32, #tpu.memory_space<any>> -> memref<8x16x128xf32, #tpu.memory_space<any>>
    %c1_i32_11 = arith.constant 1 : i32
    %c0_i32_12 = arith.constant 0 : i32
    %c0_i32_13 = arith.constant 0 : i32
    %14 = tpu.memref_slice %arg8[%c1_i32_11, %c0_i32_12, %c0_i32_13] : memref<10x24x128xf32, #tpu.memory_space<vmem>> -> memref<8x16x128xf32, #tpu.memory_space<vmem>>
    %15 = tpu.memref_slice %arg9[%c0_i32_8] : memref<3x!tpu.dma_semaphore, #tpu.memory_space<semaphore_mem>> -> memref<1x!tpu.dma_semaphore, #tpu.memory_space<semaphore_mem>>
    %16 = tpu.memref_squeeze %15 : memref<1x!tpu.dma_semaphore, #tpu.memory_space<semaphore_mem>> -> memref<!tpu.dma_semaphore, #tpu.memory_space<semaphore_mem>>
    tpu.wait_dma2 semaphore(%16 : memref<!tpu.dma_semaphore, #tpu.memory_space<semaphore_mem>>) src(%13 : memref<8x16x128xf32, #tpu.memory_space<any>>) dst(%14 : memref<8x16x128xf32, #tpu.memory_space<vmem>>)
    %c0_i32_14 = arith.constant 0 : i32
    %17 = arith.cmpi sgt, %arg1, %c0_i32_14 : i32
    %18 = arith.extui %17 : i1 to i32
    %c0_i32_15 = arith.constant 0 : i32
    %19 = arith.cmpi ne, %18, %c0_i32_15 : i32
    scf.if %19 {
      %c1_i32_102 = arith.constant 1 : i32
      %109 = arith.subi %0, %c1_i32_102 : i32
      %c1_i32_103 = arith.constant 1 : i32
      %c0_i32_104 = arith.constant 0 : i32
      %c0_i32_105 = arith.constant 0 : i32
      %110 = tpu.memref_slice %arg2[%arg0, %109, %c0_i32_104, %c0_i32_105] : memref<2x16x16x128xf32, #tpu.memory_space<any>> -> memref<1x1x16x128xf32, #tpu.memory_space<any>>
      %111 = tpu.memref_squeeze %110 : memref<1x1x16x128xf32, #tpu.memory_space<any>> -> memref<1x16x128xf32, #tpu.memory_space<any>>
      %c0_i32_106 = arith.constant 0 : i32
      %c0_i32_107 = arith.constant 0 : i32
      %c0_i32_108 = arith.constant 0 : i32
      %112 = tpu.memref_slice %arg8[%c0_i32_106, %c0_i32_107, %c0_i32_108] : memref<10x24x128xf32, #tpu.memory_space<vmem>> -> memref<1x16x128xf32, #tpu.memory_space<vmem>>
      %113 = tpu.memref_slice %arg9[%c1_i32_103] : memref<3x!tpu.dma_semaphore, #tpu.memory_space<semaphore_mem>> -> memref<1x!tpu.dma_semaphore, #tpu.memory_space<semaphore_mem>>
      %114 = tpu.memref_squeeze %113 : memref<1x!tpu.dma_semaphore, #tpu.memory_space<semaphore_mem>> -> memref<!tpu.dma_semaphore, #tpu.memory_space<semaphore_mem>>
      tpu.wait_dma2 semaphore(%114 : memref<!tpu.dma_semaphore, #tpu.memory_space<semaphore_mem>>) src(%111 : memref<1x16x128xf32, #tpu.memory_space<any>>) dst(%112 : memref<1x16x128xf32, #tpu.memory_space<vmem>>)
    } else {
    }
    %c1_i32_16 = arith.constant 1 : i32
    %20 = arith.cmpi slt, %arg1, %c1_i32_16 : i32
    %21 = arith.extui %20 : i1 to i32
    %c0_i32_17 = arith.constant 0 : i32
    %22 = arith.cmpi ne, %21, %c0_i32_17 : i32
    scf.if %22 {
      %c8_i32_102 = arith.constant 8 : i32
      %109 = arith.addi %0, %c8_i32_102 : i32
      %c2_i32 = arith.constant 2 : i32
      %c0_i32_103 = arith.constant 0 : i32
      %c0_i32_104 = arith.constant 0 : i32
      %110 = tpu.memref_slice %arg2[%arg0, %109, %c0_i32_103, %c0_i32_104] : memref<2x16x16x128xf32, #tpu.memory_space<any>> -> memref<1x1x16x128xf32, #tpu.memory_space<any>>
      %111 = tpu.memref_squeeze %110 : memref<1x1x16x128xf32, #tpu.memory_space<any>> -> memref<1x16x128xf32, #tpu.memory_space<any>>
      %c9_i32 = arith.constant 9 : i32
      %c0_i32_105 = arith.constant 0 : i32
      %c0_i32_106 = arith.constant 0 : i32
      %112 = tpu.memref_slice %arg8[%c9_i32, %c0_i32_105, %c0_i32_106] : memref<10x24x128xf32, #tpu.memory_space<vmem>> -> memref<1x16x128xf32, #tpu.memory_space<vmem>>
      %113 = tpu.memref_slice %arg9[%c2_i32] : memref<3x!tpu.dma_semaphore, #tpu.memory_space<semaphore_mem>> -> memref<1x!tpu.dma_semaphore, #tpu.memory_space<semaphore_mem>>
      %114 = tpu.memref_squeeze %113 : memref<1x!tpu.dma_semaphore, #tpu.memory_space<semaphore_mem>> -> memref<!tpu.dma_semaphore, #tpu.memory_space<semaphore_mem>>
      tpu.wait_dma2 semaphore(%114 : memref<!tpu.dma_semaphore, #tpu.memory_space<semaphore_mem>>) src(%111 : memref<1x16x128xf32, #tpu.memory_space<any>>) dst(%112 : memref<1x16x128xf32, #tpu.memory_space<vmem>>)
    } else {
    }
    %c0 = arith.constant 0 : index
    %c0_18 = arith.constant 0 : index
    %23 = vector.load %arg4[%c0, %c0_18] : memref<1x128xf32, #tpu.memory_space<vmem>>, vector<1x128xf32>
    %24 = vector.shape_cast %23 : vector<1x128xf32> to vector<1x1x128xf32>
    %c0_19 = arith.constant 0 : index
    %c0_20 = arith.constant 0 : index
    %25 = vector.load %arg5[%c0_19, %c0_20] : memref<1x128xf32, #tpu.memory_space<vmem>>, vector<1x128xf32>
    %26 = vector.shape_cast %25 : vector<1x128xf32> to vector<1x1x128xf32>
    %c0_21 = arith.constant 0 : index
    %c0_22 = arith.constant 0 : index
    %c0_23 = arith.constant 0 : index
    %27 = vector.load %arg8[%c0_21, %c0_22, %c0_23] : memref<10x24x128xf32, #tpu.memory_space<vmem>>, vector<10x24x128xf32>
    %28 = vector.broadcast %24 : vector<1x1x128xf32> to vector<10x24x128xf32>
    %29 = arith.mulf %27, %28 : vector<10x24x128xf32>
    %30 = vector.broadcast %26 : vector<1x1x128xf32> to vector<10x24x128xf32>
    %31 = arith.addf %29, %30 : vector<10x24x128xf32>
    %cst = arith.constant 0.000000e+00 : f32
    %32 = vector.broadcast %cst : f32 to vector<10x24x128xf32>
    %33 = arith.maximumf %31, %32 : vector<10x24x128xf32>
    %c0_24 = arith.constant 0 : index
    %c0_25 = arith.constant 0 : index
    %c0_26 = arith.constant 0 : index
    %34 = vector.load %arg8[%c0_24, %c0_25, %c0_26] : memref<10x24x128xf32, #tpu.memory_space<vmem>>, vector<10x24x128xf32>
    tpu.vector_store %arg8[%c0_24, %c0_25, %c0_26], %33 {strides = array<i32>} : memref<10x24x128xf32, #tpu.memory_space<vmem>>, vector<10x24x128xf32>,
    %cst_27 = arith.constant 0.000000e+00 : f32
    %35 = vector.broadcast %cst_27 : f32 to vector<10x8x128xf32>
    %c0_28 = arith.constant 0 : index
    %c16 = arith.constant 16 : index
    %c0_29 = arith.constant 0 : index
    %36 = vector.load %arg8[%c0_28, %c16, %c0_29] : memref<10x24x128xf32, #tpu.memory_space<vmem>>, vector<10x8x128xf32>
    tpu.vector_store %arg8[%c0_28, %c16, %c0_29], %35 {strides = array<i32>} : memref<10x24x128xf32, #tpu.memory_space<vmem>>, vector<10x8x128xf32>,
    %c0_i32_30 = arith.constant 0 : i32
    %37 = arith.cmpi eq, %arg1, %c0_i32_30 : i32
    %38 = arith.extui %37 : i1 to i32
    %c0_i32_31 = arith.constant 0 : i32
    %39 = arith.cmpi ne, %38, %c0_i32_31 : i32
    scf.if %39 {
      %cst_102 = arith.constant 0.000000e+00 : f32
      %109 = vector.broadcast %cst_102 : f32 to vector<1x24x128xf32>
      %c0_103 = arith.constant 0 : index
      %c0_104 = arith.constant 0 : index
      %c0_105 = arith.constant 0 : index
      %110 = vector.load %arg8[%c0_103, %c0_104, %c0_105] : memref<10x24x128xf32, #tpu.memory_space<vmem>>, vector<1x24x128xf32>
      tpu.vector_store %arg8[%c0_103, %c0_104, %c0_105], %109 {strides = array<i32>} : memref<10x24x128xf32, #tpu.memory_space<vmem>>, vector<1x24x128xf32>,
    } else {
    }
    %c1_i32_32 = arith.constant 1 : i32
    %40 = arith.cmpi eq, %arg1, %c1_i32_32 : i32
    %41 = arith.extui %40 : i1 to i32
    %c0_i32_33 = arith.constant 0 : i32
    %42 = arith.cmpi ne, %41, %c0_i32_33 : i32
    scf.if %42 {
      %cst_102 = arith.constant 0.000000e+00 : f32
      %109 = vector.broadcast %cst_102 : f32 to vector<1x24x128xf32>
      %c9 = arith.constant 9 : index
      %c0_103 = arith.constant 0 : index
      %c0_104 = arith.constant 0 : index
      %110 = vector.load %arg8[%c9, %c0_103, %c0_104] : memref<10x24x128xf32, #tpu.memory_space<vmem>>, vector<1x24x128xf32>
      tpu.vector_store %arg8[%c9, %c0_103, %c0_104], %109 {strides = array<i32>} : memref<10x24x128xf32, #tpu.memory_space<vmem>>, vector<1x24x128xf32>,
    } else {
    }
    %c0_34 = arith.constant 0 : index
    %c0_35 = arith.constant 0 : index
    %c0_36 = arith.constant 0 : index
    %43 = vector.load %arg8[%c0_34, %c0_35, %c0_36] : memref<10x24x128xf32, #tpu.memory_space<vmem>>, vector<8x24x128xf32>
    %44 = vector.shape_cast %43 : vector<8x24x128xf32> to vector<192x128xf32>
    %c0_37 = arith.constant 0 : index
    %c0_38 = arith.constant 0 : index
    %c0_39 = arith.constant 0 : index
    %c0_40 = arith.constant 0 : index
    %45 = vector.load %arg3[%c0_37, %c0_38, %c0_39, %c0_40] : memref<3x3x128x128xf32, #tpu.memory_space<vmem>>, vector<1x1x128x128xf32>
    %46 = vector.shape_cast %45 : vector<1x1x128x128xf32> to vector<128x128xf32>
    %cst_41 = arith.constant dense<0.000000e+00> : vector<192x128xf32>
    %47 = tpu.matmul %44, %46, %cst_41 {dimension_numbers = #tpu.dot_dimension_numbers<[1], [0], [0], [1], [0, 0, 1, 1], [], []>} : vector<192x128xf32>, vector<128x128xf32>, vector<192x128xf32> -> vector<192x128xf32>
    %c1_i32_42 = arith.constant 1 : i32
    %48 = tpu.dynamic_rotate %47 by %c1_i32_42 dim 0 : vector<192x128xf32>, i32 -> vector<192x128xf32>
    %c0_43 = arith.constant 0 : index
    %c1 = arith.constant 1 : index
    %c0_44 = arith.constant 0 : index
    %c0_45 = arith.constant 0 : index
    %49 = vector.load %arg3[%c0_43, %c1, %c0_44, %c0_45] : memref<3x3x128x128xf32, #tpu.memory_space<vmem>>, vector<1x1x128x128xf32>
    %50 = vector.shape_cast %49 : vector<1x1x128x128xf32> to vector<128x128xf32>
    %cst_46 = arith.constant dense<0.000000e+00> : vector<192x128xf32>
    %51 = tpu.matmul %44, %50, %cst_46 {dimension_numbers = #tpu.dot_dimension_numbers<[1], [0], [0], [1], [0, 0, 1, 1], [], []>} : vector<192x128xf32>, vector<128x128xf32>, vector<192x128xf32> -> vector<192x128xf32>
    %52 = arith.addf %48, %51 : vector<192x128xf32>
    %c0_47 = arith.constant 0 : index
    %c2 = arith.constant 2 : index
    %c0_48 = arith.constant 0 : index
    %c0_49 = arith.constant 0 : index
    %53 = vector.load %arg3[%c0_47, %c2, %c0_48, %c0_49] : memref<3x3x128x128xf32, #tpu.memory_space<vmem>>, vector<1x1x128x128xf32>
    %54 = vector.shape_cast %53 : vector<1x1x128x128xf32> to vector<128x128xf32>
    %cst_50 = arith.constant dense<0.000000e+00> : vector<192x128xf32>
    %55 = tpu.matmul %44, %54, %cst_50 {dimension_numbers = #tpu.dot_dimension_numbers<[1], [0], [0], [1], [0, 0, 1, 1], [], []>} : vector<192x128xf32>, vector<128x128xf32>, vector<192x128xf32> -> vector<192x128xf32>
    %c191_i32 = arith.constant 191 : i32
    %56 = tpu.dynamic_rotate %55 by %c191_i32 dim 0 : vector<192x128xf32>, i32 -> vector<192x128xf32>
    %57 = arith.addf %52, %56 : vector<192x128xf32>
    %c1_51 = arith.constant 1 : index
    %c0_52 = arith.constant 0 : index
    %c0_53 = arith.constant 0 : index
    %58 = vector.load %arg8[%c1_51, %c0_52, %c0_53] : memref<10x24x128xf32, #tpu.memory_space<vmem>>, vector<8x24x128xf32>
    %59 = vector.shape_cast %58 : vector<8x24x128xf32> to vector<192x128xf32>
    %c1_54 = arith.constant 1 : index
    %c0_55 = arith.constant 0 : index
    %c0_56 = arith.constant 0 : index
    %c0_57 = arith.constant 0 : index
    %60 = vector.load %arg3[%c1_54, %c0_55, %c0_56, %c0_57] : memref<3x3x128x128xf32, #tpu.memory_space<vmem>>, vector<1x1x128x128xf32>
    %61 = vector.shape_cast %60 : vector<1x1x128x128xf32> to vector<128x128xf32>
    %cst_58 = arith.constant dense<0.000000e+00> : vector<192x128xf32>
    %62 = tpu.matmul %59, %61, %cst_58 {dimension_numbers = #tpu.dot_dimension_numbers<[1], [0], [0], [1], [0, 0, 1, 1], [], []>} : vector<192x128xf32>, vector<128x128xf32>, vector<192x128xf32> -> vector<192x128xf32>
    %c1_i32_59 = arith.constant 1 : i32
    %63 = tpu.dynamic_rotate %62 by %c1_i32_59 dim 0 : vector<192x128xf32>, i32 -> vector<192x128xf32>
    %64 = arith.addf %57, %63 : vector<192x128xf32>
    %c1_60 = arith.constant 1 : index
    %c1_61 = arith.constant 1 : index
    %c0_62 = arith.constant 0 : index
    %c0_63 = arith.constant 0 : index
    %65 = vector.load %arg3[%c1_60, %c1_61, %c0_62, %c0_63] : memref<3x3x128x128xf32, #tpu.memory_space<vmem>>, vector<1x1x128x128xf32>
    %66 = vector.shape_cast %65 : vector<1x1x128x128xf32> to vector<128x128xf32>
    %cst_64 = arith.constant dense<0.000000e+00> : vector<192x128xf32>
    %67 = tpu.matmul %59, %66, %cst_64 {dimension_numbers = #tpu.dot_dimension_numbers<[1], [0], [0], [1], [0, 0, 1, 1], [], []>} : vector<192x128xf32>, vector<128x128xf32>, vector<192x128xf32> -> vector<192x128xf32>
    %68 = arith.addf %64, %67 : vector<192x128xf32>
    %c1_65 = arith.constant 1 : index
    %c2_66 = arith.constant 2 : index
    %c0_67 = arith.constant 0 : index
    %c0_68 = arith.constant 0 : index
    %69 = vector.load %arg3[%c1_65, %c2_66, %c0_67, %c0_68] : memref<3x3x128x128xf32, #tpu.memory_space<vmem>>, vector<1x1x128x128xf32>
    %70 = vector.shape_cast %69 : vector<1x1x128x128xf32> to vector<128x128xf32>
    %cst_69 = arith.constant dense<0.000000e+00> : vector<192x128xf32>
    %71 = tpu.matmul %59, %70, %cst_69 {dimension_numbers = #tpu.dot_dimension_numbers<[1], [0], [0], [1], [0, 0, 1, 1], [], []>} : vector<192x128xf32>, vector<128x128xf32>, vector<192x128xf32> -> vector<192x128xf32>
    %c191_i32_70 = arith.constant 191 : i32
    %72 = tpu.dynamic_rotate %71 by %c191_i32_70 dim 0 : vector<192x128xf32>, i32 -> vector<192x128xf32>
    %73 = arith.addf %68, %72 : vector<192x128xf32>
    %c2_71 = arith.constant 2 : index
    %c0_72 = arith.constant 0 : index
    %c0_73 = arith.constant 0 : index
    %74 = vector.load %arg8[%c2_71, %c0_72, %c0_73] : memref<10x24x128xf32, #tpu.memory_space<vmem>>, vector<8x24x128xf32>
    %75 = vector.shape_cast %74 : vector<8x24x128xf32> to vector<192x128xf32>
    %c2_74 = arith.constant 2 : index
    %c0_75 = arith.constant 0 : index
    %c0_76 = arith.constant 0 : index
    %c0_77 = arith.constant 0 : index
    %76 = vector.load %arg3[%c2_74, %c0_75, %c0_76, %c0_77] : memref<3x3x128x128xf32, #tpu.memory_space<vmem>>, vector<1x1x128x128xf32>
    %77 = vector.shape_cast %76 : vector<1x1x128x128xf32> to vector<128x128xf32>
    %cst_78 = arith.constant dense<0.000000e+00> : vector<192x128xf32>
    %78 = tpu.matmul %75, %77, %cst_78 {dimension_numbers = #tpu.dot_dimension_numbers<[1], [0], [0], [1], [0, 0, 1, 1], [], []>} : vector<192x128xf32>, vector<128x128xf32>, vector<192x128xf32> -> vector<192x128xf32>
    %c1_i32_79 = arith.constant 1 : i32
    %79 = tpu.dynamic_rotate %78 by %c1_i32_79 dim 0 : vector<192x128xf32>, i32 -> vector<192x128xf32>
    %80 = arith.addf %73, %79 : vector<192x128xf32>
    %c2_80 = arith.constant 2 : index
    %c1_81 = arith.constant 1 : index
    %c0_82 = arith.constant 0 : index
    %c0_83 = arith.constant 0 : index
    %81 = vector.load %arg3[%c2_80, %c1_81, %c0_82, %c0_83] : memref<3x3x128x128xf32, #tpu.memory_space<vmem>>, vector<1x1x128x128xf32>
    %82 = vector.shape_cast %81 : vector<1x1x128x128xf32> to vector<128x128xf32>
    %cst_84 = arith.constant dense<0.000000e+00> : vector<192x128xf32>
    %83 = tpu.matmul %75, %82, %cst_84 {dimension_numbers = #tpu.dot_dimension_numbers<[1], [0], [0], [1], [0, 0, 1, 1], [], []>} : vector<192x128xf32>, vector<128x128xf32>, vector<192x128xf32> -> vector<192x128xf32>
    %84 = arith.addf %80, %83 : vector<192x128xf32>
    %c2_85 = arith.constant 2 : index
    %c2_86 = arith.constant 2 : index
    %c0_87 = arith.constant 0 : index
    %c0_88 = arith.constant 0 : index
    %85 = vector.load %arg3[%c2_85, %c2_86, %c0_87, %c0_88] : memref<3x3x128x128xf32, #tpu.memory_space<vmem>>, vector<1x1x128x128xf32>
    %86 = vector.shape_cast %85 : vector<1x1x128x128xf32> to vector<128x128xf32>
    %cst_89 = arith.constant dense<0.000000e+00> : vector<192x128xf32>
    %87 = tpu.matmul %75, %86, %cst_89 {dimension_numbers = #tpu.dot_dimension_numbers<[1], [0], [0], [1], [0, 0, 1, 1], [], []>} : vector<192x128xf32>, vector<128x128xf32>, vector<192x128xf32> -> vector<192x128xf32>
    %c191_i32_90 = arith.constant 191 : i32
    %88 = tpu.dynamic_rotate %87 by %c191_i32_90 dim 0 : vector<192x128xf32>, i32 -> vector<192x128xf32>
    %89 = arith.addf %84, %88 : vector<192x128xf32>
    %90 = vector.shape_cast %89 : vector<192x128xf32> to vector<8x24x128xf32>
    %91 = vector.extract_strided_slice %90 {offsets = [0, 0, 0], sizes = [8, 16, 128], strides = [1, 1, 1]} : vector<8x24x128xf32> to vector<8x16x128xf32>
    %c0_91 = arith.constant 0 : index
    %c0_92 = arith.constant 0 : index
    %c0_93 = arith.constant 0 : index
    %c0_94 = arith.constant 0 : index
    %92 = vector.load %arg6[%c0_91, %c0_92, %c0_93, %c0_94] : memref<1x8x16x128xf32, #tpu.memory_space<vmem>>, vector<1x8x16x128xf32>
    %93 = vector.shape_cast %92 : vector<1x8x16x128xf32> to vector<8x16x128xf32>
    %94 = vector.shape_cast %91 : vector<8x16x128xf32> to vector<1x8x16x128xf32>
    tpu.vector_store %arg6[%c0_91, %c0_92, %c0_93, %c0_94], %94 {strides = array<i32>} : memref<1x8x16x128xf32, #tpu.memory_space<vmem>>, vector<1x8x16x128xf32>,
    %95 = vector.shape_cast %91 : vector<8x16x128xf32> to vector<128x128xf32>
    %cst_95 = arith.constant dense<0.000000e+00> : vector<128xf32>
    %96 = vector.multi_reduction <add>, %95, %cst_95 [0] : vector<128x128xf32> to vector<128xf32>
    %97 = vector.shape_cast %96 : vector<128xf32> to vector<1x128xf32>
    %cst_96 = arith.constant 7.812500e-03 : f32
    %98 = vector.broadcast %cst_96 : f32 to vector<1x128xf32>
    %99 = arith.mulf %97, %98 : vector<1x128xf32>
    %100 = vector.broadcast %99 : vector<1x128xf32> to vector<128x128xf32>
    %101 = arith.subf %95, %100 : vector<128x128xf32>
    %102 = arith.mulf %101, %101 : vector<128x128xf32>
    %cst_97 = arith.constant dense<0.000000e+00> : vector<128xf32>
    %103 = vector.multi_reduction <add>, %102, %cst_97 [0] : vector<128x128xf32> to vector<128xf32>
    %104 = vector.shape_cast %103 : vector<128xf32> to vector<1x128xf32>
    %105 = tpu.concatenate %97, %104 in 0 : vector<1x128xf32>, vector<1x128xf32> -> vector<2x128xf32>
    %c0_98 = arith.constant 0 : index
    %c0_99 = arith.constant 0 : index
    %c0_100 = arith.constant 0 : index
    %c0_101 = arith.constant 0 : index
    %106 = vector.load %arg7[%c0_98, %c0_99, %c0_100, %c0_101] : memref<1x1x2x128xf32, #tpu.memory_space<vmem>>, vector<1x1x2x128xf32>
    %107 = vector.shape_cast %106 : vector<1x1x2x128xf32> to vector<2x128xf32>
    %108 = vector.shape_cast %105 : vector<2x128xf32> to vector<1x1x2x128xf32>
    tpu.vector_store %arg7[%c0_98, %c0_99, %c0_100, %c0_101], %108 {strides = array<i32>} : memref<1x1x2x128xf32, #tpu.memory_space<vmem>>, vector<1x1x2x128xf32>,
    return
  }
  func.func @transform_1(%arg0: i32, %arg1: i32) -> (i32, i32, i32, i32) {
    %c0_i32 = arith.constant 0 : i32
    %c0_i32_0 = arith.constant 0 : i32
    %c0_i32_1 = arith.constant 0 : i32
    %c0_i32_2 = arith.constant 0 : i32
    %c0_i32_3 = arith.constant 0 : i32
    return %c0_i32, %c0_i32_0, %c0_i32_1, %c0_i32_2 : i32, i32, i32, i32
  }
  func.func @transform_2(%arg0: i32, %arg1: i32) -> (i32, i32) {
    %c0_i32 = arith.constant 0 : i32
    %c0_i32_0 = arith.constant 0 : i32
    %c0_i32_1 = arith.constant 0 : i32
    return %c0_i32, %c0_i32_0 : i32, i32
  }
  func.func @transform_3(%arg0: i32, %arg1: i32) -> (i32, i32) {
    %c0_i32 = arith.constant 0 : i32
    %c0_i32_0 = arith.constant 0 : i32
    %c0_i32_1 = arith.constant 0 : i32
    return %c0_i32, %c0_i32_0 : i32, i32
  }
  func.func @transform_4(%arg0: i32, %arg1: i32) -> (i32, i32, i32, i32) {
    %c0_i32 = arith.constant 0 : i32
    %c0_i32_0 = arith.constant 0 : i32
    %c0_i32_1 = arith.constant 0 : i32
    return %arg0, %arg1, %c0_i32, %c0_i32_0 : i32, i32, i32, i32
  }
  func.func @transform_5(%arg0: i32, %arg1: i32) -> (i32, i32, i32, i32) {
    %c0_i32 = arith.constant 0 : i32
    %c0_i32_0 = arith.constant 0 : i32
    %c0_i32_1 = arith.constant 0 : i32
    return %arg0, %arg1, %c0_i32, %c0_i32_0 : i32, i32, i32, i32
  }
}

</mosaic_0001>

<llo_original>
// kernel: unet_conv_block.5
$region0: #{unet_conv_block.5}
  #allocation0 [shape = 'u32[]', space=smem, size = 0x4, offset = 0x4, fixed_abs, tag = 'smem constant byte address 0x4 - core index']
  #allocation1 [shape = 'u32[144,128]{1,0:T(1,128)}', space=vmem, size = 0x12000, scoped, tag = 'internal scratch']
  %s0 = inlined_call_operand.vmem [shape: f32[2,16,16,128], index: 0, kind: input, shape index: {}]
  %s1 = inlined_call_operand.vmem [shape: f32[1,128], index: 1, kind: input, shape index: {}]
  %s2 = inlined_call_operand.vmem [shape: f32[1,128], index: 2, kind: input, shape index: {}]
  %s3 = inlined_call_operand.vmem [shape: f32[2,16,16,8], index: 3, kind: output, shape index: {}]
  %s4 = sld [smem:[#allocation0]]
  $region45: #{unet_conv_block.5} parent=0
    _
  %s6 = ssub.s32 1, %s4
  %s7 = scalar_select 0, %s6, %s4
  loop: start=0, step=1, limit=6
  $region2: #{unet_conv_block.5} parent=0 // loop_pre_header
    _
  $region3: #{unet_conv_block.5} parent=0 // loop_header
    %s9 = sphi 0, %s13
    %p10 = scmp.ge.s32.totalorder %s9, 6
    %s16 = sphi 0, %s28
    %s17 = sphi 0, %s24
    %s18 = sphi 0, %s16
    %s19 = sphi 0, %s17
    %s20 = sphi 0, %s18
    %s21 = sphi 0, %s19
    %s33 = sphi 0, %s35
    %s36 = sphi 0, %s33
    %s37 = sphi 0, %s36
    %s53 = sphi 0, %s37
    %s57 = sphi 0, %s57
    %s59 = sphi 0, %s57
    %s60 = sphi 0, %s59
    %s74 = sphi 0, %s60
    %s78 = sphi 0, %s78
    %s80 = sphi 0, %s78
    %s81 = sphi 0, %s80
    %s95 = sphi 0, %s81
    %s103 = sphi 0, %s105
    %s106 = sphi 0, %s103
    %s107 = sphi 0, %s106
    %s123 = sphi 0, %s107
  $region4: #{unet_conv_block.5} parent=0 // loop_header_branch
    %12 = sbr.rel (%p10) target = $region8
  $region5: #{unet_conv_block.5} parent=0 // loop_body
    %s14 = ssub.s32 %s9, 1
    %s15 = ssub.s32 %s9, 2
    %s22 = sadd.s32 1, %s17
    %p23 = scmp.ge.s32.totalorder %s22, 2
    %s24 = scalar_select %p23, 0, %s22
    %s25 = sadd.s32 1, %s16
    %s26 = scalar_select %p23, %s25, %s16
    %p27 = scmp.ge.s32.totalorder %s26, 2
    %s28 = scalar_select %p27, 0, %s26
    %s29 = ssub.s32 %s16, %s28
    %s30 = ssub.s32 %s17, %s24
    %s31 = sor.u32 %s29, %s30
    %p32 = scmp.eq.s32.totalorder %s31, 0
    %s34 = sadd.s32 %s33, 1
    %s35 = scalar_select %p32, %s33, %s34
    %p38 = pneg %p32
    %p39 = scmp.eq.s32.totalorder %s9, 3
    %p40 = por %p38, %p39
    %p41 = scmp.ne.s32.totalorder %s33, %s36
    %p42 = scmp.eq.s32.totalorder %s9, 0
    %p43 = por %p41, %p42
    %p44 = scmp.ne.s32.totalorder %s33, %s36
    %p45 = scmp.eq.s32.totalorder %s14, 3
    %p46 = por %p44, %p45
    %p47 = scmp.ne.s32.totalorder %s36, %s37
    %p48 = scmp.eq.s32.totalorder %s14, 0
    %p49 = por %p47, %p48
    %p50 = scmp.ne.s32.totalorder %s36, %s37
    %p51 = scmp.eq.s32.totalorder %s15, 3
    %p52 = por %p50, %p51
    %p54 = scmp.ne.s32.totalorder %s37, %s53
    %p55 = scmp.eq.s32.totalorder %s15, 0
    %p56 = por %p54, %p55
    %s58 = sadd.s32 %s57, 1
    %p61 = scmp.eq.s32.totalorder %s9, 3
    %p62 = scmp.ne.s32.totalorder %s57, %s59
    %p63 = scmp.eq.s32.totalorder %s9, 0
    %p64 = por %p62, %p63
    %p65 = scmp.ne.s32.totalorder %s57, %s59
    %p66 = scmp.eq.s32.totalorder %s14, 3
    %p67 = por %p65, %p66
    %p68 = scmp.ne.s32.totalorder %s59, %s60
    %p69 = scmp.eq.s32.totalorder %s14, 0
    %p70 = por %p68, %p69
    %p71 = scmp.ne.s32.totalorder %s59, %s60
    %p72 = scmp.eq.s32.totalorder %s15, 3
    %p73 = por %p71, %p72
    %p75 = scmp.ne.s32.totalorder %s60, %s74
    %p76 = scmp.eq.s32.totalorder %s15, 0
    %p77 = por %p75, %p76
    %s79 = sadd.s32 %s78, 1
    %p82 = scmp.eq.s32.totalorder %s9, 3
    %p83 = scmp.ne.s32.totalorder %s78, %s80
    %p84 = scmp.eq.s32.totalorder %s9, 0
    %p85 = por %p83, %p84
    %p86 = scmp.ne.s32.totalorder %s78, %s80
    %p87 = scmp.eq.s32.totalorder %s14, 3
    %p88 = por %p86, %p87
    %p89 = scmp.ne.s32.totalorder %s80, %s81
    %p90 = scmp.eq.s32.totalorder %s14, 0
    %p91 = por %p89, %p90
    %p92 = scmp.ne.s32.totalorder %s80, %s81
    %p93 = scmp.eq.s32.totalorder %s15, 3
    %p94 = por %p92, %p93
    %p96 = scmp.ne.s32.totalorder %s81, %s95
    %p97 = scmp.eq.s32.totalorder %s15, 0
    %p98 = por %p96, %p97
    %s99 = ssub.s32 %s16, %s28
    %s100 = ssub.s32 %s17, %s24
    %s101 = sor.u32 %s99, %s100
    %p102 = scmp.eq.s32.totalorder %s101, 0
    %s104 = sadd.s32 %s103, 1
    %s105 = scalar_select %p102, %s103, %s104
    %p108 = pneg %p102
    %p109 = scmp.eq.s32.totalorder %s9, 3
    %p110 = por %p108, %p109
    %p111 = scmp.ne.s32.totalorder %s103, %s106
    %p112 = scmp.eq.s32.totalorder %s9, 0
    %p113 = por %p111, %p112
    %p114 = scmp.ne.s32.totalorder %s103, %s106
    %p115 = scmp.eq.s32.totalorder %s14, 3
    %p116 = por %p114, %p115
    %p117 = scmp.ne.s32.totalorder %s106, %s107
    %p118 = scmp.eq.s32.totalorder %s14, 0
    %p119 = por %p117, %p118
    %p120 = scmp.ne.s32.totalorder %s106, %s107
    %p121 = scmp.eq.s32.totalorder %s15, 3
    %p122 = por %p120, %p121
    %p124 = scmp.ne.s32.totalorder %s107, %s123
    %p125 = scmp.eq.s32.totalorder %s15, 0
    %p126 = por %p124, %p125
    %p127 = scmp.le.s32.totalorder 1, %s9
    %p128 = scmp.lt.s32.totalorder %s9, 5
    %p129 = pnand %p127, %p128
    %p130 = pneg %p129
    // Predicated region
    $region9: #{unet_conv_block.5} parent=5 // pred_check
      _
    $region10: #{unet_conv_block.5} parent=5 // pred_check_branch
      %132 = sbr.rel (%p129) target = $region12
    $region11: #{unet_conv_block.5} parent=5 // pred_region
      %s133 = ssub.s32 %s9, 1
      // Predicated region
      $region13: #{unet_conv_block.5} parent=11 // pred_check
        %p134 = pneg %p70
      $region14: #{unet_conv_block.5} parent=11 // pred_check_branch
        %136 = sbr.rel (%p134) target = $region16
      $region15: #{unet_conv_block.5} parent=11 // pred_region
        _
      $region16: #{unet_conv_block.5} parent=11 // pred_fallthru
        _
      // Predicated region
      $region17: #{unet_conv_block.5} parent=11 // pred_check
        %p137 = pneg %p91
      $region18: #{unet_conv_block.5} parent=11 // pred_check_branch
        %139 = sbr.rel (%p137) target = $region20
      $region19: #{unet_conv_block.5} parent=11 // pred_region
        _
      $region20: #{unet_conv_block.5} parent=11 // pred_fallthru
        _
    $region12: #{unet_conv_block.5} parent=5 // pred_fallthru
      _
    %p140 = scmp.lt.s32.totalorder %s9, 4
    // Predicated region
    $region21: #{unet_conv_block.5} parent=5 // pred_check
      %p141 = pneg %p140
    $region22: #{unet_conv_block.5} parent=5 // pred_check_branch
      %143 = sbr.rel (%p141) target = $region24
    $region23: #{unet_conv_block.5} parent=5 // pred_region
      // Predicated region
      $region25: #{unet_conv_block.5} parent=23 // pred_check
        %p144 = pneg %p43
      $region26: #{unet_conv_block.5} parent=23 // pred_check_branch
        %146 = sbr.rel (%p144) target = $region28
      $region27: #{unet_conv_block.5} parent=23 // pred_region
        %s147 = smul.u32 8, %s17
        %p148 = scmp.lt.s32.totalorder %s16, 1
        %s149 = scalar_select %p148, %s16, 1
        %p150 = scmp.lt.s32.totalorder %s147, 15
        %s151 = scalar_select %p150, %s147, 15
        %s152 = smul.addr %s151, 2
        %s153 = smul.addr %s149, 32
        %s154 = sadd.s32 %s152, %s153
        %s155 = smul.addr %s154, 8
        %s156 = scalar_lea.vmem %s0, %s155
        %s157 = smul.u32 8, %s17
      $region28: #{unet_conv_block.5} parent=23 // pred_fallthru
        _
    $region24: #{unet_conv_block.5} parent=5 // pred_fallthru
      _
    %p158 = scmp.le.s32.totalorder 1, %s9
    %p159 = scmp.lt.s32.totalorder %s9, 5
    %p160 = pnand %p158, %p159
    %p161 = pneg %p160
    // Predicated region
    $region29: #{unet_conv_block.5} parent=5 // pred_check
      _
    $region30: #{unet_conv_block.5} parent=5 // pred_check_branch
      %163 = sbr.rel (%p160) target = $region32
    $region31: #{unet_conv_block.5} parent=5 // pred_region
      %s164 = ssub.s32 %s9, 1
      %s165 = smul.u32 8, %s19
      %p166 = scmp.lt.s32.totalorder %s18, 1
      %s167 = scalar_select %p166, %s18, 1
      %p168 = scmp.lt.s32.totalorder %s165, 15
      %s169 = scalar_select %p168, %s165, 15
      %s170 = smul.addr %s169, 2
      %s171 = smul.addr %s167, 32
      %s172 = sadd.s32 %s170, %s171
      %s173 = smul.addr %s172, 8
      %s174 = scalar_lea.vmem %s0, %s173
      %p175 = pneg %p49
      %p176 = pneg %p46
      %p177 = pneg %p70
      %p178 = pneg %p67
      %p179 = pneg %p91
      %p180 = pneg %p88
      %p181 = pneg %p119
      %p182 = pneg %p116
      %s183 = smul.u32 8, %s19
      %p184 = scmp.lt.s32.totalorder %s18, 1
      %s185 = scalar_select %p184, %s18, 1
      %p186 = scmp.lt.s32.totalorder %s183, 15
      %s187 = scalar_select %p186, %s183, 15
      %s188 = smul.addr %s187, 2
      %s189 = smul.addr %s185, 32
      %s190 = sadd.s32 %s188, %s189
      %s191 = smul.addr %s190, 8
      %s192 = scalar_lea.vmem %s3, %s191
      %s193 = smul.u32 8, %s19
      %p194 = scmp.lt.s32.totalorder %s18, 1
      %s195 = scalar_select %p194, %s18, 1
      %p196 = scmp.lt.s32.totalorder %s193, 15
      %s197 = scalar_select %p196, %s193, 15
      %s198 = smul.addr %s197, 2
      %s199 = smul.addr %s195, 32
      %s200 = sadd.s32 %s198, %s199
      %s201 = smul.addr %s200, 8
      %s202 = scalar_lea.vmem %s0, %s201
      %s203 = smul.u32 8, %s19
      %s204 = smul.u32 8, %s19
      %p205 = scmp.lt.s32.totalorder %s18, 1
      %s206 = scalar_select %p205, %s18, 1
      %p207 = scmp.lt.s32.totalorder %s204, 15
      %s208 = scalar_select %p207, %s204, 15
      %s209 = smul.addr %s208, 2
      %s210 = smul.addr %s206, 32
      %s211 = sadd.s32 %s209, %s210
      %s212 = smul.addr %s211, 8
      %s213 = scalar_lea.vmem %s3, %s212
      %s214 = smul.u32 8, %s19
      %v215 = vld [vmem:[%s202] sm:$0xff]
      %v216 = vld [vmem:[%s202 + $0x8] sm:$0xff]
      %v217 = vld [vmem:[%s202 + $0x10] sm:$0xff]
      %v218 = vld [vmem:[%s202 + $0x18] sm:$0xff]
      %v219 = vld [vmem:[%s202 + $0x20] sm:$0xff]
      %v220 = vld [vmem:[%s202 + $0x28] sm:$0xff]
      %v221 = vld [vmem:[%s202 + $0x30] sm:$0xff]
      %v222 = vld [vmem:[%s202 + $0x38] sm:$0xff]
      %v223 = vld [vmem:[%s202 + $0x40] sm:$0xff]
      %v224 = vld [vmem:[%s202 + $0x48] sm:$0xff]
      %v225 = vld [vmem:[%s202 + $0x50] sm:$0xff]
      %v226 = vld [vmem:[%s202 + $0x58] sm:$0xff]
      %v227 = vld [vmem:[%s202 + $0x60] sm:$0xff]
      %v228 = vld [vmem:[%s202 + $0x68] sm:$0xff]
      %v229 = vld [vmem:[%s202 + $0x70] sm:$0xff]
      %v230 = vld [vmem:[%s202 + $0x78] sm:$0xff]
      %v231 = vld [vmem:[%s1] sm:$0x1]
      %v233 = vlaneseq
      %v234 = vshrl.u32 %v233, 7
      %v235 = vsub.s32 0, %v234
      %v236 = vrot.slane %v231, %v235
      %v238 = vmul.f32 %v215, %v236
      %v239 = vmul.f32 %v216, %v236
      %v240 = vmul.f32 %v217, %v236
      %v241 = vmul.f32 %v218, %v236
      %v242 = vmul.f32 %v219, %v236
      %v243 = vmul.f32 %v220, %v236
      %v244 = vmul.f32 %v221, %v236
      %v245 = vmul.f32 %v222, %v236
      %v246 = vmul.f32 %v223, %v236
      %v247 = vmul.f32 %v224, %v236
      %v248 = vmul.f32 %v225, %v236
      %v249 = vmul.f32 %v226, %v236
      %v250 = vmul.f32 %v227, %v236
      %v251 = vmul.f32 %v228, %v236
      %v252 = vmul.f32 %v229, %v236
      %v253 = vmul.f32 %v230, %v236
      %v254 = vld [vmem:[%s2] sm:$0x1]
      %v256 = vlaneseq
      %v257 = vshrl.u32 %v256, 7
      %v258 = vsub.s32 0, %v257
      %v259 = vrot.slane %v254, %v258
      %v261 = vadd.f32 %v238, %v259
      %v262 = vadd.f32 %v239, %v259
      %v263 = vadd.f32 %v240, %v259
      %v264 = vadd.f32 %v241, %v259
      %v265 = vadd.f32 %v242, %v259
      %v266 = vadd.f32 %v243, %v259
      %v267 = vadd.f32 %v244, %v259
      %v268 = vadd.f32 %v245, %v259
      %v269 = vadd.f32 %v246, %v259
      %v270 = vadd.f32 %v247, %v259
      %v271 = vadd.f32 %v248, %v259
      %v272 = vadd.f32 %v249, %v259
      %v273 = vadd.f32 %v250, %v259
      %v274 = vadd.f32 %v251, %v259
      %v275 = vadd.f32 %v252, %v259
      %v276 = vadd.f32 %v253, %v259
      %v277 = vmax.f32 %v261, 0.0
      %v278 = vmax.f32 %v262, 0.0
      %v279 = vmax.f32 %v263, 0.0
      %v280 = vmax.f32 %v264, 0.0
      %v281 = vmax.f32 %v265, 0.0
      %v282 = vmax.f32 %v266, 0.0
      %v283 = vmax.f32 %v267, 0.0
      %v284 = vmax.f32 %v268, 0.0
      %v285 = vmax.f32 %v269, 0.0
      %v286 = vmax.f32 %v270, 0.0
      %v287 = vmax.f32 %v271, 0.0
      %v288 = vmax.f32 %v272, 0.0
      %v289 = vmax.f32 %v273, 0.0
      %v290 = vmax.f32 %v274, 0.0
      %v291 = vmax.f32 %v275, 0.0
      %v292 = vmax.f32 %v276, 0.0
      %vm293 = vcmask 64512
      %294 = vst.msk [vmem:[%s213] sm:$0xff] %vm293, %v277
      %295 = vst.msk [vmem:[%s213 + $0x8] sm:$0xff] %vm293, %v278
      %296 = vst.msk [vmem:[%s213 + $0x10] sm:$0xff] %vm293, %v279
      %297 = vst.msk [vmem:[%s213 + $0x18] sm:$0xff] %vm293, %v280
      %298 = vst.msk [vmem:[%s213 + $0x20] sm:$0xff] %vm293, %v281
      %299 = vst.msk [vmem:[%s213 + $0x28] sm:$0xff] %vm293, %v282
      %300 = vst.msk [vmem:[%s213 + $0x30] sm:$0xff] %vm293, %v283
      %301 = vst.msk [vmem:[%s213 + $0x38] sm:$0xff] %vm293, %v284
      %302 = vst.msk [vmem:[%s213 + $0x40] sm:$0xff] %vm293, %v285
      %303 = vst.msk [vmem:[%s213 + $0x48] sm:$0xff] %vm293, %v286
      %304 = vst.msk [vmem:[%s213 + $0x50] sm:$0xff] %vm293, %v287
      %305 = vst.msk [vmem:[%s213 + $0x58] sm:$0xff] %vm293, %v288
      %306 = vst.msk [vmem:[%s213 + $0x60] sm:$0xff] %vm293, %v289
      %307 = vst.msk [vmem:[%s213 + $0x68] sm:$0xff] %vm293, %v290
      %308 = vst.msk [vmem:[%s213 + $0x70] sm:$0xff] %vm293, %v291
      %309 = vst.msk [vmem:[%s213 + $0x78] sm:$0xff] %vm293, %v292
      %s310 = smul.u32 8, %s19
      %p311 = scmp.lt.s32.totalorder %s18, 1
      %s312 = scalar_select %p311, %s18, 1
      %p313 = scmp.lt.s32.totalorder %s310, 15
      %s314 = scalar_select %p313, %s310, 15
      %s315 = smul.addr %s314, 2
      %s316 = smul.addr %s312, 32
      %s317 = sadd.s32 %s315, %s316
      %s318 = smul.addr %s317, 8
      %s319 = scalar_lea.vmem %s3, %s318
      // Predicated region
      $region33: #{unet_conv_block.5} parent=31 // pred_check
        %p320 = pneg %p116
      $region34: #{unet_conv_block.5} parent=31 // pred_check_branch
        %322 = sbr.rel (%p320) target = $region36
      $region35: #{unet_conv_block.5} parent=31 // pred_region
        %s323 = smul.u32 8, %s19
      $region36: #{unet_conv_block.5} parent=31 // pred_fallthru
        _
    $region32: #{unet_conv_block.5} parent=5 // pred_fallthru
      _
    %p324 = scmp.le.s32.totalorder 2, %s9
    // Predicated region
    $region37: #{unet_conv_block.5} parent=5 // pred_check
      %p325 = pneg %p324
    $region38: #{unet_conv_block.5} parent=5 // pred_check_branch
      %327 = sbr.rel (%p325) target = $region40
    $region39: #{unet_conv_block.5} parent=5 // pred_region
      %s328 = ssub.s32 %s9, 2
      // Predicated region
      $region41: #{unet_conv_block.5} parent=39 // pred_check
        %p329 = pneg %p122
      $region42: #{unet_conv_block.5} parent=39 // pred_check_branch
        %331 = sbr.rel (%p329) target = $region44
      $region43: #{unet_conv_block.5} parent=39 // pred_region
        %s332 = smul.u32 8, %s21
        %p333 = scmp.lt.s32.totalorder %s20, 1
        %s334 = scalar_select %p333, %s20, 1
        %p335 = scmp.lt.s32.totalorder %s332, 15
        %s336 = scalar_select %p335, %s332, 15
        %s337 = smul.addr %s336, 2
        %s338 = smul.addr %s334, 32
        %s339 = sadd.s32 %s337, %s338
        %s340 = smul.addr %s339, 8
        %s341 = scalar_lea.vmem %s3, %s340
      $region44: #{unet_conv_block.5} parent=39 // pred_fallthru
        _
    $region40: #{unet_conv_block.5} parent=5 // pred_fallthru
      _
  $region6: #{unet_conv_block.5} parent=0 // loop_footer
    %s13 = sadd.s32 1, %s9
  $region7: #{unet_conv_block.5} parent=0 // loop_footer_branch
    %8 = sbr.rel target = $region3
  $region8: #{unet_conv_block.5} parent=0 // loop_exit
    _

// kernel: unet_conv_block.3
$region0: #{unet_conv_block.3}
  #allocation0 [shape = 'u32[]', space=smem, size = 0x4, offset = 0x4, fixed_abs, tag = 'smem constant byte address 0x4 - core index']
  #allocation1 [shape = 'u32[144,128]{1,0:T(1,128)}', space=vmem, size = 0x12000, scoped, tag = 'internal scratch']
  #allocation2 [shape = 'f32[10,24,128]{2,1,0:T(8,128)}', space=vmem, size = 0x1e000, scoped, tag = 'scratch operand']
  #allocation3 [shape = 's32[3]{0}', space=sflag, size = 0xc, scoped, tag = 'scratch operand']
  #allocation4 [shape = 's32[]', space=sflag, size = 0x4, offset = 0, fixed_abs, tag = 'sflag constant byte address 0x0 - dummy sync flag']
  #allocation5 [shape = 's32[]', space=sflag, size = 0x4, offset = 0, fixed_abs, tag = 'sflag constant byte address 0x0 - dummy sync flag']
  #allocation6 [shape = 's32[]', space=sflag, size = 0x4, offset = 0, fixed_abs, tag = 'sflag constant byte address 0x0 - dummy sync flag']
  %s0 = inlined_call_operand.vmem [shape: f32[2,16,16,128], index: 0, kind: input, shape index: {}]
  %s1 = inlined_call_operand.vmem [shape: f32[3,3,128,128], index: 1, kind: input, shape index: {}]
  %s2 = inlined_call_operand.vmem [shape: f32[1,128], index: 2, kind: input, shape index: {}]
  %s3 = inlined_call_operand.vmem [shape: f32[1,128], index: 3, kind: input, shape index: {}]
  %s4 = inlined_call_operand.vmem [shape: f32[2,16,16,128], index: 4, kind: output, shape index: {0}]
  %s5 = inlined_call_operand.vmem [shape: f32[2,2,2,128], index: 5, kind: output, shape index: {1}]
  %6 = xla_tuple %s4, %s5
  %s7 = sld [smem:[#allocation0]]
  $region179: #{unet_conv_block.3} parent=0
    _
  %s9 = ssub.s32 1, %s7
  %s10 = scalar_select 0, %s9, %s7
  loop: start=0, step=1, limit=6
  $region2: #{unet_conv_block.3} parent=0 // loop_pre_header
    _
  $region3: #{unet_conv_block.3} parent=0 // loop_header
    %s12 = sphi 0, %s16
    %p13 = scmp.ge.s32.totalorder %s12, 6
    %s19 = sphi 0, %s31
    %s20 = sphi 0, %s27
    %s21 = sphi 0, %s19
    %s22 = sphi 0, %s20
    %s23 = sphi 0, %s21
    %s24 = sphi 0, %s22
    %s32 = sphi 0, %s32
    %s34 = sphi 0, %s32
    %s35 = sphi 0, %s34
    %s49 = sphi 0, %s35
    %s53 = sphi 0, %s53
    %s55 = sphi 0, %s53
    %s56 = sphi 0, %s55
    %s70 = sphi 0, %s56
    %s74 = sphi 0, %s74
    %s76 = sphi 0, %s74
    %s77 = sphi 0, %s76
    %s91 = sphi 0, %s77
    %s99 = sphi 0, %s101
    %s102 = sphi 0, %s99
    %s103 = sphi 0, %s102
    %s119 = sphi 0, %s103
    %s127 = sphi 0, %s129
    %s130 = sphi 0, %s127
    %s131 = sphi 0, %s130
    %s147 = sphi 0, %s131
  $region4: #{unet_conv_block.3} parent=0 // loop_header_branch
    %15 = sbr.rel (%p13) target = $region8
  $region5: #{unet_conv_block.3} parent=0 // loop_body
    %s17 = ssub.s32 %s12, 1
    %s18 = ssub.s32 %s12, 2
    %s25 = sadd.s32 1, %s20
    %p26 = scmp.ge.s32.totalorder %s25, 2
    %s27 = scalar_select %p26, 0, %s25
    %s28 = sadd.s32 1, %s19
    %s29 = scalar_select %p26, %s28, %s19
    %p30 = scmp.ge.s32.totalorder %s29, 2
    %s31 = scalar_select %p30, 0, %s29
    %s33 = sadd.s32 %s32, 1
    %p36 = scmp.eq.s32.totalorder %s12, 3
    %p37 = scmp.ne.s32.totalorder %s32, %s34
    %p38 = scmp.eq.s32.totalorder %s12, 0
    %p39 = por %p37, %p38
    %p40 = scmp.ne.s32.totalorder %s32, %s34
    %p41 = scmp.eq.s32.totalorder %s17, 3
    %p42 = por %p40, %p41
    %p43 = scmp.ne.s32.totalorder %s34, %s35
    %p44 = scmp.eq.s32.totalorder %s17, 0
    %p45 = por %p43, %p44
    %p46 = scmp.ne.s32.totalorder %s34, %s35
    %p47 = scmp.eq.s32.totalorder %s18, 3
    %p48 = por %p46, %p47
    %p50 = scmp.ne.s32.totalorder %s35, %s49
    %p51 = scmp.eq.s32.totalorder %s18, 0
    %p52 = por %p50, %p51
    %s54 = sadd.s32 %s53, 1
    %p57 = scmp.eq.s32.totalorder %s12, 3
    %p58 = scmp.ne.s32.totalorder %s53, %s55
    %p59 = scmp.eq.s32.totalorder %s12, 0
    %p60 = por %p58, %p59
    %p61 = scmp.ne.s32.totalorder %s53, %s55
    %p62 = scmp.eq.s32.totalorder %s17, 3
    %p63 = por %p61, %p62
    %p64 = scmp.ne.s32.totalorder %s55, %s56
    %p65 = scmp.eq.s32.totalorder %s17, 0
    %p66 = por %p64, %p65
    %p67 = scmp.ne.s32.totalorder %s55, %s56
    %p68 = scmp.eq.s32.totalorder %s18, 3
    %p69 = por %p67, %p68
    %p71 = scmp.ne.s32.totalorder %s56, %s70
    %p72 = scmp.eq.s32.totalorder %s18, 0
    %p73 = por %p71, %p72
    %s75 = sadd.s32 %s74, 1
    %p78 = scmp.eq.s32.totalorder %s12, 3
    %p79 = scmp.ne.s32.totalorder %s74, %s76
    %p80 = scmp.eq.s32.totalorder %s12, 0
    %p81 = por %p79, %p80
    %p82 = scmp.ne.s32.totalorder %s74, %s76
    %p83 = scmp.eq.s32.totalorder %s17, 3
    %p84 = por %p82, %p83
    %p85 = scmp.ne.s32.totalorder %s76, %s77
    %p86 = scmp.eq.s32.totalorder %s17, 0
    %p87 = por %p85, %p86
    %p88 = scmp.ne.s32.totalorder %s76, %s77
    %p89 = scmp.eq.s32.totalorder %s18, 3
    %p90 = por %p88, %p89
    %p92 = scmp.ne.s32.totalorder %s77, %s91
    %p93 = scmp.eq.s32.totalorder %s18, 0
    %p94 = por %p92, %p93
    %s95 = ssub.s32 %s19, %s31
    %s96 = ssub.s32 %s20, %s27
    %s97 = sor.u32 %s95, %s96
    %p98 = scmp.eq.s32.totalorder %s97, 0
    %s100 = sadd.s32 %s99, 1
    %s101 = scalar_select %p98, %s99, %s100
    %p104 = pneg %p98
    %p105 = scmp.eq.s32.totalorder %s12, 3
    %p106 = por %p104, %p105
    %p107 = scmp.ne.s32.totalorder %s99, %s102
    %p108 = scmp.eq.s32.totalorder %s12, 0
    %p109 = por %p107, %p108
    %p110 = scmp.ne.s32.totalorder %s99, %s102
    %p111 = scmp.eq.s32.totalorder %s17, 3
    %p112 = por %p110, %p111
    %p113 = scmp.ne.s32.totalorder %s102, %s103
    %p114 = scmp.eq.s32.totalorder %s17, 0
    %p115 = por %p113, %p114
    %p116 = scmp.ne.s32.totalorder %s102, %s103
    %p117 = scmp.eq.s32.totalorder %s18, 3
    %p118 = por %p116, %p117
    %p120 = scmp.ne.s32.totalorder %s103, %s119
    %p121 = scmp.eq.s32.totalorder %s18, 0
    %p122 = por %p120, %p121
    %s123 = ssub.s32 %s19, %s31
    %s124 = ssub.s32 %s20, %s27
    %s125 = sor.u32 %s123, %s124
    %p126 = scmp.eq.s32.totalorder %s125, 0
    %s128 = sadd.s32 %s127, 1
    %s129 = scalar_select %p126, %s127, %s128
    %p132 = pneg %p126
    %p133 = scmp.eq.s32.totalorder %s12, 3
    %p134 = por %p132, %p133
    %p135 = scmp.ne.s32.totalorder %s127, %s130
    %p136 = scmp.eq.s32.totalorder %s12, 0
    %p137 = por %p135, %p136
    %p138 = scmp.ne.s32.totalorder %s127, %s130
    %p139 = scmp.eq.s32.totalorder %s17, 3
    %p140 = por %p138, %p139
    %p141 = scmp.ne.s32.totalorder %s130, %s131
    %p142 = scmp.eq.s32.totalorder %s17, 0
    %p143 = por %p141, %p142
    %p144 = scmp.ne.s32.totalorder %s130, %s131
    %p145 = scmp.eq.s32.totalorder %s18, 3
    %p146 = por %p144, %p145
    %p148 = scmp.ne.s32.totalorder %s131, %s147
    %p149 = scmp.eq.s32.totalorder %s18, 0
    %p150 = por %p148, %p149
    %p151 = scmp.le.s32.totalorder 1, %s12
    %p152 = scmp.lt.s32.totalorder %s12, 5
    %p153 = pnand %p151, %p152
    %p154 = pneg %p153
    // Predicated region
    $region9: #{unet_conv_block.3} parent=5 // pred_check
      _
    $region10: #{unet_conv_block.3} parent=5 // pred_check_branch
      %156 = sbr.rel (%p153) target = $region12
    $region11: #{unet_conv_block.3} parent=5 // pred_region
      %s157 = ssub.s32 %s12, 1
      // Predicated region
      $region13: #{unet_conv_block.3} parent=11 // pred_check
        %p158 = pneg %p45
      $region14: #{unet_conv_block.3} parent=11 // pred_check_branch
        %160 = sbr.rel (%p158) target = $region16
      $region15: #{unet_conv_block.3} parent=11 // pred_region
        _
      $region16: #{unet_conv_block.3} parent=11 // pred_fallthru
        _
      // Predicated region
      $region17: #{unet_conv_block.3} parent=11 // pred_check
        %p161 = pneg %p66
      $region18: #{unet_conv_block.3} parent=11 // pred_check_branch
        %163 = sbr.rel (%p161) target = $region20
      $region19: #{unet_conv_block.3} parent=11 // pred_region
        _
      $region20: #{unet_conv_block.3} parent=11 // pred_fallthru
        _
      // Predicated region
      $region21: #{unet_conv_block.3} parent=11 // pred_check
        %p164 = pneg %p87
      $region22: #{unet_conv_block.3} parent=11 // pred_check_branch
        %166 = sbr.rel (%p164) target = $region24
      $region23: #{unet_conv_block.3} parent=11 // pred_region
        _
      $region24: #{unet_conv_block.3} parent=11 // pred_fallthru
        _
    $region12: #{unet_conv_block.3} parent=5 // pred_fallthru
      _
    %p167 = scmp.lt.s32.totalorder %s12, 4
    // Predicated region
    $region25: #{unet_conv_block.3} parent=5 // pred_check
      %p168 = pneg %p167
    $region26: #{unet_conv_block.3} parent=5 // pred_check_branch
      %170 = sbr.rel (%p168) target = $region28
    $region27: #{unet_conv_block.3} parent=5 // pred_region
      _
    $region28: #{unet_conv_block.3} parent=5 // pred_fallthru
      _
    %p171 = scmp.le.s32.totalorder 1, %s12
    %p172 = scmp.lt.s32.totalorder %s12, 5
    %p173 = pnand %p171, %p172
    %p174 = pneg %p173
    // Predicated region
    $region29: #{unet_conv_block.3} parent=5 // pred_check
      _
    $region30: #{unet_conv_block.3} parent=5 // pred_check_branch
      %176 = sbr.rel (%p173) target = $region32
    $region31: #{unet_conv_block.3} parent=5 // pred_region
      %s177 = ssub.s32 %s12, 1
      %p178 = pneg %p45
      %p179 = pneg %p42
      %p180 = pneg %p66
      %p181 = pneg %p63
      %p182 = pneg %p87
      %p183 = pneg %p84
      %p184 = pneg %p115
      %p185 = pneg %p112
      %s186 = smul.u32 8, %s22
      %p187 = scmp.lt.s32.totalorder %s21, 1
      %s188 = scalar_select %p187, %s21, 1
      %p189 = scmp.lt.s32.totalorder %s186, 15
      %s190 = scalar_select %p189, %s186, 15
      %s191 = smul.addr %s190, 2
      %s192 = smul.addr %s188, 32
      %s193 = sadd.s32 %s191, %s192
      %s194 = smul.addr %s193, 8
      %s195 = scalar_lea.vmem %s4, %s194
      %p196 = pneg %p143
      %p197 = pneg %p140
      %p198 = scmp.lt.s32.totalorder %s21, 1
      %s199 = scalar_select %p198, %s21, 1
      %p200 = scmp.lt.s32.totalorder %s22, 1
      %s201 = scalar_select %p200, %s22, 1
      %s202 = smul.addr %s199, 2
      %s203 = sadd.s32 %s201, %s202
      %s204 = smul.addr %s203, 2
      %s205 = scalar_lea.vmem %s5, %s204
      %s206 = smul.u32 8, %s22
      %p207 = scmp.lt.s32.totalorder %s21, 1
      %s208 = scalar_select %p207, %s21, 1
      %p209 = scmp.lt.s32.totalorder %s206, 15
      %s210 = scalar_select %p209, %s206, 15
      %s211 = smul.addr %s210, 2
      %s212 = smul.addr %s208, 32
      %s213 = sadd.s32 %s211, %s212
      %s214 = smul.addr %s213, 8
      %s215 = scalar_lea.vmem %s4, %s214
      %s216 = smul.u32 8, %s22
      %p217 = scmp.lt.s32.totalorder %s21, 1
      %s218 = scalar_select %p217, %s21, 1
      %p219 = scmp.lt.s32.totalorder %s22, 1
      %s220 = scalar_select %p219, %s22, 1
      %s221 = smul.addr %s218, 2
      %s222 = sadd.s32 %s220, %s221
      %s223 = smul.addr %s222, 2
      %s224 = scalar_lea.vmem %s5, %s223
      %s225 = smul.u32 %s22, 8
      %s226 = smul.u32 %s225, 16
      %s227 = smul.u32 %s21, 256
      %s228 = sadd.s32 %s226, %s227
      %s229 = scalar_lea.vmem %s0, %s228
      %s230 = scalar_lea.vmem [#allocation2], 24
      %p232 = scmp.lt.u32.totalorder 16, 8
      %p233 = pneg %p232
      // Predicated region
      $region33: #{unet_conv_block.3} parent=31 // pred_check
        _
      $region34: #{unet_conv_block.3} parent=31 // pred_check_branch
        %235 = sbr.rel (%p232) target = $region36
      $region35: #{unet_conv_block.3} parent=31 // pred_region
        %s264 = sand.u32 16, 7
        %p265 = scmp.eq.s32.totalorder %s264, 0
        // Predicated region
        $region48: #{unet_conv_block.3} parent=35 // pred_check
          %p266 = pneg %p265
        $region49: #{unet_conv_block.3} parent=35 // pred_check_branch
          %268 = sbr.rel (%p266) target = $region51
        $region50: #{unet_conv_block.3} parent=35 // pred_region
          loop: start=0, step=1, limit=1
          $region52: #{unet_conv_block.3} parent=50 // loop_pre_header
            _
          $region53: #{unet_conv_block.3} parent=50 // loop_header
            %s270 = sphi 0, %s274
            %p271 = scmp.ge.s32.totalorder %s270, 1
            %s275 = sphi %s229, %s229
            %s276 = sphi %s230, %s230
          $region54: #{unet_conv_block.3} parent=50 // loop_header_branch
            %273 = sbr.rel (%p271) target = $region58
          $region55: #{unet_conv_block.3} parent=50 // loop_body
            %v277 = vld [vmem:[%s275] sm:$0xff]
            %278 = vst [vmem:[%s276] sm:$0xff] %v277
            %v279 = vld [vmem:[%s275 + $0x8] sm:$0xff]
            %280 = vst [vmem:[%s276 + $0x8] sm:$0xff] %v279
            %v281 = vld [vmem:[%s275 + $0x10] sm:$0xff]
            %282 = vst [vmem:[%s276 + $0x18] sm:$0xff] %v281
            %v283 = vld [vmem:[%s275 + $0x18] sm:$0xff]
            %284 = vst [vmem:[%s276 + $0x20] sm:$0xff] %v283
            %v285 = vld [vmem:[%s275 + $0x20] sm:$0xff]
            %286 = vst [vmem:[%s276 + $0x30] sm:$0xff] %v285
            %v287 = vld [vmem:[%s275 + $0x28] sm:$0xff]
            %288 = vst [vmem:[%s276 + $0x38] sm:$0xff] %v287
            %v289 = vld [vmem:[%s275 + $0x30] sm:$0xff]
            %290 = vst [vmem:[%s276 + $0x48] sm:$0xff] %v289
            %v291 = vld [vmem:[%s275 + $0x38] sm:$0xff]
            %292 = vst [vmem:[%s276 + $0x50] sm:$0xff] %v291
            %v293 = vld [vmem:[%s275 + $0x40] sm:$0xff]
            %294 = vst [vmem:[%s276 + $0x60] sm:$0xff] %v293
            %v295 = vld [vmem:[%s275 + $0x48] sm:$0xff]
            %296 = vst [vmem:[%s276 + $0x68] sm:$0xff] %v295
            %v297 = vld [vmem:[%s275 + $0x50] sm:$0xff]
            %298 = vst [vmem:[%s276 + $0x78] sm:$0xff] %v297
            %v299 = vld [vmem:[%s275 + $0x58] sm:$0xff]
            %300 = vst [vmem:[%s276 + $0x80] sm:$0xff] %v299
            %v301 = vld [vmem:[%s275 + $0x60] sm:$0xff]
            %302 = vst [vmem:[%s276 + $0x90] sm:$0xff] %v301
            %v303 = vld [vmem:[%s275 + $0x68] sm:$0xff]
            %304 = vst [vmem:[%s276 + $0x98] sm:$0xff] %v303
            %v305 = vld [vmem:[%s275 + $0x70] sm:$0xff]
            %306 = vst [vmem:[%s276 + $0xa8] sm:$0xff] %v305
            %v307 = vld [vmem:[%s275 + $0x78] sm:$0xff]
            %308 = vst [vmem:[%s276 + $0xb0] sm:$0xff] %v307
          $region56: #{unet_conv_block.3} parent=50 // loop_footer
            %s274 = sadd.s32 1, %s270
          $region57: #{unet_conv_block.3} parent=50 // loop_footer_branch
            %269 = sbr.rel target = $region53
          $region58: #{unet_conv_block.3} parent=50 // loop_exit
            _
        $region51: #{unet_conv_block.3} parent=35 // pred_fallthru
          _
        %p309 = pneg %p265
        // Predicated region
        $region59: #{unet_conv_block.3} parent=35 // pred_check
          _
        $region60: #{unet_conv_block.3} parent=35 // pred_check_branch
          %311 = sbr.rel (%p265) target = $region62
        $region61: #{unet_conv_block.3} parent=35 // pred_region
          %s312 = sand.u32 16, 7
        $region62: #{unet_conv_block.3} parent=35 // pred_fallthru
          _
      $region36: #{unet_conv_block.3} parent=31 // pred_fallthru
        _
      // Predicated region
      $region37: #{unet_conv_block.3} parent=31 // pred_check
        %p236 = pneg %p232
      $region38: #{unet_conv_block.3} parent=31 // pred_check_branch
        %238 = sbr.rel (%p236) target = $region40
      $region39: #{unet_conv_block.3} parent=31 // pred_region
        %s239 = sshllo.u32 0, 16
        loop: start=0, step=1, limit=1
        $region41: #{unet_conv_block.3} parent=39 // loop_pre_header
          _
        $region42: #{unet_conv_block.3} parent=39 // loop_header
          %s241 = sphi 0, %s245
          %p242 = scmp.ge.s32.totalorder %s241, 1
          %s246 = sphi %s229, %s229
          %s247 = sphi %s230, %s230
        $region43: #{unet_conv_block.3} parent=39 // loop_header_branch
          %244 = sbr.rel (%p242) target = $region47
        $region44: #{unet_conv_block.3} parent=39 // loop_body
          %v248 = vld [vmem:[%s246] sm:%s239]
          %249 = vst [vmem:[%s247] sm:%s239] %v248
          %v250 = vld [vmem:[%s246 + $0x10] sm:%s239]
          %251 = vst [vmem:[%s247 + $0x18] sm:%s239] %v250
          %v252 = vld [vmem:[%s246 + $0x20] sm:%s239]
          %253 = vst [vmem:[%s247 + $0x30] sm:%s239] %v252
          %v254 = vld [vmem:[%s246 + $0x30] sm:%s239]
          %255 = vst [vmem:[%s247 + $0x48] sm:%s239] %v254
          %v256 = vld [vmem:[%s246 + $0x40] sm:%s239]
          %257 = vst [vmem:[%s247 + $0x60] sm:%s239] %v256
          %v258 = vld [vmem:[%s246 + $0x50] sm:%s239]
          %259 = vst [vmem:[%s247 + $0x78] sm:%s239] %v258
          %v260 = vld [vmem:[%s246 + $0x60] sm:%s239]
          %261 = vst [vmem:[%s247 + $0x90] sm:%s239] %v260
          %v262 = vld [vmem:[%s246 + $0x70] sm:%s239]
          %263 = vst [vmem:[%s247 + $0xa8] sm:%s239] %v262
        $region45: #{unet_conv_block.3} parent=39 // loop_footer
          %s245 = sadd.s32 1, %s241
        $region46: #{unet_conv_block.3} parent=39 // loop_footer_branch
          %240 = sbr.rel target = $region42
        $region47: #{unet_conv_block.3} parent=39 // loop_exit
          _
      $region40: #{unet_conv_block.3} parent=31 // pred_fallthru
        _
      // Predicated region
      $region63: #{unet_conv_block.3} parent=31 // pred_check
        _
      $region64: #{unet_conv_block.3} parent=31 // pred_check_branch
        %315 = sbr.rel (0) target = $region66
      $region65: #{unet_conv_block.3} parent=31 // pred_region
        %316 = vsyncadd [#allocation3], 2048
      $region66: #{unet_conv_block.3} parent=31 // pred_fallthru
        _
      %p317 = scmp.gt.s32.totalorder %s22, 0
      // Predicated region
      $region67: #{unet_conv_block.3} parent=31 // pred_check
        %p318 = pneg %p317
      $region68: #{unet_conv_block.3} parent=31 // pred_check_branch
        %320 = sbr.rel (%p318) target = $region70
      $region69: #{unet_conv_block.3} parent=31 // pred_region
        %s321 = ssub.s32 %s225, 1
        %s322 = smul.u32 %s321, 16
        %s323 = sadd.s32 %s322, %s227
        %s324 = scalar_lea.vmem %s0, %s323
        %s325 = scalar_lea.sflag [#allocation3], 1
        %p327 = scmp.lt.u32.totalorder 16, 8
        %p328 = pneg %p327
        // Predicated region
        $region71: #{unet_conv_block.3} parent=69 // pred_check
          _
        $region72: #{unet_conv_block.3} parent=69 // pred_check_branch
          %330 = sbr.rel (%p327) target = $region74
        $region73: #{unet_conv_block.3} parent=69 // pred_region
          %s345 = sand.u32 16, 7
          %p346 = scmp.eq.s32.totalorder %s345, 0
          // Predicated region
          $region86: #{unet_conv_block.3} parent=73 // pred_check
            %p347 = pneg %p346
          $region87: #{unet_conv_block.3} parent=73 // pred_check_branch
            %349 = sbr.rel (%p347) target = $region89
          $region88: #{unet_conv_block.3} parent=73 // pred_region
            loop: start=0, step=1, limit=1
            $region90: #{unet_conv_block.3} parent=88 // loop_pre_header
              _
            $region91: #{unet_conv_block.3} parent=88 // loop_header
              %s351 = sphi 0, %s355
              %p352 = scmp.ge.s32.totalorder %s351, 1
              %s356 = sphi %s324, %s324
              %s357 = sphi [#allocation2], [#allocation2]
            $region92: #{unet_conv_block.3} parent=88 // loop_header_branch
              %354 = sbr.rel (%p352) target = $region96
            $region93: #{unet_conv_block.3} parent=88 // loop_body
              %v358 = vld [vmem:[%s356] sm:$0xff]
              %359 = vst [vmem:[%s357] sm:$0xff] %v358
              %v360 = vld [vmem:[%s356 + $0x8] sm:$0xff]
              %361 = vst [vmem:[%s357 + $0x8] sm:$0xff] %v360
            $region94: #{unet_conv_block.3} parent=88 // loop_footer
              %s355 = sadd.s32 1, %s351
            $region95: #{unet_conv_block.3} parent=88 // loop_footer_branch
              %350 = sbr.rel target = $region91
            $region96: #{unet_conv_block.3} parent=88 // loop_exit
              _
          $region89: #{unet_conv_block.3} parent=73 // pred_fallthru
            _
          %p362 = pneg %p346
          // Predicated region
          $region97: #{unet_conv_block.3} parent=73 // pred_check
            _
          $region98: #{unet_conv_block.3} parent=73 // pred_check_branch
            %364 = sbr.rel (%p346) target = $region100
          $region99: #{unet_conv_block.3} parent=73 // pred_region
            %s365 = sand.u32 16, 7
          $region100: #{unet_conv_block.3} parent=73 // pred_fallthru
            _
        $region74: #{unet_conv_block.3} parent=69 // pred_fallthru
          _
        // Predicated region
        $region75: #{unet_conv_block.3} parent=69 // pred_check
          %p331 = pneg %p327
        $region76: #{unet_conv_block.3} parent=69 // pred_check_branch
          %333 = sbr.rel (%p331) target = $region78
        $region77: #{unet_conv_block.3} parent=69 // pred_region
          %s334 = sshllo.u32 0, 16
          loop: start=0, step=1, limit=1
          $region79: #{unet_conv_block.3} parent=77 // loop_pre_header
            _
          $region80: #{unet_conv_block.3} parent=77 // loop_header
            %s336 = sphi 0, %s340
            %p337 = scmp.ge.s32.totalorder %s336, 1
            %s341 = sphi %s324, %s324
            %s342 = sphi [#allocation2], [#allocation2]
          $region81: #{unet_conv_block.3} parent=77 // loop_header_branch
            %339 = sbr.rel (%p337) target = $region85
          $region82: #{unet_conv_block.3} parent=77 // loop_body
            %v343 = vld [vmem:[%s341] sm:%s334]
            %344 = vst [vmem:[%s342] sm:%s334] %v343
          $region83: #{unet_conv_block.3} parent=77 // loop_footer
            %s340 = sadd.s32 1, %s336
          $region84: #{unet_conv_block.3} parent=77 // loop_footer_branch
            %335 = sbr.rel target = $region80
          $region85: #{unet_conv_block.3} parent=77 // loop_exit
            _
        $region78: #{unet_conv_block.3} parent=69 // pred_fallthru
          _
        // Predicated region
        $region101: #{unet_conv_block.3} parent=69 // pred_check
          _
        $region102: #{unet_conv_block.3} parent=69 // pred_check_branch
          %368 = sbr.rel (0) target = $region104
        $region103: #{unet_conv_block.3} parent=69 // pred_region
          %369 = vsyncadd %s325, 256
        $region104: #{unet_conv_block.3} parent=69 // pred_fallthru
          _
      $region70: #{unet_conv_block.3} parent=31 // pred_fallthru
        _
      %p370 = scmp.lt.s32.totalorder %s22, 1
      // Predicated region
      $region105: #{unet_conv_block.3} parent=31 // pred_check
        %p371 = pneg %p370
      $region106: #{unet_conv_block.3} parent=31 // pred_check_branch
        %373 = sbr.rel (%p371) target = $region108
      $region107: #{unet_conv_block.3} parent=31 // pred_region
        %s374 = sadd.s32 %s225, 8
        %s375 = smul.u32 %s374, 16
        %s376 = sadd.s32 %s375, %s227
        %s377 = scalar_lea.vmem %s0, %s376
        %s378 = scalar_lea.vmem [#allocation2], 216
        %s379 = scalar_lea.sflag [#allocation3], 2
        %p381 = scmp.lt.u32.totalorder 16, 8
        %p382 = pneg %p381
        // Predicated region
        $region109: #{unet_conv_block.3} parent=107 // pred_check
          _
        $region110: #{unet_conv_block.3} parent=107 // pred_check_branch
          %384 = sbr.rel (%p381) target = $region112
        $region111: #{unet_conv_block.3} parent=107 // pred_region
          %s399 = sand.u32 16, 7
          %p400 = scmp.eq.s32.totalorder %s399, 0
          // Predicated region
          $region124: #{unet_conv_block.3} parent=111 // pred_check
            %p401 = pneg %p400
          $region125: #{unet_conv_block.3} parent=111 // pred_check_branch
            %403 = sbr.rel (%p401) target = $region127
          $region126: #{unet_conv_block.3} parent=111 // pred_region
            loop: start=0, step=1, limit=1
            $region128: #{unet_conv_block.3} parent=126 // loop_pre_header
              _
            $region129: #{unet_conv_block.3} parent=126 // loop_header
              %s405 = sphi 0, %s409
              %p406 = scmp.ge.s32.totalorder %s405, 1
              %s410 = sphi %s377, %s377
              %s411 = sphi %s378, %s378
            $region130: #{unet_conv_block.3} parent=126 // loop_header_branch
              %408 = sbr.rel (%p406) target = $region134
            $region131: #{unet_conv_block.3} parent=126 // loop_body
              %v412 = vld [vmem:[%s410] sm:$0xff]
              %413 = vst [vmem:[%s411] sm:$0xff] %v412
              %v414 = vld [vmem:[%s410 + $0x8] sm:$0xff]
              %415 = vst [vmem:[%s411 + $0x8] sm:$0xff] %v414
            $region132: #{unet_conv_block.3} parent=126 // loop_footer
              %s409 = sadd.s32 1, %s405
            $region133: #{unet_conv_block.3} parent=126 // loop_footer_branch
              %404 = sbr.rel target = $region129
            $region134: #{unet_conv_block.3} parent=126 // loop_exit
              _
          $region127: #{unet_conv_block.3} parent=111 // pred_fallthru
            _
          %p416 = pneg %p400
          // Predicated region
          $region135: #{unet_conv_block.3} parent=111 // pred_check
            _
          $region136: #{unet_conv_block.3} parent=111 // pred_check_branch
            %418 = sbr.rel (%p400) target = $region138
          $region137: #{unet_conv_block.3} parent=111 // pred_region
            %s419 = sand.u32 16, 7
          $region138: #{unet_conv_block.3} parent=111 // pred_fallthru
            _
        $region112: #{unet_conv_block.3} parent=107 // pred_fallthru
          _
        // Predicated region
        $region113: #{unet_conv_block.3} parent=107 // pred_check
          %p385 = pneg %p381
        $region114: #{unet_conv_block.3} parent=107 // pred_check_branch
          %387 = sbr.rel (%p385) target = $region116
        $region115: #{unet_conv_block.3} parent=107 // pred_region
          %s388 = sshllo.u32 0, 16
          loop: start=0, step=1, limit=1
          $region117: #{unet_conv_block.3} parent=115 // loop_pre_header
            _
          $region118: #{unet_conv_block.3} parent=115 // loop_header
            %s390 = sphi 0, %s394
            %p391 = scmp.ge.s32.totalorder %s390, 1
            %s395 = sphi %s377, %s377
            %s396 = sphi %s378, %s378
          $region119: #{unet_conv_block.3} parent=115 // loop_header_branch
            %393 = sbr.rel (%p391) target = $region123
          $region120: #{unet_conv_block.3} parent=115 // loop_body
            %v397 = vld [vmem:[%s395] sm:%s388]
            %398 = vst [vmem:[%s396] sm:%s388] %v397
          $region121: #{unet_conv_block.3} parent=115 // loop_footer
            %s394 = sadd.s32 1, %s390
          $region122: #{unet_conv_block.3} parent=115 // loop_footer_branch
            %389 = sbr.rel target = $region118
          $region123: #{unet_conv_block.3} parent=115 // loop_exit
            _
        $region116: #{unet_conv_block.3} parent=107 // pred_fallthru
          _
        // Predicated region
        $region139: #{unet_conv_block.3} parent=107 // pred_check
          _
        $region140: #{unet_conv_block.3} parent=107 // pred_check_branch
          %422 = sbr.rel (0) target = $region142
        $region141: #{unet_conv_block.3} parent=107 // pred_region
          %423 = vsyncadd %s379, 256
        $region142: #{unet_conv_block.3} parent=107 // pred_fallthru
          _
      $region108: #{unet_conv_block.3} parent=31 // pred_fallthru
        _
      %s424 = smul.u32 8, 16
      %s425 = smul.u32 %s424, 1
      %s426 = sshll.u32 %s425, 4
      %427 = dma.done [#allocation3], %s426
      // Predicated region
      $region143: #{unet_conv_block.3} parent=31 // pred_check
        %p428 = pneg %p317
      $region144: #{unet_conv_block.3} parent=31 // pred_check_branch
        %430 = sbr.rel (%p428) target = $region146
      $region145: #{unet_conv_block.3} parent=31 // pred_region
        %s431 = scalar_lea.sflag [#allocation3], 1
        %s432 = smul.u32 1, 16
        %s433 = smul.u32 %s432, 1
        %s434 = sshll.u32 %s433, 4
        %435 = dma.done %s431, %s434
      $region146: #{unet_conv_block.3} parent=31 // pred_fallthru
        _
      // Predicated region
      $region147: #{unet_conv_block.3} parent=31 // pred_check
        %p436 = pneg %p370
      $region148: #{unet_conv_block.3} parent=31 // pred_check_branch
        %438 = sbr.rel (%p436) target = $region150
      $region149: #{unet_conv_block.3} parent=31 // pred_region
        %s439 = scalar_lea.sflag [#allocation3], 2
        %s440 = smul.u32 1, 16
        %s441 = smul.u32 %s440, 1
        %s442 = sshll.u32 %s441, 4
        %443 = dma.done %s439, %s442
      $region150: #{unet_conv_block.3} parent=31 // pred_fallthru
        _
      %444 = vst [vmem:[#allocation2 + $0x10] sm:$0xff] 0.0
      %445 = vst [vmem:[#allocation2 + $0x28] sm:$0xff] 0.0
      %446 = vst [vmem:[#allocation2 + $0x40] sm:$0xff] 0.0
      %447 = vst [vmem:[#allocation2 + $0x58] sm:$0xff] 0.0
      %448 = vst [vmem:[#allocation2 + $0x70] sm:$0xff] 0.0
      %449 = vst [vmem:[#allocation2 + $0x88] sm:$0xff] 0.0
      %450 = vst [vmem:[#allocation2 + $0xa0] sm:$0xff] 0.0
      %451 = vst [vmem:[#allocation2 + $0xb8] sm:$0xff] 0.0
      %452 = vst [vmem:[#allocation2 + $0xd0] sm:$0xff] 0.0
      %453 = vst [vmem:[#allocation2 + $0xe8] sm:$0xff] 0.0
      %p454 = scmp.eq.s32.totalorder %s22, 0
      // Predicated region
      $region151: #{unet_conv_block.3} parent=31 // pred_check
        %p455 = pneg %p454
      $region152: #{unet_conv_block.3} parent=31 // pred_check_branch
        %457 = sbr.rel (%p455) target = $region154
      $region153: #{unet_conv_block.3} parent=31 // pred_region
        %458 = vst [vmem:[#allocation2] sm:$0xff] 0.0
        %459 = vst [vmem:[#allocation2 + $0x8] sm:$0xff] 0.0
        %460 = vst [vmem:[#allocation2 + $0x10] sm:$0xff] 0.0
      $region154: #{unet_conv_block.3} parent=31 // pred_fallthru
        _
      %p461 = scmp.eq.s32.totalorder %s22, 1
      // Predicated region
      $region155: #{unet_conv_block.3} parent=31 // pred_check
        %p462 = pneg %p461
      $region156: #{unet_conv_block.3} parent=31 // pred_check_branch
        %464 = sbr.rel (%p462) target = $region158
      $region157: #{unet_conv_block.3} parent=31 // pred_region
        %s465 = scalar_lea.vmem [#allocation2], 216
        %466 = vst [vmem:[%s465] sm:$0xff] 0.0
        %467 = vst [vmem:[%s465 + $0x8] sm:$0xff] 0.0
        %468 = vst [vmem:[%s465 + $0x10] sm:$0xff] 0.0
      $region158: #{unet_conv_block.3} parent=31 // pred_fallthru
        _
      %v469 = vld [vmem:[#allocation2] sm:$0xff]
      %v470 = vld [vmem:[#allocation2 + $0x8] sm:$0xff]
      %v471 = vld [vmem:[#allocation2 + $0x10] sm:$0xff]
      %v472 = vld [vmem:[#allocation2 + $0x18] sm:$0xff]
      %v473 = vld [vmem:[#allocation2 + $0x20] sm:$0xff]
      %v474 = vld [vmem:[#allocation2 + $0x28] sm:$0xff]
      %v475 = vld [vmem:[#allocation2 + $0x30] sm:$0xff]
      %v476 = vld [vmem:[#allocation2 + $0x38] sm:$0xff]
      %v477 = vld [vmem:[#allocation2 + $0x40] sm:$0xff]
      %v478 = vld [vmem:[#allocation2 + $0x48] sm:$0xff]
      %v479 = vld [vmem:[#allocation2 + $0x50] sm:$0xff]
      %v480 = vld [vmem:[#allocation2 + $0x58] sm:$0xff]
      %v481 = vld [vmem:[#allocation2 + $0x60] sm:$0xff]
      %v482 = vld [vmem:[#allocation2 + $0x68] sm:$0xff]
      %v483 = vld [vmem:[#allocation2 + $0x70] sm:$0xff]
      %v484 = vld [vmem:[#allocation2 + $0x78] sm:$0xff]
      %v485 = vld [vmem:[#allocation2 + $0x80] sm:$0xff]
      %v486 = vld [vmem:[#allocation2 + $0x88] sm:$0xff]
      %v487 = vld [vmem:[#allocation2 + $0x90] sm:$0xff]
      %v488 = vld [vmem:[#allocation2 + $0x98] sm:$0xff]
      %v489 = vld [vmem:[#allocation2 + $0xa0] sm:$0xff]
      %v490 = vld [vmem:[#allocation2 + $0xa8] sm:$0xff]
      %v491 = vld [vmem:[#allocation2 + $0xb0] sm:$0xff]
      %v492 = vld [vmem:[#allocation2 + $0xb8] sm:$0xff]
      %v493 = vld [vmem:[%s1] sm:$0xff]
      %v494 = vld [vmem:[%s1 + $0x8] sm:$0xff]
      %v495 = vld [vmem:[%s1 + $0x10] sm:$0xff]
      %v496 = vld [vmem:[%s1 + $0x18] sm:$0xff]
      %v497 = vld [vmem:[%s1 + $0x20] sm:$0xff]
      %v498 = vld [vmem:[%s1 + $0x28] sm:$0xff]
      %v499 = vld [vmem:[%s1 + $0x30] sm:$0xff]
      %v500 = vld [vmem:[%s1 + $0x38] sm:$0xff]
      %v501 = vld [vmem:[%s1 + $0x40] sm:$0xff]
      %v502 = vld [vmem:[%s1 + $0x48] sm:$0xff]
      %v503 = vld [vmem:[%s1 + $0x50] sm:$0xff]
      %v504 = vld [vmem:[%s1 + $0x58] sm:$0xff]
      %v505 = vld [vmem:[%s1 + $0x60] sm:$0xff]
      %v506 = vld [vmem:[%s1 + $0x68] sm:$0xff]
      %v507 = vld [vmem:[%s1 + $0x70] sm:$0xff]
      %v508 = vld [vmem:[%s1 + $0x78] sm:$0xff]
      %509 = vmatprep.subr.mxu0 0.0
      %510 = vmatpush1.msra.mxu0 %v493
      %511 = vmatprep.subr.mxu0 0.0
      %512 = vmatpush1.msra.mxu0 %v494
      %513 = vmatprep.subr.mxu0 0.0
      %514 = vmatpush1.msra.mxu0 %v495
      %515 = vmatprep.subr.mxu0 0.0
      %516 = vmatpush1.msra.mxu0 %v496
      %517 = vmatprep.subr.mxu0 0.0
      %518 = vmatpush1.msra.mxu0 %v497
      %519 = vmatprep.subr.mxu0 0.0
      %520 = vmatpush1.msra.mxu0 %v498
      %521 = vmatprep.subr.mxu0 0.0
      %522 = vmatpush1.msra.mxu0 %v499
      %523 = vmatprep.subr.mxu0 0.0
      %524 = vmatpush1.msra.mxu0 %v500
      %525 = vmatprep.subr.mxu0 0.0
      %526 = vmatpush1.msra.mxu0 %v501
      %527 = vmatprep.subr.mxu0 0.0
      %528 = vmatpush1.msra.mxu0 %v502
      %529 = vmatprep.subr.mxu0 0.0
      %530 = vmatpush1.msra.mxu0 %v503
      %531 = vmatprep.subr.mxu0 0.0
      %532 = vmatpush1.msra.mxu0 %v504
      %533 = vmatprep.subr.mxu0 0.0
      %534 = vmatpush1.msra.mxu0 %v505
      %535 = vmatprep.subr.mxu0 0.0
      %536 = vmatpush1.msra.mxu0 %v506
      %537 = vmatprep.subr.mxu0 0.0
      %538 = vmatpush1.msra.mxu0 %v507
      %539 = vmatprep.subr.mxu0 0.0
      %540 = vmatpush1.msra.mxu0 %v508
      %541 = vmatprep.subr.mxu0 0.0
      %542 = vmatpush1.msra.mxu0 0.0
      %543 = vmatprep.subr.mxu0 0.0
      %544 = vmatpush1.msra.mxu0 0.0
      %545 = vmatprep.subr.mxu0 0.0
      %546 = vmatpush1.msra.mxu0 0.0
      %547 = vmatprep.subr.mxu0 0.0
      %548 = vmatpush1.msra.mxu0 0.0
      %549 = vmatprep.subr.mxu0 0.0
      %550 = vmatpush1.msra.mxu0 0.0
      %551 = vmatprep.subr.mxu0 0.0
      %552 = vmatpush1.msra.mxu0 0.0
      %553 = vmatprep.subr.mxu0 0.0
      %554 = vmatpush1.msra.mxu0 0.0
      %555 = vmatprep.subr.mxu0 0.0
      %556 = vmatpush1.msra.mxu0 0.0
      %557 = vmatprep.subr.mxu0 0.0
      %558 = vmatpush1.msra.mxu0 0.0
      %559 = vmatprep.subr.mxu0 0.0
      %560 = vmatpush1.msra.mxu0 0.0
      %561 = vmatprep.subr.mxu0 0.0
      %562 = vmatpush1.msra.mxu0 0.0
      %563 = vmatprep.subr.mxu0 0.0
      %564 = vmatpush1.msra.mxu0 0.0
      %565 = vmatprep.subr.mxu0 0.0
      %566 = vmatpush1.msra.mxu0 0.0
      %567 = vmatprep.subr.mxu0 0.0
      %568 = vmatpush1.msra.mxu0 0.0
      %569 = vmatprep.subr.mxu0 0.0
      %570 = vmatpush1.msra.mxu0 0.0
      %571 = vmatprep.subr.mxu0 0.0
      %572 = vmatpush1.msra.mxu0 0.0
      %573 = vmatprep.mubr.f32.mxu0 0.0
      %574 = vmatmul.mubr.f32.gmra.mrb[0].mxu0 %v469
      %v575 = vpop.f32.mrb[0].mxu0
      %v576 = vadd.f32 0.0, %v575
      %v577 = vpop.f32.mrb[0].mxu0
      %578 = vmatprep.mubr.f32.mxu0 0.0
      %579 = vmatmul.mubr.f32.gmra.mrb[0].mxu0 %v470
      %v580 = vpop.f32.mrb[0].mxu0
      %v581 = vadd.f32 0.0, %v580
      %v582 = vpop.f32.mrb[0].mxu0
      %583 = vmatprep.mubr.f32.mxu0 0.0
      %584 = vmatmul.mubr.f32.gmra.mrb[0].mxu0 %v471
      %v585 = vpop.f32.mrb[0].mxu0
      %v586 = vadd.f32 0.0, %v585
      %v587 = vpop.f32.mrb[0].mxu0
      %588 = vmatprep.mubr.f32.mxu0 0.0
      %589 = vmatmul.mubr.f32.gmra.mrb[0].mxu0 %v472
      %v590 = vpop.f32.mrb[0].mxu0
      %v591 = vadd.f32 0.0, %v590
      %v592 = vpop.f32.mrb[0].mxu0
      %593 = vmatprep.mubr.f32.mxu0 0.0
      %594 = vmatmul.mubr.f32.gmra.mrb[0].mxu0 %v473
      %v595 = vpop.f32.mrb[0].mxu0
      %v596 = vadd.f32 0.0, %v595
      %v597 = vpop.f32.mrb[0].mxu0
      %598 = vmatprep.mubr.f32.mxu0 0.0
      %599 = vmatmul.mubr.f32.gmra.mrb[0].mxu0 %v474
      %v600 = vpop.f32.mrb[0].mxu0
      %v601 = vadd.f32 0.0, %v600
      %v602 = vpop.f32.mrb[0].mxu0
      %603 = vmatprep.mubr.f32.mxu0 0.0
      %604 = vmatmul.mubr.f32.gmra.mrb[0].mxu0 %v475
      %v605 = vpop.f32.mrb[0].mxu0
      %v606 = vadd.f32 0.0, %v605
      %v607 = vpop.f32.mrb[0].mxu0
      %608 = vmatprep.mubr.f32.mxu0 0.0
      %609 = vmatmul.mubr.f32.gmra.mrb[0].mxu0 %v476
      %v610 = vpop.f32.mrb[0].mxu0
      %v611 = vadd.f32 0.0, %v610
      %v612 = vpop.f32.mrb[0].mxu0
      %613 = vmatprep.mubr.f32.mxu0 0.0
      %614 = vmatmul.mubr.f32.gmra.mrb[0].mxu0 %v477
      %v615 = vpop.f32.mrb[0].mxu0
      %v616 = vadd.f32 0.0, %v615
      %v617 = vpop.f32.mrb[0].mxu0
      %618 = vmatprep.mubr.f32.mxu0 0.0
      %619 = vmatmul.mubr.f32.gmra.mrb[0].mxu0 %v478
      %v620 = vpop.f32.mrb[0].mxu0
      %v621 = vadd.f32 0.0, %v620
      %v622 = vpop.f32.mrb[0].mxu0
      %623 = vmatprep.mubr.f32.mxu0 0.0
      %624 = vmatmul.mubr.f32.gmra.mrb[0].mxu0 %v479
      %v625 = vpop.f32.mrb[0].mxu0
      %v626 = vadd.f32 0.0, %v625
      %v627 = vpop.f32.mrb[0].mxu0
      %628 = vmatprep.mubr.f32.mxu0 0.0
      %629 = vmatmul.mubr.f32.gmra.mrb[0].mxu0 %v480
      %v630 = vpop.f32.mrb[0].mxu0
      %v631 = vadd.f32 0.0, %v630
      %v632 = vpop.f32.mrb[0].mxu0
      %633 = vmatprep.mubr.f32.mxu0 0.0
      %634 = vmatmul.mubr.f32.gmra.mrb[0].mxu0 %v481
      %v635 = vpop.f32.mrb[0].mxu0
      %v636 = vadd.f32 0.0, %v635
      %v637 = vpop.f32.mrb[0].mxu0
      %638 = vmatprep.mubr.f32.mxu0 0.0
      %639 = vmatmul.mubr.f32.gmra.mrb[0].mxu0 %v482
      %v640 = vpop.f32.mrb[0].mxu0
      %v641 = vadd.f32 0.0, %v640
      %v642 = vpop.f32.mrb[0].mxu0
      %643 = vmatprep.mubr.f32.mxu0 0.0
      %644 = vmatmul.mubr.f32.gmra.mrb[0].mxu0 %v483
      %v645 = vpop.f32.mrb[0].mxu0
      %v646 = vadd.f32 0.0, %v645
      %v647 = vpop.f32.mrb[0].mxu0
      %648 = vmatprep.mubr.f32.mxu0 0.0
      %649 = vmatmul.mubr.f32.gmra.mrb[0].mxu0 %v484
      %v650 = vpop.f32.mrb[0].mxu0
      %v651 = vadd.f32 0.0, %v650
      %v652 = vpop.f32.mrb[0].mxu0
      %653 = vmatprep.mubr.f32.mxu0 0.0
      %654 = vmatmul.mubr.f32.gmra.mrb[0].mxu0 %v485
      %v655 = vpop.f32.mrb[0].mxu0
      %v656 = vadd.f32 0.0, %v655
      %v657 = vpop.f32.mrb[0].mxu0
      %658 = vmatprep.mubr.f32.mxu0 0.0
      %659 = vmatmul.mubr.f32.gmra.mrb[0].mxu0 %v486
      %v660 = vpop.f32.mrb[0].mxu0
      %v661 = vadd.f32 0.0, %v660
      %v662 = vpop.f32.mrb[0].mxu0
      %663 = vmatprep.mubr.f32.mxu0 0.0
      %664 = vmatmul.mubr.f32.gmra.mrb[0].mxu0 %v487
      %v665 = vpop.f32.mrb[0].mxu0
      %v666 = vadd.f32 0.0, %v665
      %v667 = vpop.f32.mrb[0].mxu0
      %668 = vmatprep.mubr.f32.mxu0 0.0
      %669 = vmatmul.mubr.f32.gmra.mrb[0].mxu0 %v488
      %v670 = vpop.f32.mrb[0].mxu0
      %v671 = vadd.f32 0.0, %v670
      %v672 = vpop.f32.mrb[0].mxu0
      %673 = vmatprep.mubr.f32.mxu0 0.0
      %674 = vmatmul.mubr.f32.gmra.mrb[0].mxu0 %v489
      %v675 = vpop.f32.mrb[0].mxu0
      %v676 = vadd.f32 0.0, %v675
      %v677 = vpop.f32.mrb[0].mxu0
      %678 = vmatprep.mubr.f32.mxu0 0.0
      %679 = vmatmul.mubr.f32.gmra.mrb[0].mxu0 %v490
      %v680 = vpop.f32.mrb[0].mxu0
      %v681 = vadd.f32 0.0, %v680
      %v682 = vpop.f32.mrb[0].mxu0
      %683 = vmatprep.mubr.f32.mxu0 0.0
      %684 = vmatmul.mubr.f32.gmra.mrb[0].mxu0 %v491
      %v685 = vpop.f32.mrb[0].mxu0
      %v686 = vadd.f32 0.0, %v685
      %v687 = vpop.f32.mrb[0].mxu0
      %688 = vmatprep.mubr.f32.mxu0 0.0
      %689 = vmatmul.mubr.f32.gmra.mrb[0].mxu0 %v492
      %v690 = vpop.f32.mrb[0].mxu0
      %v691 = vadd.f32 0.0, %v690
      %v692 = vpop.f32.mrb[0].mxu0
      %693 = vdwg.mxu0
      %v694 = vrot.slane %v576, 7
      %v695 = vrot.slane %v581, 7
      %v696 = vrot.slane %v586, 7
      %v697 = vrot.slane %v591, 7
      %v698 = vrot.slane %v596, 7
      %v699 = vrot.slane %v601, 7
      %v700 = vrot.slane %v606, 7
      %v701 = vrot.slane %v611, 7
      %v702 = vrot.slane %v616, 7
      %v703 = vrot.slane %v621, 7
      %v704 = vrot.slane %v626, 7
      %v705 = vrot.slane %v631, 7
      %v706 = vrot.slane %v636, 7
      %v707 = vrot.slane %v641, 7
      %v708 = vrot.slane %v646, 7
      %v709 = vrot.slane %v651, 7
      %v710 = vrot.slane %v656, 7
      %v711 = vrot.slane %v661, 7
      %v712 = vrot.slane %v666, 7
      %v713 = vrot.slane %v671, 7
      %v714 = vrot.slane %v676, 7
      %v715 = vrot.slane %v681, 7
      %v716 = vrot.slane %v686, 7
      %v717 = vrot.slane %v691, 7
      %v718 = vlaneseq
      %v719 = vshrl.u32 %v718, 7
      %vm720 = vcmp.lt.s32.totalorder %v719, 1
      %v721 = vsel %vm720, %v715, %v716
      %v722 = vsel %vm720, %v714, %v715
      %v723 = vsel %vm720, %v712, %v713
      %v724 = vsel %vm720, %v711, %v712
      %v725 = vsel %vm720, %v709, %v710
      %v726 = vsel %vm720, %v708, %v709
      %v727 = vsel %vm720, %v706, %v707
      %v728 = vsel %vm720, %v705, %v706
      %v729 = vsel %vm720, %v703, %v704
      %v730 = vsel %vm720, %v702, %v703
      %v731 = vsel %vm720, %v700, %v701
      %v732 = vsel %vm720, %v699, %v700
      %v733 = vsel %vm720, %v697, %v698
      %v734 = vsel %vm720, %v696, %v697
      %v735 = vsel %vm720, %v694, %v695
      %v736 = vsel %vm720, %v717, %v694
      %s737 = scalar_lea.vmem %s1, 128
      %v738 = vld [vmem:[%s737] sm:$0xff]
      %v739 = vld [vmem:[%s737 + $0x8] sm:$0xff]
      %v740 = vld [vmem:[%s737 + $0x10] sm:$0xff]
      %v741 = vld [vmem:[%s737 + $0x18] sm:$0xff]
      %v742 = vld [vmem:[%s737 + $0x20] sm:$0xff]
      %v743 = vld [vmem:[%s737 + $0x28] sm:$0xff]
      %v744 = vld [vmem:[%s737 + $0x30] sm:$0xff]
      %v745 = vld [vmem:[%s737 + $0x38] sm:$0xff]
      %v746 = vld [vmem:[%s737 + $0x40] sm:$0xff]
      %v747 = vld [vmem:[%s737 + $0x48] sm:$0xff]
      %v748 = vld [vmem:[%s737 + $0x50] sm:$0xff]
      %v749 = vld [vmem:[%s737 + $0x58] sm:$0xff]
      %v750 = vld [vmem:[%s737 + $0x60] sm:$0xff]
      %v751 = vld [vmem:[%s737 + $0x68] sm:$0xff]
      %v752 = vld [vmem:[%s737 + $0x70] sm:$0xff]
      %v753 = vld [vmem:[%s737 + $0x78] sm:$0xff]
      %754 = vmatprep.subr.mxu0 0.0
      %755 = vmatpush1.msra.mxu0 %v738
      %756 = vmatprep.subr.mxu0 0.0
      %757 = vmatpush1.msra.mxu0 %v739
      %758 = vmatprep.subr.mxu0 0.0
      %759 = vmatpush1.msra.mxu0 %v740
      %760 = vmatprep.subr.mxu0 0.0
      %761 = vmatpush1.msra.mxu0 %v741
      %762 = vmatprep.subr.mxu0 0.0
      %763 = vmatpush1.msra.mxu0 %v742
      %764 = vmatprep.subr.mxu0 0.0
      %765 = vmatpush1.msra.mxu0 %v743
      %766 = vmatprep.subr.mxu0 0.0
      %767 = vmatpush1.msra.mxu0 %v744
      %768 = vmatprep.subr.mxu0 0.0
      %769 = vmatpush1.msra.mxu0 %v745
      %770 = vmatprep.subr.mxu0 0.0
      %771 = vmatpush1.msra.mxu0 %v746
      %772 = vmatprep.subr.mxu0 0.0
      %773 = vmatpush1.msra.mxu0 %v747
      %774 = vmatprep.subr.mxu0 0.0
      %775 = vmatpush1.msra.mxu0 %v748
      %776 = vmatprep.subr.mxu0 0.0
      %777 = vmatpush1.msra.mxu0 %v749
      %778 = vmatprep.subr.mxu0 0.0
      %779 = vmatpush1.msra.mxu0 %v750
      %780 = vmatprep.subr.mxu0 0.0
      %781 = vmatpush1.msra.mxu0 %v751
      %782 = vmatprep.subr.mxu0 0.0
      %783 = vmatpush1.msra.mxu0 %v752
      %784 = vmatprep.subr.mxu0 0.0
      %785 = vmatpush1.msra.mxu0 %v753
      %786 = vmatprep.subr.mxu0 0.0
      %787 = vmatpush1.msra.mxu0 0.0
      %788 = vmatprep.subr.mxu0 0.0
      %789 = vmatpush1.msra.mxu0 0.0
      %790 = vmatprep.subr.mxu0 0.0
      %791 = vmatpush1.msra.mxu0 0.0
      %792 = vmatprep.subr.mxu0 0.0
      %793 = vmatpush1.msra.mxu0 0.0
      %794 = vmatprep.subr.mxu0 0.0
      %795 = vmatpush1.msra.mxu0 0.0
      %796 = vmatprep.subr.mxu0 0.0
      %797 = vmatpush1.msra.mxu0 0.0
      %798 = vmatprep.subr.mxu0 0.0
      %799 = vmatpush1.msra.mxu0 0.0
      %800 = vmatprep.subr.mxu0 0.0
      %801 = vmatpush1.msra.mxu0 0.0
      %802 = vmatprep.subr.mxu0 0.0
      %803 = vmatpush1.msra.mxu0 0.0
      %804 = vmatprep.subr.mxu0 0.0
      %805 = vmatpush1.msra.mxu0 0.0
      %806 = vmatprep.subr.mxu0 0.0
      %807 = vmatpush1.msra.mxu0 0.0
      %808 = vmatprep.subr.mxu0 0.0
      %809 = vmatpush1.msra.mxu0 0.0
      %810 = vmatprep.subr.mxu0 0.0
      %811 = vmatpush1.msra.mxu0 0.0
      %812 = vmatprep.subr.mxu0 0.0
      %813 = vmatpush1.msra.mxu0 0.0
      %814 = vmatprep.subr.mxu0 0.0
      %815 = vmatpush1.msra.mxu0 0.0
      %816 = vmatprep.subr.mxu0 0.0
      %817 = vmatpush1.msra.mxu0 0.0
      %818 = vmatprep.mubr.f32.mxu0 0.0
      %819 = vmatmul.mubr.f32.gmra.mrb[0].mxu0 %v469
      %v820 = vpop.f32.mrb[0].mxu0
      %v821 = vadd.f32 0.0, %v820
      %v822 = vpop.f32.mrb[0].mxu0
      %823 = vmatprep.mubr.f32.mxu0 0.0
      %824 = vmatmul.mubr.f32.gmra.mrb[0].mxu0 %v470
      %v825 = vpop.f32.mrb[0].mxu0
      %v826 = vadd.f32 0.0, %v825
      %v827 = vpop.f32.mrb[0].mxu0
      %828 = vmatprep.mubr.f32.mxu0 0.0
      %829 = vmatmul.mubr.f32.gmra.mrb[0].mxu0 %v471
      %v830 = vpop.f32.mrb[0].mxu0
      %v831 = vpop.f32.mrb[0].mxu0
      %832 = vmatprep.mubr.f32.mxu0 0.0
      %833 = vmatmul.mubr.f32.gmra.mrb[0].mxu0 %v472
      %v834 = vpop.f32.mrb[0].mxu0
      %v835 = vadd.f32 0.0, %v834
      %v836 = vpop.f32.mrb[0].mxu0
      %837 = vmatprep.mubr.f32.mxu0 0.0
      %838 = vmatmul.mubr.f32.gmra.mrb[0].mxu0 %v473
      %v839 = vpop.f32.mrb[0].mxu0
      %v840 = vadd.f32 0.0, %v839
      %v841 = vpop.f32.mrb[0].mxu0
      %842 = vmatprep.mubr.f32.mxu0 0.0
      %843 = vmatmul.mubr.f32.gmra.mrb[0].mxu0 %v474
      %v844 = vpop.f32.mrb[0].mxu0
      %v845 = vpop.f32.mrb[0].mxu0
      %846 = vmatprep.mubr.f32.mxu0 0.0
      %847 = vmatmul.mubr.f32.gmra.mrb[0].mxu0 %v475
      %v848 = vpop.f32.mrb[0].mxu0
      %v849 = vadd.f32 0.0, %v848
      %v850 = vpop.f32.mrb[0].mxu0
      %851 = vmatprep.mubr.f32.mxu0 0.0
      %852 = vmatmul.mubr.f32.gmra.mrb[0].mxu0 %v476
      %v853 = vpop.f32.mrb[0].mxu0
      %v854 = vadd.f32 0.0, %v853
      %v855 = vpop.f32.mrb[0].mxu0
      %856 = vmatprep.mubr.f32.mxu0 0.0
      %857 = vmatmul.mubr.f32.gmra.mrb[0].mxu0 %v477
      %v858 = vpop.f32.mrb[0].mxu0
      %v859 = vpop.f32.mrb[0].mxu0
      %860 = vmatprep.mubr.f32.mxu0 0.0
      %861 = vmatmul.mubr.f32.gmra.mrb[0].mxu0 %v478
      %v862 = vpop.f32.mrb[0].mxu0
      %v863 = vadd.f32 0.0, %v862
      %v864 = vpop.f32.mrb[0].mxu0
      %865 = vmatprep.mubr.f32.mxu0 0.0
      %866 = vmatmul.mubr.f32.gmra.mrb[0].mxu0 %v479
      %v867 = vpop.f32.mrb[0].mxu0
      %v868 = vadd.f32 0.0, %v867
      %v869 = vpop.f32.mrb[0].mxu0
      %870 = vmatprep.mubr.f32.mxu0 0.0
      %871 = vmatmul.mubr.f32.gmra.mrb[0].mxu0 %v480
      %v872 = vpop.f32.mrb[0].mxu0
      %v873 = vpop.f32.mrb[0].mxu0
      %874 = vmatprep.mubr.f32.mxu0 0.0
      %875 = vmatmul.mubr.f32.gmra.mrb[0].mxu0 %v481
      %v876 = vpop.f32.mrb[0].mxu0
      %v877 = vadd.f32 0.0, %v876
      %v878 = vpop.f32.mrb[0].mxu0
      %879 = vmatprep.mubr.f32.mxu0 0.0
      %880 = vmatmul.mubr.f32.gmra.mrb[0].mxu0 %v482
      %v881 = vpop.f32.mrb[0].mxu0
      %v882 = vadd.f32 0.0, %v881
      %v883 = vpop.f32.mrb[0].mxu0
      %884 = vmatprep.mubr.f32.mxu0 0.0
      %885 = vmatmul.mubr.f32.gmra.mrb[0].mxu0 %v483
      %v886 = vpop.f32.mrb[0].mxu0
      %v887 = vpop.f32.mrb[0].mxu0
      %888 = vmatprep.mubr.f32.mxu0 0.0
      %889 = vmatmul.mubr.f32.gmra.mrb[0].mxu0 %v484
      %v890 = vpop.f32.mrb[0].mxu0
      %v891 = vadd.f32 0.0, %v890
      %v892 = vpop.f32.mrb[0].mxu0
      %893 = vmatprep.mubr.f32.mxu0 0.0
      %894 = vmatmul.mubr.f32.gmra.mrb[0].mxu0 %v485
      %v895 = vpop.f32.mrb[0].mxu0
      %v896 = vadd.f32 0.0, %v895
      %v897 = vpop.f32.mrb[0].mxu0
      %898 = vmatprep.mubr.f32.mxu0 0.0
      %899 = vmatmul.mubr.f32.gmra.mrb[0].mxu0 %v486
      %v900 = vpop.f32.mrb[0].mxu0
      %v901 = vpop.f32.mrb[0].mxu0
      %902 = vmatprep.mubr.f32.mxu0 0.0
      %903 = vmatmul.mubr.f32.gmra.mrb[0].mxu0 %v487
      %v904 = vpop.f32.mrb[0].mxu0
      %v905 = vadd.f32 0.0, %v904
      %v906 = vpop.f32.mrb[0].mxu0
      %907 = vmatprep.mubr.f32.mxu0 0.0
      %908 = vmatmul.mubr.f32.gmra.mrb[0].mxu0 %v488
      %v909 = vpop.f32.mrb[0].mxu0
      %v910 = vadd.f32 0.0, %v909
      %v911 = vpop.f32.mrb[0].mxu0
      %912 = vmatprep.mubr.f32.mxu0 0.0
      %913 = vmatmul.mubr.f32.gmra.mrb[0].mxu0 %v489
      %v914 = vpop.f32.mrb[0].mxu0
      %v915 = vpop.f32.mrb[0].mxu0
      %916 = vmatprep.mubr.f32.mxu0 0.0
      %917 = vmatmul.mubr.f32.gmra.mrb[0].mxu0 %v490
      %v918 = vpop.f32.mrb[0].mxu0
      %v919 = vadd.f32 0.0, %v918
      %v920 = vpop.f32.mrb[0].mxu0
      %921 = vmatprep.mubr.f32.mxu0 0.0
      %922 = vmatmul.mubr.f32.gmra.mrb[0].mxu0 %v491
      %v923 = vpop.f32.mrb[0].mxu0
      %v924 = vadd.f32 0.0, %v923
      %v925 = vpop.f32.mrb[0].mxu0
      %926 = vmatprep.mubr.f32.mxu0 0.0
      %927 = vmatmul.mubr.f32.gmra.mrb[0].mxu0 %v492
      %v928 = vpop.f32.mrb[0].mxu0
      %v929 = vpop.f32.mrb[0].mxu0
      %930 = vdwg.mxu0
      %v931 = vadd.f32 %v736, %v821
      %v932 = vadd.f32 %v735, %v826
      %v933 = vadd.f32 %v734, %v835
      %v934 = vadd.f32 %v733, %v840
      %v935 = vadd.f32 %v732, %v849
      %v936 = vadd.f32 %v731, %v854
      %v937 = vadd.f32 %v730, %v863
      %v938 = vadd.f32 %v729, %v868
      %v939 = vadd.f32 %v728, %v877
      %v940 = vadd.f32 %v727, %v882
      %v941 = vadd.f32 %v726, %v891
      %v942 = vadd.f32 %v725, %v896
      %v943 = vadd.f32 %v724, %v905
      %v944 = vadd.f32 %v723, %v910
      %v945 = vadd.f32 %v722, %v919
      %v946 = vadd.f32 %v721, %v924
      %s947 = scalar_lea.vmem %s1, 256
      %v948 = vld [vmem:[%s947] sm:$0xff]
      %v949 = vld [vmem:[%s947 + $0x8] sm:$0xff]
      %v950 = vld [vmem:[%s947 + $0x10] sm:$0xff]
      %v951 = vld [vmem:[%s947 + $0x18] sm:$0xff]
      %v952 = vld [vmem:[%s947 + $0x20] sm:$0xff]
      %v953 = vld [vmem:[%s947 + $0x28] sm:$0xff]
      %v954 = vld [vmem:[%s947 + $0x30] sm:$0xff]
      %v955 = vld [vmem:[%s947 + $0x38] sm:$0xff]
      %v956 = vld [vmem:[%s947 + $0x40] sm:$0xff]
      %v957 = vld [vmem:[%s947 + $0x48] sm:$0xff]
      %v958 = vld [vmem:[%s947 + $0x50] sm:$0xff]
      %v959 = vld [vmem:[%s947 + $0x58] sm:$0xff]
      %v960 = vld [vmem:[%s947 + $0x60] sm:$0xff]
      %v961 = vld [vmem:[%s947 + $0x68] sm:$0xff]
      %v962 = vld [vmem:[%s947 + $0x70] sm:$0xff]
      %v963 = vld [vmem:[%s947 + $0x78] sm:$0xff]
      %964 = vmatprep.subr.mxu0 0.0
      %965 = vmatpush1.msra.mxu0 %v948
      %966 = vmatprep.subr.mxu0 0.0
      %967 = vmatpush1.msra.mxu0 %v949
      %968 = vmatprep.subr.mxu0 0.0
      %969 = vmatpush1.msra.mxu0 %v950
      %970 = vmatprep.subr.mxu0 0.0
      %971 = vmatpush1.msra.mxu0 %v951
      %972 = vmatprep.subr.mxu0 0.0
      %973 = vmatpush1.msra.mxu0 %v952
      %974 = vmatprep.subr.mxu0 0.0
      %975 = vmatpush1.msra.mxu0 %v953
      %976 = vmatprep.subr.mxu0 0.0
      %977 = vmatpush1.msra.mxu0 %v954
      %978 = vmatprep.subr.mxu0 0.0
      %979 = vmatpush1.msra.mxu0 %v955
      %980 = vmatprep.subr.mxu0 0.0
      %981 = vmatpush1.msra.mxu0 %v956
      %982 = vmatprep.subr.mxu0 0.0
      %983 = vmatpush1.msra.mxu0 %v957
      %984 = vmatprep.subr.mxu0 0.0
      %985 = vmatpush1.msra.mxu0 %v958
      %986 = vmatprep.subr.mxu0 0.0
      %987 = vmatpush1.msra.mxu0 %v959
      %988 = vmatprep.subr.mxu0 0.0
      %989 = vmatpush1.msra.mxu0 %v960
      %990 = vmatprep.subr.mxu0 0.0
      %991 = vmatpush1.msra.mxu0 %v961
      %992 = vmatprep.subr.mxu0 0.0
      %993 = vmatpush1.msra.mxu0 %v962
      %994 = vmatprep.subr.mxu0 0.0
      %995 = vmatpush1.msra.mxu0 %v963
      %996 = vmatprep.subr.mxu0 0.0
      %997 = vmatpush1.msra.mxu0 0.0
      %998 = vmatprep.subr.mxu0 0.0
      %999 = vmatpush1.msra.mxu0 0.0
      %1000 = vmatprep.subr.mxu0 0.0
      %1001 = vmatpush1.msra.mxu0 0.0
      %1002 = vmatprep.subr.mxu0 0.0
      %1003 = vmatpush1.msra.mxu0 0.0
      %1004 = vmatprep.subr.mxu0 0.0
      %1005 = vmatpush1.msra.mxu0 0.0
      %1006 = vmatprep.subr.mxu0 0.0
      %1007 = vmatpush1.msra.mxu0 0.0
      %1008 = vmatprep.subr.mxu0 0.0
      %1009 = vmatpush1.msra.mxu0 0.0
      %1010 = vmatprep.subr.mxu0 0.0
      %1011 = vmatpush1.msra.mxu0 0.0
      %1012 = vmatprep.subr.mxu0 0.0
      %1013 = vmatpush1.msra.mxu0 0.0
      %1014 = vmatprep.subr.mxu0 0.0
      %1015 = vmatpush1.msra.mxu0 0.0
      %1016 = vmatprep.subr.mxu0 0.0
      %1017 = vmatpush1.msra.mxu0 0.0
      %1018 = vmatprep.subr.mxu0 0.0
      %1019 = vmatpush1.msra.mxu0 0.0
      %1020 = vmatprep.subr.mxu0 0.0
      %1021 = vmatpush1.msra.mxu0 0.0
      %1022 = vmatprep.subr.mxu0 0.0
      %1023 = vmatpush1.msra.mxu0 0.0
      %1024 = vmatprep.subr.mxu0 0.0
      %1025 = vmatpush1.msra.mxu0 0.0
      %1026 = vmatprep.subr.mxu0 0.0
      %1027 = vmatpush1.msra.mxu0 0.0
      %1028 = vmatprep.mubr.f32.mxu0 0.0
      %1029 = vmatmul.mubr.f32.gmra.mrb[0].mxu0 %v469
      %v1030 = vpop.f32.mrb[0].mxu0
      %v1031 = vadd.f32 0.0, %v1030
      %v1032 = vpop.f32.mrb[0].mxu0
      %1033 = vmatprep.mubr.f32.mxu0 0.0
      %1034 = vmatmul.mubr.f32.gmra.mrb[0].mxu0 %v470
      %v1035 = vpop.f32.mrb[0].mxu0
      %v1036 = vadd.f32 0.0, %v1035
      %v1037 = vpop.f32.mrb[0].mxu0
      %1038 = vmatprep.mubr.f32.mxu0 0.0
      %1039 = vmatmul.mubr.f32.gmra.mrb[0].mxu0 %v471
      %v1040 = vpop.f32.mrb[0].mxu0
      %v1041 = vadd.f32 0.0, %v1040
      %v1042 = vpop.f32.mrb[0].mxu0
      %1043 = vmatprep.mubr.f32.mxu0 0.0
      %1044 = vmatmul.mubr.f32.gmra.mrb[0].mxu0 %v472
      %v1045 = vpop.f32.mrb[0].mxu0
      %v1046 = vadd.f32 0.0, %v1045
      %v1047 = vpop.f32.mrb[0].mxu0
      %1048 = vmatprep.mubr.f32.mxu0 0.0
      %1049 = vmatmul.mubr.f32.gmra.mrb[0].mxu0 %v473
      %v1050 = vpop.f32.mrb[0].mxu0
      %v1051 = vadd.f32 0.0, %v1050
      %v1052 = vpop.f32.mrb[0].mxu0
      %1053 = vmatprep.mubr.f32.mxu0 0.0
      %1054 = vmatmul.mubr.f32.gmra.mrb[0].mxu0 %v474
      %v1055 = vpop.f32.mrb[0].mxu0
      %v1056 = vadd.f32 0.0, %v1055
      %v1057 = vpop.f32.mrb[0].mxu0
      %1058 = vmatprep.mubr.f32.mxu0 0.0
      %1059 = vmatmul.mubr.f32.gmra.mrb[0].mxu0 %v475
      %v1060 = vpop.f32.mrb[0].mxu0
      %v1061 = vadd.f32 0.0, %v1060
      %v1062 = vpop.f32.mrb[0].mxu0
      %1063 = vmatprep.mubr.f32.mxu0 0.0
      %1064 = vmatmul.mubr.f32.gmra.mrb[0].mxu0 %v476
      %v1065 = vpop.f32.mrb[0].mxu0
      %v1066 = vadd.f32 0.0, %v1065
      %v1067 = vpop.f32.mrb[0].mxu0
      %1068 = vmatprep.mubr.f32.mxu0 0.0
      %1069 = vmatmul.mubr.f32.gmra.mrb[0].mxu0 %v477
      %v1070 = vpop.f32.mrb[0].mxu0
      %v1071 = vadd.f32 0.0, %v1070
      %v1072 = vpop.f32.mrb[0].mxu0
      %1073 = vmatprep.mubr.f32.mxu0 0.0
      %1074 = vmatmul.mubr.f32.gmra.mrb[0].mxu0 %v478
      %v1075 = vpop.f32.mrb[0].mxu0
      %v1076 = vadd.f32 0.0, %v1075
      %v1077 = vpop.f32.mrb[0].mxu0
      %1078 = vmatprep.mubr.f32.mxu0 0.0
      %1079 = vmatmul.mubr.f32.gmra.mrb[0].mxu0 %v479
      %v1080 = vpop.f32.mrb[0].mxu0
      %v1081 = vadd.f32 0.0, %v1080
      %v1082 = vpop.f32.mrb[0].mxu0
      %1083 = vmatprep.mubr.f32.mxu0 0.0
      %1084 = vmatmul.mubr.f32.gmra.mrb[0].mxu0 %v480
      %v1085 = vpop.f32.mrb[0].mxu0
      %v1086 = vadd.f32 0.0, %v1085
      %v1087 = vpop.f32.mrb[0].mxu0
      %1088 = vmatprep.mubr.f32.mxu0 0.0
      %1089 = vmatmul.mubr.f32.gmra.mrb[0].mxu0 %v481
      %v1090 = vpop.f32.mrb[0].mxu0
      %v1091 = vadd.f32 0.0, %v1090
      %v1092 = vpop.f32.mrb[0].mxu0
      %1093 = vmatprep.mubr.f32.mxu0 0.0
      %1094 = vmatmul.mubr.f32.gmra.mrb[0].mxu0 %v482
      %v1095 = vpop.f32.mrb[0].mxu0
      %v1096 = vadd.f32 0.0, %v1095
      %v1097 = vpop.f32.mrb[0].mxu0
      %1098 = vmatprep.mubr.f32.mxu0 0.0
      %1099 = vmatmul.mubr.f32.gmra.mrb[0].mxu0 %v483
      %v1100 = vpop.f32.mrb[0].mxu0
      %v1101 = vadd.f32 0.0, %v1100
      %v1102 = vpop.f32.mrb[0].mxu0
      %1103 = vmatprep.mubr.f32.mxu0 0.0
      %1104 = vmatmul.mubr.f32.gmra.mrb[0].mxu0 %v484
      %v1105 = vpop.f32.mrb[0].mxu0
      %v1106 = vadd.f32 0.0, %v1105
      %v1107 = vpop.f32.mrb[0].mxu0
      %1108 = vmatprep.mubr.f32.mxu0 0.0
      %1109 = vmatmul.mubr.f32.gmra.mrb[0].mxu0 %v485
      %v1110 = vpop.f32.mrb[0].mxu0
      %v1111 = vadd.f32 0.0, %v1110
      %v1112 = vpop.f32.mrb[0].mxu0
      %1113 = vmatprep.mubr.f32.mxu0 0.0
      %1114 = vmatmul.mubr.f32.gmra.mrb[0].mxu0 %v486
      %v1115 = vpop.f32.mrb[0].mxu0
      %v1116 = vadd.f32 0.0, %v1115
      %v1117 = vpop.f32.mrb[0].mxu0
      %1118 = vmatprep.mubr.f32.mxu0 0.0
      %1119 = vmatmul.mubr.f32.gmra.mrb[0].mxu0 %v487
      %v1120 = vpop.f32.mrb[0].mxu0
      %v1121 = vadd.f32 0.0, %v1120
      %v1122 = vpop.f32.mrb[0].mxu0
      %1123 = vmatprep.mubr.f32.mxu0 0.0
      %1124 = vmatmul.mubr.f32.gmra.mrb[0].mxu0 %v488
      %v1125 = vpop.f32.mrb[0].mxu0
      %v1126 = vadd.f32 0.0, %v1125
      %v1127 = vpop.f32.mrb[0].mxu0
      %1128 = vmatprep.mubr.f32.mxu0 0.0
      %1129 = vmatmul.mubr.f32.gmra.mrb[0].mxu0 %v489
      %v1130 = vpop.f32.mrb[0].mxu0
      %v1131 = vadd.f32 0.0, %v1130
      %v1132 = vpop.f32.mrb[0].mxu0
      %1133 = vmatprep.mubr.f32.mxu0 0.0
      %1134 = vmatmul.mubr.f32.gmra.mrb[0].mxu0 %v490
      %v1135 = vpop.f32.mrb[0].mxu0
      %v1136 = vadd.f32 0.0, %v1135
      %v1137 = vpop.f32.mrb[0].mxu0
      %1138 = vmatprep.mubr.f32.mxu0 0.0
      %1139 = vmatmul.mubr.f32.gmra.mrb[0].mxu0 %v491
      %v1140 = vpop.f32.mrb[0].mxu0
      %v1141 = vadd.f32 0.0, %v1140
      %v1142 = vpop.f32.mrb[0].mxu0
      %1143 = vmatprep.mubr.f32.mxu0 0.0
      %1144 = vmatmul.mubr.f32.gmra.mrb[0].mxu0 %v492
      %v1145 = vpop.f32.mrb[0].mxu0
      %v1146 = vadd.f32 0.0, %v1145
      %v1147 = vpop.f32.mrb[0].mxu0
      %1148 = vdwg.mxu0
      %v1149 = vrot.slane %v1031, 1
      %v1150 = vrot.slane %v1036, 1
      %v1151 = vrot.slane %v1041, 1
      %v1152 = vrot.slane %v1046, 1
      %v1153 = vrot.slane %v1051, 1
      %v1154 = vrot.slane %v1056, 1
      %v1155 = vrot.slane %v1061, 1
      %v1156 = vrot.slane %v1066, 1
      %v1157 = vrot.slane %v1071, 1
      %v1158 = vrot.slane %v1076, 1
      %v1159 = vrot.slane %v1081, 1
      %v1160 = vrot.slane %v1086, 1
      %v1161 = vrot.slane %v1091, 1
      %v1162 = vrot.slane %v1096, 1
      %v1163 = vrot.slane %v1101, 1
      %v1164 = vrot.slane %v1106, 1
      %v1165 = vrot.slane %v1111, 1
      %v1166 = vrot.slane %v1116, 1
      %v1167 = vrot.slane %v1121, 1
      %v1168 = vrot.slane %v1126, 1
      %v1169 = vrot.slane %v1131, 1
      %v1170 = vrot.slane %v1136, 1
      %v1171 = vrot.slane %v1141, 1
      %v1172 = vrot.slane %v1146, 1
      %vm1173 = vcmp.lt.s32.totalorder %v719, 7
      %v1174 = vsel %vm1173, %v1171, %v1172
      %v1175 = vsel %vm1173, %v1170, %v1171
      %v1176 = vsel %vm1173, %v1168, %v1169
      %v1177 = vsel %vm1173, %v1167, %v1168
      %v1178 = vsel %vm1173, %v1165, %v1166
      %v1179 = vsel %vm1173, %v1164, %v1165
      %v1180 = vsel %vm1173, %v1162, %v1163
      %v1181 = vsel %vm1173, %v1161, %v1162
      %v1182 = vsel %vm1173, %v1159, %v1160
      %v1183 = vsel %vm1173, %v1158, %v1159
      %v1184 = vsel %vm1173, %v1156, %v1157
      %v1185 = vsel %vm1173, %v1155, %v1156
      %v1186 = vsel %vm1173, %v1153, %v1154
      %v1187 = vsel %vm1173, %v1152, %v1153
      %v1188 = vsel %vm1173, %v1150, %v1151
      %v1189 = vsel %vm1173, %v1149, %v1150
      %v1190 = vadd.f32 %v931, %v1189
      %v1191 = vadd.f32 %v932, %v1188
      %v1192 = vadd.f32 %v933, %v1187
      %v1193 = vadd.f32 %v934, %v1186
      %v1194 = vadd.f32 %v935, %v1185
      %v1195 = vadd.f32 %v936, %v1184
      %v1196 = vadd.f32 %v937, %v1183
      %v1197 = vadd.f32 %v938, %v1182
      %v1198 = vadd.f32 %v939, %v1181
      %v1199 = vadd.f32 %v940, %v1180
      %v1200 = vadd.f32 %v941, %v1179
      %v1201 = vadd.f32 %v942, %v1178
      %v1202 = vadd.f32 %v943, %v1177
      %v1203 = vadd.f32 %v944, %v1176
      %v1204 = vadd.f32 %v945, %v1175
      %v1205 = vadd.f32 %v946, %v1174
      %v1206 = vld [vmem:[%s230] sm:$0xff]
      %v1207 = vld [vmem:[%s230 + $0x8] sm:$0xff]
      %v1208 = vld [vmem:[%s230 + $0x10] sm:$0xff]
      %v1209 = vld [vmem:[%s230 + $0x18] sm:$0xff]
      %v1210 = vld [vmem:[%s230 + $0x20] sm:$0xff]
      %v1211 = vld [vmem:[%s230 + $0x28] sm:$0xff]
      %v1212 = vld [vmem:[%s230 + $0x30] sm:$0xff]
      %v1213 = vld [vmem:[%s230 + $0x38] sm:$0xff]
      %v1214 = vld [vmem:[%s230 + $0x40] sm:$0xff]
      %v1215 = vld [vmem:[%s230 + $0x48] sm:$0xff]
      %v1216 = vld [vmem:[%s230 + $0x50] sm:$0xff]
      %v1217 = vld [vmem:[%s230 + $0x58] sm:$0xff]
      %v1218 = vld [vmem:[%s230 + $0x60] sm:$0xff]
      %v1219 = vld [vmem:[%s230 + $0x68] sm:$0xff]
      %v1220 = vld [vmem:[%s230 + $0x70] sm:$0xff]
      %v1221 = vld [vmem:[%s230 + $0x78] sm:$0xff]
      %v1222 = vld [vmem:[%s230 + $0x80] sm:$0xff]
      %v1223 = vld [vmem:[%s230 + $0x88] sm:$0xff]
      %v1224 = vld [vmem:[%s230 + $0x90] sm:$0xff]
      %v1225 = vld [vmem:[%s230 + $0x98] sm:$0xff]
      %v1226 = vld [vmem:[%s230 + $0xa0] sm:$0xff]
      %v1227 = vld [vmem:[%s230 + $0xa8] sm:$0xff]
      %v1228 = vld [vmem:[%s230 + $0xb0] sm:$0xff]
      %v1229 = vld [vmem:[%s230 + $0xb8] sm:$0xff]
      %s1230 = scalar_lea.vmem %s1, 384
      %v1231 = vld [vmem:[%s1230] sm:$0xff]
      %v1232 = vld [vmem:[%s1230 + $0x8] sm:$0xff]
      %v1233 = vld [vmem:[%s1230 + $0x10] sm:$0xff]
      %v1234 = vld [vmem:[%s1230 + $0x18] sm:$0xff]
      %v1235 = vld [vmem:[%s1230 + $0x20] sm:$0xff]
      %v1236 = vld [vmem:[%s1230 + $0x28] sm:$0xff]
      %v1237 = vld [vmem:[%s1230 + $0x30] sm:$0xff]
      %v1238 = vld [vmem:[%s1230 + $0x38] sm:$0xff]
      %v1239 = vld [vmem:[%s1230 + $0x40] sm:$0xff]
      %v1240 = vld [vmem:[%s1230 + $0x48] sm:$0xff]
      %v1241 = vld [vmem:[%s1230 + $0x50] sm:$0xff]
      %v1242 = vld [vmem:[%s1230 + $0x58] sm:$0xff]
      %v1243 = vld [vmem:[%s1230 + $0x60] sm:$0xff]
      %v1244 = vld [vmem:[%s1230 + $0x68] sm:$0xff]
      %v1245 = vld [vmem:[%s1230 + $0x70] sm:$0xff]
      %v1246 = vld [vmem:[%s1230 + $0x78] sm:$0xff]
      %1247 = vmatprep.subr.mxu0 0.0
      %1248 = vmatpush1.msra.mxu0 %v1231
      %1249 = vmatprep.subr.mxu0 0.0
      %1250 = vmatpush1.msra.mxu0 %v1232
      %1251 = vmatprep.subr.mxu0 0.0
      %1252 = vmatpush1.msra.mxu0 %v1233
      %1253 = vmatprep.subr.mxu0 0.0
      %1254 = vmatpush1.msra.mxu0 %v1234
      %1255 = vmatprep.subr.mxu0 0.0
      %1256 = vmatpush1.msra.mxu0 %v1235
      %1257 = vmatprep.subr.mxu0 0.0
      %1258 = vmatpush1.msra.mxu0 %v1236
      %1259 = vmatprep.subr.mxu0 0.0
      %1260 = vmatpush1.msra.mxu0 %v1237
      %1261 = vmatprep.subr.mxu0 0.0
      %1262 = vmatpush1.msra.mxu0 %v1238
      %1263 = vmatprep.subr.mxu0 0.0
      %1264 = vmatpush1.msra.mxu0 %v1239
      %1265 = vmatprep.subr.mxu0 0.0
      %1266 = vmatpush1.msra.mxu0 %v1240
      %1267 = vmatprep.subr.mxu0 0.0
      %1268 = vmatpush1.msra.mxu0 %v1241
      %1269 = vmatprep.subr.mxu0 0.0
      %1270 = vmatpush1.msra.mxu0 %v1242
      %1271 = vmatprep.subr.mxu0 0.0
      %1272 = vmatpush1.msra.mxu0 %v1243
      %1273 = vmatprep.subr.mxu0 0.0
      %1274 = vmatpush1.msra.mxu0 %v1244
      %1275 = vmatprep.subr.mxu0 0.0
      %1276 = vmatpush1.msra.mxu0 %v1245
      %1277 = vmatprep.subr.mxu0 0.0
      %1278 = vmatpush1.msra.mxu0 %v1246
      %1279 = vmatprep.subr.mxu0 0.0
      %1280 = vmatpush1.msra.mxu0 0.0
      %1281 = vmatprep.subr.mxu0 0.0
      %1282 = vmatpush1.msra.mxu0 0.0
      %1283 = vmatprep.subr.mxu0 0.0
      %1284 = vmatpush1.msra.mxu0 0.0
      %1285 = vmatprep.subr.mxu0 0.0
      %1286 = vmatpush1.msra.mxu0 0.0
      %1287 = vmatprep.subr.mxu0 0.0
      %1288 = vmatpush1.msra.mxu0 0.0
      %1289 = vmatprep.subr.mxu0 0.0
      %1290 = vmatpush1.msra.mxu0 0.0
      %1291 = vmatprep.subr.mxu0 0.0
      %1292 = vmatpush1.msra.mxu0 0.0
      %1293 = vmatprep.subr.mxu0 0.0
      %1294 = vmatpush1.msra.mxu0 0.0
      %1295 = vmatprep.subr.mxu0 0.0
      %1296 = vmatpush1.msra.mxu0 0.0
      %1297 = vmatprep.subr.mxu0 0.0
      %1298 = vmatpush1.msra.mxu0 0.0
      %1299 = vmatprep.subr.mxu0 0.0
      %1300 = vmatpush1.msra.mxu0 0.0
      %1301 = vmatprep.subr.mxu0 0.0
      %1302 = vmatpush1.msra.mxu0 0.0
      %1303 = vmatprep.subr.mxu0 0.0
      %1304 = vmatpush1.msra.mxu0 0.0
      %1305 = vmatprep.subr.mxu0 0.0
      %1306 = vmatpush1.msra.mxu0 0.0
      %1307 = vmatprep.subr.mxu0 0.0
      %1308 = vmatpush1.msra.mxu0 0.0
      %1309 = vmatprep.subr.mxu0 0.0
      %1310 = vmatpush1.msra.mxu0 0.0
      %1311 = vmatprep.mubr.f32.mxu0 0.0
      %1312 = vmatmul.mubr.f32.gmra.mrb[0].mxu0 %v1206
      %v1313 = vpop.f32.mrb[0].mxu0
      %v1314 = vadd.f32 0.0, %v1313
      %v1315 = vpop.f32.mrb[0].mxu0
      %1316 = vmatprep.mubr.f32.mxu0 0.0
      %1317 = vmatmul.mubr.f32.gmra.mrb[0].mxu0 %v1207
      %v1318 = vpop.f32.mrb[0].mxu0
      %v1319 = vadd.f32 0.0, %v1318
      %v1320 = vpop.f32.mrb[0].mxu0
      %1321 = vmatprep.mubr.f32.mxu0 0.0
      %1322 = vmatmul.mubr.f32.gmra.mrb[0].mxu0 %v1208
      %v1323 = vpop.f32.mrb[0].mxu0
      %v1324 = vadd.f32 0.0, %v1323
      %v1325 = vpop.f32.mrb[0].mxu0
      %1326 = vmatprep.mubr.f32.mxu0 0.0
      %1327 = vmatmul.mubr.f32.gmra.mrb[0].mxu0 %v1209
      %v1328 = vpop.f32.mrb[0].mxu0
      %v1329 = vadd.f32 0.0, %v1328
      %v1330 = vpop.f32.mrb[0].mxu0
      %1331 = vmatprep.mubr.f32.mxu0 0.0
      %1332 = vmatmul.mubr.f32.gmra.mrb[0].mxu0 %v1210
      %v1333 = vpop.f32.mrb[0].mxu0
      %v1334 = vadd.f32 0.0, %v1333
      %v1335 = vpop.f32.mrb[0].mxu0
      %1336 = vmatprep.mubr.f32.mxu0 0.0
      %1337 = vmatmul.mubr.f32.gmra.mrb[0].mxu0 %v1211
      %v1338 = vpop.f32.mrb[0].mxu0
      %v1339 = vadd.f32 0.0, %v1338
      %v1340 = vpop.f32.mrb[0].mxu0
      %1341 = vmatprep.mubr.f32.mxu0 0.0
      %1342 = vmatmul.mubr.f32.gmra.mrb[0].mxu0 %v1212
      %v1343 = vpop.f32.mrb[0].mxu0
      %v1344 = vadd.f32 0.0, %v1343
      %v1345 = vpop.f32.mrb[0].mxu0
      %1346 = vmatprep.mubr.f32.mxu0 0.0
      %1347 = vmatmul.mubr.f32.gmra.mrb[0].mxu0 %v1213
      %v1348 = vpop.f32.mrb[0].mxu0
      %v1349 = vadd.f32 0.0, %v1348
      %v1350 = vpop.f32.mrb[0].mxu0
      %1351 = vmatprep.mubr.f32.mxu0 0.0
      %1352 = vmatmul.mubr.f32.gmra.mrb[0].mxu0 %v1214
      %v1353 = vpop.f32.mrb[0].mxu0
      %v1354 = vadd.f32 0.0, %v1353
      %v1355 = vpop.f32.mrb[0].mxu0
      %1356 = vmatprep.mubr.f32.mxu0 0.0
      %1357 = vmatmul.mubr.f32.gmra.mrb[0].mxu0 %v1215
      %v1358 = vpop.f32.mrb[0].mxu0
      %v1359 = vadd.f32 0.0, %v1358
      %v1360 = vpop.f32.mrb[0].mxu0
      %1361 = vmatprep.mubr.f32.mxu0 0.0
      %1362 = vmatmul.mubr.f32.gmra.mrb[0].mxu0 %v1216
      %v1363 = vpop.f32.mrb[0].mxu0
      %v1364 = vadd.f32 0.0, %v1363
      %v1365 = vpop.f32.mrb[0].mxu0
      %1366 = vmatprep.mubr.f32.mxu0 0.0
      %1367 = vmatmul.mubr.f32.gmra.mrb[0].mxu0 %v1217
      %v1368 = vpop.f32.mrb[0].mxu0
      %v1369 = vadd.f32 0.0, %v1368
      %v1370 = vpop.f32.mrb[0].mxu0
      %1371 = vmatprep.mubr.f32.mxu0 0.0
      %1372 = vmatmul.mubr.f32.gmra.mrb[0].mxu0 %v1218
      %v1373 = vpop.f32.mrb[0].mxu0
      %v1374 = vadd.f32 0.0, %v1373
      %v1375 = vpop.f32.mrb[0].mxu0
      %1376 = vmatprep.mubr.f32.mxu0 0.0
      %1377 = vmatmul.mubr.f32.gmra.mrb[0].mxu0 %v1219
      %v1378 = vpop.f32.mrb[0].mxu0
      %v1379 = vadd.f32 0.0, %v1378
      %v1380 = vpop.f32.mrb[0].mxu0
      %1381 = vmatprep.mubr.f32.mxu0 0.0
      %1382 = vmatmul.mubr.f32.gmra.mrb[0].mxu0 %v1220
      %v1383 = vpop.f32.mrb[0].mxu0
      %v1384 = vadd.f32 0.0, %v1383
      %v1385 = vpop.f32.mrb[0].mxu0
      %1386 = vmatprep.mubr.f32.mxu0 0.0
      %1387 = vmatmul.mubr.f32.gmra.mrb[0].mxu0 %v1221
      %v1388 = vpop.f32.mrb[0].mxu0
      %v1389 = vadd.f32 0.0, %v1388
      %v1390 = vpop.f32.mrb[0].mxu0
      %1391 = vmatprep.mubr.f32.mxu0 0.0
      %1392 = vmatmul.mubr.f32.gmra.mrb[0].mxu0 %v1222
      %v1393 = vpop.f32.mrb[0].mxu0
      %v1394 = vadd.f32 0.0, %v1393
      %v1395 = vpop.f32.mrb[0].mxu0
      %1396 = vmatprep.mubr.f32.mxu0 0.0
      %1397 = vmatmul.mubr.f32.gmra.mrb[0].mxu0 %v1223
      %v1398 = vpop.f32.mrb[0].mxu0
      %v1399 = vadd.f32 0.0, %v1398
      %v1400 = vpop.f32.mrb[0].mxu0
      %1401 = vmatprep.mubr.f32.mxu0 0.0
      %1402 = vmatmul.mubr.f32.gmra.mrb[0].mxu0 %v1224
      %v1403 = vpop.f32.mrb[0].mxu0
      %v1404 = vadd.f32 0.0, %v1403
      %v1405 = vpop.f32.mrb[0].mxu0
      %1406 = vmatprep.mubr.f32.mxu0 0.0
      %1407 = vmatmul.mubr.f32.gmra.mrb[0].mxu0 %v1225
      %v1408 = vpop.f32.mrb[0].mxu0
      %v1409 = vadd.f32 0.0, %v1408
      %v1410 = vpop.f32.mrb[0].mxu0
      %1411 = vmatprep.mubr.f32.mxu0 0.0
      %1412 = vmatmul.mubr.f32.gmra.mrb[0].mxu0 %v1226
      %v1413 = vpop.f32.mrb[0].mxu0
      %v1414 = vadd.f32 0.0, %v1413
      %v1415 = vpop.f32.mrb[0].mxu0
      %1416 = vmatprep.mubr.f32.mxu0 0.0
      %1417 = vmatmul.mubr.f32.gmra.mrb[0].mxu0 %v1227
      %v1418 = vpop.f32.mrb[0].mxu0
      %v1419 = vadd.f32 0.0, %v1418
      %v1420 = vpop.f32.mrb[0].mxu0
      %1421 = vmatprep.mubr.f32.mxu0 0.0
      %1422 = vmatmul.mubr.f32.gmra.mrb[0].mxu0 %v1228
      %v1423 = vpop.f32.mrb[0].mxu0
      %v1424 = vadd.f32 0.0, %v1423
      %v1425 = vpop.f32.mrb[0].mxu0
      %1426 = vmatprep.mubr.f32.mxu0 0.0
      %1427 = vmatmul.mubr.f32.gmra.mrb[0].mxu0 %v1229
      %v1428 = vpop.f32.mrb[0].mxu0
      %v1429 = vadd.f32 0.0, %v1428
      %v1430 = vpop.f32.mrb[0].mxu0
      %1431 = vdwg.mxu0
      %v1432 = vrot.slane %v1314, 7
      %v1433 = vrot.slane %v1319, 7
      %v1434 = vrot.slane %v1324, 7
      %v1435 = vrot.slane %v1329, 7
      %v1436 = vrot.slane %v1334, 7
      %v1437 = vrot.slane %v1339, 7
      %v1438 = vrot.slane %v1344, 7
      %v1439 = vrot.slane %v1349, 7
      %v1440 = vrot.slane %v1354, 7
      %v1441 = vrot.slane %v1359, 7
      %v1442 = vrot.slane %v1364, 7
      %v1443 = vrot.slane %v1369, 7
      %v1444 = vrot.slane %v1374, 7
      %v1445 = vrot.slane %v1379, 7
      %v1446 = vrot.slane %v1384, 7
      %v1447 = vrot.slane %v1389, 7
      %v1448 = vrot.slane %v1394, 7
      %v1449 = vrot.slane %v1399, 7
      %v1450 = vrot.slane %v1404, 7
      %v1451 = vrot.slane %v1409, 7
      %v1452 = vrot.slane %v1414, 7
      %v1453 = vrot.slane %v1419, 7
      %v1454 = vrot.slane %v1424, 7
      %v1455 = vrot.slane %v1429, 7
      %v1456 = vsel %vm720, %v1453, %v1454
      %v1457 = vsel %vm720, %v1452, %v1453
      %v1458 = vsel %vm720, %v1450, %v1451
      %v1459 = vsel %vm720, %v1449, %v1450
      %v1460 = vsel %vm720, %v1447, %v1448
      %v1461 = vsel %vm720, %v1446, %v1447
      %v1462 = vsel %vm720, %v1444, %v1445
      %v1463 = vsel %vm720, %v1443, %v1444
      %v1464 = vsel %vm720, %v1441, %v1442
      %v1465 = vsel %vm720, %v1440, %v1441
      %v1466 = vsel %vm720, %v1438, %v1439
      %v1467 = vsel %vm720, %v1437, %v1438
      %v1468 = vsel %vm720, %v1435, %v1436
      %v1469 = vsel %vm720, %v1434, %v1435
      %v1470 = vsel %vm720, %v1432, %v1433
      %v1471 = vsel %vm720, %v1455, %v1432
      %v1472 = vadd.f32 %v1190, %v1471
      %v1473 = vadd.f32 %v1191, %v1470
      %v1474 = vadd.f32 %v1192, %v1469
      %v1475 = vadd.f32 %v1193, %v1468
      %v1476 = vadd.f32 %v1194, %v1467
      %v1477 = vadd.f32 %v1195, %v1466
      %v1478 = vadd.f32 %v1196, %v1465
      %v1479 = vadd.f32 %v1197, %v1464
      %v1480 = vadd.f32 %v1198, %v1463
      %v1481 = vadd.f32 %v1199, %v1462
      %v1482 = vadd.f32 %v1200, %v1461
      %v1483 = vadd.f32 %v1201, %v1460
      %v1484 = vadd.f32 %v1202, %v1459
      %v1485 = vadd.f32 %v1203, %v1458
      %v1486 = vadd.f32 %v1204, %v1457
      %v1487 = vadd.f32 %v1205, %v1456
      %s1488 = scalar_lea.vmem %s1, 512
      %v1489 = vld [vmem:[%s1488] sm:$0xff]
      %v1490 = vld [vmem:[%s1488 + $0x8] sm:$0xff]
      %v1491 = vld [vmem:[%s1488 + $0x10] sm:$0xff]
      %v1492 = vld [vmem:[%s1488 + $0x18] sm:$0xff]
      %v1493 = vld [vmem:[%s1488 + $0x20] sm:$0xff]
      %v1494 = vld [vmem:[%s1488 + $0x28] sm:$0xff]
      %v1495 = vld [vmem:[%s1488 + $0x30] sm:$0xff]
      %v1496 = vld [vmem:[%s1488 + $0x38] sm:$0xff]
      %v1497 = vld [vmem:[%s1488 + $0x40] sm:$0xff]
      %v1498 = vld [vmem:[%s1488 + $0x48] sm:$0xff]
      %v1499 = vld [vmem:[%s1488 + $0x50] sm:$0xff]
      %v1500 = vld [vmem:[%s1488 + $0x58] sm:$0xff]
      %v1501 = vld [vmem:[%s1488 + $0x60] sm:$0xff]
      %v1502 = vld [vmem:[%s1488 + $0x68] sm:$0xff]
      %v1503 = vld [vmem:[%s1488 + $0x70] sm:$0xff]
      %v1504 = vld [vmem:[%s1488 + $0x78] sm:$0xff]
      %1505 = vmatprep.subr.mxu0 0.0
      %1506 = vmatpush1.msra.mxu0 %v1489
      %1507 = vmatprep.subr.mxu0 0.0
      %1508 = vmatpush1.msra.mxu0 %v1490
      %1509 = vmatprep.subr.mxu0 0.0
      %1510 = vmatpush1.msra.mxu0 %v1491
      %1511 = vmatprep.subr.mxu0 0.0
      %1512 = vmatpush1.msra.mxu0 %v1492
      %1513 = vmatprep.subr.mxu0 0.0
      %1514 = vmatpush1.msra.mxu0 %v1493
      %1515 = vmatprep.subr.mxu0 0.0
      %1516 = vmatpush1.msra.mxu0 %v1494
      %1517 = vmatprep.subr.mxu0 0.0
      %1518 = vmatpush1.msra.mxu0 %v1495
      %1519 = vmatprep.subr.mxu0 0.0
      %1520 = vmatpush1.msra.mxu0 %v1496
      %1521 = vmatprep.subr.mxu0 0.0
      %1522 = vmatpush1.msra.mxu0 %v1497
      %1523 = vmatprep.subr.mxu0 0.0
      %1524 = vmatpush1.msra.mxu0 %v1498
      %1525 = vmatprep.subr.mxu0 0.0
      %1526 = vmatpush1.msra.mxu0 %v1499
      %1527 = vmatprep.subr.mxu0 0.0
      %1528 = vmatpush1.msra.mxu0 %v1500
      %1529 = vmatprep.subr.mxu0 0.0
      %1530 = vmatpush1.msra.mxu0 %v1501
      %1531 = vmatprep.subr.mxu0 0.0
      %1532 = vmatpush1.msra.mxu0 %v1502
      %1533 = vmatprep.subr.mxu0 0.0
      %1534 = vmatpush1.msra.mxu0 %v1503
      %1535 = vmatprep.subr.mxu0 0.0
      %1536 = vmatpush1.msra.mxu0 %v1504
      %1537 = vmatprep.subr.mxu0 0.0
      %1538 = vmatpush1.msra.mxu0 0.0
      %1539 = vmatprep.subr.mxu0 0.0
      %1540 = vmatpush1.msra.mxu0 0.0
      %1541 = vmatprep.subr.mxu0 0.0
      %1542 = vmatpush1.msra.mxu0 0.0
      %1543 = vmatprep.subr.mxu0 0.0
      %1544 = vmatpush1.msra.mxu0 0.0
      %1545 = vmatprep.subr.mxu0 0.0
      %1546 = vmatpush1.msra.mxu0 0.0
      %1547 = vmatprep.subr.mxu0 0.0
      %1548 = vmatpush1.msra.mxu0 0.0
      %1549 = vmatprep.subr.mxu0 0.0
      %1550 = vmatpush1.msra.mxu0 0.0
      %1551 = vmatprep.subr.mxu0 0.0
      %1552 = vmatpush1.msra.mxu0 0.0
      %1553 = vmatprep.subr.mxu0 0.0
      %1554 = vmatpush1.msra.mxu0 0.0
      %1555 = vmatprep.subr.mxu0 0.0
      %1556 = vmatpush1.msra.mxu0 0.0
      %1557 = vmatprep.subr.mxu0 0.0
      %1558 = vmatpush1.msra.mxu0 0.0
      %1559 = vmatprep.subr.mxu0 0.0
      %1560 = vmatpush1.msra.mxu0 0.0
      %1561 = vmatprep.subr.mxu0 0.0
      %1562 = vmatpush1.msra.mxu0 0.0
      %1563 = vmatprep.subr.mxu0 0.0
      %1564 = vmatpush1.msra.mxu0 0.0
      %1565 = vmatprep.subr.mxu0 0.0
      %1566 = vmatpush1.msra.mxu0 0.0
      %1567 = vmatprep.subr.mxu0 0.0
      %1568 = vmatpush1.msra.mxu0 0.0
      %1569 = vmatprep.mubr.f32.mxu0 0.0
      %1570 = vmatmul.mubr.f32.gmra.mrb[0].mxu0 %v1206
      %v1571 = vpop.f32.mrb[0].mxu0
      %v1572 = vadd.f32 0.0, %v1571
      %v1573 = vpop.f32.mrb[0].mxu0
      %1574 = vmatprep.mubr.f32.mxu0 0.0
      %1575 = vmatmul.mubr.f32.gmra.mrb[0].mxu0 %v1207
      %v1576 = vpop.f32.mrb[0].mxu0
      %v1577 = vadd.f32 0.0, %v1576
      %v1578 = vpop.f32.mrb[0].mxu0
      %1579 = vmatprep.mubr.f32.mxu0 0.0
      %1580 = vmatmul.mubr.f32.gmra.mrb[0].mxu0 %v1208
      %v1581 = vpop.f32.mrb[0].mxu0
      %v1582 = vpop.f32.mrb[0].mxu0
      %1583 = vmatprep.mubr.f32.mxu0 0.0
      %1584 = vmatmul.mubr.f32.gmra.mrb[0].mxu0 %v1209
      %v1585 = vpop.f32.mrb[0].mxu0
      %v1586 = vadd.f32 0.0, %v1585
      %v1587 = vpop.f32.mrb[0].mxu0
      %1588 = vmatprep.mubr.f32.mxu0 0.0
      %1589 = vmatmul.mubr.f32.gmra.mrb[0].mxu0 %v1210
      %v1590 = vpop.f32.mrb[0].mxu0
      %v1591 = vadd.f32 0.0, %v1590
      %v1592 = vpop.f32.mrb[0].mxu0
      %1593 = vmatprep.mubr.f32.mxu0 0.0
      %1594 = vmatmul.mubr.f32.gmra.mrb[0].mxu0 %v1211
      %v1595 = vpop.f32.mrb[0].mxu0
      %v1596 = vpop.f32.mrb[0].mxu0
      %1597 = vmatprep.mubr.f32.mxu0 0.0
      %1598 = vmatmul.mubr.f32.gmra.mrb[0].mxu0 %v1212
      %v1599 = vpop.f32.mrb[0].mxu0
      %v1600 = vadd.f32 0.0, %v1599
      %v1601 = vpop.f32.mrb[0].mxu0
      %1602 = vmatprep.mubr.f32.mxu0 0.0
      %1603 = vmatmul.mubr.f32.gmra.mrb[0].mxu0 %v1213
      %v1604 = vpop.f32.mrb[0].mxu0
      %v1605 = vadd.f32 0.0, %v1604
      %v1606 = vpop.f32.mrb[0].mxu0
      %1607 = vmatprep.mubr.f32.mxu0 0.0
      %1608 = vmatmul.mubr.f32.gmra.mrb[0].mxu0 %v1214
      %v1609 = vpop.f32.mrb[0].mxu0
      %v1610 = vpop.f32.mrb[0].mxu0
      %1611 = vmatprep.mubr.f32.mxu0 0.0
      %1612 = vmatmul.mubr.f32.gmra.mrb[0].mxu0 %v1215
      %v1613 = vpop.f32.mrb[0].mxu0
      %v1614 = vadd.f32 0.0, %v1613
      %v1615 = vpop.f32.mrb[0].mxu0
      %1616 = vmatprep.mubr.f32.mxu0 0.0
      %1617 = vmatmul.mubr.f32.gmra.mrb[0].mxu0 %v1216
      %v1618 = vpop.f32.mrb[0].mxu0
      %v1619 = vadd.f32 0.0, %v1618
      %v1620 = vpop.f32.mrb[0].mxu0
      %1621 = vmatprep.mubr.f32.mxu0 0.0
      %1622 = vmatmul.mubr.f32.gmra.mrb[0].mxu0 %v1217
      %v1623 = vpop.f32.mrb[0].mxu0
      %v1624 = vpop.f32.mrb[0].mxu0
      %1625 = vmatprep.mubr.f32.mxu0 0.0
      %1626 = vmatmul.mubr.f32.gmra.mrb[0].mxu0 %v1218
      %v1627 = vpop.f32.mrb[0].mxu0
      %v1628 = vadd.f32 0.0, %v1627
      %v1629 = vpop.f32.mrb[0].mxu0
      %1630 = vmatprep.mubr.f32.mxu0 0.0
      %1631 = vmatmul.mubr.f32.gmra.mrb[0].mxu0 %v1219
      %v1632 = vpop.f32.mrb[0].mxu0
      %v1633 = vadd.f32 0.0, %v1632
      %v1634 = vpop.f32.mrb[0].mxu0
      %1635 = vmatprep.mubr.f32.mxu0 0.0
      %1636 = vmatmul.mubr.f32.gmra.mrb[0].mxu0 %v1220
      %v1637 = vpop.f32.mrb[0].mxu0
      %v1638 = vpop.f32.mrb[0].mxu0
      %1639 = vmatprep.mubr.f32.mxu0 0.0
      %1640 = vmatmul.mubr.f32.gmra.mrb[0].mxu0 %v1221
      %v1641 = vpop.f32.mrb[0].mxu0
      %v1642 = vadd.f32 0.0, %v1641
      %v1643 = vpop.f32.mrb[0].mxu0
      %1644 = vmatprep.mubr.f32.mxu0 0.0
      %1645 = vmatmul.mubr.f32.gmra.mrb[0].mxu0 %v1222
      %v1646 = vpop.f32.mrb[0].mxu0
      %v1647 = vadd.f32 0.0, %v1646
      %v1648 = vpop.f32.mrb[0].mxu0
      %1649 = vmatprep.mubr.f32.mxu0 0.0
      %1650 = vmatmul.mubr.f32.gmra.mrb[0].mxu0 %v1223
      %v1651 = vpop.f32.mrb[0].mxu0
      %v1652 = vpop.f32.mrb[0].mxu0
      %1653 = vmatprep.mubr.f32.mxu0 0.0
      %1654 = vmatmul.mubr.f32.gmra.mrb[0].mxu0 %v1224
      %v1655 = vpop.f32.mrb[0].mxu0
      %v1656 = vadd.f32 0.0, %v1655
      %v1657 = vpop.f32.mrb[0].mxu0
      %1658 = vmatprep.mubr.f32.mxu0 0.0
      %1659 = vmatmul.mubr.f32.gmra.mrb[0].mxu0 %v1225
      %v1660 = vpop.f32.mrb[0].mxu0
      %v1661 = vadd.f32 0.0, %v1660
      %v1662 = vpop.f32.mrb[0].mxu0
      %1663 = vmatprep.mubr.f32.mxu0 0.0
      %1664 = vmatmul.mubr.f32.gmra.mrb[0].mxu0 %v1226
      %v1665 = vpop.f32.mrb[0].mxu0
      %v1666 = vpop.f32.mrb[0].mxu0
      %1667 = vmatprep.mubr.f32.mxu0 0.0
      %1668 = vmatmul.mubr.f32.gmra.mrb[0].mxu0 %v1227
      %v1669 = vpop.f32.mrb[0].mxu0
      %v1670 = vadd.f32 0.0, %v1669
      %v1671 = vpop.f32.mrb[0].mxu0
      %1672 = vmatprep.mubr.f32.mxu0 0.0
      %1673 = vmatmul.mubr.f32.gmra.mrb[0].mxu0 %v1228
      %v1674 = vpop.f32.mrb[0].mxu0
      %v1675 = vadd.f32 0.0, %v1674
      %v1676 = vpop.f32.mrb[0].mxu0
      %1677 = vmatprep.mubr.f32.mxu0 0.0
      %1678 = vmatmul.mubr.f32.gmra.mrb[0].mxu0 %v1229
      %v1679 = vpop.f32.mrb[0].mxu0
      %v1680 = vpop.f32.mrb[0].mxu0
      %1681 = vdwg.mxu0
      %v1682 = vadd.f32 %v1472, %v1572
      %v1683 = vadd.f32 %v1473, %v1577
      %v1684 = vadd.f32 %v1474, %v1586
      %v1685 = vadd.f32 %v1475, %v1591
      %v1686 = vadd.f32 %v1476, %v1600
      %v1687 = vadd.f32 %v1477, %v1605
      %v1688 = vadd.f32 %v1478, %v1614
      %v1689 = vadd.f32 %v1479, %v1619
      %v1690 = vadd.f32 %v1480, %v1628
      %v1691 = vadd.f32 %v1481, %v1633
      %v1692 = vadd.f32 %v1482, %v1642
      %v1693 = vadd.f32 %v1483, %v1647
      %v1694 = vadd.f32 %v1484, %v1656
      %v1695 = vadd.f32 %v1485, %v1661
      %v1696 = vadd.f32 %v1486, %v1670
      %v1697 = vadd.f32 %v1487, %v1675
      %s1698 = scalar_lea.vmem %s1, 640
      %v1699 = vld [vmem:[%s1698] sm:$0xff]
      %v1700 = vld [vmem:[%s1698 + $0x8] sm:$0xff]
      %v1701 = vld [vmem:[%s1698 + $0x10] sm:$0xff]
      %v1702 = vld [vmem:[%s1698 + $0x18] sm:$0xff]
      %v1703 = vld [vmem:[%s1698 + $0x20] sm:$0xff]
      %v1704 = vld [vmem:[%s1698 + $0x28] sm:$0xff]
      %v1705 = vld [vmem:[%s1698 + $0x30] sm:$0xff]
      %v1706 = vld [vmem:[%s1698 + $0x38] sm:$0xff]
      %v1707 = vld [vmem:[%s1698 + $0x40] sm:$0xff]
      %v1708 = vld [vmem:[%s1698 + $0x48] sm:$0xff]
      %v1709 = vld [vmem:[%s1698 + $0x50] sm:$0xff]
      %v1710 = vld [vmem:[%s1698 + $0x58] sm:$0xff]
      %v1711 = vld [vmem:[%s1698 + $0x60] sm:$0xff]
      %v1712 = vld [vmem:[%s1698 + $0x68] sm:$0xff]
      %v1713 = vld [vmem:[%s1698 + $0x70] sm:$0xff]
      %v1714 = vld [vmem:[%s1698 + $0x78] sm:$0xff]
      %1715 = vmatprep.subr.mxu0 0.0
      %1716 = vmatpush1.msra.mxu0 %v1699
      %1717 = vmatprep.subr.mxu0 0.0
      %1718 = vmatpush1.msra.mxu0 %v1700
      %1719 = vmatprep.subr.mxu0 0.0
      %1720 = vmatpush1.msra.mxu0 %v1701
      %1721 = vmatprep.subr.mxu0 0.0
      %1722 = vmatpush1.msra.mxu0 %v1702
      %1723 = vmatprep.subr.mxu0 0.0
      %1724 = vmatpush1.msra.mxu0 %v1703
      %1725 = vmatprep.subr.mxu0 0.0
      %1726 = vmatpush1.msra.mxu0 %v1704
      %1727 = vmatprep.subr.mxu0 0.0
      %1728 = vmatpush1.msra.mxu0 %v1705
      %1729 = vmatprep.subr.mxu0 0.0
      %1730 = vmatpush1.msra.mxu0 %v1706
      %1731 = vmatprep.subr.mxu0 0.0
      %1732 = vmatpush1.msra.mxu0 %v1707
      %1733 = vmatprep.subr.mxu0 0.0
      %1734 = vmatpush1.msra.mxu0 %v1708
      %1735 = vmatprep.subr.mxu0 0.0
      %1736 = vmatpush1.msra.mxu0 %v1709
      %1737 = vmatprep.subr.mxu0 0.0
      %1738 = vmatpush1.msra.mxu0 %v1710
      %1739 = vmatprep.subr.mxu0 0.0
      %1740 = vmatpush1.msra.mxu0 %v1711
      %1741 = vmatprep.subr.mxu0 0.0
      %1742 = vmatpush1.msra.mxu0 %v1712
      %1743 = vmatprep.subr.mxu0 0.0
      %1744 = vmatpush1.msra.mxu0 %v1713
      %1745 = vmatprep.subr.mxu0 0.0
      %1746 = vmatpush1.msra.mxu0 %v1714
      %1747 = vmatprep.subr.mxu0 0.0
      %1748 = vmatpush1.msra.mxu0 0.0
      %1749 = vmatprep.subr.mxu0 0.0
      %1750 = vmatpush1.msra.mxu0 0.0
      %1751 = vmatprep.subr.mxu0 0.0
      %1752 = vmatpush1.msra.mxu0 0.0
      %1753 = vmatprep.subr.mxu0 0.0
      %1754 = vmatpush1.msra.mxu0 0.0
      %1755 = vmatprep.subr.mxu0 0.0
      %1756 = vmatpush1.msra.mxu0 0.0
      %1757 = vmatprep.subr.mxu0 0.0
      %1758 = vmatpush1.msra.mxu0 0.0
      %1759 = vmatprep.subr.mxu0 0.0
      %1760 = vmatpush1.msra.mxu0 0.0
      %1761 = vmatprep.subr.mxu0 0.0
      %1762 = vmatpush1.msra.mxu0 0.0
      %1763 = vmatprep.subr.mxu0 0.0
      %1764 = vmatpush1.msra.mxu0 0.0
      %1765 = vmatprep.subr.mxu0 0.0
      %1766 = vmatpush1.msra.mxu0 0.0
      %1767 = vmatprep.subr.mxu0 0.0
      %1768 = vmatpush1.msra.mxu0 0.0
      %1769 = vmatprep.subr.mxu0 0.0
      %1770 = vmatpush1.msra.mxu0 0.0
      %1771 = vmatprep.subr.mxu0 0.0
      %1772 = vmatpush1.msra.mxu0 0.0
      %1773 = vmatprep.subr.mxu0 0.0
      %1774 = vmatpush1.msra.mxu0 0.0
      %1775 = vmatprep.subr.mxu0 0.0
      %1776 = vmatpush1.msra.mxu0 0.0
      %1777 = vmatprep.subr.mxu0 0.0
      %1778 = vmatpush1.msra.mxu0 0.0
      %1779 = vmatprep.mubr.f32.mxu0 0.0
      %1780 = vmatmul.mubr.f32.gmra.mrb[0].mxu0 %v1206
      %v1781 = vpop.f32.mrb[0].mxu0
      %v1782 = vadd.f32 0.0, %v1781
      %v1783 = vpop.f32.mrb[0].mxu0
      %1784 = vmatprep.mubr.f32.mxu0 0.0
      %1785 = vmatmul.mubr.f32.gmra.mrb[0].mxu0 %v1207
      %v1786 = vpop.f32.mrb[0].mxu0
      %v1787 = vadd.f32 0.0, %v1786
      %v1788 = vpop.f32.mrb[0].mxu0
      %1789 = vmatprep.mubr.f32.mxu0 0.0
      %1790 = vmatmul.mubr.f32.gmra.mrb[0].mxu0 %v1208
      %v1791 = vpop.f32.mrb[0].mxu0
      %v1792 = vadd.f32 0.0, %v1791
      %v1793 = vpop.f32.mrb[0].mxu0
      %1794 = vmatprep.mubr.f32.mxu0 0.0
      %1795 = vmatmul.mubr.f32.gmra.mrb[0].mxu0 %v1209
      %v1796 = vpop.f32.mrb[0].mxu0
      %v1797 = vadd.f32 0.0, %v1796
      %v1798 = vpop.f32.mrb[0].mxu0
      %1799 = vmatprep.mubr.f32.mxu0 0.0
      %1800 = vmatmul.mubr.f32.gmra.mrb[0].mxu0 %v1210
      %v1801 = vpop.f32.mrb[0].mxu0
      %v1802 = vadd.f32 0.0, %v1801
      %v1803 = vpop.f32.mrb[0].mxu0
      %1804 = vmatprep.mubr.f32.mxu0 0.0
      %1805 = vmatmul.mubr.f32.gmra.mrb[0].mxu0 %v1211
      %v1806 = vpop.f32.mrb[0].mxu0
      %v1807 = vadd.f32 0.0, %v1806
      %v1808 = vpop.f32.mrb[0].mxu0
      %1809 = vmatprep.mubr.f32.mxu0 0.0
      %1810 = vmatmul.mubr.f32.gmra.mrb[0].mxu0 %v1212
      %v1811 = vpop.f32.mrb[0].mxu0
      %v1812 = vadd.f32 0.0, %v1811
      %v1813 = vpop.f32.mrb[0].mxu0
      %1814 = vmatprep.mubr.f32.mxu0 0.0
      %1815 = vmatmul.mubr.f32.gmra.mrb[0].mxu0 %v1213
      %v1816 = vpop.f32.mrb[0].mxu0
      %v1817 = vadd.f32 0.0, %v1816
      %v1818 = vpop.f32.mrb[0].mxu0
      %1819 = vmatprep.mubr.f32.mxu0 0.0
      %1820 = vmatmul.mubr.f32.gmra.mrb[0].mxu0 %v1214
      %v1821 = vpop.f32.mrb[0].mxu0
      %v1822 = vadd.f32 0.0, %v1821
      %v1823 = vpop.f32.mrb[0].mxu0
      %1824 = vmatprep.mubr.f32.mxu0 0.0
      %1825 = vmatmul.mubr.f32.gmra.mrb[0].mxu0 %v1215
      %v1826 = vpop.f32.mrb[0].mxu0
      %v1827 = vadd.f32 0.0, %v1826
      %v1828 = vpop.f32.mrb[0].mxu0
      %1829 = vmatprep.mubr.f32.mxu0 0.0
      %1830 = vmatmul.mubr.f32.gmra.mrb[0].mxu0 %v1216
      %v1831 = vpop.f32.mrb[0].mxu0
      %v1832 = vadd.f32 0.0, %v1831
      %v1833 = vpop.f32.mrb[0].mxu0
      %1834 = vmatprep.mubr.f32.mxu0 0.0
      %1835 = vmatmul.mubr.f32.gmra.mrb[0].mxu0 %v1217
      %v1836 = vpop.f32.mrb[0].mxu0
      %v1837 = vadd.f32 0.0, %v1836
      %v1838 = vpop.f32.mrb[0].mxu0
      %1839 = vmatprep.mubr.f32.mxu0 0.0
      %1840 = vmatmul.mubr.f32.gmra.mrb[0].mxu0 %v1218
      %v1841 = vpop.f32.mrb[0].mxu0
      %v1842 = vadd.f32 0.0, %v1841
      %v1843 = vpop.f32.mrb[0].mxu0
      %1844 = vmatprep.mubr.f32.mxu0 0.0
      %1845 = vmatmul.mubr.f32.gmra.mrb[0].mxu0 %v1219
      %v1846 = vpop.f32.mrb[0].mxu0
      %v1847 = vadd.f32 0.0, %v1846
      %v1848 = vpop.f32.mrb[0].mxu0
      %1849 = vmatprep.mubr.f32.mxu0 0.0
      %1850 = vmatmul.mubr.f32.gmra.mrb[0].mxu0 %v1220
      %v1851 = vpop.f32.mrb[0].mxu0
      %v1852 = vadd.f32 0.0, %v1851
      %v1853 = vpop.f32.mrb[0].mxu0
      %1854 = vmatprep.mubr.f32.mxu0 0.0
      %1855 = vmatmul.mubr.f32.gmra.mrb[0].mxu0 %v1221
      %v1856 = vpop.f32.mrb[0].mxu0
      %v1857 = vadd.f32 0.0, %v1856
      %v1858 = vpop.f32.mrb[0].mxu0
      %1859 = vmatprep.mubr.f32.mxu0 0.0
      %1860 = vmatmul.mubr.f32.gmra.mrb[0].mxu0 %v1222
      %v1861 = vpop.f32.mrb[0].mxu0
      %v1862 = vadd.f32 0.0, %v1861
      %v1863 = vpop.f32.mrb[0].mxu0
      %1864 = vmatprep.mubr.f32.mxu0 0.0
      %1865 = vmatmul.mubr.f32.gmra.mrb[0].mxu0 %v1223
      %v1866 = vpop.f32.mrb[0].mxu0
      %v1867 = vadd.f32 0.0, %v1866
      %v1868 = vpop.f32.mrb[0].mxu0
      %1869 = vmatprep.mubr.f32.mxu0 0.0
      %1870 = vmatmul.mubr.f32.gmra.mrb[0].mxu0 %v1224
      %v1871 = vpop.f32.mrb[0].mxu0
      %v1872 = vadd.f32 0.0, %v1871
      %v1873 = vpop.f32.mrb[0].mxu0
      %1874 = vmatprep.mubr.f32.mxu0 0.0
      %1875 = vmatmul.mubr.f32.gmra.mrb[0].mxu0 %v1225
      %v1876 = vpop.f32.mrb[0].mxu0
      %v1877 = vadd.f32 0.0, %v1876
      %v1878 = vpop.f32.mrb[0].mxu0
      %1879 = vmatprep.mubr.f32.mxu0 0.0
      %1880 = vmatmul.mubr.f32.gmra.mrb[0].mxu0 %v1226
      %v1881 = vpop.f32.mrb[0].mxu0
      %v1882 = vadd.f32 0.0, %v1881
      %v1883 = vpop.f32.mrb[0].mxu0
      %1884 = vmatprep.mubr.f32.mxu0 0.0
      %1885 = vmatmul.mubr.f32.gmra.mrb[0].mxu0 %v1227
      %v1886 = vpop.f32.mrb[0].mxu0
      %v1887 = vadd.f32 0.0, %v1886
      %v1888 = vpop.f32.mrb[0].mxu0
      %1889 = vmatprep.mubr.f32.mxu0 0.0
      %1890 = vmatmul.mubr.f32.gmra.mrb[0].mxu0 %v1228
      %v1891 = vpop.f32.mrb[0].mxu0
      %v1892 = vadd.f32 0.0, %v1891
      %v1893 = vpop.f32.mrb[0].mxu0
      %1894 = vmatprep.mubr.f32.mxu0 0.0
      %1895 = vmatmul.mubr.f32.gmra.mrb[0].mxu0 %v1229
      %v1896 = vpop.f32.mrb[0].mxu0
      %v1897 = vadd.f32 0.0, %v1896
      %v1898 = vpop.f32.mrb[0].mxu0
      %1899 = vdwg.mxu0
      %v1900 = vrot.slane %v1782, 1
      %v1901 = vrot.slane %v1787, 1
      %v1902 = vrot.slane %v1792, 1
      %v1903 = vrot.slane %v1797, 1
      %v1904 = vrot.slane %v1802, 1
      %v1905 = vrot.slane %v1807, 1
      %v1906 = vrot.slane %v1812, 1
      %v1907 = vrot.slane %v1817, 1
      %v1908 = vrot.slane %v1822, 1
      %v1909 = vrot.slane %v1827, 1
      %v1910 = vrot.slane %v1832, 1
      %v1911 = vrot.slane %v1837, 1
      %v1912 = vrot.slane %v1842, 1
      %v1913 = vrot.slane %v1847, 1
      %v1914 = vrot.slane %v1852, 1
      %v1915 = vrot.slane %v1857, 1
      %v1916 = vrot.slane %v1862, 1
      %v1917 = vrot.slane %v1867, 1
      %v1918 = vrot.slane %v1872, 1
      %v1919 = vrot.slane %v1877, 1
      %v1920 = vrot.slane %v1882, 1
      %v1921 = vrot.slane %v1887, 1
      %v1922 = vrot.slane %v1892, 1
      %v1923 = vrot.slane %v1897, 1
      %v1924 = vsel %vm1173, %v1922, %v1923
      %v1925 = vsel %vm1173, %v1921, %v1922
      %v1926 = vsel %vm1173, %v1919, %v1920
      %v1927 = vsel %vm1173, %v1918, %v1919
      %v1928 = vsel %vm1173, %v1916, %v1917
      %v1929 = vsel %vm1173, %v1915, %v1916
      %v1930 = vsel %vm1173, %v1913, %v1914
      %v1931 = vsel %vm1173, %v1912, %v1913
      %v1932 = vsel %vm1173, %v1910, %v1911
      %v1933 = vsel %vm1173, %v1909, %v1910
      %v1934 = vsel %vm1173, %v1907, %v1908
      %v1935 = vsel %vm1173, %v1906, %v1907
      %v1936 = vsel %vm1173, %v1904, %v1905
      %v1937 = vsel %vm1173, %v1903, %v1904
      %v1938 = vsel %vm1173, %v1901, %v1902
      %v1939 = vsel %vm1173, %v1900, %v1901
      %v1940 = vadd.f32 %v1682, %v1939
      %v1941 = vadd.f32 %v1683, %v1938
      %v1942 = vadd.f32 %v1684, %v1937
      %v1943 = vadd.f32 %v1685, %v1936
      %v1944 = vadd.f32 %v1686, %v1935
      %v1945 = vadd.f32 %v1687, %v1934
      %v1946 = vadd.f32 %v1688, %v1933
      %v1947 = vadd.f32 %v1689, %v1932
      %v1948 = vadd.f32 %v1690, %v1931
      %v1949 = vadd.f32 %v1691, %v1930
      %v1950 = vadd.f32 %v1692, %v1929
      %v1951 = vadd.f32 %v1693, %v1928
      %v1952 = vadd.f32 %v1694, %v1927
      %v1953 = vadd.f32 %v1695, %v1926
      %v1954 = vadd.f32 %v1696, %v1925
      %v1955 = vadd.f32 %v1697, %v1924
      %s1956 = scalar_lea.vmem [#allocation2], 48
      %v1957 = vld [vmem:[%s1956] sm:$0xff]
      %v1958 = vld [vmem:[%s1956 + $0x8] sm:$0xff]
      %v1959 = vld [vmem:[%s1956 + $0x10] sm:$0xff]
      %v1960 = vld [vmem:[%s1956 + $0x18] sm:$0xff]
      %v1961 = vld [vmem:[%s1956 + $0x20] sm:$0xff]
      %v1962 = vld [vmem:[%s1956 + $0x28] sm:$0xff]
      %v1963 = vld [vmem:[%s1956 + $0x30] sm:$0xff]
      %v1964 = vld [vmem:[%s1956 + $0x38] sm:$0xff]
      %v1965 = vld [vmem:[%s1956 + $0x40] sm:$0xff]
      %v1966 = vld [vmem:[%s1956 + $0x48] sm:$0xff]
      %v1967 = vld [vmem:[%s1956 + $0x50] sm:$0xff]
      %v1968 = vld [vmem:[%s1956 + $0x58] sm:$0xff]
      %v1969 = vld [vmem:[%s1956 + $0x60] sm:$0xff]
      %v1970 = vld [vmem:[%s1956 + $0x68] sm:$0xff]
      %v1971 = vld [vmem:[%s1956 + $0x70] sm:$0xff]
      %v1972 = vld [vmem:[%s1956 + $0x78] sm:$0xff]
      %v1973 = vld [vmem:[%s1956 + $0x80] sm:$0xff]
      %v1974 = vld [vmem:[%s1956 + $0x88] sm:$0xff]
      %v1975 = vld [vmem:[%s1956 + $0x90] sm:$0xff]
      %v1976 = vld [vmem:[%s1956 + $0x98] sm:$0xff]
      %v1977 = vld [vmem:[%s1956 + $0xa0] sm:$0xff]
      %v1978 = vld [vmem:[%s1956 + $0xa8] sm:$0xff]
      %v1979 = vld [vmem:[%s1956 + $0xb0] sm:$0xff]
      %v1980 = vld [vmem:[%s1956 + $0xb8] sm:$0xff]
      %s1981 = scalar_lea.vmem %s1, 768
      %v1982 = vld [vmem:[%s1981] sm:$0xff]
      %v1983 = vld [vmem:[%s1981 + $0x8] sm:$0xff]
      %v1984 = vld [vmem:[%s1981 + $0x10] sm:$0xff]
      %v1985 = vld [vmem:[%s1981 + $0x18] sm:$0xff]
      %v1986 = vld [vmem:[%s1981 + $0x20] sm:$0xff]
      %v1987 = vld [vmem:[%s1981 + $0x28] sm:$0xff]
      %v1988 = vld [vmem:[%s1981 + $0x30] sm:$0xff]
      %v1989 = vld [vmem:[%s1981 + $0x38] sm:$0xff]
      %v1990 = vld [vmem:[%s1981 + $0x40] sm:$0xff]
      %v1991 = vld [vmem:[%s1981 + $0x48] sm:$0xff]
      %v1992 = vld [vmem:[%s1981 + $0x50] sm:$0xff]
      %v1993 = vld [vmem:[%s1981 + $0x58] sm:$0xff]
      %v1994 = vld [vmem:[%s1981 + $0x60] sm:$0xff]
      %v1995 = vld [vmem:[%s1981 + $0x68] sm:$0xff]
      %v1996 = vld [vmem:[%s1981 + $0x70] sm:$0xff]
      %v1997 = vld [vmem:[%s1981 + $0x78] sm:$0xff]
      %1998 = vmatprep.subr.mxu0 0.0
      %1999 = vmatpush1.msra.mxu0 %v1982
      %2000 = vmatprep.subr.mxu0 0.0
      %2001 = vmatpush1.msra.mxu0 %v1983
      %2002 = vmatprep.subr.mxu0 0.0
      %2003 = vmatpush1.msra.mxu0 %v1984
      %2004 = vmatprep.subr.mxu0 0.0
      %2005 = vmatpush1.msra.mxu0 %v1985
      %2006 = vmatprep.subr.mxu0 0.0
      %2007 = vmatpush1.msra.mxu0 %v1986
      %2008 = vmatprep.subr.mxu0 0.0
      %2009 = vmatpush1.msra.mxu0 %v1987
      %2010 = vmatprep.subr.mxu0 0.0
      %2011 = vmatpush1.msra.mxu0 %v1988
      %2012 = vmatprep.subr.mxu0 0.0
      %2013 = vmatpush1.msra.mxu0 %v1989
      %2014 = vmatprep.subr.mxu0 0.0
      %2015 = vmatpush1.msra.mxu0 %v1990
      %2016 = vmatprep.subr.mxu0 0.0
      %2017 = vmatpush1.msra.mxu0 %v1991
      %2018 = vmatprep.subr.mxu0 0.0
      %2019 = vmatpush1.msra.mxu0 %v1992
      %2020 = vmatprep.subr.mxu0 0.0
      %2021 = vmatpush1.msra.mxu0 %v1993
      %2022 = vmatprep.subr.mxu0 0.0
      %2023 = vmatpush1.msra.mxu0 %v1994
      %2024 = vmatprep.subr.mxu0 0.0
      %2025 = vmatpush1.msra.mxu0 %v1995
      %2026 = vmatprep.subr.mxu0 0.0
      %2027 = vmatpush1.msra.mxu0 %v1996
      %2028 = vmatprep.subr.mxu0 0.0
      %2029 = vmatpush1.msra.mxu0 %v1997
      %2030 = vmatprep.subr.mxu0 0.0
      %2031 = vmatpush1.msra.mxu0 0.0
      %2032 = vmatprep.subr.mxu0 0.0
      %2033 = vmatpush1.msra.mxu0 0.0
      %2034 = vmatprep.subr.mxu0 0.0
      %2035 = vmatpush1.msra.mxu0 0.0
      %2036 = vmatprep.subr.mxu0 0.0
      %2037 = vmatpush1.msra.mxu0 0.0
      %2038 = vmatprep.subr.mxu0 0.0
      %2039 = vmatpush1.msra.mxu0 0.0
      %2040 = vmatprep.subr.mxu0 0.0
      %2041 = vmatpush1.msra.mxu0 0.0
      %2042 = vmatprep.subr.mxu0 0.0
      %2043 = vmatpush1.msra.mxu0 0.0
      %2044 = vmatprep.subr.mxu0 0.0
      %2045 = vmatpush1.msra.mxu0 0.0
      %2046 = vmatprep.subr.mxu0 0.0
      %2047 = vmatpush1.msra.mxu0 0.0
      %2048 = vmatprep.subr.mxu0 0.0
      %2049 = vmatpush1.msra.mxu0 0.0
      %2050 = vmatprep.subr.mxu0 0.0
      %2051 = vmatpush1.msra.mxu0 0.0
      %2052 = vmatprep.subr.mxu0 0.0
      %2053 = vmatpush1.msra.mxu0 0.0
      %2054 = vmatprep.subr.mxu0 0.0
      %2055 = vmatpush1.msra.mxu0 0.0
      %2056 = vmatprep.subr.mxu0 0.0
      %2057 = vmatpush1.msra.mxu0 0.0
      %2058 = vmatprep.subr.mxu0 0.0
      %2059 = vmatpush1.msra.mxu0 0.0
      %2060 = vmatprep.subr.mxu0 0.0
      %2061 = vmatpush1.msra.mxu0 0.0
      %2062 = vmatprep.mubr.f32.mxu0 0.0
      %2063 = vmatmul.mubr.f32.gmra.mrb[0].mxu0 %v1957
      %v2064 = vpop.f32.mrb[0].mxu0
      %v2065 = vadd.f32 0.0, %v2064
      %v2066 = vpop.f32.mrb[0].mxu0
      %2067 = vmatprep.mubr.f32.mxu0 0.0
      %2068 = vmatmul.mubr.f32.gmra.mrb[0].mxu0 %v1958
      %v2069 = vpop.f32.mrb[0].mxu0
      %v2070 = vadd.f32 0.0, %v2069
      %v2071 = vpop.f32.mrb[0].mxu0
      %2072 = vmatprep.mubr.f32.mxu0 0.0
      %2073 = vmatmul.mubr.f32.gmra.mrb[0].mxu0 %v1959
      %v2074 = vpop.f32.mrb[0].mxu0
      %v2075 = vadd.f32 0.0, %v2074
      %v2076 = vpop.f32.mrb[0].mxu0
      %2077 = vmatprep.mubr.f32.mxu0 0.0
      %2078 = vmatmul.mubr.f32.gmra.mrb[0].mxu0 %v1960
      %v2079 = vpop.f32.mrb[0].mxu0
      %v2080 = vadd.f32 0.0, %v2079
      %v2081 = vpop.f32.mrb[0].mxu0
      %2082 = vmatprep.mubr.f32.mxu0 0.0
      %2083 = vmatmul.mubr.f32.gmra.mrb[0].mxu0 %v1961
      %v2084 = vpop.f32.mrb[0].mxu0
      %v2085 = vadd.f32 0.0, %v2084
      %v2086 = vpop.f32.mrb[0].mxu0
      %2087 = vmatprep.mubr.f32.mxu0 0.0
      %2088 = vmatmul.mubr.f32.gmra.mrb[0].mxu0 %v1962
      %v2089 = vpop.f32.mrb[0].mxu0
      %v2090 = vadd.f32 0.0, %v2089
      %v2091 = vpop.f32.mrb[0].mxu0
      %2092 = vmatprep.mubr.f32.mxu0 0.0
      %2093 = vmatmul.mubr.f32.gmra.mrb[0].mxu0 %v1963
      %v2094 = vpop.f32.mrb[0].mxu0
      %v2095 = vadd.f32 0.0, %v2094
      %v2096 = vpop.f32.mrb[0].mxu0
      %2097 = vmatprep.mubr.f32.mxu0 0.0
      %2098 = vmatmul.mubr.f32.gmra.mrb[0].mxu0 %v1964
      %v2099 = vpop.f32.mrb[0].mxu0
      %v2100 = vadd.f32 0.0, %v2099
      %v2101 = vpop.f32.mrb[0].mxu0
      %2102 = vmatprep.mubr.f32.mxu0 0.0
      %2103 = vmatmul.mubr.f32.gmra.mrb[0].mxu0 %v1965
      %v2104 = vpop.f32.mrb[0].mxu0
      %v2105 = vadd.f32 0.0, %v2104
      %v2106 = vpop.f32.mrb[0].mxu0
      %2107 = vmatprep.mubr.f32.mxu0 0.0
      %2108 = vmatmul.mubr.f32.gmra.mrb[0].mxu0 %v1966
      %v2109 = vpop.f32.mrb[0].mxu0
      %v2110 = vadd.f32 0.0, %v2109
      %v2111 = vpop.f32.mrb[0].mxu0
      %2112 = vmatprep.mubr.f32.mxu0 0.0
      %2113 = vmatmul.mubr.f32.gmra.mrb[0].mxu0 %v1967
      %v2114 = vpop.f32.mrb[0].mxu0
      %v2115 = vadd.f32 0.0, %v2114
      %v2116 = vpop.f32.mrb[0].mxu0
      %2117 = vmatprep.mubr.f32.mxu0 0.0
      %2118 = vmatmul.mubr.f32.gmra.mrb[0].mxu0 %v1968
      %v2119 = vpop.f32.mrb[0].mxu0
      %v2120 = vadd.f32 0.0, %v2119
      %v2121 = vpop.f32.mrb[0].mxu0
      %2122 = vmatprep.mubr.f32.mxu0 0.0
      %2123 = vmatmul.mubr.f32.gmra.mrb[0].mxu0 %v1969
      %v2124 = vpop.f32.mrb[0].mxu0
      %v2125 = vadd.f32 0.0, %v2124
      %v2126 = vpop.f32.mrb[0].mxu0
      %2127 = vmatprep.mubr.f32.mxu0 0.0
      %2128 = vmatmul.mubr.f32.gmra.mrb[0].mxu0 %v1970
      %v2129 = vpop.f32.mrb[0].mxu0
      %v2130 = vadd.f32 0.0, %v2129
      %v2131 = vpop.f32.mrb[0].mxu0
      %2132 = vmatprep.mubr.f32.mxu0 0.0
      %2133 = vmatmul.mubr.f32.gmra.mrb[0].mxu0 %v1971
      %v2134 = vpop.f32.mrb[0].mxu0
      %v2135 = vadd.f32 0.0, %v2134
      %v2136 = vpop.f32.mrb[0].mxu0
      %2137 = vmatprep.mubr.f32.mxu0 0.0
      %2138 = vmatmul.mubr.f32.gmra.mrb[0].mxu0 %v1972
      %v2139 = vpop.f32.mrb[0].mxu0
      %v2140 = vadd.f32 0.0, %v2139
      %v2141 = vpop.f32.mrb[0].mxu0
      %2142 = vmatprep.mubr.f32.mxu0 0.0
      %2143 = vmatmul.mubr.f32.gmra.mrb[0].mxu0 %v1973
      %v2144 = vpop.f32.mrb[0].mxu0
      %v2145 = vadd.f32 0.0, %v2144
      %v2146 = vpop.f32.mrb[0].mxu0
      %2147 = vmatprep.mubr.f32.mxu0 0.0
      %2148 = vmatmul.mubr.f32.gmra.mrb[0].mxu0 %v1974
      %v2149 = vpop.f32.mrb[0].mxu0
      %v2150 = vadd.f32 0.0, %v2149
      %v2151 = vpop.f32.mrb[0].mxu0
      %2152 = vmatprep.mubr.f32.mxu0 0.0
      %2153 = vmatmul.mubr.f32.gmra.mrb[0].mxu0 %v1975
      %v2154 = vpop.f32.mrb[0].mxu0
      %v2155 = vadd.f32 0.0, %v2154
      %v2156 = vpop.f32.mrb[0].mxu0
      %2157 = vmatprep.mubr.f32.mxu0 0.0
      %2158 = vmatmul.mubr.f32.gmra.mrb[0].mxu0 %v1976
      %v2159 = vpop.f32.mrb[0].mxu0
      %v2160 = vadd.f32 0.0, %v2159
      %v2161 = vpop.f32.mrb[0].mxu0
      %2162 = vmatprep.mubr.f32.mxu0 0.0
      %2163 = vmatmul.mubr.f32.gmra.mrb[0].mxu0 %v1977
      %v2164 = vpop.f32.mrb[0].mxu0
      %v2165 = vadd.f32 0.0, %v2164
      %v2166 = vpop.f32.mrb[0].mxu0
      %2167 = vmatprep.mubr.f32.mxu0 0.0
      %2168 = vmatmul.mubr.f32.gmra.mrb[0].mxu0 %v1978
      %v2169 = vpop.f32.mrb[0].mxu0
      %v2170 = vadd.f32 0.0, %v2169
      %v2171 = vpop.f32.mrb[0].mxu0
      %2172 = vmatprep.mubr.f32.mxu0 0.0
      %2173 = vmatmul.mubr.f32.gmra.mrb[0].mxu0 %v1979
      %v2174 = vpop.f32.mrb[0].mxu0
      %v2175 = vadd.f32 0.0, %v2174
      %v2176 = vpop.f32.mrb[0].mxu0
      %2177 = vmatprep.mubr.f32.mxu0 0.0
      %2178 = vmatmul.mubr.f32.gmra.mrb[0].mxu0 %v1980
      %v2179 = vpop.f32.mrb[0].mxu0
      %v2180 = vadd.f32 0.0, %v2179
      %v2181 = vpop.f32.mrb[0].mxu0
      %2182 = vdwg.mxu0
      %v2183 = vrot.slane %v2065, 7
      %v2184 = vrot.slane %v2070, 7
      %v2185 = vrot.slane %v2075, 7
      %v2186 = vrot.slane %v2080, 7
      %v2187 = vrot.slane %v2085, 7
      %v2188 = vrot.slane %v2090, 7
      %v2189 = vrot.slane %v2095, 7
      %v2190 = vrot.slane %v2100, 7
      %v2191 = vrot.slane %v2105, 7
      %v2192 = vrot.slane %v2110, 7
      %v2193 = vrot.slane %v2115, 7
      %v2194 = vrot.slane %v2120, 7
      %v2195 = vrot.slane %v2125, 7
      %v2196 = vrot.slane %v2130, 7
      %v2197 = vrot.slane %v2135, 7
      %v2198 = vrot.slane %v2140, 7
      %v2199 = vrot.slane %v2145, 7
      %v2200 = vrot.slane %v2150, 7
      %v2201 = vrot.slane %v2155, 7
      %v2202 = vrot.slane %v2160, 7
      %v2203 = vrot.slane %v2165, 7
      %v2204 = vrot.slane %v2170, 7
      %v2205 = vrot.slane %v2175, 7
      %v2206 = vrot.slane %v2180, 7
      %v2207 = vsel %vm720, %v2204, %v2205
      %v2208 = vsel %vm720, %v2203, %v2204
      %v2209 = vsel %vm720, %v2201, %v2202
      %v2210 = vsel %vm720, %v2200, %v2201
      %v2211 = vsel %vm720, %v2198, %v2199
      %v2212 = vsel %vm720, %v2197, %v2198
      %v2213 = vsel %vm720, %v2195, %v2196
      %v2214 = vsel %vm720, %v2194, %v2195
      %v2215 = vsel %vm720, %v2192, %v2193
      %v2216 = vsel %vm720, %v2191, %v2192
      %v2217 = vsel %vm720, %v2189, %v2190
      %v2218 = vsel %vm720, %v2188, %v2189
      %v2219 = vsel %vm720, %v2186, %v2187
      %v2220 = vsel %vm720, %v2185, %v2186
      %v2221 = vsel %vm720, %v2183, %v2184
      %v2222 = vsel %vm720, %v2206, %v2183
      %v2223 = vadd.f32 %v1940, %v2222
      %v2224 = vadd.f32 %v1941, %v2221
      %v2225 = vadd.f32 %v1942, %v2220
      %v2226 = vadd.f32 %v1943, %v2219
      %v2227 = vadd.f32 %v1944, %v2218
      %v2228 = vadd.f32 %v1945, %v2217
      %v2229 = vadd.f32 %v1946, %v2216
      %v2230 = vadd.f32 %v1947, %v2215
      %v2231 = vadd.f32 %v1948, %v2214
      %v2232 = vadd.f32 %v1949, %v2213
      %v2233 = vadd.f32 %v1950, %v2212
      %v2234 = vadd.f32 %v1951, %v2211
      %v2235 = vadd.f32 %v1952, %v2210
      %v2236 = vadd.f32 %v1953, %v2209
      %v2237 = vadd.f32 %v1954, %v2208
      %v2238 = vadd.f32 %v1955, %v2207
      %s2239 = scalar_lea.vmem %s1, 896
      %v2240 = vld [vmem:[%s2239] sm:$0xff]
      %v2241 = vld [vmem:[%s2239 + $0x8] sm:$0xff]
      %v2242 = vld [vmem:[%s2239 + $0x10] sm:$0xff]
      %v2243 = vld [vmem:[%s2239 + $0x18] sm:$0xff]
      %v2244 = vld [vmem:[%s2239 + $0x20] sm:$0xff]
      %v2245 = vld [vmem:[%s2239 + $0x28] sm:$0xff]
      %v2246 = vld [vmem:[%s2239 + $0x30] sm:$0xff]
      %v2247 = vld [vmem:[%s2239 + $0x38] sm:$0xff]
      %v2248 = vld [vmem:[%s2239 + $0x40] sm:$0xff]
      %v2249 = vld [vmem:[%s2239 + $0x48] sm:$0xff]
      %v2250 = vld [vmem:[%s2239 + $0x50] sm:$0xff]
      %v2251 = vld [vmem:[%s2239 + $0x58] sm:$0xff]
      %v2252 = vld [vmem:[%s2239 + $0x60] sm:$0xff]
      %v2253 = vld [vmem:[%s2239 + $0x68] sm:$0xff]
      %v2254 = vld [vmem:[%s2239 + $0x70] sm:$0xff]
      %v2255 = vld [vmem:[%s2239 + $0x78] sm:$0xff]
      %2256 = vmatprep.subr.mxu0 0.0
      %2257 = vmatpush1.msra.mxu0 %v2240
      %2258 = vmatprep.subr.mxu0 0.0
      %2259 = vmatpush1.msra.mxu0 %v2241
      %2260 = vmatprep.subr.mxu0 0.0
      %2261 = vmatpush1.msra.mxu0 %v2242
      %2262 = vmatprep.subr.mxu0 0.0
      %2263 = vmatpush1.msra.mxu0 %v2243
      %2264 = vmatprep.subr.mxu0 0.0
      %2265 = vmatpush1.msra.mxu0 %v2244
      %2266 = vmatprep.subr.mxu0 0.0
      %2267 = vmatpush1.msra.mxu0 %v2245
      %2268 = vmatprep.subr.mxu0 0.0
      %2269 = vmatpush1.msra.mxu0 %v2246
      %2270 = vmatprep.subr.mxu0 0.0
      %2271 = vmatpush1.msra.mxu0 %v2247
      %2272 = vmatprep.subr.mxu0 0.0
      %2273 = vmatpush1.msra.mxu0 %v2248
      %2274 = vmatprep.subr.mxu0 0.0
      %2275 = vmatpush1.msra.mxu0 %v2249
      %2276 = vmatprep.subr.mxu0 0.0
      %2277 = vmatpush1.msra.mxu0 %v2250
      %2278 = vmatprep.subr.mxu0 0.0
      %2279 = vmatpush1.msra.mxu0 %v2251
      %2280 = vmatprep.subr.mxu0 0.0
      %2281 = vmatpush1.msra.mxu0 %v2252
      %2282 = vmatprep.subr.mxu0 0.0
      %2283 = vmatpush1.msra.mxu0 %v2253
      %2284 = vmatprep.subr.mxu0 0.0
      %2285 = vmatpush1.msra.mxu0 %v2254
      %2286 = vmatprep.subr.mxu0 0.0
      %2287 = vmatpush1.msra.mxu0 %v2255
      %2288 = vmatprep.subr.mxu0 0.0
      %2289 = vmatpush1.msra.mxu0 0.0
      %2290 = vmatprep.subr.mxu0 0.0
      %2291 = vmatpush1.msra.mxu0 0.0
      %2292 = vmatprep.subr.mxu0 0.0
      %2293 = vmatpush1.msra.mxu0 0.0
      %2294 = vmatprep.subr.mxu0 0.0
      %2295 = vmatpush1.msra.mxu0 0.0
      %2296 = vmatprep.subr.mxu0 0.0
      %2297 = vmatpush1.msra.mxu0 0.0
      %2298 = vmatprep.subr.mxu0 0.0
      %2299 = vmatpush1.msra.mxu0 0.0
      %2300 = vmatprep.subr.mxu0 0.0
      %2301 = vmatpush1.msra.mxu0 0.0
      %2302 = vmatprep.subr.mxu0 0.0
      %2303 = vmatpush1.msra.mxu0 0.0
      %2304 = vmatprep.subr.mxu0 0.0
      %2305 = vmatpush1.msra.mxu0 0.0
      %2306 = vmatprep.subr.mxu0 0.0
      %2307 = vmatpush1.msra.mxu0 0.0
      %2308 = vmatprep.subr.mxu0 0.0
      %2309 = vmatpush1.msra.mxu0 0.0
      %2310 = vmatprep.subr.mxu0 0.0
      %2311 = vmatpush1.msra.mxu0 0.0
      %2312 = vmatprep.subr.mxu0 0.0
      %2313 = vmatpush1.msra.mxu0 0.0
      %2314 = vmatprep.subr.mxu0 0.0
      %2315 = vmatpush1.msra.mxu0 0.0
      %2316 = vmatprep.subr.mxu0 0.0
      %2317 = vmatpush1.msra.mxu0 0.0
      %2318 = vmatprep.subr.mxu0 0.0
      %2319 = vmatpush1.msra.mxu0 0.0
      %2320 = vmatprep.mubr.f32.mxu0 0.0
      %2321 = vmatmul.mubr.f32.gmra.mrb[0].mxu0 %v1957
      %v2322 = vpop.f32.mrb[0].mxu0
      %v2323 = vadd.f32 0.0, %v2322
      %v2324 = vpop.f32.mrb[0].mxu0
      %2325 = vmatprep.mubr.f32.mxu0 0.0
      %2326 = vmatmul.mubr.f32.gmra.mrb[0].mxu0 %v1958
      %v2327 = vpop.f32.mrb[0].mxu0
      %v2328 = vadd.f32 0.0, %v2327
      %v2329 = vpop.f32.mrb[0].mxu0
      %2330 = vmatprep.mubr.f32.mxu0 0.0
      %2331 = vmatmul.mubr.f32.gmra.mrb[0].mxu0 %v1959
      %v2332 = vpop.f32.mrb[0].mxu0
      %v2333 = vpop.f32.mrb[0].mxu0
      %2334 = vmatprep.mubr.f32.mxu0 0.0
      %2335 = vmatmul.mubr.f32.gmra.mrb[0].mxu0 %v1960
      %v2336 = vpop.f32.mrb[0].mxu0
      %v2337 = vadd.f32 0.0, %v2336
      %v2338 = vpop.f32.mrb[0].mxu0
      %2339 = vmatprep.mubr.f32.mxu0 0.0
      %2340 = vmatmul.mubr.f32.gmra.mrb[0].mxu0 %v1961
      %v2341 = vpop.f32.mrb[0].mxu0
      %v2342 = vadd.f32 0.0, %v2341
      %v2343 = vpop.f32.mrb[0].mxu0
      %2344 = vmatprep.mubr.f32.mxu0 0.0
      %2345 = vmatmul.mubr.f32.gmra.mrb[0].mxu0 %v1962
      %v2346 = vpop.f32.mrb[0].mxu0
      %v2347 = vpop.f32.mrb[0].mxu0
      %2348 = vmatprep.mubr.f32.mxu0 0.0
      %2349 = vmatmul.mubr.f32.gmra.mrb[0].mxu0 %v1963
      %v2350 = vpop.f32.mrb[0].mxu0
      %v2351 = vadd.f32 0.0, %v2350
      %v2352 = vpop.f32.mrb[0].mxu0
      %2353 = vmatprep.mubr.f32.mxu0 0.0
      %2354 = vmatmul.mubr.f32.gmra.mrb[0].mxu0 %v1964
      %v2355 = vpop.f32.mrb[0].mxu0
      %v2356 = vadd.f32 0.0, %v2355
      %v2357 = vpop.f32.mrb[0].mxu0
      %2358 = vmatprep.mubr.f32.mxu0 0.0
      %2359 = vmatmul.mubr.f32.gmra.mrb[0].mxu0 %v1965
      %v2360 = vpop.f32.mrb[0].mxu0
      %v2361 = vpop.f32.mrb[0].mxu0
      %2362 = vmatprep.mubr.f32.mxu0 0.0
      %2363 = vmatmul.mubr.f32.gmra.mrb[0].mxu0 %v1966
      %v2364 = vpop.f32.mrb[0].mxu0
      %v2365 = vadd.f32 0.0, %v2364
      %v2366 = vpop.f32.mrb[0].mxu0
      %2367 = vmatprep.mubr.f32.mxu0 0.0
      %2368 = vmatmul.mubr.f32.gmra.mrb[0].mxu0 %v1967
      %v2369 = vpop.f32.mrb[0].mxu0
      %v2370 = vadd.f32 0.0, %v2369
      %v2371 = vpop.f32.mrb[0].mxu0
      %2372 = vmatprep.mubr.f32.mxu0 0.0
      %2373 = vmatmul.mubr.f32.gmra.mrb[0].mxu0 %v1968
      %v2374 = vpop.f32.mrb[0].mxu0
      %v2375 = vpop.f32.mrb[0].mxu0
      %2376 = vmatprep.mubr.f32.mxu0 0.0
      %2377 = vmatmul.mubr.f32.gmra.mrb[0].mxu0 %v1969
      %v2378 = vpop.f32.mrb[0].mxu0
      %v2379 = vadd.f32 0.0, %v2378
      %v2380 = vpop.f32.mrb[0].mxu0
      %2381 = vmatprep.mubr.f32.mxu0 0.0
      %2382 = vmatmul.mubr.f32.gmra.mrb[0].mxu0 %v1970
      %v2383 = vpop.f32.mrb[0].mxu0
      %v2384 = vadd.f32 0.0, %v2383
      %v2385 = vpop.f32.mrb[0].mxu0
      %2386 = vmatprep.mubr.f32.mxu0 0.0
      %2387 = vmatmul.mubr.f32.gmra.mrb[0].mxu0 %v1971
      %v2388 = vpop.f32.mrb[0].mxu0
      %v2389 = vpop.f32.mrb[0].mxu0
      %2390 = vmatprep.mubr.f32.mxu0 0.0
      %2391 = vmatmul.mubr.f32.gmra.mrb[0].mxu0 %v1972
      %v2392 = vpop.f32.mrb[0].mxu0
      %v2393 = vadd.f32 0.0, %v2392
      %v2394 = vpop.f32.mrb[0].mxu0
      %2395 = vmatprep.mubr.f32.mxu0 0.0
      %2396 = vmatmul.mubr.f32.gmra.mrb[0].mxu0 %v1973
      %v2397 = vpop.f32.mrb[0].mxu0
      %v2398 = vadd.f32 0.0, %v2397
      %v2399 = vpop.f32.mrb[0].mxu0
      %2400 = vmatprep.mubr.f32.mxu0 0.0
      %2401 = vmatmul.mubr.f32.gmra.mrb[0].mxu0 %v1974
      %v2402 = vpop.f32.mrb[0].mxu0
      %v2403 = vpop.f32.mrb[0].mxu0
      %2404 = vmatprep.mubr.f32.mxu0 0.0
      %2405 = vmatmul.mubr.f32.gmra.mrb[0].mxu0 %v1975
      %v2406 = vpop.f32.mrb[0].mxu0
      %v2407 = vadd.f32 0.0, %v2406
      %v2408 = vpop.f32.mrb[0].mxu0
      %2409 = vmatprep.mubr.f32.mxu0 0.0
      %2410 = vmatmul.mubr.f32.gmra.mrb[0].mxu0 %v1976
      %v2411 = vpop.f32.mrb[0].mxu0
      %v2412 = vadd.f32 0.0, %v2411
      %v2413 = vpop.f32.mrb[0].mxu0
      %2414 = vmatprep.mubr.f32.mxu0 0.0
      %2415 = vmatmul.mubr.f32.gmra.mrb[0].mxu0 %v1977
      %v2416 = vpop.f32.mrb[0].mxu0
      %v2417 = vpop.f32.mrb[0].mxu0
      %2418 = vmatprep.mubr.f32.mxu0 0.0
      %2419 = vmatmul.mubr.f32.gmra.mrb[0].mxu0 %v1978
      %v2420 = vpop.f32.mrb[0].mxu0
      %v2421 = vadd.f32 0.0, %v2420
      %v2422 = vpop.f32.mrb[0].mxu0
      %2423 = vmatprep.mubr.f32.mxu0 0.0
      %2424 = vmatmul.mubr.f32.gmra.mrb[0].mxu0 %v1979
      %v2425 = vpop.f32.mrb[0].mxu0
      %v2426 = vadd.f32 0.0, %v2425
      %v2427 = vpop.f32.mrb[0].mxu0
      %2428 = vmatprep.mubr.f32.mxu0 0.0
      %2429 = vmatmul.mubr.f32.gmra.mrb[0].mxu0 %v1980
      %v2430 = vpop.f32.mrb[0].mxu0
      %v2431 = vpop.f32.mrb[0].mxu0
      %2432 = vdwg.mxu0
      %v2433 = vadd.f32 %v2223, %v2323
      %v2434 = vadd.f32 %v2224, %v2328
      %v2435 = vadd.f32 %v2225, %v2337
      %v2436 = vadd.f32 %v2226, %v2342
      %v2437 = vadd.f32 %v2227, %v2351
      %v2438 = vadd.f32 %v2228, %v2356
      %v2439 = vadd.f32 %v2229, %v2365
      %v2440 = vadd.f32 %v2230, %v2370
      %v2441 = vadd.f32 %v2231, %v2379
      %v2442 = vadd.f32 %v2232, %v2384
      %v2443 = vadd.f32 %v2233, %v2393
      %v2444 = vadd.f32 %v2234, %v2398
      %v2445 = vadd.f32 %v2235, %v2407
      %v2446 = vadd.f32 %v2236, %v2412
      %v2447 = vadd.f32 %v2237, %v2421
      %v2448 = vadd.f32 %v2238, %v2426
      %s2449 = scalar_lea.vmem %s1, 1024
      %v2450 = vld [vmem:[%s2449] sm:$0xff]
      %v2451 = vld [vmem:[%s2449 + $0x8] sm:$0xff]
      %v2452 = vld [vmem:[%s2449 + $0x10] sm:$0xff]
      %v2453 = vld [vmem:[%s2449 + $0x18] sm:$0xff]
      %v2454 = vld [vmem:[%s2449 + $0x20] sm:$0xff]
      %v2455 = vld [vmem:[%s2449 + $0x28] sm:$0xff]
      %v2456 = vld [vmem:[%s2449 + $0x30] sm:$0xff]
      %v2457 = vld [vmem:[%s2449 + $0x38] sm:$0xff]
      %v2458 = vld [vmem:[%s2449 + $0x40] sm:$0xff]
      %v2459 = vld [vmem:[%s2449 + $0x48] sm:$0xff]
      %v2460 = vld [vmem:[%s2449 + $0x50] sm:$0xff]
      %v2461 = vld [vmem:[%s2449 + $0x58] sm:$0xff]
      %v2462 = vld [vmem:[%s2449 + $0x60] sm:$0xff]
      %v2463 = vld [vmem:[%s2449 + $0x68] sm:$0xff]
      %v2464 = vld [vmem:[%s2449 + $0x70] sm:$0xff]
      %v2465 = vld [vmem:[%s2449 + $0x78] sm:$0xff]
      %2466 = vmatprep.subr.mxu0 0.0
      %2467 = vmatpush1.msra.mxu0 %v2450
      %2468 = vmatprep.subr.mxu0 0.0
      %2469 = vmatpush1.msra.mxu0 %v2451
      %2470 = vmatprep.subr.mxu0 0.0
      %2471 = vmatpush1.msra.mxu0 %v2452
      %2472 = vmatprep.subr.mxu0 0.0
      %2473 = vmatpush1.msra.mxu0 %v2453
      %2474 = vmatprep.subr.mxu0 0.0
      %2475 = vmatpush1.msra.mxu0 %v2454
      %2476 = vmatprep.subr.mxu0 0.0
      %2477 = vmatpush1.msra.mxu0 %v2455
      %2478 = vmatprep.subr.mxu0 0.0
      %2479 = vmatpush1.msra.mxu0 %v2456
      %2480 = vmatprep.subr.mxu0 0.0
      %2481 = vmatpush1.msra.mxu0 %v2457
      %2482 = vmatprep.subr.mxu0 0.0
      %2483 = vmatpush1.msra.mxu0 %v2458
      %2484 = vmatprep.subr.mxu0 0.0
      %2485 = vmatpush1.msra.mxu0 %v2459
      %2486 = vmatprep.subr.mxu0 0.0
      %2487 = vmatpush1.msra.mxu0 %v2460
      %2488 = vmatprep.subr.mxu0 0.0
      %2489 = vmatpush1.msra.mxu0 %v2461
      %2490 = vmatprep.subr.mxu0 0.0
      %2491 = vmatpush1.msra.mxu0 %v2462
      %2492 = vmatprep.subr.mxu0 0.0
      %2493 = vmatpush1.msra.mxu0 %v2463
      %2494 = vmatprep.subr.mxu0 0.0
      %2495 = vmatpush1.msra.mxu0 %v2464
      %2496 = vmatprep.subr.mxu0 0.0
      %2497 = vmatpush1.msra.mxu0 %v2465
      %2498 = vmatprep.subr.mxu0 0.0
      %2499 = vmatpush1.msra.mxu0 0.0
      %2500 = vmatprep.subr.mxu0 0.0
      %2501 = vmatpush1.msra.mxu0 0.0
      %2502 = vmatprep.subr.mxu0 0.0
      %2503 = vmatpush1.msra.mxu0 0.0
      %2504 = vmatprep.subr.mxu0 0.0
      %2505 = vmatpush1.msra.mxu0 0.0
      %2506 = vmatprep.subr.mxu0 0.0
      %2507 = vmatpush1.msra.mxu0 0.0
      %2508 = vmatprep.subr.mxu0 0.0
      %2509 = vmatpush1.msra.mxu0 0.0
      %2510 = vmatprep.subr.mxu0 0.0
      %2511 = vmatpush1.msra.mxu0 0.0
      %2512 = vmatprep.subr.mxu0 0.0
      %2513 = vmatpush1.msra.mxu0 0.0
      %2514 = vmatprep.subr.mxu0 0.0
      %2515 = vmatpush1.msra.mxu0 0.0
      %2516 = vmatprep.subr.mxu0 0.0
      %2517 = vmatpush1.msra.mxu0 0.0
      %2518 = vmatprep.subr.mxu0 0.0
      %2519 = vmatpush1.msra.mxu0 0.0
      %2520 = vmatprep.subr.mxu0 0.0
      %2521 = vmatpush1.msra.mxu0 0.0
      %2522 = vmatprep.subr.mxu0 0.0
      %2523 = vmatpush1.msra.mxu0 0.0
      %2524 = vmatprep.subr.mxu0 0.0
      %2525 = vmatpush1.msra.mxu0 0.0
      %2526 = vmatprep.subr.mxu0 0.0
      %2527 = vmatpush1.msra.mxu0 0.0
      %2528 = vmatprep.subr.mxu0 0.0
      %2529 = vmatpush1.msra.mxu0 0.0
      %2530 = vmatprep.mubr.f32.mxu0 0.0
      %2531 = vmatmul.mubr.f32.gmra.mrb[0].mxu0 %v1957
      %v2532 = vpop.f32.mrb[0].mxu0
      %v2533 = vadd.f32 0.0, %v2532
      %v2534 = vpop.f32.mrb[0].mxu0
      %2535 = vmatprep.mubr.f32.mxu0 0.0
      %2536 = vmatmul.mubr.f32.gmra.mrb[0].mxu0 %v1958
      %v2537 = vpop.f32.mrb[0].mxu0
      %v2538 = vadd.f32 0.0, %v2537
      %v2539 = vpop.f32.mrb[0].mxu0
      %2540 = vmatprep.mubr.f32.mxu0 0.0
      %2541 = vmatmul.mubr.f32.gmra.mrb[0].mxu0 %v1959
      %v2542 = vpop.f32.mrb[0].mxu0
      %v2543 = vadd.f32 0.0, %v2542
      %v2544 = vpop.f32.mrb[0].mxu0
      %2545 = vmatprep.mubr.f32.mxu0 0.0
      %2546 = vmatmul.mubr.f32.gmra.mrb[0].mxu0 %v1960
      %v2547 = vpop.f32.mrb[0].mxu0
      %v2548 = vadd.f32 0.0, %v2547
      %v2549 = vpop.f32.mrb[0].mxu0
      %2550 = vmatprep.mubr.f32.mxu0 0.0
      %2551 = vmatmul.mubr.f32.gmra.mrb[0].mxu0 %v1961
      %v2552 = vpop.f32.mrb[0].mxu0
      %v2553 = vadd.f32 0.0, %v2552
      %v2554 = vpop.f32.mrb[0].mxu0
      %2555 = vmatprep.mubr.f32.mxu0 0.0
      %2556 = vmatmul.mubr.f32.gmra.mrb[0].mxu0 %v1962
      %v2557 = vpop.f32.mrb[0].mxu0
      %v2558 = vadd.f32 0.0, %v2557
      %v2559 = vpop.f32.mrb[0].mxu0
      %2560 = vmatprep.mubr.f32.mxu0 0.0
      %2561 = vmatmul.mubr.f32.gmra.mrb[0].mxu0 %v1963
      %v2562 = vpop.f32.mrb[0].mxu0
      %v2563 = vadd.f32 0.0, %v2562
      %v2564 = vpop.f32.mrb[0].mxu0
      %2565 = vmatprep.mubr.f32.mxu0 0.0
      %2566 = vmatmul.mubr.f32.gmra.mrb[0].mxu0 %v1964
      %v2567 = vpop.f32.mrb[0].mxu0
      %v2568 = vadd.f32 0.0, %v2567
      %v2569 = vpop.f32.mrb[0].mxu0
      %2570 = vmatprep.mubr.f32.mxu0 0.0
      %2571 = vmatmul.mubr.f32.gmra.mrb[0].mxu0 %v1965
      %v2572 = vpop.f32.mrb[0].mxu0
      %v2573 = vadd.f32 0.0, %v2572
      %v2574 = vpop.f32.mrb[0].mxu0
      %2575 = vmatprep.mubr.f32.mxu0 0.0
      %2576 = vmatmul.mubr.f32.gmra.mrb[0].mxu0 %v1966
      %v2577 = vpop.f32.mrb[0].mxu0
      %v2578 = vadd.f32 0.0, %v2577
      %v2579 = vpop.f32.mrb[0].mxu0
      %2580 = vmatprep.mubr.f32.mxu0 0.0
      %2581 = vmatmul.mubr.f32.gmra.mrb[0].mxu0 %v1967
      %v2582 = vpop.f32.mrb[0].mxu0
      %v2583 = vadd.f32 0.0, %v2582
      %v2584 = vpop.f32.mrb[0].mxu0
      %2585 = vmatprep.mubr.f32.mxu0 0.0
      %2586 = vmatmul.mubr.f32.gmra.mrb[0].mxu0 %v1968
      %v2587 = vpop.f32.mrb[0].mxu0
      %v2588 = vadd.f32 0.0, %v2587
      %v2589 = vpop.f32.mrb[0].mxu0
      %2590 = vmatprep.mubr.f32.mxu0 0.0
      %2591 = vmatmul.mubr.f32.gmra.mrb[0].mxu0 %v1969
      %v2592 = vpop.f32.mrb[0].mxu0
      %v2593 = vadd.f32 0.0, %v2592
      %v2594 = vpop.f32.mrb[0].mxu0
      %2595 = vmatprep.mubr.f32.mxu0 0.0
      %2596 = vmatmul.mubr.f32.gmra.mrb[0].mxu0 %v1970
      %v2597 = vpop.f32.mrb[0].mxu0
      %v2598 = vadd.f32 0.0, %v2597
      %v2599 = vpop.f32.mrb[0].mxu0
      %2600 = vmatprep.mubr.f32.mxu0 0.0
      %2601 = vmatmul.mubr.f32.gmra.mrb[0].mxu0 %v1971
      %v2602 = vpop.f32.mrb[0].mxu0
      %v2603 = vadd.f32 0.0, %v2602
      %v2604 = vpop.f32.mrb[0].mxu0
      %2605 = vmatprep.mubr.f32.mxu0 0.0
      %2606 = vmatmul.mubr.f32.gmra.mrb[0].mxu0 %v1972
      %v2607 = vpop.f32.mrb[0].mxu0
      %v2608 = vadd.f32 0.0, %v2607
      %v2609 = vpop.f32.mrb[0].mxu0
      %2610 = vmatprep.mubr.f32.mxu0 0.0
      %2611 = vmatmul.mubr.f32.gmra.mrb[0].mxu0 %v1973
      %v2612 = vpop.f32.mrb[0].mxu0
      %v2613 = vadd.f32 0.0, %v2612
      %v2614 = vpop.f32.mrb[0].mxu0
      %2615 = vmatprep.mubr.f32.mxu0 0.0
      %2616 = vmatmul.mubr.f32.gmra.mrb[0].mxu0 %v1974
      %v2617 = vpop.f32.mrb[0].mxu0
      %v2618 = vadd.f32 0.0, %v2617
      %v2619 = vpop.f32.mrb[0].mxu0
      %2620 = vmatprep.mubr.f32.mxu0 0.0
      %2621 = vmatmul.mubr.f32.gmra.mrb[0].mxu0 %v1975
      %v2622 = vpop.f32.mrb[0].mxu0
      %v2623 = vadd.f32 0.0, %v2622
      %v2624 = vpop.f32.mrb[0].mxu0
      %2625 = vmatprep.mubr.f32.mxu0 0.0
      %2626 = vmatmul.mubr.f32.gmra.mrb[0].mxu0 %v1976
      %v2627 = vpop.f32.mrb[0].mxu0
      %v2628 = vadd.f32 0.0, %v2627
      %v2629 = vpop.f32.mrb[0].mxu0
      %2630 = vmatprep.mubr.f32.mxu0 0.0
      %2631 = vmatmul.mubr.f32.gmra.mrb[0].mxu0 %v1977
      %v2632 = vpop.f32.mrb[0].mxu0
      %v2633 = vadd.f32 0.0, %v2632
      %v2634 = vpop.f32.mrb[0].mxu0
      %2635 = vmatprep.mubr.f32.mxu0 0.0
      %2636 = vmatmul.mubr.f32.gmra.mrb[0].mxu0 %v1978
      %v2637 = vpop.f32.mrb[0].mxu0
      %v2638 = vadd.f32 0.0, %v2637
      %v2639 = vpop.f32.mrb[0].mxu0
      %2640 = vmatprep.mubr.f32.mxu0 0.0
      %2641 = vmatmul.mubr.f32.gmra.mrb[0].mxu0 %v1979
      %v2642 = vpop.f32.mrb[0].mxu0
      %v2643 = vadd.f32 0.0, %v2642
      %v2644 = vpop.f32.mrb[0].mxu0
      %2645 = vmatprep.mubr.f32.mxu0 0.0
      %2646 = vmatmul.mubr.f32.gmra.mrb[0].mxu0 %v1980
      %v2647 = vpop.f32.mrb[0].mxu0
      %v2648 = vadd.f32 0.0, %v2647
      %v2649 = vpop.f32.mrb[0].mxu0
      %2650 = vdwg.mxu0
      %v2651 = vrot.slane %v2533, 1
      %v2652 = vrot.slane %v2538, 1
      %v2653 = vrot.slane %v2543, 1
      %v2654 = vrot.slane %v2548, 1
      %v2655 = vrot.slane %v2553, 1
      %v2656 = vrot.slane %v2558, 1
      %v2657 = vrot.slane %v2563, 1
      %v2658 = vrot.slane %v2568, 1
      %v2659 = vrot.slane %v2573, 1
      %v2660 = vrot.slane %v2578, 1
      %v2661 = vrot.slane %v2583, 1
      %v2662 = vrot.slane %v2588, 1
      %v2663 = vrot.slane %v2593, 1
      %v2664 = vrot.slane %v2598, 1
      %v2665 = vrot.slane %v2603, 1
      %v2666 = vrot.slane %v2608, 1
      %v2667 = vrot.slane %v2613, 1
      %v2668 = vrot.slane %v2618, 1
      %v2669 = vrot.slane %v2623, 1
      %v2670 = vrot.slane %v2628, 1
      %v2671 = vrot.slane %v2633, 1
      %v2672 = vrot.slane %v2638, 1
      %v2673 = vrot.slane %v2643, 1
      %v2674 = vrot.slane %v2648, 1
      %v2675 = vsel %vm1173, %v2673, %v2674
      %v2676 = vsel %vm1173, %v2672, %v2673
      %v2677 = vsel %vm1173, %v2670, %v2671
      %v2678 = vsel %vm1173, %v2669, %v2670
      %v2679 = vsel %vm1173, %v2667, %v2668
      %v2680 = vsel %vm1173, %v2666, %v2667
      %v2681 = vsel %vm1173, %v2664, %v2665
      %v2682 = vsel %vm1173, %v2663, %v2664
      %v2683 = vsel %vm1173, %v2661, %v2662
      %v2684 = vsel %vm1173, %v2660, %v2661
      %v2685 = vsel %vm1173, %v2658, %v2659
      %v2686 = vsel %vm1173, %v2657, %v2658
      %v2687 = vsel %vm1173, %v2655, %v2656
      %v2688 = vsel %vm1173, %v2654, %v2655
      %v2689 = vsel %vm1173, %v2652, %v2653
      %v2690 = vsel %vm1173, %v2651, %v2652
      %v2691 = vadd.f32 %v2433, %v2690
      %v2692 = vadd.f32 %v2434, %v2689
      %v2693 = vadd.f32 %v2435, %v2688
      %v2694 = vadd.f32 %v2436, %v2687
      %v2695 = vadd.f32 %v2437, %v2686
      %v2696 = vadd.f32 %v2438, %v2685
      %v2697 = vadd.f32 %v2439, %v2684
      %v2698 = vadd.f32 %v2440, %v2683
      %v2699 = vadd.f32 %v2441, %v2682
      %v2700 = vadd.f32 %v2442, %v2681
      %v2701 = vadd.f32 %v2443, %v2680
      %v2702 = vadd.f32 %v2444, %v2679
      %v2703 = vadd.f32 %v2445, %v2678
      %v2704 = vadd.f32 %v2446, %v2677
      %v2705 = vadd.f32 %v2447, %v2676
      %v2706 = vadd.f32 %v2448, %v2675
      %2707 = vst [vmem:[%s215] sm:$0xff] %v2691
      %2708 = vst [vmem:[%s215 + $0x8] sm:$0xff] %v2692
      %2709 = vst [vmem:[%s215 + $0x10] sm:$0xff] %v2693
      %2710 = vst [vmem:[%s215 + $0x18] sm:$0xff] %v2694
      %2711 = vst [vmem:[%s215 + $0x20] sm:$0xff] %v2695
      %2712 = vst [vmem:[%s215 + $0x28] sm:$0xff] %v2696
      %2713 = vst [vmem:[%s215 + $0x30] sm:$0xff] %v2697
      %2714 = vst [vmem:[%s215 + $0x38] sm:$0xff] %v2698
      %2715 = vst [vmem:[%s215 + $0x40] sm:$0xff] %v2699
      %2716 = vst [vmem:[%s215 + $0x48] sm:$0xff] %v2700
      %2717 = vst [vmem:[%s215 + $0x50] sm:$0xff] %v2701
      %2718 = vst [vmem:[%s215 + $0x58] sm:$0xff] %v2702
      %2719 = vst [vmem:[%s215 + $0x60] sm:$0xff] %v2703
      %2720 = vst [vmem:[%s215 + $0x68] sm:$0xff] %v2704
      %2721 = vst [vmem:[%s215 + $0x70] sm:$0xff] %v2705
      %2722 = vst [vmem:[%s215 + $0x78] sm:$0xff] %v2706
      %v2723 = vadd.f32 %v2691, %v2692
      %v2724 = vadd.f32 %v2723, %v2693
      %v2725 = vadd.f32 %v2724, %v2694
      %v2726 = vadd.f32 %v2725, %v2695
      %v2727 = vadd.f32 %v2726, %v2696
      %v2728 = vadd.f32 %v2727, %v2697
      %v2729 = vadd.f32 %v2728, %v2698
      %v2730 = vadd.f32 %v2729, %v2699
      %v2731 = vadd.f32 %v2730, %v2700
      %v2732 = vadd.f32 %v2731, %v2701
      %v2733 = vadd.f32 %v2732, %v2702
      %v2734 = vadd.f32 %v2733, %v2703
      %v2735 = vadd.f32 %v2734, %v2704
      %v2736 = vadd.f32 %v2735, %v2705
      %v2737 = vadd.f32 %v2736, %v2706
      %v2738 = vrot.slane %v2737, 4
      %v2739 = vadd.f32 %v2737, %v2738
      %v2740 = vrot.slane %v2739, 2
      %v2741 = vadd.f32 %v2739, %v2740
      %v2742 = vrot.slane %v2741, 1
      %v2743 = vadd.f32 %v2741, %v2742
      %v2744 = vmul.f32 %v2743, 0.0078125
      %v2745 = vsub.f32 %v2691, %v2744
      %v2746 = vsub.f32 %v2692, %v2744
      %v2747 = vsub.f32 %v2693, %v2744
      %v2748 = vsub.f32 %v2694, %v2744
      %v2749 = vsub.f32 %v2695, %v2744
      %v2750 = vsub.f32 %v2696, %v2744
      %v2751 = vsub.f32 %v2697, %v2744
      %v2752 = vsub.f32 %v2698, %v2744
      %v2753 = vsub.f32 %v2699, %v2744
      %v2754 = vsub.f32 %v2700, %v2744
      %v2755 = vsub.f32 %v2701, %v2744
      %v2756 = vsub.f32 %v2702, %v2744
      %v2757 = vsub.f32 %v2703, %v2744
      %v2758 = vsub.f32 %v2704, %v2744
      %v2759 = vsub.f32 %v2705, %v2744
      %v2760 = vsub.f32 %v2706, %v2744
      %v2761 = vmul.f32 %v2745, %v2745
      %v2762 = vmul.f32 %v2746, %v2746
      %v2763 = vmul.f32 %v2747, %v2747
      %v2764 = vmul.f32 %v2748, %v2748
      %v2765 = vmul.f32 %v2749, %v2749
      %v2766 = vmul.f32 %v2750, %v2750
      %v2767 = vmul.f32 %v2751, %v2751
      %v2768 = vmul.f32 %v2752, %v2752
      %v2769 = vmul.f32 %v2753, %v2753
      %v2770 = vmul.f32 %v2754, %v2754
      %v2771 = vmul.f32 %v2755, %v2755
      %v2772 = vmul.f32 %v2756, %v2756
      %v2773 = vmul.f32 %v2757, %v2757
      %v2774 = vmul.f32 %v2758, %v2758
      %v2775 = vmul.f32 %v2759, %v2759
      %v2776 = vmul.f32 %v2760, %v2760
      %v2777 = vadd.f32 %v2761, %v2762
      %v2778 = vadd.f32 %v2777, %v2763
      %v2779 = vadd.f32 %v2778, %v2764
      %v2780 = vadd.f32 %v2779, %v2765
      %v2781 = vadd.f32 %v2780, %v2766
      %v2782 = vadd.f32 %v2781, %v2767
      %v2783 = vadd.f32 %v2782, %v2768
      %v2784 = vadd.f32 %v2783, %v2769
      %v2785 = vadd.f32 %v2784, %v2770
      %v2786 = vadd.f32 %v2785, %v2771
      %v2787 = vadd.f32 %v2786, %v2772
      %v2788 = vadd.f32 %v2787, %v2773
      %v2789 = vadd.f32 %v2788, %v2774
      %v2790 = vadd.f32 %v2789, %v2775
      %v2791 = vadd.f32 %v2790, %v2776
      %v2792 = vrot.slane %v2791, 4
      %v2793 = vadd.f32 %v2791, %v2792
      %v2794 = vrot.slane %v2793, 2
      %v2795 = vadd.f32 %v2793, %v2794
      %v2796 = vrot.slane %v2795, 1
      %v2797 = vadd.f32 %v2795, %v2796
      %vm2798 = vcmask 1040384
      %v2799 = vsel %vm2798, %v2743, %v2797
      %2800 = vst [vmem:[%s224] sm:$0x3] %v2799
      %s2801 = smul.u32 8, %s22
      %p2802 = scmp.lt.s32.totalorder %s21, 1
      %s2803 = scalar_select %p2802, %s21, 1
      %p2804 = scmp.lt.s32.totalorder %s2801, 15
      %s2805 = scalar_select %p2804, %s2801, 15
      %s2806 = smul.addr %s2805, 2
      %s2807 = smul.addr %s2803, 32
      %s2808 = sadd.s32 %s2806, %s2807
      %s2809 = smul.addr %s2808, 8
      %s2810 = scalar_lea.vmem %s4, %s2809
      %p2811 = scmp.lt.s32.totalorder %s21, 1
      %s2812 = scalar_select %p2811, %s21, 1
      %p2813 = scmp.lt.s32.totalorder %s22, 1
      %s2814 = scalar_select %p2813, %s22, 1
      %s2815 = smul.addr %s2812, 2
      %s2816 = sadd.s32 %s2814, %s2815
      %s2817 = smul.addr %s2816, 2
      %s2818 = scalar_lea.vmem %s5, %s2817
      // Predicated region
      $region159: #{unet_conv_block.3} parent=31 // pred_check
        %p2819 = pneg %p112
      $region160: #{unet_conv_block.3} parent=31 // pred_check_branch
        %2821 = sbr.rel (%p2819) target = $region162
      $region161: #{unet_conv_block.3} parent=31 // pred_region
        %s2822 = smul.u32 8, %s22
      $region162: #{unet_conv_block.3} parent=31 // pred_fallthru
        _
      // Predicated region
      $region163: #{unet_conv_block.3} parent=31 // pred_check
        %p2823 = pneg %p140
      $region164: #{unet_conv_block.3} parent=31 // pred_check_branch
        %2825 = sbr.rel (%p2823) target = $region166
      $region165: #{unet_conv_block.3} parent=31 // pred_region
        _
      $region166: #{unet_conv_block.3} parent=31 // pred_fallthru
        _
    $region32: #{unet_conv_block.3} parent=5 // pred_fallthru
      _
    %p2826 = scmp.le.s32.totalorder 2, %s12
    // Predicated region
    $region167: #{unet_conv_block.3} parent=5 // pred_check
      %p2827 = pneg %p2826
    $region168: #{unet_conv_block.3} parent=5 // pred_check_branch
      %2829 = sbr.rel (%p2827) target = $region170
    $region169: #{unet_conv_block.3} parent=5 // pred_region
      %s2830 = ssub.s32 %s12, 2
      // Predicated region
      $region171: #{unet_conv_block.3} parent=169 // pred_check
        %p2831 = pneg %p118
      $region172: #{unet_conv_block.3} parent=169 // pred_check_branch
        %2833 = sbr.rel (%p2831) target = $region174
      $region173: #{unet_conv_block.3} parent=169 // pred_region
        %s2834 = smul.u32 8, %s24
        %p2835 = scmp.lt.s32.totalorder %s23, 1
        %s2836 = scalar_select %p2835, %s23, 1
        %p2837 = scmp.lt.s32.totalorder %s2834, 15
        %s2838 = scalar_select %p2837, %s2834, 15
        %s2839 = smul.addr %s2838, 2
        %s2840 = smul.addr %s2836, 32
        %s2841 = sadd.s32 %s2839, %s2840
        %s2842 = smul.addr %s2841, 8
        %s2843 = scalar_lea.vmem %s4, %s2842
      $region174: #{unet_conv_block.3} parent=169 // pred_fallthru
        _
      // Predicated region
      $region175: #{unet_conv_block.3} parent=169 // pred_check
        %p2844 = pneg %p146
      $region176: #{unet_conv_block.3} parent=169 // pred_check_branch
        %2846 = sbr.rel (%p2844) target = $region178
      $region177: #{unet_conv_block.3} parent=169 // pred_region
        %p2847 = scmp.lt.s32.totalorder %s23, 1
        %s2848 = scalar_select %p2847, %s23, 1
        %p2849 = scmp.lt.s32.totalorder %s24, 1
        %s2850 = scalar_select %p2849, %s24, 1
        %s2851 = smul.addr %s2848, 2
        %s2852 = sadd.s32 %s2850, %s2851
        %s2853 = smul.addr %s2852, 2
        %s2854 = scalar_lea.vmem %s5, %s2853
      $region178: #{unet_conv_block.3} parent=169 // pred_fallthru
        _
    $region170: #{unet_conv_block.3} parent=5 // pred_fallthru
      _
  $region6: #{unet_conv_block.3} parent=0 // loop_footer
    %s16 = sadd.s32 1, %s12
  $region7: #{unet_conv_block.3} parent=0 // loop_footer_branch
    %11 = sbr.rel target = $region3
  $region8: #{unet_conv_block.3} parent=0 // loop_exit
    _
  %2855 = vsyncmov [#allocation3]
  %s2856 = vpop.sfrf %2855
  %p2857 = scmp.eq.s32.totalorder %s2856, 0
  %p2858 = pneg %p2857
  %2860 = shalt.err (%p2858)
  %s2861 = scalar_lea.sflag [#allocation3], 1
  %2862 = vsyncmov %s2861
  %s2863 = vpop.sfrf %2862
  %p2864 = scmp.eq.s32.totalorder %s2863, 0
  %p2865 = pneg %p2864
  %2867 = shalt.err (%p2865)
  %s2868 = scalar_lea.sflag [#allocation3], 2
  %2869 = vsyncmov %s2868
  %s2870 = vpop.sfrf %2869
  %p2871 = scmp.eq.s32.totalorder %s2870, 0
  %p2872 = pneg %p2871
  %2874 = shalt.err (%p2872)

// kernel: unet_conv_block.4
$region0: #{unet_conv_block.4}
  #allocation0 [shape = 'u32[]', space=smem, size = 0x4, offset = 0x4, fixed_abs, tag = 'smem constant byte address 0x4 - core index']
  #allocation1 [shape = 'u32[144,128]{1,0:T(1,128)}', space=vmem, size = 0x12000, scoped, tag = 'internal scratch']
  #allocation2 [shape = 'f32[10,24,128]{2,1,0:T(8,128)}', space=vmem, size = 0x1e000, scoped, tag = 'scratch operand']
  #allocation3 [shape = 's32[3]{0}', space=sflag, size = 0xc, scoped, tag = 'scratch operand']
  #allocation4 [shape = 's32[]', space=sflag, size = 0x4, offset = 0, fixed_abs, tag = 'sflag constant byte address 0x0 - dummy sync flag']
  #allocation5 [shape = 's32[]', space=sflag, size = 0x4, offset = 0, fixed_abs, tag = 'sflag constant byte address 0x0 - dummy sync flag']
  #allocation6 [shape = 's32[]', space=sflag, size = 0x4, offset = 0, fixed_abs, tag = 'sflag constant byte address 0x0 - dummy sync flag']
  %s0 = inlined_call_operand.vmem [shape: f32[2,16,16,128], index: 0, kind: input, shape index: {}]
  %s1 = inlined_call_operand.vmem [shape: f32[3,3,128,128], index: 1, kind: input, shape index: {}]
  %s2 = inlined_call_operand.vmem [shape: f32[1,128], index: 2, kind: input, shape index: {}]
  %s3 = inlined_call_operand.vmem [shape: f32[1,128], index: 3, kind: input, shape index: {}]
  %s4 = inlined_call_operand.vmem [shape: f32[2,16,16,128], index: 4, kind: output, shape index: {0}]
  %s5 = inlined_call_operand.vmem [shape: f32[2,2,2,128], index: 5, kind: output, shape index: {1}]
  %6 = xla_tuple %s4, %s5
  %s7 = sld [smem:[#allocation0]]
  $region179: #{unet_conv_block.4} parent=0
    _
  %s9 = ssub.s32 1, %s7
  %s10 = scalar_select 0, %s9, %s7
  loop: start=0, step=1, limit=6
  $region2: #{unet_conv_block.4} parent=0 // loop_pre_header
    _
  $region3: #{unet_conv_block.4} parent=0 // loop_header
    %s12 = sphi 0, %s16
    %p13 = scmp.ge.s32.totalorder %s12, 6
    %s19 = sphi 0, %s31
    %s20 = sphi 0, %s27
    %s21 = sphi 0, %s19
    %s22 = sphi 0, %s20
    %s23 = sphi 0, %s21
    %s24 = sphi 0, %s22
    %s32 = sphi 0, %s32
    %s34 = sphi 0, %s32
    %s35 = sphi 0, %s34
    %s49 = sphi 0, %s35
    %s53 = sphi 0, %s53
    %s55 = sphi 0, %s53
    %s56 = sphi 0, %s55
    %s70 = sphi 0, %s56
    %s74 = sphi 0, %s74
    %s76 = sphi 0, %s74
    %s77 = sphi 0, %s76
    %s91 = sphi 0, %s77
    %s99 = sphi 0, %s101
    %s102 = sphi 0, %s99
    %s103 = sphi 0, %s102
    %s119 = sphi 0, %s103
    %s127 = sphi 0, %s129
    %s130 = sphi 0, %s127
    %s131 = sphi 0, %s130
    %s147 = sphi 0, %s131
  $region4: #{unet_conv_block.4} parent=0 // loop_header_branch
    %15 = sbr.rel (%p13) target = $region8
  $region5: #{unet_conv_block.4} parent=0 // loop_body
    %s17 = ssub.s32 %s12, 1
    %s18 = ssub.s32 %s12, 2
    %s25 = sadd.s32 1, %s20
    %p26 = scmp.ge.s32.totalorder %s25, 2
    %s27 = scalar_select %p26, 0, %s25
    %s28 = sadd.s32 1, %s19
    %s29 = scalar_select %p26, %s28, %s19
    %p30 = scmp.ge.s32.totalorder %s29, 2
    %s31 = scalar_select %p30, 0, %s29
    %s33 = sadd.s32 %s32, 1
    %p36 = scmp.eq.s32.totalorder %s12, 3
    %p37 = scmp.ne.s32.totalorder %s32, %s34
    %p38 = scmp.eq.s32.totalorder %s12, 0
    %p39 = por %p37, %p38
    %p40 = scmp.ne.s32.totalorder %s32, %s34
    %p41 = scmp.eq.s32.totalorder %s17, 3
    %p42 = por %p40, %p41
    %p43 = scmp.ne.s32.totalorder %s34, %s35
    %p44 = scmp.eq.s32.totalorder %s17, 0
    %p45 = por %p43, %p44
    %p46 = scmp.ne.s32.totalorder %s34, %s35
    %p47 = scmp.eq.s32.totalorder %s18, 3
    %p48 = por %p46, %p47
    %p50 = scmp.ne.s32.totalorder %s35, %s49
    %p51 = scmp.eq.s32.totalorder %s18, 0
    %p52 = por %p50, %p51
    %s54 = sadd.s32 %s53, 1
    %p57 = scmp.eq.s32.totalorder %s12, 3
    %p58 = scmp.ne.s32.totalorder %s53, %s55
    %p59 = scmp.eq.s32.totalorder %s12, 0
    %p60 = por %p58, %p59
    %p61 = scmp.ne.s32.totalorder %s53, %s55
    %p62 = scmp.eq.s32.totalorder %s17, 3
    %p63 = por %p61, %p62
    %p64 = scmp.ne.s32.totalorder %s55, %s56
    %p65 = scmp.eq.s32.totalorder %s17, 0
    %p66 = por %p64, %p65
    %p67 = scmp.ne.s32.totalorder %s55, %s56
    %p68 = scmp.eq.s32.totalorder %s18, 3
    %p69 = por %p67, %p68
    %p71 = scmp.ne.s32.totalorder %s56, %s70
    %p72 = scmp.eq.s32.totalorder %s18, 0
    %p73 = por %p71, %p72
    %s75 = sadd.s32 %s74, 1
    %p78 = scmp.eq.s32.totalorder %s12, 3
    %p79 = scmp.ne.s32.totalorder %s74, %s76
    %p80 = scmp.eq.s32.totalorder %s12, 0
    %p81 = por %p79, %p80
    %p82 = scmp.ne.s32.totalorder %s74, %s76
    %p83 = scmp.eq.s32.totalorder %s17, 3
    %p84 = por %p82, %p83
    %p85 = scmp.ne.s32.totalorder %s76, %s77
    %p86 = scmp.eq.s32.totalorder %s17, 0
    %p87 = por %p85, %p86
    %p88 = scmp.ne.s32.totalorder %s76, %s77
    %p89 = scmp.eq.s32.totalorder %s18, 3
    %p90 = por %p88, %p89
    %p92 = scmp.ne.s32.totalorder %s77, %s91
    %p93 = scmp.eq.s32.totalorder %s18, 0
    %p94 = por %p92, %p93
    %s95 = ssub.s32 %s19, %s31
    %s96 = ssub.s32 %s20, %s27
    %s97 = sor.u32 %s95, %s96
    %p98 = scmp.eq.s32.totalorder %s97, 0
    %s100 = sadd.s32 %s99, 1
    %s101 = scalar_select %p98, %s99, %s100
    %p104 = pneg %p98
    %p105 = scmp.eq.s32.totalorder %s12, 3
    %p106 = por %p104, %p105
    %p107 = scmp.ne.s32.totalorder %s99, %s102
    %p108 = scmp.eq.s32.totalorder %s12, 0
    %p109 = por %p107, %p108
    %p110 = scmp.ne.s32.totalorder %s99, %s102
    %p111 = scmp.eq.s32.totalorder %s17, 3
    %p112 = por %p110, %p111
    %p113 = scmp.ne.s32.totalorder %s102, %s103
    %p114 = scmp.eq.s32.totalorder %s17, 0
    %p115 = por %p113, %p114
    %p116 = scmp.ne.s32.totalorder %s102, %s103
    %p117 = scmp.eq.s32.totalorder %s18, 3
    %p118 = por %p116, %p117
    %p120 = scmp.ne.s32.totalorder %s103, %s119
    %p121 = scmp.eq.s32.totalorder %s18, 0
    %p122 = por %p120, %p121
    %s123 = ssub.s32 %s19, %s31
    %s124 = ssub.s32 %s20, %s27
    %s125 = sor.u32 %s123, %s124
    %p126 = scmp.eq.s32.totalorder %s125, 0
    %s128 = sadd.s32 %s127, 1
    %s129 = scalar_select %p126, %s127, %s128
    %p132 = pneg %p126
    %p133 = scmp.eq.s32.totalorder %s12, 3
    %p134 = por %p132, %p133
    %p135 = scmp.ne.s32.totalorder %s127, %s130
    %p136 = scmp.eq.s32.totalorder %s12, 0
    %p137 = por %p135, %p136
    %p138 = scmp.ne.s32.totalorder %s127, %s130
    %p139 = scmp.eq.s32.totalorder %s17, 3
    %p140 = por %p138, %p139
    %p141 = scmp.ne.s32.totalorder %s130, %s131
    %p142 = scmp.eq.s32.totalorder %s17, 0
    %p143 = por %p141, %p142
    %p144 = scmp.ne.s32.totalorder %s130, %s131
    %p145 = scmp.eq.s32.totalorder %s18, 3
    %p146 = por %p144, %p145
    %p148 = scmp.ne.s32.totalorder %s131, %s147
    %p149 = scmp.eq.s32.totalorder %s18, 0
    %p150 = por %p148, %p149
    %p151 = scmp.le.s32.totalorder 1, %s12
    %p152 = scmp.lt.s32.totalorder %s12, 5
    %p153 = pnand %p151, %p152
    %p154 = pneg %p153
    // Predicated region
    $region9: #{unet_conv_block.4} parent=5 // pred_check
      _
    $region10: #{unet_conv_block.4} parent=5 // pred_check_branch
      %156 = sbr.rel (%p153) target = $region12
    $region11: #{unet_conv_block.4} parent=5 // pred_region
      %s157 = ssub.s32 %s12, 1
      // Predicated region
      $region13: #{unet_conv_block.4} parent=11 // pred_check
        %p158 = pneg %p45
      $region14: #{unet_conv_block.4} parent=11 // pred_check_branch
        %160 = sbr.rel (%p158) target = $region16
      $region15: #{unet_conv_block.4} parent=11 // pred_region
        _
      $region16: #{unet_conv_block.4} parent=11 // pred_fallthru
        _
      // Predicated region
      $region17: #{unet_conv_block.4} parent=11 // pred_check
        %p161 = pneg %p66
      $region18: #{unet_conv_block.4} parent=11 // pred_check_branch
        %163 = sbr.rel (%p161) target = $region20
      $region19: #{unet_conv_block.4} parent=11 // pred_region
        _
      $region20: #{unet_conv_block.4} parent=11 // pred_fallthru
        _
      // Predicated region
      $region21: #{unet_conv_block.4} parent=11 // pred_check
        %p164 = pneg %p87
      $region22: #{unet_conv_block.4} parent=11 // pred_check_branch
        %166 = sbr.rel (%p164) target = $region24
      $region23: #{unet_conv_block.4} parent=11 // pred_region
        _
      $region24: #{unet_conv_block.4} parent=11 // pred_fallthru
        _
    $region12: #{unet_conv_block.4} parent=5 // pred_fallthru
      _
    %p167 = scmp.lt.s32.totalorder %s12, 4
    // Predicated region
    $region25: #{unet_conv_block.4} parent=5 // pred_check
      %p168 = pneg %p167
    $region26: #{unet_conv_block.4} parent=5 // pred_check_branch
      %170 = sbr.rel (%p168) target = $region28
    $region27: #{unet_conv_block.4} parent=5 // pred_region
      _
    $region28: #{unet_conv_block.4} parent=5 // pred_fallthru
      _
    %p171 = scmp.le.s32.totalorder 1, %s12
    %p172 = scmp.lt.s32.totalorder %s12, 5
    %p173 = pnand %p171, %p172
    %p174 = pneg %p173
    // Predicated region
    $region29: #{unet_conv_block.4} parent=5 // pred_check
      _
    $region30: #{unet_conv_block.4} parent=5 // pred_check_branch
      %176 = sbr.rel (%p173) target = $region32
    $region31: #{unet_conv_block.4} parent=5 // pred_region
      %s177 = ssub.s32 %s12, 1
      %p178 = pneg %p45
      %p179 = pneg %p42
      %p180 = pneg %p66
      %p181 = pneg %p63
      %p182 = pneg %p87
      %p183 = pneg %p84
      %p184 = pneg %p115
      %p185 = pneg %p112
      %s186 = smul.u32 8, %s22
      %p187 = scmp.lt.s32.totalorder %s21, 1
      %s188 = scalar_select %p187, %s21, 1
      %p189 = scmp.lt.s32.totalorder %s186, 15
      %s190 = scalar_select %p189, %s186, 15
      %s191 = smul.addr %s190, 2
      %s192 = smul.addr %s188, 32
      %s193 = sadd.s32 %s191, %s192
      %s194 = smul.addr %s193, 8
      %s195 = scalar_lea.vmem %s4, %s194
      %p196 = pneg %p143
      %p197 = pneg %p140
      %p198 = scmp.lt.s32.totalorder %s21, 1
      %s199 = scalar_select %p198, %s21, 1
      %p200 = scmp.lt.s32.totalorder %s22, 1
      %s201 = scalar_select %p200, %s22, 1
      %s202 = smul.addr %s199, 2
      %s203 = sadd.s32 %s201, %s202
      %s204 = smul.addr %s203, 2
      %s205 = scalar_lea.vmem %s5, %s204
      %s206 = smul.u32 8, %s22
      %p207 = scmp.lt.s32.totalorder %s21, 1
      %s208 = scalar_select %p207, %s21, 1
      %p209 = scmp.lt.s32.totalorder %s206, 15
      %s210 = scalar_select %p209, %s206, 15
      %s211 = smul.addr %s210, 2
      %s212 = smul.addr %s208, 32
      %s213 = sadd.s32 %s211, %s212
      %s214 = smul.addr %s213, 8
      %s215 = scalar_lea.vmem %s4, %s214
      %s216 = smul.u32 8, %s22
      %p217 = scmp.lt.s32.totalorder %s21, 1
      %s218 = scalar_select %p217, %s21, 1
      %p219 = scmp.lt.s32.totalorder %s22, 1
      %s220 = scalar_select %p219, %s22, 1
      %s221 = smul.addr %s218, 2
      %s222 = sadd.s32 %s220, %s221
      %s223 = smul.addr %s222, 2
      %s224 = scalar_lea.vmem %s5, %s223
      %s225 = smul.u32 %s22, 8
      %s226 = smul.u32 %s225, 16
      %s227 = smul.u32 %s21, 256
      %s228 = sadd.s32 %s226, %s227
      %s229 = scalar_lea.vmem %s0, %s228
      %s230 = scalar_lea.vmem [#allocation2], 24
      %p232 = scmp.lt.u32.totalorder 16, 8
      %p233 = pneg %p232
      // Predicated region
      $region33: #{unet_conv_block.4} parent=31 // pred_check
        _
      $region34: #{unet_conv_block.4} parent=31 // pred_check_branch
        %235 = sbr.rel (%p232) target = $region36
      $region35: #{unet_conv_block.4} parent=31 // pred_region
        %s264 = sand.u32 16, 7
        %p265 = scmp.eq.s32.totalorder %s264, 0
        // Predicated region
        $region48: #{unet_conv_block.4} parent=35 // pred_check
          %p266 = pneg %p265
        $region49: #{unet_conv_block.4} parent=35 // pred_check_branch
          %268 = sbr.rel (%p266) target = $region51
        $region50: #{unet_conv_block.4} parent=35 // pred_region
          loop: start=0, step=1, limit=1
          $region52: #{unet_conv_block.4} parent=50 // loop_pre_header
            _
          $region53: #{unet_conv_block.4} parent=50 // loop_header
            %s270 = sphi 0, %s274
            %p271 = scmp.ge.s32.totalorder %s270, 1
            %s275 = sphi %s229, %s229
            %s276 = sphi %s230, %s230
          $region54: #{unet_conv_block.4} parent=50 // loop_header_branch
            %273 = sbr.rel (%p271) target = $region58
          $region55: #{unet_conv_block.4} parent=50 // loop_body
            %v277 = vld [vmem:[%s275] sm:$0xff]
            %278 = vst [vmem:[%s276] sm:$0xff] %v277
            %v279 = vld [vmem:[%s275 + $0x8] sm:$0xff]
            %280 = vst [vmem:[%s276 + $0x8] sm:$0xff] %v279
            %v281 = vld [vmem:[%s275 + $0x10] sm:$0xff]
            %282 = vst [vmem:[%s276 + $0x18] sm:$0xff] %v281
            %v283 = vld [vmem:[%s275 + $0x18] sm:$0xff]
            %284 = vst [vmem:[%s276 + $0x20] sm:$0xff] %v283
            %v285 = vld [vmem:[%s275 + $0x20] sm:$0xff]
            %286 = vst [vmem:[%s276 + $0x30] sm:$0xff] %v285
            %v287 = vld [vmem:[%s275 + $0x28] sm:$0xff]
            %288 = vst [vmem:[%s276 + $0x38] sm:$0xff] %v287
            %v289 = vld [vmem:[%s275 + $0x30] sm:$0xff]
            %290 = vst [vmem:[%s276 + $0x48] sm:$0xff] %v289
            %v291 = vld [vmem:[%s275 + $0x38] sm:$0xff]
            %292 = vst [vmem:[%s276 + $0x50] sm:$0xff] %v291
            %v293 = vld [vmem:[%s275 + $0x40] sm:$0xff]
            %294 = vst [vmem:[%s276 + $0x60] sm:$0xff] %v293
            %v295 = vld [vmem:[%s275 + $0x48] sm:$0xff]
            %296 = vst [vmem:[%s276 + $0x68] sm:$0xff] %v295
            %v297 = vld [vmem:[%s275 + $0x50] sm:$0xff]
            %298 = vst [vmem:[%s276 + $0x78] sm:$0xff] %v297
            %v299 = vld [vmem:[%s275 + $0x58] sm:$0xff]
            %300 = vst [vmem:[%s276 + $0x80] sm:$0xff] %v299
            %v301 = vld [vmem:[%s275 + $0x60] sm:$0xff]
            %302 = vst [vmem:[%s276 + $0x90] sm:$0xff] %v301
            %v303 = vld [vmem:[%s275 + $0x68] sm:$0xff]
            %304 = vst [vmem:[%s276 + $0x98] sm:$0xff] %v303
            %v305 = vld [vmem:[%s275 + $0x70] sm:$0xff]
            %306 = vst [vmem:[%s276 + $0xa8] sm:$0xff] %v305
            %v307 = vld [vmem:[%s275 + $0x78] sm:$0xff]
            %308 = vst [vmem:[%s276 + $0xb0] sm:$0xff] %v307
          $region56: #{unet_conv_block.4} parent=50 // loop_footer
            %s274 = sadd.s32 1, %s270
          $region57: #{unet_conv_block.4} parent=50 // loop_footer_branch
            %269 = sbr.rel target = $region53
          $region58: #{unet_conv_block.4} parent=50 // loop_exit
            _
        $region51: #{unet_conv_block.4} parent=35 // pred_fallthru
          _
        %p309 = pneg %p265
        // Predicated region
        $region59: #{unet_conv_block.4} parent=35 // pred_check
          _
        $region60: #{unet_conv_block.4} parent=35 // pred_check_branch
          %311 = sbr.rel (%p265) target = $region62
        $region61: #{unet_conv_block.4} parent=35 // pred_region
          %s312 = sand.u32 16, 7
        $region62: #{unet_conv_block.4} parent=35 // pred_fallthru
          _
      $region36: #{unet_conv_block.4} parent=31 // pred_fallthru
        _
      // Predicated region
      $region37: #{unet_conv_block.4} parent=31 // pred_check
        %p236 = pneg %p232
      $region38: #{unet_conv_block.4} parent=31 // pred_check_branch
        %238 = sbr.rel (%p236) target = $region40
      $region39: #{unet_conv_block.4} parent=31 // pred_region
        %s239 = sshllo.u32 0, 16
        loop: start=0, step=1, limit=1
        $region41: #{unet_conv_block.4} parent=39 // loop_pre_header
          _
        $region42: #{unet_conv_block.4} parent=39 // loop_header
          %s241 = sphi 0, %s245
          %p242 = scmp.ge.s32.totalorder %s241, 1
          %s246 = sphi %s229, %s229
          %s247 = sphi %s230, %s230
        $region43: #{unet_conv_block.4} parent=39 // loop_header_branch
          %244 = sbr.rel (%p242) target = $region47
        $region44: #{unet_conv_block.4} parent=39 // loop_body
          %v248 = vld [vmem:[%s246] sm:%s239]
          %249 = vst [vmem:[%s247] sm:%s239] %v248
          %v250 = vld [vmem:[%s246 + $0x10] sm:%s239]
          %251 = vst [vmem:[%s247 + $0x18] sm:%s239] %v250
          %v252 = vld [vmem:[%s246 + $0x20] sm:%s239]
          %253 = vst [vmem:[%s247 + $0x30] sm:%s239] %v252
          %v254 = vld [vmem:[%s246 + $0x30] sm:%s239]
          %255 = vst [vmem:[%s247 + $0x48] sm:%s239] %v254
          %v256 = vld [vmem:[%s246 + $0x40] sm:%s239]
          %257 = vst [vmem:[%s247 + $0x60] sm:%s239] %v256
          %v258 = vld [vmem:[%s246 + $0x50] sm:%s239]
          %259 = vst [vmem:[%s247 + $0x78] sm:%s239] %v258
          %v260 = vld [vmem:[%s246 + $0x60] sm:%s239]
          %261 = vst [vmem:[%s247 + $0x90] sm:%s239] %v260
          %v262 = vld [vmem:[%s246 + $0x70] sm:%s239]
          %263 = vst [vmem:[%s247 + $0xa8] sm:%s239] %v262
        $region45: #{unet_conv_block.4} parent=39 // loop_footer
          %s245 = sadd.s32 1, %s241
        $region46: #{unet_conv_block.4} parent=39 // loop_footer_branch
          %240 = sbr.rel target = $region42
        $region47: #{unet_conv_block.4} parent=39 // loop_exit
          _
      $region40: #{unet_conv_block.4} parent=31 // pred_fallthru
        _
      // Predicated region
      $region63: #{unet_conv_block.4} parent=31 // pred_check
        _
      $region64: #{unet_conv_block.4} parent=31 // pred_check_branch
        %315 = sbr.rel (0) target = $region66
      $region65: #{unet_conv_block.4} parent=31 // pred_region
        %316 = vsyncadd [#allocation3], 2048
      $region66: #{unet_conv_block.4} parent=31 // pred_fallthru
        _
      %p317 = scmp.gt.s32.totalorder %s22, 0
      // Predicated region
      $region67: #{unet_conv_block.4} parent=31 // pred_check
        %p318 = pneg %p317
      $region68: #{unet_conv_block.4} parent=31 // pred_check_branch
        %320 = sbr.rel (%p318) target = $region70
      $region69: #{unet_conv_block.4} parent=31 // pred_region
        %s321 = ssub.s32 %s225, 1
        %s322 = smul.u32 %s321, 16
        %s323 = sadd.s32 %s322, %s227
        %s324 = scalar_lea.vmem %s0, %s323
        %s325 = scalar_lea.sflag [#allocation3], 1
        %p327 = scmp.lt.u32.totalorder 16, 8
        %p328 = pneg %p327
        // Predicated region
        $region71: #{unet_conv_block.4} parent=69 // pred_check
          _
        $region72: #{unet_conv_block.4} parent=69 // pred_check_branch
          %330 = sbr.rel (%p327) target = $region74
        $region73: #{unet_conv_block.4} parent=69 // pred_region
          %s345 = sand.u32 16, 7
          %p346 = scmp.eq.s32.totalorder %s345, 0
          // Predicated region
          $region86: #{unet_conv_block.4} parent=73 // pred_check
            %p347 = pneg %p346
          $region87: #{unet_conv_block.4} parent=73 // pred_check_branch
            %349 = sbr.rel (%p347) target = $region89
          $region88: #{unet_conv_block.4} parent=73 // pred_region
            loop: start=0, step=1, limit=1
            $region90: #{unet_conv_block.4} parent=88 // loop_pre_header
              _
            $region91: #{unet_conv_block.4} parent=88 // loop_header
              %s351 = sphi 0, %s355
              %p352 = scmp.ge.s32.totalorder %s351, 1
              %s356 = sphi %s324, %s324
              %s357 = sphi [#allocation2], [#allocation2]
            $region92: #{unet_conv_block.4} parent=88 // loop_header_branch
              %354 = sbr.rel (%p352) target = $region96
            $region93: #{unet_conv_block.4} parent=88 // loop_body
              %v358 = vld [vmem:[%s356] sm:$0xff]
              %359 = vst [vmem:[%s357] sm:$0xff] %v358
              %v360 = vld [vmem:[%s356 + $0x8] sm:$0xff]
              %361 = vst [vmem:[%s357 + $0x8] sm:$0xff] %v360
            $region94: #{unet_conv_block.4} parent=88 // loop_footer
              %s355 = sadd.s32 1, %s351
            $region95: #{unet_conv_block.4} parent=88 // loop_footer_branch
              %350 = sbr.rel target = $region91
            $region96: #{unet_conv_block.4} parent=88 // loop_exit
              _
          $region89: #{unet_conv_block.4} parent=73 // pred_fallthru
            _
          %p362 = pneg %p346
          // Predicated region
          $region97: #{unet_conv_block.4} parent=73 // pred_check
            _
          $region98: #{unet_conv_block.4} parent=73 // pred_check_branch
            %364 = sbr.rel (%p346) target = $region100
          $region99: #{unet_conv_block.4} parent=73 // pred_region
            %s365 = sand.u32 16, 7
          $region100: #{unet_conv_block.4} parent=73 // pred_fallthru
            _
        $region74: #{unet_conv_block.4} parent=69 // pred_fallthru
          _
        // Predicated region
        $region75: #{unet_conv_block.4} parent=69 // pred_check
          %p331 = pneg %p327
        $region76: #{unet_conv_block.4} parent=69 // pred_check_branch
          %333 = sbr.rel (%p331) target = $region78
        $region77: #{unet_conv_block.4} parent=69 // pred_region
          %s334 = sshllo.u32 0, 16
          loop: start=0, step=1, limit=1
          $region79: #{unet_conv_block.4} parent=77 // loop_pre_header
            _
          $region80: #{unet_conv_block.4} parent=77 // loop_header
            %s336 = sphi 0, %s340
            %p337 = scmp.ge.s32.totalorder %s336, 1
            %s341 = sphi %s324, %s324
            %s342 = sphi [#allocation2], [#allocation2]
          $region81: #{unet_conv_block.4} parent=77 // loop_header_branch
            %339 = sbr.rel (%p337) target = $region85
          $region82: #{unet_conv_block.4} parent=77 // loop_body
            %v343 = vld [vmem:[%s341] sm:%s334]
            %344 = vst [vmem:[%s342] sm:%s334] %v343
          $region83: #{unet_conv_block.4} parent=77 // loop_footer
            %s340 = sadd.s32 1, %s336
          $region84: #{unet_conv_block.4} parent=77 // loop_footer_branch
            %335 = sbr.rel target = $region80
          $region85: #{unet_conv_block.4} parent=77 // loop_exit
            _
        $region78: #{unet_conv_block.4} parent=69 // pred_fallthru
          _
        // Predicated region
        $region101: #{unet_conv_block.4} parent=69 // pred_check
          _
        $region102: #{unet_conv_block.4} parent=69 // pred_check_branch
          %368 = sbr.rel (0) target = $region104
        $region103: #{unet_conv_block.4} parent=69 // pred_region
          %369 = vsyncadd %s325, 256
        $region104: #{unet_conv_block.4} parent=69 // pred_fallthru
          _
      $region70: #{unet_conv_block.4} parent=31 // pred_fallthru
        _
      %p370 = scmp.lt.s32.totalorder %s22, 1
      // Predicated region
      $region105: #{unet_conv_block.4} parent=31 // pred_check
        %p371 = pneg %p370
      $region106: #{unet_conv_block.4} parent=31 // pred_check_branch
        %373 = sbr.rel (%p371) target = $region108
      $region107: #{unet_conv_block.4} parent=31 // pred_region
        %s374 = sadd.s32 %s225, 8
        %s375 = smul.u32 %s374, 16
        %s376 = sadd.s32 %s375, %s227
        %s377 = scalar_lea.vmem %s0, %s376
        %s378 = scalar_lea.vmem [#allocation2], 216
        %s379 = scalar_lea.sflag [#allocation3], 2
        %p381 = scmp.lt.u32.totalorder 16, 8
        %p382 = pneg %p381
        // Predicated region
        $region109: #{unet_conv_block.4} parent=107 // pred_check
          _
        $region110: #{unet_conv_block.4} parent=107 // pred_check_branch
          %384 = sbr.rel (%p381) target = $region112
        $region111: #{unet_conv_block.4} parent=107 // pred_region
          %s399 = sand.u32 16, 7
          %p400 = scmp.eq.s32.totalorder %s399, 0
          // Predicated region
          $region124: #{unet_conv_block.4} parent=111 // pred_check
            %p401 = pneg %p400
          $region125: #{unet_conv_block.4} parent=111 // pred_check_branch
            %403 = sbr.rel (%p401) target = $region127
          $region126: #{unet_conv_block.4} parent=111 // pred_region
            loop: start=0, step=1, limit=1
            $region128: #{unet_conv_block.4} parent=126 // loop_pre_header
              _
            $region129: #{unet_conv_block.4} parent=126 // loop_header
              %s405 = sphi 0, %s409
              %p406 = scmp.ge.s32.totalorder %s405, 1
              %s410 = sphi %s377, %s377
              %s411 = sphi %s378, %s378
            $region130: #{unet_conv_block.4} parent=126 // loop_header_branch
              %408 = sbr.rel (%p406) target = $region134
            $region131: #{unet_conv_block.4} parent=126 // loop_body
              %v412 = vld [vmem:[%s410] sm:$0xff]
              %413 = vst [vmem:[%s411] sm:$0xff] %v412
              %v414 = vld [vmem:[%s410 + $0x8] sm:$0xff]
              %415 = vst [vmem:[%s411 + $0x8] sm:$0xff] %v414
            $region132: #{unet_conv_block.4} parent=126 // loop_footer
              %s409 = sadd.s32 1, %s405
            $region133: #{unet_conv_block.4} parent=126 // loop_footer_branch
              %404 = sbr.rel target = $region129
            $region134: #{unet_conv_block.4} parent=126 // loop_exit
              _
          $region127: #{unet_conv_block.4} parent=111 // pred_fallthru
            _
          %p416 = pneg %p400
          // Predicated region
          $region135: #{unet_conv_block.4} parent=111 // pred_check
            _
          $region136: #{unet_conv_block.4} parent=111 // pred_check_branch
            %418 = sbr.rel (%p400) target = $region138
          $region137: #{unet_conv_block.4} parent=111 // pred_region
            %s419 = sand.u32 16, 7
          $region138: #{unet_conv_block.4} parent=111 // pred_fallthru
            _
        $region112: #{unet_conv_block.4} parent=107 // pred_fallthru
          _
        // Predicated region
        $region113: #{unet_conv_block.4} parent=107 // pred_check
          %p385 = pneg %p381
        $region114: #{unet_conv_block.4} parent=107 // pred_check_branch
          %387 = sbr.rel (%p385) target = $region116
        $region115: #{unet_conv_block.4} parent=107 // pred_region
          %s388 = sshllo.u32 0, 16
          loop: start=0, step=1, limit=1
          $region117: #{unet_conv_block.4} parent=115 // loop_pre_header
            _
          $region118: #{unet_conv_block.4} parent=115 // loop_header
            %s390 = sphi 0, %s394
            %p391 = scmp.ge.s32.totalorder %s390, 1
            %s395 = sphi %s377, %s377
            %s396 = sphi %s378, %s378
          $region119: #{unet_conv_block.4} parent=115 // loop_header_branch
            %393 = sbr.rel (%p391) target = $region123
          $region120: #{unet_conv_block.4} parent=115 // loop_body
            %v397 = vld [vmem:[%s395] sm:%s388]
            %398 = vst [vmem:[%s396] sm:%s388] %v397
          $region121: #{unet_conv_block.4} parent=115 // loop_footer
            %s394 = sadd.s32 1, %s390
          $region122: #{unet_conv_block.4} parent=115 // loop_footer_branch
            %389 = sbr.rel target = $region118
          $region123: #{unet_conv_block.4} parent=115 // loop_exit
            _
        $region116: #{unet_conv_block.4} parent=107 // pred_fallthru
          _
        // Predicated region
        $region139: #{unet_conv_block.4} parent=107 // pred_check
          _
        $region140: #{unet_conv_block.4} parent=107 // pred_check_branch
          %422 = sbr.rel (0) target = $region142
        $region141: #{unet_conv_block.4} parent=107 // pred_region
          %423 = vsyncadd %s379, 256
        $region142: #{unet_conv_block.4} parent=107 // pred_fallthru
          _
      $region108: #{unet_conv_block.4} parent=31 // pred_fallthru
        _
      %s424 = smul.u32 8, 16
      %s425 = smul.u32 %s424, 1
      %s426 = sshll.u32 %s425, 4
      %427 = dma.done [#allocation3], %s426
      // Predicated region
      $region143: #{unet_conv_block.4} parent=31 // pred_check
        %p428 = pneg %p317
      $region144: #{unet_conv_block.4} parent=31 // pred_check_branch
        %430 = sbr.rel (%p428) target = $region146
      $region145: #{unet_conv_block.4} parent=31 // pred_region
        %s431 = scalar_lea.sflag [#allocation3], 1
        %s432 = smul.u32 1, 16
        %s433 = smul.u32 %s432, 1
        %s434 = sshll.u32 %s433, 4
        %435 = dma.done %s431, %s434
      $region146: #{unet_conv_block.4} parent=31 // pred_fallthru
        _
      // Predicated region
      $region147: #{unet_conv_block.4} parent=31 // pred_check
        %p436 = pneg %p370
      $region148: #{unet_conv_block.4} parent=31 // pred_check_branch
        %438 = sbr.rel (%p436) target = $region150
      $region149: #{unet_conv_block.4} parent=31 // pred_region
        %s439 = scalar_lea.sflag [#allocation3], 2
        %s440 = smul.u32 1, 16
        %s441 = smul.u32 %s440, 1
        %s442 = sshll.u32 %s441, 4
        %443 = dma.done %s439, %s442
      $region150: #{unet_conv_block.4} parent=31 // pred_fallthru
        _
      %v444 = vld [vmem:[%s2] sm:$0x1]
      %v445 = vld [vmem:[%s3] sm:$0x1]
      %v446 = vld [vmem:[#allocation2] sm:$0xff]
      %v447 = vld [vmem:[#allocation2 + $0x8] sm:$0xff]
      %v448 = vld [vmem:[#allocation2 + $0x10] sm:$0xff]
      %v449 = vld [vmem:[#allocation2 + $0x18] sm:$0xff]
      %v450 = vld [vmem:[#allocation2 + $0x20] sm:$0xff]
      %v451 = vld [vmem:[#allocation2 + $0x28] sm:$0xff]
      %v452 = vld [vmem:[#allocation2 + $0x30] sm:$0xff]
      %v453 = vld [vmem:[#allocation2 + $0x38] sm:$0xff]
      %v454 = vld [vmem:[#allocation2 + $0x40] sm:$0xff]
      %v455 = vld [vmem:[#allocation2 + $0x48] sm:$0xff]
      %v456 = vld [vmem:[#allocation2 + $0x50] sm:$0xff]
      %v457 = vld [vmem:[#allocation2 + $0x58] sm:$0xff]
      %v458 = vld [vmem:[#allocation2 + $0x60] sm:$0xff]
      %v459 = vld [vmem:[#allocation2 + $0x68] sm:$0xff]
      %v460 = vld [vmem:[#allocation2 + $0x70] sm:$0xff]
      %v461 = vld [vmem:[#allocation2 + $0x78] sm:$0xff]
      %v462 = vld [vmem:[#allocation2 + $0x80] sm:$0xff]
      %v463 = vld [vmem:[#allocation2 + $0x88] sm:$0xff]
      %v464 = vld [vmem:[#allocation2 + $0x90] sm:$0xff]
      %v465 = vld [vmem:[#allocation2 + $0x98] sm:$0xff]
      %v466 = vld [vmem:[#allocation2 + $0xa0] sm:$0xff]
      %v467 = vld [vmem:[#allocation2 + $0xa8] sm:$0xff]
      %v468 = vld [vmem:[#allocation2 + $0xb0] sm:$0xff]
      %v469 = vld [vmem:[#allocation2 + $0xb8] sm:$0xff]
      %v470 = vld [vmem:[#allocation2 + $0xc0] sm:$0xff]
      %v471 = vld [vmem:[#allocation2 + $0xc8] sm:$0xff]
      %v472 = vld [vmem:[#allocation2 + $0xd0] sm:$0xff]
      %v473 = vld [vmem:[#allocation2 + $0xd8] sm:$0xff]
      %v474 = vld [vmem:[#allocation2 + $0xe0] sm:$0xff]
      %v475 = vld [vmem:[#allocation2 + $0xe8] sm:$0xff]
      %v477 = vlaneseq
      %v478 = vshrl.u32 %v477, 7
      %v479 = vsub.s32 0, %v478
      %v480 = vrot.slane %v444, %v479
      %v482 = vmul.f32 %v446, %v480
      %v483 = vmul.f32 %v447, %v480
      %v484 = vmul.f32 %v448, %v480
      %v485 = vmul.f32 %v449, %v480
      %v486 = vmul.f32 %v450, %v480
      %v487 = vmul.f32 %v451, %v480
      %v488 = vmul.f32 %v452, %v480
      %v489 = vmul.f32 %v453, %v480
      %v490 = vmul.f32 %v454, %v480
      %v491 = vmul.f32 %v455, %v480
      %v492 = vmul.f32 %v456, %v480
      %v493 = vmul.f32 %v457, %v480
      %v494 = vmul.f32 %v458, %v480
      %v495 = vmul.f32 %v459, %v480
      %v496 = vmul.f32 %v460, %v480
      %v497 = vmul.f32 %v461, %v480
      %v498 = vmul.f32 %v462, %v480
      %v499 = vmul.f32 %v463, %v480
      %v500 = vmul.f32 %v464, %v480
      %v501 = vmul.f32 %v465, %v480
      %v502 = vmul.f32 %v466, %v480
      %v503 = vmul.f32 %v467, %v480
      %v504 = vmul.f32 %v468, %v480
      %v505 = vmul.f32 %v469, %v480
      %v506 = vmul.f32 %v470, %v480
      %v507 = vmul.f32 %v471, %v480
      %v508 = vmul.f32 %v472, %v480
      %v509 = vmul.f32 %v473, %v480
      %v510 = vmul.f32 %v474, %v480
      %v511 = vmul.f32 %v475, %v480
      %v513 = vlaneseq
      %v514 = vshrl.u32 %v513, 7
      %v515 = vsub.s32 0, %v514
      %v516 = vrot.slane %v445, %v515
      %v518 = vadd.f32 %v482, %v516
      %v519 = vadd.f32 %v483, %v516
      %v520 = vadd.f32 %v484, %v516
      %v521 = vadd.f32 %v485, %v516
      %v522 = vadd.f32 %v486, %v516
      %v523 = vadd.f32 %v487, %v516
      %v524 = vadd.f32 %v488, %v516
      %v525 = vadd.f32 %v489, %v516
      %v526 = vadd.f32 %v490, %v516
      %v527 = vadd.f32 %v491, %v516
      %v528 = vadd.f32 %v492, %v516
      %v529 = vadd.f32 %v493, %v516
      %v530 = vadd.f32 %v494, %v516
      %v531 = vadd.f32 %v495, %v516
      %v532 = vadd.f32 %v496, %v516
      %v533 = vadd.f32 %v497, %v516
      %v534 = vadd.f32 %v498, %v516
      %v535 = vadd.f32 %v499, %v516
      %v536 = vadd.f32 %v500, %v516
      %v537 = vadd.f32 %v501, %v516
      %v538 = vadd.f32 %v502, %v516
      %v539 = vadd.f32 %v503, %v516
      %v540 = vadd.f32 %v504, %v516
      %v541 = vadd.f32 %v505, %v516
      %v542 = vadd.f32 %v506, %v516
      %v543 = vadd.f32 %v507, %v516
      %v544 = vadd.f32 %v508, %v516
      %v545 = vadd.f32 %v509, %v516
      %v546 = vadd.f32 %v510, %v516
      %v547 = vadd.f32 %v511, %v516
      %v548 = vmax.f32 %v518, 0.0
      %v549 = vmax.f32 %v519, 0.0
      %v550 = vmax.f32 %v520, 0.0
      %v551 = vmax.f32 %v521, 0.0
      %v552 = vmax.f32 %v522, 0.0
      %v553 = vmax.f32 %v523, 0.0
      %v554 = vmax.f32 %v524, 0.0
      %v555 = vmax.f32 %v525, 0.0
      %v556 = vmax.f32 %v526, 0.0
      %v557 = vmax.f32 %v527, 0.0
      %v558 = vmax.f32 %v528, 0.0
      %v559 = vmax.f32 %v529, 0.0
      %v560 = vmax.f32 %v530, 0.0
      %v561 = vmax.f32 %v531, 0.0
      %v562 = vmax.f32 %v532, 0.0
      %v563 = vmax.f32 %v533, 0.0
      %v564 = vmax.f32 %v534, 0.0
      %v565 = vmax.f32 %v535, 0.0
      %v566 = vmax.f32 %v536, 0.0
      %v567 = vmax.f32 %v537, 0.0
      %v568 = vmax.f32 %v538, 0.0
      %v569 = vmax.f32 %v539, 0.0
      %v570 = vmax.f32 %v540, 0.0
      %v571 = vmax.f32 %v541, 0.0
      %v572 = vmax.f32 %v542, 0.0
      %v573 = vmax.f32 %v543, 0.0
      %v574 = vmax.f32 %v544, 0.0
      %v575 = vmax.f32 %v545, 0.0
      %v576 = vmax.f32 %v546, 0.0
      %v577 = vmax.f32 %v547, 0.0
      %578 = vst [vmem:[#allocation2] sm:$0xff] %v548
      %579 = vst [vmem:[#allocation2 + $0x8] sm:$0xff] %v549
      %580 = vst [vmem:[#allocation2 + $0x10] sm:$0xff] %v550
      %581 = vst [vmem:[#allocation2 + $0x18] sm:$0xff] %v551
      %582 = vst [vmem:[#allocation2 + $0x20] sm:$0xff] %v552
      %583 = vst [vmem:[#allocation2 + $0x28] sm:$0xff] %v553
      %584 = vst [vmem:[#allocation2 + $0x30] sm:$0xff] %v554
      %585 = vst [vmem:[#allocation2 + $0x38] sm:$0xff] %v555
      %586 = vst [vmem:[#allocation2 + $0x40] sm:$0xff] %v556
      %587 = vst [vmem:[#allocation2 + $0x48] sm:$0xff] %v557
      %588 = vst [vmem:[#allocation2 + $0x50] sm:$0xff] %v558
      %589 = vst [vmem:[#allocation2 + $0x58] sm:$0xff] %v559
      %590 = vst [vmem:[#allocation2 + $0x60] sm:$0xff] %v560
      %591 = vst [vmem:[#allocation2 + $0x68] sm:$0xff] %v561
      %592 = vst [vmem:[#allocation2 + $0x70] sm:$0xff] %v562
      %593 = vst [vmem:[#allocation2 + $0x78] sm:$0xff] %v563
      %594 = vst [vmem:[#allocation2 + $0x80] sm:$0xff] %v564
      %595 = vst [vmem:[#allocation2 + $0x88] sm:$0xff] %v565
      %596 = vst [vmem:[#allocation2 + $0x90] sm:$0xff] %v566
      %597 = vst [vmem:[#allocation2 + $0x98] sm:$0xff] %v567
      %598 = vst [vmem:[#allocation2 + $0xa0] sm:$0xff] %v568
      %599 = vst [vmem:[#allocation2 + $0xa8] sm:$0xff] %v569
      %600 = vst [vmem:[#allocation2 + $0xb0] sm:$0xff] %v570
      %601 = vst [vmem:[#allocation2 + $0xb8] sm:$0xff] %v571
      %602 = vst [vmem:[#allocation2 + $0xc0] sm:$0xff] %v572
      %603 = vst [vmem:[#allocation2 + $0xc8] sm:$0xff] %v573
      %604 = vst [vmem:[#allocation2 + $0xd0] sm:$0xff] %v574
      %605 = vst [vmem:[#allocation2 + $0xd8] sm:$0xff] %v575
      %606 = vst [vmem:[#allocation2 + $0xe0] sm:$0xff] %v576
      %607 = vst [vmem:[#allocation2 + $0xe8] sm:$0xff] %v577
      %608 = vst [vmem:[#allocation2 + $0x10] sm:$0xff] 0.0
      %609 = vst [vmem:[#allocation2 + $0x28] sm:$0xff] 0.0
      %610 = vst [vmem:[#allocation2 + $0x40] sm:$0xff] 0.0
      %611 = vst [vmem:[#allocation2 + $0x58] sm:$0xff] 0.0
      %612 = vst [vmem:[#allocation2 + $0x70] sm:$0xff] 0.0
      %613 = vst [vmem:[#allocation2 + $0x88] sm:$0xff] 0.0
      %614 = vst [vmem:[#allocation2 + $0xa0] sm:$0xff] 0.0
      %615 = vst [vmem:[#allocation2 + $0xb8] sm:$0xff] 0.0
      %616 = vst [vmem:[#allocation2 + $0xd0] sm:$0xff] 0.0
      %617 = vst [vmem:[#allocation2 + $0xe8] sm:$0xff] 0.0
      %p618 = scmp.eq.s32.totalorder %s22, 0
      // Predicated region
      $region151: #{unet_conv_block.4} parent=31 // pred_check
        %p619 = pneg %p618
      $region152: #{unet_conv_block.4} parent=31 // pred_check_branch
        %621 = sbr.rel (%p619) target = $region154
      $region153: #{unet_conv_block.4} parent=31 // pred_region
        %622 = vst [vmem:[#allocation2] sm:$0xff] 0.0
        %623 = vst [vmem:[#allocation2 + $0x8] sm:$0xff] 0.0
        %624 = vst [vmem:[#allocation2 + $0x10] sm:$0xff] 0.0
      $region154: #{unet_conv_block.4} parent=31 // pred_fallthru
        _
      %p625 = scmp.eq.s32.totalorder %s22, 1
      // Predicated region
      $region155: #{unet_conv_block.4} parent=31 // pred_check
        %p626 = pneg %p625
      $region156: #{unet_conv_block.4} parent=31 // pred_check_branch
        %628 = sbr.rel (%p626) target = $region158
      $region157: #{unet_conv_block.4} parent=31 // pred_region
        %s629 = scalar_lea.vmem [#allocation2], 216
        %630 = vst [vmem:[%s629] sm:$0xff] 0.0
        %631 = vst [vmem:[%s629 + $0x8] sm:$0xff] 0.0
        %632 = vst [vmem:[%s629 + $0x10] sm:$0xff] 0.0
      $region158: #{unet_conv_block.4} parent=31 // pred_fallthru
        _
      %v633 = vld [vmem:[#allocation2] sm:$0xff]
      %v634 = vld [vmem:[#allocation2 + $0x8] sm:$0xff]
      %v635 = vld [vmem:[#allocation2 + $0x10] sm:$0xff]
      %v636 = vld [vmem:[#allocation2 + $0x18] sm:$0xff]
      %v637 = vld [vmem:[#allocation2 + $0x20] sm:$0xff]
      %v638 = vld [vmem:[#allocation2 + $0x28] sm:$0xff]
      %v639 = vld [vmem:[#allocation2 + $0x30] sm:$0xff]
      %v640 = vld [vmem:[#allocation2 + $0x38] sm:$0xff]
      %v641 = vld [vmem:[#allocation2 + $0x40] sm:$0xff]
      %v642 = vld [vmem:[#allocation2 + $0x48] sm:$0xff]
      %v643 = vld [vmem:[#allocation2 + $0x50] sm:$0xff]
      %v644 = vld [vmem:[#allocation2 + $0x58] sm:$0xff]
      %v645 = vld [vmem:[#allocation2 + $0x60] sm:$0xff]
      %v646 = vld [vmem:[#allocation2 + $0x68] sm:$0xff]
      %v647 = vld [vmem:[#allocation2 + $0x70] sm:$0xff]
      %v648 = vld [vmem:[#allocation2 + $0x78] sm:$0xff]
      %v649 = vld [vmem:[#allocation2 + $0x80] sm:$0xff]
      %v650 = vld [vmem:[#allocation2 + $0x88] sm:$0xff]
      %v651 = vld [vmem:[#allocation2 + $0x90] sm:$0xff]
      %v652 = vld [vmem:[#allocation2 + $0x98] sm:$0xff]
      %v653 = vld [vmem:[#allocation2 + $0xa0] sm:$0xff]
      %v654 = vld [vmem:[#allocation2 + $0xa8] sm:$0xff]
      %v655 = vld [vmem:[#allocation2 + $0xb0] sm:$0xff]
      %v656 = vld [vmem:[#allocation2 + $0xb8] sm:$0xff]
      %v657 = vld [vmem:[%s1] sm:$0xff]
      %v658 = vld [vmem:[%s1 + $0x8] sm:$0xff]
      %v659 = vld [vmem:[%s1 + $0x10] sm:$0xff]
      %v660 = vld [vmem:[%s1 + $0x18] sm:$0xff]
      %v661 = vld [vmem:[%s1 + $0x20] sm:$0xff]
      %v662 = vld [vmem:[%s1 + $0x28] sm:$0xff]
      %v663 = vld [vmem:[%s1 + $0x30] sm:$0xff]
      %v664 = vld [vmem:[%s1 + $0x38] sm:$0xff]
      %v665 = vld [vmem:[%s1 + $0x40] sm:$0xff]
      %v666 = vld [vmem:[%s1 + $0x48] sm:$0xff]
      %v667 = vld [vmem:[%s1 + $0x50] sm:$0xff]
      %v668 = vld [vmem:[%s1 + $0x58] sm:$0xff]
      %v669 = vld [vmem:[%s1 + $0x60] sm:$0xff]
      %v670 = vld [vmem:[%s1 + $0x68] sm:$0xff]
      %v671 = vld [vmem:[%s1 + $0x70] sm:$0xff]
      %v672 = vld [vmem:[%s1 + $0x78] sm:$0xff]
      %673 = vmatprep.subr.mxu0 0.0
      %674 = vmatpush1.msra.mxu0 %v657
      %675 = vmatprep.subr.mxu0 0.0
      %676 = vmatpush1.msra.mxu0 %v658
      %677 = vmatprep.subr.mxu0 0.0
      %678 = vmatpush1.msra.mxu0 %v659
      %679 = vmatprep.subr.mxu0 0.0
      %680 = vmatpush1.msra.mxu0 %v660
      %681 = vmatprep.subr.mxu0 0.0
      %682 = vmatpush1.msra.mxu0 %v661
      %683 = vmatprep.subr.mxu0 0.0
      %684 = vmatpush1.msra.mxu0 %v662
      %685 = vmatprep.subr.mxu0 0.0
      %686 = vmatpush1.msra.mxu0 %v663
      %687 = vmatprep.subr.mxu0 0.0
      %688 = vmatpush1.msra.mxu0 %v664
      %689 = vmatprep.subr.mxu0 0.0
      %690 = vmatpush1.msra.mxu0 %v665
      %691 = vmatprep.subr.mxu0 0.0
      %692 = vmatpush1.msra.mxu0 %v666
      %693 = vmatprep.subr.mxu0 0.0
      %694 = vmatpush1.msra.mxu0 %v667
      %695 = vmatprep.subr.mxu0 0.0
      %696 = vmatpush1.msra.mxu0 %v668
      %697 = vmatprep.subr.mxu0 0.0
      %698 = vmatpush1.msra.mxu0 %v669
      %699 = vmatprep.subr.mxu0 0.0
      %700 = vmatpush1.msra.mxu0 %v670
      %701 = vmatprep.subr.mxu0 0.0
      %702 = vmatpush1.msra.mxu0 %v671
      %703 = vmatprep.subr.mxu0 0.0
      %704 = vmatpush1.msra.mxu0 %v672
      %705 = vmatprep.subr.mxu0 0.0
      %706 = vmatpush1.msra.mxu0 0.0
      %707 = vmatprep.subr.mxu0 0.0
      %708 = vmatpush1.msra.mxu0 0.0
      %709 = vmatprep.subr.mxu0 0.0
      %710 = vmatpush1.msra.mxu0 0.0
      %711 = vmatprep.subr.mxu0 0.0
      %712 = vmatpush1.msra.mxu0 0.0
      %713 = vmatprep.subr.mxu0 0.0
      %714 = vmatpush1.msra.mxu0 0.0
      %715 = vmatprep.subr.mxu0 0.0
      %716 = vmatpush1.msra.mxu0 0.0
      %717 = vmatprep.subr.mxu0 0.0
      %718 = vmatpush1.msra.mxu0 0.0
      %719 = vmatprep.subr.mxu0 0.0
      %720 = vmatpush1.msra.mxu0 0.0
      %721 = vmatprep.subr.mxu0 0.0
      %722 = vmatpush1.msra.mxu0 0.0
      %723 = vmatprep.subr.mxu0 0.0
      %724 = vmatpush1.msra.mxu0 0.0
      %725 = vmatprep.subr.mxu0 0.0
      %726 = vmatpush1.msra.mxu0 0.0
      %727 = vmatprep.subr.mxu0 0.0
      %728 = vmatpush1.msra.mxu0 0.0
      %729 = vmatprep.subr.mxu0 0.0
      %730 = vmatpush1.msra.mxu0 0.0
      %731 = vmatprep.subr.mxu0 0.0
      %732 = vmatpush1.msra.mxu0 0.0
      %733 = vmatprep.subr.mxu0 0.0
      %734 = vmatpush1.msra.mxu0 0.0
      %735 = vmatprep.subr.mxu0 0.0
      %736 = vmatpush1.msra.mxu0 0.0
      %737 = vmatprep.mubr.f32.mxu0 0.0
      %738 = vmatmul.mubr.f32.gmra.mrb[0].mxu0 %v633
      %v739 = vpop.f32.mrb[0].mxu0
      %v740 = vadd.f32 0.0, %v739
      %v741 = vpop.f32.mrb[0].mxu0
      %742 = vmatprep.mubr.f32.mxu0 0.0
      %743 = vmatmul.mubr.f32.gmra.mrb[0].mxu0 %v634
      %v744 = vpop.f32.mrb[0].mxu0
      %v745 = vadd.f32 0.0, %v744
      %v746 = vpop.f32.mrb[0].mxu0
      %747 = vmatprep.mubr.f32.mxu0 0.0
      %748 = vmatmul.mubr.f32.gmra.mrb[0].mxu0 %v635
      %v749 = vpop.f32.mrb[0].mxu0
      %v750 = vadd.f32 0.0, %v749
      %v751 = vpop.f32.mrb[0].mxu0
      %752 = vmatprep.mubr.f32.mxu0 0.0
      %753 = vmatmul.mubr.f32.gmra.mrb[0].mxu0 %v636
      %v754 = vpop.f32.mrb[0].mxu0
      %v755 = vadd.f32 0.0, %v754
      %v756 = vpop.f32.mrb[0].mxu0
      %757 = vmatprep.mubr.f32.mxu0 0.0
      %758 = vmatmul.mubr.f32.gmra.mrb[0].mxu0 %v637
      %v759 = vpop.f32.mrb[0].mxu0
      %v760 = vadd.f32 0.0, %v759
      %v761 = vpop.f32.mrb[0].mxu0
      %762 = vmatprep.mubr.f32.mxu0 0.0
      %763 = vmatmul.mubr.f32.gmra.mrb[0].mxu0 %v638
      %v764 = vpop.f32.mrb[0].mxu0
      %v765 = vadd.f32 0.0, %v764
      %v766 = vpop.f32.mrb[0].mxu0
      %767 = vmatprep.mubr.f32.mxu0 0.0
      %768 = vmatmul.mubr.f32.gmra.mrb[0].mxu0 %v639
      %v769 = vpop.f32.mrb[0].mxu0
      %v770 = vadd.f32 0.0, %v769
      %v771 = vpop.f32.mrb[0].mxu0
      %772 = vmatprep.mubr.f32.mxu0 0.0
      %773 = vmatmul.mubr.f32.gmra.mrb[0].mxu0 %v640
      %v774 = vpop.f32.mrb[0].mxu0
      %v775 = vadd.f32 0.0, %v774
      %v776 = vpop.f32.mrb[0].mxu0
      %777 = vmatprep.mubr.f32.mxu0 0.0
      %778 = vmatmul.mubr.f32.gmra.mrb[0].mxu0 %v641
      %v779 = vpop.f32.mrb[0].mxu0
      %v780 = vadd.f32 0.0, %v779
      %v781 = vpop.f32.mrb[0].mxu0
      %782 = vmatprep.mubr.f32.mxu0 0.0
      %783 = vmatmul.mubr.f32.gmra.mrb[0].mxu0 %v642
      %v784 = vpop.f32.mrb[0].mxu0
      %v785 = vadd.f32 0.0, %v784
      %v786 = vpop.f32.mrb[0].mxu0
      %787 = vmatprep.mubr.f32.mxu0 0.0
      %788 = vmatmul.mubr.f32.gmra.mrb[0].mxu0 %v643
      %v789 = vpop.f32.mrb[0].mxu0
      %v790 = vadd.f32 0.0, %v789
      %v791 = vpop.f32.mrb[0].mxu0
      %792 = vmatprep.mubr.f32.mxu0 0.0
      %793 = vmatmul.mubr.f32.gmra.mrb[0].mxu0 %v644
      %v794 = vpop.f32.mrb[0].mxu0
      %v795 = vadd.f32 0.0, %v794
      %v796 = vpop.f32.mrb[0].mxu0
      %797 = vmatprep.mubr.f32.mxu0 0.0
      %798 = vmatmul.mubr.f32.gmra.mrb[0].mxu0 %v645
      %v799 = vpop.f32.mrb[0].mxu0
      %v800 = vadd.f32 0.0, %v799
      %v801 = vpop.f32.mrb[0].mxu0
      %802 = vmatprep.mubr.f32.mxu0 0.0
      %803 = vmatmul.mubr.f32.gmra.mrb[0].mxu0 %v646
      %v804 = vpop.f32.mrb[0].mxu0
      %v805 = vadd.f32 0.0, %v804
      %v806 = vpop.f32.mrb[0].mxu0
      %807 = vmatprep.mubr.f32.mxu0 0.0
      %808 = vmatmul.mubr.f32.gmra.mrb[0].mxu0 %v647
      %v809 = vpop.f32.mrb[0].mxu0
      %v810 = vadd.f32 0.0, %v809
      %v811 = vpop.f32.mrb[0].mxu0
      %812 = vmatprep.mubr.f32.mxu0 0.0
      %813 = vmatmul.mubr.f32.gmra.mrb[0].mxu0 %v648
      %v814 = vpop.f32.mrb[0].mxu0
      %v815 = vadd.f32 0.0, %v814
      %v816 = vpop.f32.mrb[0].mxu0
      %817 = vmatprep.mubr.f32.mxu0 0.0
      %818 = vmatmul.mubr.f32.gmra.mrb[0].mxu0 %v649
      %v819 = vpop.f32.mrb[0].mxu0
      %v820 = vadd.f32 0.0, %v819
      %v821 = vpop.f32.mrb[0].mxu0
      %822 = vmatprep.mubr.f32.mxu0 0.0
      %823 = vmatmul.mubr.f32.gmra.mrb[0].mxu0 %v650
      %v824 = vpop.f32.mrb[0].mxu0
      %v825 = vadd.f32 0.0, %v824
      %v826 = vpop.f32.mrb[0].mxu0
      %827 = vmatprep.mubr.f32.mxu0 0.0
      %828 = vmatmul.mubr.f32.gmra.mrb[0].mxu0 %v651
      %v829 = vpop.f32.mrb[0].mxu0
      %v830 = vadd.f32 0.0, %v829
      %v831 = vpop.f32.mrb[0].mxu0
      %832 = vmatprep.mubr.f32.mxu0 0.0
      %833 = vmatmul.mubr.f32.gmra.mrb[0].mxu0 %v652
      %v834 = vpop.f32.mrb[0].mxu0
      %v835 = vadd.f32 0.0, %v834
      %v836 = vpop.f32.mrb[0].mxu0
      %837 = vmatprep.mubr.f32.mxu0 0.0
      %838 = vmatmul.mubr.f32.gmra.mrb[0].mxu0 %v653
      %v839 = vpop.f32.mrb[0].mxu0
      %v840 = vadd.f32 0.0, %v839
      %v841 = vpop.f32.mrb[0].mxu0
      %842 = vmatprep.mubr.f32.mxu0 0.0
      %843 = vmatmul.mubr.f32.gmra.mrb[0].mxu0 %v654
      %v844 = vpop.f32.mrb[0].mxu0
      %v845 = vadd.f32 0.0, %v844
      %v846 = vpop.f32.mrb[0].mxu0
      %847 = vmatprep.mubr.f32.mxu0 0.0
      %848 = vmatmul.mubr.f32.gmra.mrb[0].mxu0 %v655
      %v849 = vpop.f32.mrb[0].mxu0
      %v850 = vadd.f32 0.0, %v849
      %v851 = vpop.f32.mrb[0].mxu0
      %852 = vmatprep.mubr.f32.mxu0 0.0
      %853 = vmatmul.mubr.f32.gmra.mrb[0].mxu0 %v656
      %v854 = vpop.f32.mrb[0].mxu0
      %v855 = vadd.f32 0.0, %v854
      %v856 = vpop.f32.mrb[0].mxu0
      %857 = vdwg.mxu0
      %v858 = vrot.slane %v740, 7
      %v859 = vrot.slane %v745, 7
      %v860 = vrot.slane %v750, 7
      %v861 = vrot.slane %v755, 7
      %v862 = vrot.slane %v760, 7
      %v863 = vrot.slane %v765, 7
      %v864 = vrot.slane %v770, 7
      %v865 = vrot.slane %v775, 7
      %v866 = vrot.slane %v780, 7
      %v867 = vrot.slane %v785, 7
      %v868 = vrot.slane %v790, 7
      %v869 = vrot.slane %v795, 7
      %v870 = vrot.slane %v800, 7
      %v871 = vrot.slane %v805, 7
      %v872 = vrot.slane %v810, 7
      %v873 = vrot.slane %v815, 7
      %v874 = vrot.slane %v820, 7
      %v875 = vrot.slane %v825, 7
      %v876 = vrot.slane %v830, 7
      %v877 = vrot.slane %v835, 7
      %v878 = vrot.slane %v840, 7
      %v879 = vrot.slane %v845, 7
      %v880 = vrot.slane %v850, 7
      %v881 = vrot.slane %v855, 7
      %v882 = vlaneseq
      %v883 = vshrl.u32 %v882, 7
      %vm884 = vcmp.lt.s32.totalorder %v883, 1
      %v885 = vsel %vm884, %v879, %v880
      %v886 = vsel %vm884, %v878, %v879
      %v887 = vsel %vm884, %v876, %v877
      %v888 = vsel %vm884, %v875, %v876
      %v889 = vsel %vm884, %v873, %v874
      %v890 = vsel %vm884, %v872, %v873
      %v891 = vsel %vm884, %v870, %v871
      %v892 = vsel %vm884, %v869, %v870
      %v893 = vsel %vm884, %v867, %v868
      %v894 = vsel %vm884, %v866, %v867
      %v895 = vsel %vm884, %v864, %v865
      %v896 = vsel %vm884, %v863, %v864
      %v897 = vsel %vm884, %v861, %v862
      %v898 = vsel %vm884, %v860, %v861
      %v899 = vsel %vm884, %v858, %v859
      %v900 = vsel %vm884, %v881, %v858
      %s901 = scalar_lea.vmem %s1, 128
      %v902 = vld [vmem:[%s901] sm:$0xff]
      %v903 = vld [vmem:[%s901 + $0x8] sm:$0xff]
      %v904 = vld [vmem:[%s901 + $0x10] sm:$0xff]
      %v905 = vld [vmem:[%s901 + $0x18] sm:$0xff]
      %v906 = vld [vmem:[%s901 + $0x20] sm:$0xff]
      %v907 = vld [vmem:[%s901 + $0x28] sm:$0xff]
      %v908 = vld [vmem:[%s901 + $0x30] sm:$0xff]
      %v909 = vld [vmem:[%s901 + $0x38] sm:$0xff]
      %v910 = vld [vmem:[%s901 + $0x40] sm:$0xff]
      %v911 = vld [vmem:[%s901 + $0x48] sm:$0xff]
      %v912 = vld [vmem:[%s901 + $0x50] sm:$0xff]
      %v913 = vld [vmem:[%s901 + $0x58] sm:$0xff]
      %v914 = vld [vmem:[%s901 + $0x60] sm:$0xff]
      %v915 = vld [vmem:[%s901 + $0x68] sm:$0xff]
      %v916 = vld [vmem:[%s901 + $0x70] sm:$0xff]
      %v917 = vld [vmem:[%s901 + $0x78] sm:$0xff]
      %918 = vmatprep.subr.mxu0 0.0
      %919 = vmatpush1.msra.mxu0 %v902
      %920 = vmatprep.subr.mxu0 0.0
      %921 = vmatpush1.msra.mxu0 %v903
      %922 = vmatprep.subr.mxu0 0.0
      %923 = vmatpush1.msra.mxu0 %v904
      %924 = vmatprep.subr.mxu0 0.0
      %925 = vmatpush1.msra.mxu0 %v905
      %926 = vmatprep.subr.mxu0 0.0
      %927 = vmatpush1.msra.mxu0 %v906
      %928 = vmatprep.subr.mxu0 0.0
      %929 = vmatpush1.msra.mxu0 %v907
      %930 = vmatprep.subr.mxu0 0.0
      %931 = vmatpush1.msra.mxu0 %v908
      %932 = vmatprep.subr.mxu0 0.0
      %933 = vmatpush1.msra.mxu0 %v909
      %934 = vmatprep.subr.mxu0 0.0
      %935 = vmatpush1.msra.mxu0 %v910
      %936 = vmatprep.subr.mxu0 0.0
      %937 = vmatpush1.msra.mxu0 %v911
      %938 = vmatprep.subr.mxu0 0.0
      %939 = vmatpush1.msra.mxu0 %v912
      %940 = vmatprep.subr.mxu0 0.0
      %941 = vmatpush1.msra.mxu0 %v913
      %942 = vmatprep.subr.mxu0 0.0
      %943 = vmatpush1.msra.mxu0 %v914
      %944 = vmatprep.subr.mxu0 0.0
      %945 = vmatpush1.msra.mxu0 %v915
      %946 = vmatprep.subr.mxu0 0.0
      %947 = vmatpush1.msra.mxu0 %v916
      %948 = vmatprep.subr.mxu0 0.0
      %949 = vmatpush1.msra.mxu0 %v917
      %950 = vmatprep.subr.mxu0 0.0
      %951 = vmatpush1.msra.mxu0 0.0
      %952 = vmatprep.subr.mxu0 0.0
      %953 = vmatpush1.msra.mxu0 0.0
      %954 = vmatprep.subr.mxu0 0.0
      %955 = vmatpush1.msra.mxu0 0.0
      %956 = vmatprep.subr.mxu0 0.0
      %957 = vmatpush1.msra.mxu0 0.0
      %958 = vmatprep.subr.mxu0 0.0
      %959 = vmatpush1.msra.mxu0 0.0
      %960 = vmatprep.subr.mxu0 0.0
      %961 = vmatpush1.msra.mxu0 0.0
      %962 = vmatprep.subr.mxu0 0.0
      %963 = vmatpush1.msra.mxu0 0.0
      %964 = vmatprep.subr.mxu0 0.0
      %965 = vmatpush1.msra.mxu0 0.0
      %966 = vmatprep.subr.mxu0 0.0
      %967 = vmatpush1.msra.mxu0 0.0
      %968 = vmatprep.subr.mxu0 0.0
      %969 = vmatpush1.msra.mxu0 0.0
      %970 = vmatprep.subr.mxu0 0.0
      %971 = vmatpush1.msra.mxu0 0.0
      %972 = vmatprep.subr.mxu0 0.0
      %973 = vmatpush1.msra.mxu0 0.0
      %974 = vmatprep.subr.mxu0 0.0
      %975 = vmatpush1.msra.mxu0 0.0
      %976 = vmatprep.subr.mxu0 0.0
      %977 = vmatpush1.msra.mxu0 0.0
      %978 = vmatprep.subr.mxu0 0.0
      %979 = vmatpush1.msra.mxu0 0.0
      %980 = vmatprep.subr.mxu0 0.0
      %981 = vmatpush1.msra.mxu0 0.0
      %982 = vmatprep.mubr.f32.mxu0 0.0
      %983 = vmatmul.mubr.f32.gmra.mrb[0].mxu0 %v633
      %v984 = vpop.f32.mrb[0].mxu0
      %v985 = vadd.f32 0.0, %v984
      %v986 = vpop.f32.mrb[0].mxu0
      %987 = vmatprep.mubr.f32.mxu0 0.0
      %988 = vmatmul.mubr.f32.gmra.mrb[0].mxu0 %v634
      %v989 = vpop.f32.mrb[0].mxu0
      %v990 = vadd.f32 0.0, %v989
      %v991 = vpop.f32.mrb[0].mxu0
      %992 = vmatprep.mubr.f32.mxu0 0.0
      %993 = vmatmul.mubr.f32.gmra.mrb[0].mxu0 %v635
      %v994 = vpop.f32.mrb[0].mxu0
      %v995 = vpop.f32.mrb[0].mxu0
      %996 = vmatprep.mubr.f32.mxu0 0.0
      %997 = vmatmul.mubr.f32.gmra.mrb[0].mxu0 %v636
      %v998 = vpop.f32.mrb[0].mxu0
      %v999 = vadd.f32 0.0, %v998
      %v1000 = vpop.f32.mrb[0].mxu0
      %1001 = vmatprep.mubr.f32.mxu0 0.0
      %1002 = vmatmul.mubr.f32.gmra.mrb[0].mxu0 %v637
      %v1003 = vpop.f32.mrb[0].mxu0
      %v1004 = vadd.f32 0.0, %v1003
      %v1005 = vpop.f32.mrb[0].mxu0
      %1006 = vmatprep.mubr.f32.mxu0 0.0
      %1007 = vmatmul.mubr.f32.gmra.mrb[0].mxu0 %v638
      %v1008 = vpop.f32.mrb[0].mxu0
      %v1009 = vpop.f32.mrb[0].mxu0
      %1010 = vmatprep.mubr.f32.mxu0 0.0
      %1011 = vmatmul.mubr.f32.gmra.mrb[0].mxu0 %v639
      %v1012 = vpop.f32.mrb[0].mxu0
      %v1013 = vadd.f32 0.0, %v1012
      %v1014 = vpop.f32.mrb[0].mxu0
      %1015 = vmatprep.mubr.f32.mxu0 0.0
      %1016 = vmatmul.mubr.f32.gmra.mrb[0].mxu0 %v640
      %v1017 = vpop.f32.mrb[0].mxu0
      %v1018 = vadd.f32 0.0, %v1017
      %v1019 = vpop.f32.mrb[0].mxu0
      %1020 = vmatprep.mubr.f32.mxu0 0.0
      %1021 = vmatmul.mubr.f32.gmra.mrb[0].mxu0 %v641
      %v1022 = vpop.f32.mrb[0].mxu0
      %v1023 = vpop.f32.mrb[0].mxu0
      %1024 = vmatprep.mubr.f32.mxu0 0.0
      %1025 = vmatmul.mubr.f32.gmra.mrb[0].mxu0 %v642
      %v1026 = vpop.f32.mrb[0].mxu0
      %v1027 = vadd.f32 0.0, %v1026
      %v1028 = vpop.f32.mrb[0].mxu0
      %1029 = vmatprep.mubr.f32.mxu0 0.0
      %1030 = vmatmul.mubr.f32.gmra.mrb[0].mxu0 %v643
      %v1031 = vpop.f32.mrb[0].mxu0
      %v1032 = vadd.f32 0.0, %v1031
      %v1033 = vpop.f32.mrb[0].mxu0
      %1034 = vmatprep.mubr.f32.mxu0 0.0
      %1035 = vmatmul.mubr.f32.gmra.mrb[0].mxu0 %v644
      %v1036 = vpop.f32.mrb[0].mxu0
      %v1037 = vpop.f32.mrb[0].mxu0
      %1038 = vmatprep.mubr.f32.mxu0 0.0
      %1039 = vmatmul.mubr.f32.gmra.mrb[0].mxu0 %v645
      %v1040 = vpop.f32.mrb[0].mxu0
      %v1041 = vadd.f32 0.0, %v1040
      %v1042 = vpop.f32.mrb[0].mxu0
      %1043 = vmatprep.mubr.f32.mxu0 0.0
      %1044 = vmatmul.mubr.f32.gmra.mrb[0].mxu0 %v646
      %v1045 = vpop.f32.mrb[0].mxu0
      %v1046 = vadd.f32 0.0, %v1045
      %v1047 = vpop.f32.mrb[0].mxu0
      %1048 = vmatprep.mubr.f32.mxu0 0.0
      %1049 = vmatmul.mubr.f32.gmra.mrb[0].mxu0 %v647
      %v1050 = vpop.f32.mrb[0].mxu0
      %v1051 = vpop.f32.mrb[0].mxu0
      %1052 = vmatprep.mubr.f32.mxu0 0.0
      %1053 = vmatmul.mubr.f32.gmra.mrb[0].mxu0 %v648
      %v1054 = vpop.f32.mrb[0].mxu0
      %v1055 = vadd.f32 0.0, %v1054
      %v1056 = vpop.f32.mrb[0].mxu0
      %1057 = vmatprep.mubr.f32.mxu0 0.0
      %1058 = vmatmul.mubr.f32.gmra.mrb[0].mxu0 %v649
      %v1059 = vpop.f32.mrb[0].mxu0
      %v1060 = vadd.f32 0.0, %v1059
      %v1061 = vpop.f32.mrb[0].mxu0
      %1062 = vmatprep.mubr.f32.mxu0 0.0
      %1063 = vmatmul.mubr.f32.gmra.mrb[0].mxu0 %v650
      %v1064 = vpop.f32.mrb[0].mxu0
      %v1065 = vpop.f32.mrb[0].mxu0
      %1066 = vmatprep.mubr.f32.mxu0 0.0
      %1067 = vmatmul.mubr.f32.gmra.mrb[0].mxu0 %v651
      %v1068 = vpop.f32.mrb[0].mxu0
      %v1069 = vadd.f32 0.0, %v1068
      %v1070 = vpop.f32.mrb[0].mxu0
      %1071 = vmatprep.mubr.f32.mxu0 0.0
      %1072 = vmatmul.mubr.f32.gmra.mrb[0].mxu0 %v652
      %v1073 = vpop.f32.mrb[0].mxu0
      %v1074 = vadd.f32 0.0, %v1073
      %v1075 = vpop.f32.mrb[0].mxu0
      %1076 = vmatprep.mubr.f32.mxu0 0.0
      %1077 = vmatmul.mubr.f32.gmra.mrb[0].mxu0 %v653
      %v1078 = vpop.f32.mrb[0].mxu0
      %v1079 = vpop.f32.mrb[0].mxu0
      %1080 = vmatprep.mubr.f32.mxu0 0.0
      %1081 = vmatmul.mubr.f32.gmra.mrb[0].mxu0 %v654
      %v1082 = vpop.f32.mrb[0].mxu0
      %v1083 = vadd.f32 0.0, %v1082
      %v1084 = vpop.f32.mrb[0].mxu0
      %1085 = vmatprep.mubr.f32.mxu0 0.0
      %1086 = vmatmul.mubr.f32.gmra.mrb[0].mxu0 %v655
      %v1087 = vpop.f32.mrb[0].mxu0
      %v1088 = vadd.f32 0.0, %v1087
      %v1089 = vpop.f32.mrb[0].mxu0
      %1090 = vmatprep.mubr.f32.mxu0 0.0
      %1091 = vmatmul.mubr.f32.gmra.mrb[0].mxu0 %v656
      %v1092 = vpop.f32.mrb[0].mxu0
      %v1093 = vpop.f32.mrb[0].mxu0
      %1094 = vdwg.mxu0
      %v1095 = vadd.f32 %v900, %v985
      %v1096 = vadd.f32 %v899, %v990
      %v1097 = vadd.f32 %v898, %v999
      %v1098 = vadd.f32 %v897, %v1004
      %v1099 = vadd.f32 %v896, %v1013
      %v1100 = vadd.f32 %v895, %v1018
      %v1101 = vadd.f32 %v894, %v1027
      %v1102 = vadd.f32 %v893, %v1032
      %v1103 = vadd.f32 %v892, %v1041
      %v1104 = vadd.f32 %v891, %v1046
      %v1105 = vadd.f32 %v890, %v1055
      %v1106 = vadd.f32 %v889, %v1060
      %v1107 = vadd.f32 %v888, %v1069
      %v1108 = vadd.f32 %v887, %v1074
      %v1109 = vadd.f32 %v886, %v1083
      %v1110 = vadd.f32 %v885, %v1088
      %s1111 = scalar_lea.vmem %s1, 256
      %v1112 = vld [vmem:[%s1111] sm:$0xff]
      %v1113 = vld [vmem:[%s1111 + $0x8] sm:$0xff]
      %v1114 = vld [vmem:[%s1111 + $0x10] sm:$0xff]
      %v1115 = vld [vmem:[%s1111 + $0x18] sm:$0xff]
      %v1116 = vld [vmem:[%s1111 + $0x20] sm:$0xff]
      %v1117 = vld [vmem:[%s1111 + $0x28] sm:$0xff]
      %v1118 = vld [vmem:[%s1111 + $0x30] sm:$0xff]
      %v1119 = vld [vmem:[%s1111 + $0x38] sm:$0xff]
      %v1120 = vld [vmem:[%s1111 + $0x40] sm:$0xff]
      %v1121 = vld [vmem:[%s1111 + $0x48] sm:$0xff]
      %v1122 = vld [vmem:[%s1111 + $0x50] sm:$0xff]
      %v1123 = vld [vmem:[%s1111 + $0x58] sm:$0xff]
      %v1124 = vld [vmem:[%s1111 + $0x60] sm:$0xff]
      %v1125 = vld [vmem:[%s1111 + $0x68] sm:$0xff]
      %v1126 = vld [vmem:[%s1111 + $0x70] sm:$0xff]
      %v1127 = vld [vmem:[%s1111 + $0x78] sm:$0xff]
      %1128 = vmatprep.subr.mxu0 0.0
      %1129 = vmatpush1.msra.mxu0 %v1112
      %1130 = vmatprep.subr.mxu0 0.0
      %1131 = vmatpush1.msra.mxu0 %v1113
      %1132 = vmatprep.subr.mxu0 0.0
      %1133 = vmatpush1.msra.mxu0 %v1114
      %1134 = vmatprep.subr.mxu0 0.0
      %1135 = vmatpush1.msra.mxu0 %v1115
      %1136 = vmatprep.subr.mxu0 0.0
      %1137 = vmatpush1.msra.mxu0 %v1116
      %1138 = vmatprep.subr.mxu0 0.0
      %1139 = vmatpush1.msra.mxu0 %v1117
      %1140 = vmatprep.subr.mxu0 0.0
      %1141 = vmatpush1.msra.mxu0 %v1118
      %1142 = vmatprep.subr.mxu0 0.0
      %1143 = vmatpush1.msra.mxu0 %v1119
      %1144 = vmatprep.subr.mxu0 0.0
      %1145 = vmatpush1.msra.mxu0 %v1120
      %1146 = vmatprep.subr.mxu0 0.0
      %1147 = vmatpush1.msra.mxu0 %v1121
      %1148 = vmatprep.subr.mxu0 0.0
      %1149 = vmatpush1.msra.mxu0 %v1122
      %1150 = vmatprep.subr.mxu0 0.0
      %1151 = vmatpush1.msra.mxu0 %v1123
      %1152 = vmatprep.subr.mxu0 0.0
      %1153 = vmatpush1.msra.mxu0 %v1124
      %1154 = vmatprep.subr.mxu0 0.0
      %1155 = vmatpush1.msra.mxu0 %v1125
      %1156 = vmatprep.subr.mxu0 0.0
      %1157 = vmatpush1.msra.mxu0 %v1126
      %1158 = vmatprep.subr.mxu0 0.0
      %1159 = vmatpush1.msra.mxu0 %v1127
      %1160 = vmatprep.subr.mxu0 0.0
      %1161 = vmatpush1.msra.mxu0 0.0
      %1162 = vmatprep.subr.mxu0 0.0
      %1163 = vmatpush1.msra.mxu0 0.0
      %1164 = vmatprep.subr.mxu0 0.0
      %1165 = vmatpush1.msra.mxu0 0.0
      %1166 = vmatprep.subr.mxu0 0.0
      %1167 = vmatpush1.msra.mxu0 0.0
      %1168 = vmatprep.subr.mxu0 0.0
      %1169 = vmatpush1.msra.mxu0 0.0
      %1170 = vmatprep.subr.mxu0 0.0
      %1171 = vmatpush1.msra.mxu0 0.0
      %1172 = vmatprep.subr.mxu0 0.0
      %1173 = vmatpush1.msra.mxu0 0.0
      %1174 = vmatprep.subr.mxu0 0.0
      %1175 = vmatpush1.msra.mxu0 0.0
      %1176 = vmatprep.subr.mxu0 0.0
      %1177 = vmatpush1.msra.mxu0 0.0
      %1178 = vmatprep.subr.mxu0 0.0
      %1179 = vmatpush1.msra.mxu0 0.0
      %1180 = vmatprep.subr.mxu0 0.0
      %1181 = vmatpush1.msra.mxu0 0.0
      %1182 = vmatprep.subr.mxu0 0.0
      %1183 = vmatpush1.msra.mxu0 0.0
      %1184 = vmatprep.subr.mxu0 0.0
      %1185 = vmatpush1.msra.mxu0 0.0
      %1186 = vmatprep.subr.mxu0 0.0
      %1187 = vmatpush1.msra.mxu0 0.0
      %1188 = vmatprep.subr.mxu0 0.0
      %1189 = vmatpush1.msra.mxu0 0.0
      %1190 = vmatprep.subr.mxu0 0.0
      %1191 = vmatpush1.msra.mxu0 0.0
      %1192 = vmatprep.mubr.f32.mxu0 0.0
      %1193 = vmatmul.mubr.f32.gmra.mrb[0].mxu0 %v633
      %v1194 = vpop.f32.mrb[0].mxu0
      %v1195 = vadd.f32 0.0, %v1194
      %v1196 = vpop.f32.mrb[0].mxu0
      %1197 = vmatprep.mubr.f32.mxu0 0.0
      %1198 = vmatmul.mubr.f32.gmra.mrb[0].mxu0 %v634
      %v1199 = vpop.f32.mrb[0].mxu0
      %v1200 = vadd.f32 0.0, %v1199
      %v1201 = vpop.f32.mrb[0].mxu0
      %1202 = vmatprep.mubr.f32.mxu0 0.0
      %1203 = vmatmul.mubr.f32.gmra.mrb[0].mxu0 %v635
      %v1204 = vpop.f32.mrb[0].mxu0
      %v1205 = vadd.f32 0.0, %v1204
      %v1206 = vpop.f32.mrb[0].mxu0
      %1207 = vmatprep.mubr.f32.mxu0 0.0
      %1208 = vmatmul.mubr.f32.gmra.mrb[0].mxu0 %v636
      %v1209 = vpop.f32.mrb[0].mxu0
      %v1210 = vadd.f32 0.0, %v1209
      %v1211 = vpop.f32.mrb[0].mxu0
      %1212 = vmatprep.mubr.f32.mxu0 0.0
      %1213 = vmatmul.mubr.f32.gmra.mrb[0].mxu0 %v637
      %v1214 = vpop.f32.mrb[0].mxu0
      %v1215 = vadd.f32 0.0, %v1214
      %v1216 = vpop.f32.mrb[0].mxu0
      %1217 = vmatprep.mubr.f32.mxu0 0.0
      %1218 = vmatmul.mubr.f32.gmra.mrb[0].mxu0 %v638
      %v1219 = vpop.f32.mrb[0].mxu0
      %v1220 = vadd.f32 0.0, %v1219
      %v1221 = vpop.f32.mrb[0].mxu0
      %1222 = vmatprep.mubr.f32.mxu0 0.0
      %1223 = vmatmul.mubr.f32.gmra.mrb[0].mxu0 %v639
      %v1224 = vpop.f32.mrb[0].mxu0
      %v1225 = vadd.f32 0.0, %v1224
      %v1226 = vpop.f32.mrb[0].mxu0
      %1227 = vmatprep.mubr.f32.mxu0 0.0
      %1228 = vmatmul.mubr.f32.gmra.mrb[0].mxu0 %v640
      %v1229 = vpop.f32.mrb[0].mxu0
      %v1230 = vadd.f32 0.0, %v1229
      %v1231 = vpop.f32.mrb[0].mxu0
      %1232 = vmatprep.mubr.f32.mxu0 0.0
      %1233 = vmatmul.mubr.f32.gmra.mrb[0].mxu0 %v641
      %v1234 = vpop.f32.mrb[0].mxu0
      %v1235 = vadd.f32 0.0, %v1234
      %v1236 = vpop.f32.mrb[0].mxu0
      %1237 = vmatprep.mubr.f32.mxu0 0.0
      %1238 = vmatmul.mubr.f32.gmra.mrb[0].mxu0 %v642
      %v1239 = vpop.f32.mrb[0].mxu0
      %v1240 = vadd.f32 0.0, %v1239
      %v1241 = vpop.f32.mrb[0].mxu0
      %1242 = vmatprep.mubr.f32.mxu0 0.0
      %1243 = vmatmul.mubr.f32.gmra.mrb[0].mxu0 %v643
      %v1244 = vpop.f32.mrb[0].mxu0
      %v1245 = vadd.f32 0.0, %v1244
      %v1246 = vpop.f32.mrb[0].mxu0
      %1247 = vmatprep.mubr.f32.mxu0 0.0
      %1248 = vmatmul.mubr.f32.gmra.mrb[0].mxu0 %v644
      %v1249 = vpop.f32.mrb[0].mxu0
      %v1250 = vadd.f32 0.0, %v1249
      %v1251 = vpop.f32.mrb[0].mxu0
      %1252 = vmatprep.mubr.f32.mxu0 0.0
      %1253 = vmatmul.mubr.f32.gmra.mrb[0].mxu0 %v645
      %v1254 = vpop.f32.mrb[0].mxu0
      %v1255 = vadd.f32 0.0, %v1254
      %v1256 = vpop.f32.mrb[0].mxu0
      %1257 = vmatprep.mubr.f32.mxu0 0.0
      %1258 = vmatmul.mubr.f32.gmra.mrb[0].mxu0 %v646
      %v1259 = vpop.f32.mrb[0].mxu0
      %v1260 = vadd.f32 0.0, %v1259
      %v1261 = vpop.f32.mrb[0].mxu0
      %1262 = vmatprep.mubr.f32.mxu0 0.0
      %1263 = vmatmul.mubr.f32.gmra.mrb[0].mxu0 %v647
      %v1264 = vpop.f32.mrb[0].mxu0
      %v1265 = vadd.f32 0.0, %v1264
      %v1266 = vpop.f32.mrb[0].mxu0
      %1267 = vmatprep.mubr.f32.mxu0 0.0
      %1268 = vmatmul.mubr.f32.gmra.mrb[0].mxu0 %v648
      %v1269 = vpop.f32.mrb[0].mxu0
      %v1270 = vadd.f32 0.0, %v1269
      %v1271 = vpop.f32.mrb[0].mxu0
      %1272 = vmatprep.mubr.f32.mxu0 0.0
      %1273 = vmatmul.mubr.f32.gmra.mrb[0].mxu0 %v649
      %v1274 = vpop.f32.mrb[0].mxu0
      %v1275 = vadd.f32 0.0, %v1274
      %v1276 = vpop.f32.mrb[0].mxu0
      %1277 = vmatprep.mubr.f32.mxu0 0.0
      %1278 = vmatmul.mubr.f32.gmra.mrb[0].mxu0 %v650
      %v1279 = vpop.f32.mrb[0].mxu0
      %v1280 = vadd.f32 0.0, %v1279
      %v1281 = vpop.f32.mrb[0].mxu0
      %1282 = vmatprep.mubr.f32.mxu0 0.0
      %1283 = vmatmul.mubr.f32.gmra.mrb[0].mxu0 %v651
      %v1284 = vpop.f32.mrb[0].mxu0
      %v1285 = vadd.f32 0.0, %v1284
      %v1286 = vpop.f32.mrb[0].mxu0
      %1287 = vmatprep.mubr.f32.mxu0 0.0
      %1288 = vmatmul.mubr.f32.gmra.mrb[0].mxu0 %v652
      %v1289 = vpop.f32.mrb[0].mxu0
      %v1290 = vadd.f32 0.0, %v1289
      %v1291 = vpop.f32.mrb[0].mxu0
      %1292 = vmatprep.mubr.f32.mxu0 0.0
      %1293 = vmatmul.mubr.f32.gmra.mrb[0].mxu0 %v653
      %v1294 = vpop.f32.mrb[0].mxu0
      %v1295 = vadd.f32 0.0, %v1294
      %v1296 = vpop.f32.mrb[0].mxu0
      %1297 = vmatprep.mubr.f32.mxu0 0.0
      %1298 = vmatmul.mubr.f32.gmra.mrb[0].mxu0 %v654
      %v1299 = vpop.f32.mrb[0].mxu0
      %v1300 = vadd.f32 0.0, %v1299
      %v1301 = vpop.f32.mrb[0].mxu0
      %1302 = vmatprep.mubr.f32.mxu0 0.0
      %1303 = vmatmul.mubr.f32.gmra.mrb[0].mxu0 %v655
      %v1304 = vpop.f32.mrb[0].mxu0
      %v1305 = vadd.f32 0.0, %v1304
      %v1306 = vpop.f32.mrb[0].mxu0
      %1307 = vmatprep.mubr.f32.mxu0 0.0
      %1308 = vmatmul.mubr.f32.gmra.mrb[0].mxu0 %v656
      %v1309 = vpop.f32.mrb[0].mxu0
      %v1310 = vadd.f32 0.0, %v1309
      %v1311 = vpop.f32.mrb[0].mxu0
      %1312 = vdwg.mxu0
      %v1313 = vrot.slane %v1195, 1
      %v1314 = vrot.slane %v1200, 1
      %v1315 = vrot.slane %v1205, 1
      %v1316 = vrot.slane %v1210, 1
      %v1317 = vrot.slane %v1215, 1
      %v1318 = vrot.slane %v1220, 1
      %v1319 = vrot.slane %v1225, 1
      %v1320 = vrot.slane %v1230, 1
      %v1321 = vrot.slane %v1235, 1
      %v1322 = vrot.slane %v1240, 1
      %v1323 = vrot.slane %v1245, 1
      %v1324 = vrot.slane %v1250, 1
      %v1325 = vrot.slane %v1255, 1
      %v1326 = vrot.slane %v1260, 1
      %v1327 = vrot.slane %v1265, 1
      %v1328 = vrot.slane %v1270, 1
      %v1329 = vrot.slane %v1275, 1
      %v1330 = vrot.slane %v1280, 1
      %v1331 = vrot.slane %v1285, 1
      %v1332 = vrot.slane %v1290, 1
      %v1333 = vrot.slane %v1295, 1
      %v1334 = vrot.slane %v1300, 1
      %v1335 = vrot.slane %v1305, 1
      %v1336 = vrot.slane %v1310, 1
      %vm1337 = vcmp.lt.s32.totalorder %v883, 7
      %v1338 = vsel %vm1337, %v1335, %v1336
      %v1339 = vsel %vm1337, %v1334, %v1335
      %v1340 = vsel %vm1337, %v1332, %v1333
      %v1341 = vsel %vm1337, %v1331, %v1332
      %v1342 = vsel %vm1337, %v1329, %v1330
      %v1343 = vsel %vm1337, %v1328, %v1329
      %v1344 = vsel %vm1337, %v1326, %v1327
      %v1345 = vsel %vm1337, %v1325, %v1326
      %v1346 = vsel %vm1337, %v1323, %v1324
      %v1347 = vsel %vm1337, %v1322, %v1323
      %v1348 = vsel %vm1337, %v1320, %v1321
      %v1349 = vsel %vm1337, %v1319, %v1320
      %v1350 = vsel %vm1337, %v1317, %v1318
      %v1351 = vsel %vm1337, %v1316, %v1317
      %v1352 = vsel %vm1337, %v1314, %v1315
      %v1353 = vsel %vm1337, %v1313, %v1314
      %v1354 = vadd.f32 %v1095, %v1353
      %v1355 = vadd.f32 %v1096, %v1352
      %v1356 = vadd.f32 %v1097, %v1351
      %v1357 = vadd.f32 %v1098, %v1350
      %v1358 = vadd.f32 %v1099, %v1349
      %v1359 = vadd.f32 %v1100, %v1348
      %v1360 = vadd.f32 %v1101, %v1347
      %v1361 = vadd.f32 %v1102, %v1346
      %v1362 = vadd.f32 %v1103, %v1345
      %v1363 = vadd.f32 %v1104, %v1344
      %v1364 = vadd.f32 %v1105, %v1343
      %v1365 = vadd.f32 %v1106, %v1342
      %v1366 = vadd.f32 %v1107, %v1341
      %v1367 = vadd.f32 %v1108, %v1340
      %v1368 = vadd.f32 %v1109, %v1339
      %v1369 = vadd.f32 %v1110, %v1338
      %v1370 = vld [vmem:[%s230] sm:$0xff]
      %v1371 = vld [vmem:[%s230 + $0x8] sm:$0xff]
      %v1372 = vld [vmem:[%s230 + $0x10] sm:$0xff]
      %v1373 = vld [vmem:[%s230 + $0x18] sm:$0xff]
      %v1374 = vld [vmem:[%s230 + $0x20] sm:$0xff]
      %v1375 = vld [vmem:[%s230 + $0x28] sm:$0xff]
      %v1376 = vld [vmem:[%s230 + $0x30] sm:$0xff]
      %v1377 = vld [vmem:[%s230 + $0x38] sm:$0xff]
      %v1378 = vld [vmem:[%s230 + $0x40] sm:$0xff]
      %v1379 = vld [vmem:[%s230 + $0x48] sm:$0xff]
      %v1380 = vld [vmem:[%s230 + $0x50] sm:$0xff]
      %v1381 = vld [vmem:[%s230 + $0x58] sm:$0xff]
      %v1382 = vld [vmem:[%s230 + $0x60] sm:$0xff]
      %v1383 = vld [vmem:[%s230 + $0x68] sm:$0xff]
      %v1384 = vld [vmem:[%s230 + $0x70] sm:$0xff]
      %v1385 = vld [vmem:[%s230 + $0x78] sm:$0xff]
      %v1386 = vld [vmem:[%s230 + $0x80] sm:$0xff]
      %v1387 = vld [vmem:[%s230 + $0x88] sm:$0xff]
      %v1388 = vld [vmem:[%s230 + $0x90] sm:$0xff]
      %v1389 = vld [vmem:[%s230 + $0x98] sm:$0xff]
      %v1390 = vld [vmem:[%s230 + $0xa0] sm:$0xff]
      %v1391 = vld [vmem:[%s230 + $0xa8] sm:$0xff]
      %v1392 = vld [vmem:[%s230 + $0xb0] sm:$0xff]
      %v1393 = vld [vmem:[%s230 + $0xb8] sm:$0xff]
      %s1394 = scalar_lea.vmem %s1, 384
      %v1395 = vld [vmem:[%s1394] sm:$0xff]
      %v1396 = vld [vmem:[%s1394 + $0x8] sm:$0xff]
      %v1397 = vld [vmem:[%s1394 + $0x10] sm:$0xff]
      %v1398 = vld [vmem:[%s1394 + $0x18] sm:$0xff]
      %v1399 = vld [vmem:[%s1394 + $0x20] sm:$0xff]
      %v1400 = vld [vmem:[%s1394 + $0x28] sm:$0xff]
      %v1401 = vld [vmem:[%s1394 + $0x30] sm:$0xff]
      %v1402 = vld [vmem:[%s1394 + $0x38] sm:$0xff]
      %v1403 = vld [vmem:[%s1394 + $0x40] sm:$0xff]
      %v1404 = vld [vmem:[%s1394 + $0x48] sm:$0xff]
      %v1405 = vld [vmem:[%s1394 + $0x50] sm:$0xff]
      %v1406 = vld [vmem:[%s1394 + $0x58] sm:$0xff]
      %v1407 = vld [vmem:[%s1394 + $0x60] sm:$0xff]
      %v1408 = vld [vmem:[%s1394 + $0x68] sm:$0xff]
      %v1409 = vld [vmem:[%s1394 + $0x70] sm:$0xff]
      %v1410 = vld [vmem:[%s1394 + $0x78] sm:$0xff]
      %1411 = vmatprep.subr.mxu0 0.0
      %1412 = vmatpush1.msra.mxu0 %v1395
      %1413 = vmatprep.subr.mxu0 0.0
      %1414 = vmatpush1.msra.mxu0 %v1396
      %1415 = vmatprep.subr.mxu0 0.0
      %1416 = vmatpush1.msra.mxu0 %v1397
      %1417 = vmatprep.subr.mxu0 0.0
      %1418 = vmatpush1.msra.mxu0 %v1398
      %1419 = vmatprep.subr.mxu0 0.0
      %1420 = vmatpush1.msra.mxu0 %v1399
      %1421 = vmatprep.subr.mxu0 0.0
      %1422 = vmatpush1.msra.mxu0 %v1400
      %1423 = vmatprep.subr.mxu0 0.0
      %1424 = vmatpush1.msra.mxu0 %v1401
      %1425 = vmatprep.subr.mxu0 0.0
      %1426 = vmatpush1.msra.mxu0 %v1402
      %1427 = vmatprep.subr.mxu0 0.0
      %1428 = vmatpush1.msra.mxu0 %v1403
      %1429 = vmatprep.subr.mxu0 0.0
      %1430 = vmatpush1.msra.mxu0 %v1404
      %1431 = vmatprep.subr.mxu0 0.0
      %1432 = vmatpush1.msra.mxu0 %v1405
      %1433 = vmatprep.subr.mxu0 0.0
      %1434 = vmatpush1.msra.mxu0 %v1406
      %1435 = vmatprep.subr.mxu0 0.0
      %1436 = vmatpush1.msra.mxu0 %v1407
      %1437 = vmatprep.subr.mxu0 0.0
      %1438 = vmatpush1.msra.mxu0 %v1408
      %1439 = vmatprep.subr.mxu0 0.0
      %1440 = vmatpush1.msra.mxu0 %v1409
      %1441 = vmatprep.subr.mxu0 0.0
      %1442 = vmatpush1.msra.mxu0 %v1410
      %1443 = vmatprep.subr.mxu0 0.0
      %1444 = vmatpush1.msra.mxu0 0.0
      %1445 = vmatprep.subr.mxu0 0.0
      %1446 = vmatpush1.msra.mxu0 0.0
      %1447 = vmatprep.subr.mxu0 0.0
      %1448 = vmatpush1.msra.mxu0 0.0
      %1449 = vmatprep.subr.mxu0 0.0
      %1450 = vmatpush1.msra.mxu0 0.0
      %1451 = vmatprep.subr.mxu0 0.0
      %1452 = vmatpush1.msra.mxu0 0.0
      %1453 = vmatprep.subr.mxu0 0.0
      %1454 = vmatpush1.msra.mxu0 0.0
      %1455 = vmatprep.subr.mxu0 0.0
      %1456 = vmatpush1.msra.mxu0 0.0
      %1457 = vmatprep.subr.mxu0 0.0
      %1458 = vmatpush1.msra.mxu0 0.0
      %1459 = vmatprep.subr.mxu0 0.0
      %1460 = vmatpush1.msra.mxu0 0.0
      %1461 = vmatprep.subr.mxu0 0.0
      %1462 = vmatpush1.msra.mxu0 0.0
      %1463 = vmatprep.subr.mxu0 0.0
      %1464 = vmatpush1.msra.mxu0 0.0
      %1465 = vmatprep.subr.mxu0 0.0
      %1466 = vmatpush1.msra.mxu0 0.0
      %1467 = vmatprep.subr.mxu0 0.0
      %1468 = vmatpush1.msra.mxu0 0.0
      %1469 = vmatprep.subr.mxu0 0.0
      %1470 = vmatpush1.msra.mxu0 0.0
      %1471 = vmatprep.subr.mxu0 0.0
      %1472 = vmatpush1.msra.mxu0 0.0
      %1473 = vmatprep.subr.mxu0 0.0
      %1474 = vmatpush1.msra.mxu0 0.0
      %1475 = vmatprep.mubr.f32.mxu0 0.0
      %1476 = vmatmul.mubr.f32.gmra.mrb[0].mxu0 %v1370
      %v1477 = vpop.f32.mrb[0].mxu0
      %v1478 = vadd.f32 0.0, %v1477
      %v1479 = vpop.f32.mrb[0].mxu0
      %1480 = vmatprep.mubr.f32.mxu0 0.0
      %1481 = vmatmul.mubr.f32.gmra.mrb[0].mxu0 %v1371
      %v1482 = vpop.f32.mrb[0].mxu0
      %v1483 = vadd.f32 0.0, %v1482
      %v1484 = vpop.f32.mrb[0].mxu0
      %1485 = vmatprep.mubr.f32.mxu0 0.0
      %1486 = vmatmul.mubr.f32.gmra.mrb[0].mxu0 %v1372
      %v1487 = vpop.f32.mrb[0].mxu0
      %v1488 = vadd.f32 0.0, %v1487
      %v1489 = vpop.f32.mrb[0].mxu0
      %1490 = vmatprep.mubr.f32.mxu0 0.0
      %1491 = vmatmul.mubr.f32.gmra.mrb[0].mxu0 %v1373
      %v1492 = vpop.f32.mrb[0].mxu0
      %v1493 = vadd.f32 0.0, %v1492
      %v1494 = vpop.f32.mrb[0].mxu0
      %1495 = vmatprep.mubr.f32.mxu0 0.0
      %1496 = vmatmul.mubr.f32.gmra.mrb[0].mxu0 %v1374
      %v1497 = vpop.f32.mrb[0].mxu0
      %v1498 = vadd.f32 0.0, %v1497
      %v1499 = vpop.f32.mrb[0].mxu0
      %1500 = vmatprep.mubr.f32.mxu0 0.0
      %1501 = vmatmul.mubr.f32.gmra.mrb[0].mxu0 %v1375
      %v1502 = vpop.f32.mrb[0].mxu0
      %v1503 = vadd.f32 0.0, %v1502
      %v1504 = vpop.f32.mrb[0].mxu0
      %1505 = vmatprep.mubr.f32.mxu0 0.0
      %1506 = vmatmul.mubr.f32.gmra.mrb[0].mxu0 %v1376
      %v1507 = vpop.f32.mrb[0].mxu0
      %v1508 = vadd.f32 0.0, %v1507
      %v1509 = vpop.f32.mrb[0].mxu0
      %1510 = vmatprep.mubr.f32.mxu0 0.0
      %1511 = vmatmul.mubr.f32.gmra.mrb[0].mxu0 %v1377
      %v1512 = vpop.f32.mrb[0].mxu0
      %v1513 = vadd.f32 0.0, %v1512
      %v1514 = vpop.f32.mrb[0].mxu0
      %1515 = vmatprep.mubr.f32.mxu0 0.0
      %1516 = vmatmul.mubr.f32.gmra.mrb[0].mxu0 %v1378
      %v1517 = vpop.f32.mrb[0].mxu0
      %v1518 = vadd.f32 0.0, %v1517
      %v1519 = vpop.f32.mrb[0].mxu0
      %1520 = vmatprep.mubr.f32.mxu0 0.0
      %1521 = vmatmul.mubr.f32.gmra.mrb[0].mxu0 %v1379
      %v1522 = vpop.f32.mrb[0].mxu0
      %v1523 = vadd.f32 0.0, %v1522
      %v1524 = vpop.f32.mrb[0].mxu0
      %1525 = vmatprep.mubr.f32.mxu0 0.0
      %1526 = vmatmul.mubr.f32.gmra.mrb[0].mxu0 %v1380
      %v1527 = vpop.f32.mrb[0].mxu0
      %v1528 = vadd.f32 0.0, %v1527
      %v1529 = vpop.f32.mrb[0].mxu0
      %1530 = vmatprep.mubr.f32.mxu0 0.0
      %1531 = vmatmul.mubr.f32.gmra.mrb[0].mxu0 %v1381
      %v1532 = vpop.f32.mrb[0].mxu0
      %v1533 = vadd.f32 0.0, %v1532
      %v1534 = vpop.f32.mrb[0].mxu0
      %1535 = vmatprep.mubr.f32.mxu0 0.0
      %1536 = vmatmul.mubr.f32.gmra.mrb[0].mxu0 %v1382
      %v1537 = vpop.f32.mrb[0].mxu0
      %v1538 = vadd.f32 0.0, %v1537
      %v1539 = vpop.f32.mrb[0].mxu0
      %1540 = vmatprep.mubr.f32.mxu0 0.0
      %1541 = vmatmul.mubr.f32.gmra.mrb[0].mxu0 %v1383
      %v1542 = vpop.f32.mrb[0].mxu0
      %v1543 = vadd.f32 0.0, %v1542
      %v1544 = vpop.f32.mrb[0].mxu0
      %1545 = vmatprep.mubr.f32.mxu0 0.0
      %1546 = vmatmul.mubr.f32.gmra.mrb[0].mxu0 %v1384
      %v1547 = vpop.f32.mrb[0].mxu0
      %v1548 = vadd.f32 0.0, %v1547
      %v1549 = vpop.f32.mrb[0].mxu0
      %1550 = vmatprep.mubr.f32.mxu0 0.0
      %1551 = vmatmul.mubr.f32.gmra.mrb[0].mxu0 %v1385
      %v1552 = vpop.f32.mrb[0].mxu0
      %v1553 = vadd.f32 0.0, %v1552
      %v1554 = vpop.f32.mrb[0].mxu0
      %1555 = vmatprep.mubr.f32.mxu0 0.0
      %1556 = vmatmul.mubr.f32.gmra.mrb[0].mxu0 %v1386
      %v1557 = vpop.f32.mrb[0].mxu0
      %v1558 = vadd.f32 0.0, %v1557
      %v1559 = vpop.f32.mrb[0].mxu0
      %1560 = vmatprep.mubr.f32.mxu0 0.0
      %1561 = vmatmul.mubr.f32.gmra.mrb[0].mxu0 %v1387
      %v1562 = vpop.f32.mrb[0].mxu0
      %v1563 = vadd.f32 0.0, %v1562
      %v1564 = vpop.f32.mrb[0].mxu0
      %1565 = vmatprep.mubr.f32.mxu0 0.0
      %1566 = vmatmul.mubr.f32.gmra.mrb[0].mxu0 %v1388
      %v1567 = vpop.f32.mrb[0].mxu0
      %v1568 = vadd.f32 0.0, %v1567
      %v1569 = vpop.f32.mrb[0].mxu0
      %1570 = vmatprep.mubr.f32.mxu0 0.0
      %1571 = vmatmul.mubr.f32.gmra.mrb[0].mxu0 %v1389
      %v1572 = vpop.f32.mrb[0].mxu0
      %v1573 = vadd.f32 0.0, %v1572
      %v1574 = vpop.f32.mrb[0].mxu0
      %1575 = vmatprep.mubr.f32.mxu0 0.0
      %1576 = vmatmul.mubr.f32.gmra.mrb[0].mxu0 %v1390
      %v1577 = vpop.f32.mrb[0].mxu0
      %v1578 = vadd.f32 0.0, %v1577
      %v1579 = vpop.f32.mrb[0].mxu0
      %1580 = vmatprep.mubr.f32.mxu0 0.0
      %1581 = vmatmul.mubr.f32.gmra.mrb[0].mxu0 %v1391
      %v1582 = vpop.f32.mrb[0].mxu0
      %v1583 = vadd.f32 0.0, %v1582
      %v1584 = vpop.f32.mrb[0].mxu0
      %1585 = vmatprep.mubr.f32.mxu0 0.0
      %1586 = vmatmul.mubr.f32.gmra.mrb[0].mxu0 %v1392
      %v1587 = vpop.f32.mrb[0].mxu0
      %v1588 = vadd.f32 0.0, %v1587
      %v1589 = vpop.f32.mrb[0].mxu0
      %1590 = vmatprep.mubr.f32.mxu0 0.0
      %1591 = vmatmul.mubr.f32.gmra.mrb[0].mxu0 %v1393
      %v1592 = vpop.f32.mrb[0].mxu0
      %v1593 = vadd.f32 0.0, %v1592
      %v1594 = vpop.f32.mrb[0].mxu0
      %1595 = vdwg.mxu0
      %v1596 = vrot.slane %v1478, 7
      %v1597 = vrot.slane %v1483, 7
      %v1598 = vrot.slane %v1488, 7
      %v1599 = vrot.slane %v1493, 7
      %v1600 = vrot.slane %v1498, 7
      %v1601 = vrot.slane %v1503, 7
      %v1602 = vrot.slane %v1508, 7
      %v1603 = vrot.slane %v1513, 7
      %v1604 = vrot.slane %v1518, 7
      %v1605 = vrot.slane %v1523, 7
      %v1606 = vrot.slane %v1528, 7
      %v1607 = vrot.slane %v1533, 7
      %v1608 = vrot.slane %v1538, 7
      %v1609 = vrot.slane %v1543, 7
      %v1610 = vrot.slane %v1548, 7
      %v1611 = vrot.slane %v1553, 7
      %v1612 = vrot.slane %v1558, 7
      %v1613 = vrot.slane %v1563, 7
      %v1614 = vrot.slane %v1568, 7
      %v1615 = vrot.slane %v1573, 7
      %v1616 = vrot.slane %v1578, 7
      %v1617 = vrot.slane %v1583, 7
      %v1618 = vrot.slane %v1588, 7
      %v1619 = vrot.slane %v1593, 7
      %v1620 = vsel %vm884, %v1617, %v1618
      %v1621 = vsel %vm884, %v1616, %v1617
      %v1622 = vsel %vm884, %v1614, %v1615
      %v1623 = vsel %vm884, %v1613, %v1614
      %v1624 = vsel %vm884, %v1611, %v1612
      %v1625 = vsel %vm884, %v1610, %v1611
      %v1626 = vsel %vm884, %v1608, %v1609
      %v1627 = vsel %vm884, %v1607, %v1608
      %v1628 = vsel %vm884, %v1605, %v1606
      %v1629 = vsel %vm884, %v1604, %v1605
      %v1630 = vsel %vm884, %v1602, %v1603
      %v1631 = vsel %vm884, %v1601, %v1602
      %v1632 = vsel %vm884, %v1599, %v1600
      %v1633 = vsel %vm884, %v1598, %v1599
      %v1634 = vsel %vm884, %v1596, %v1597
      %v1635 = vsel %vm884, %v1619, %v1596
      %v1636 = vadd.f32 %v1354, %v1635
      %v1637 = vadd.f32 %v1355, %v1634
      %v1638 = vadd.f32 %v1356, %v1633
      %v1639 = vadd.f32 %v1357, %v1632
      %v1640 = vadd.f32 %v1358, %v1631
      %v1641 = vadd.f32 %v1359, %v1630
      %v1642 = vadd.f32 %v1360, %v1629
      %v1643 = vadd.f32 %v1361, %v1628
      %v1644 = vadd.f32 %v1362, %v1627
      %v1645 = vadd.f32 %v1363, %v1626
      %v1646 = vadd.f32 %v1364, %v1625
      %v1647 = vadd.f32 %v1365, %v1624
      %v1648 = vadd.f32 %v1366, %v1623
      %v1649 = vadd.f32 %v1367, %v1622
      %v1650 = vadd.f32 %v1368, %v1621
      %v1651 = vadd.f32 %v1369, %v1620
      %s1652 = scalar_lea.vmem %s1, 512
      %v1653 = vld [vmem:[%s1652] sm:$0xff]
      %v1654 = vld [vmem:[%s1652 + $0x8] sm:$0xff]
      %v1655 = vld [vmem:[%s1652 + $0x10] sm:$0xff]
      %v1656 = vld [vmem:[%s1652 + $0x18] sm:$0xff]
      %v1657 = vld [vmem:[%s1652 + $0x20] sm:$0xff]
      %v1658 = vld [vmem:[%s1652 + $0x28] sm:$0xff]
      %v1659 = vld [vmem:[%s1652 + $0x30] sm:$0xff]
      %v1660 = vld [vmem:[%s1652 + $0x38] sm:$0xff]
      %v1661 = vld [vmem:[%s1652 + $0x40] sm:$0xff]
      %v1662 = vld [vmem:[%s1652 + $0x48] sm:$0xff]
      %v1663 = vld [vmem:[%s1652 + $0x50] sm:$0xff]
      %v1664 = vld [vmem:[%s1652 + $0x58] sm:$0xff]
      %v1665 = vld [vmem:[%s1652 + $0x60] sm:$0xff]
      %v1666 = vld [vmem:[%s1652 + $0x68] sm:$0xff]
      %v1667 = vld [vmem:[%s1652 + $0x70] sm:$0xff]
      %v1668 = vld [vmem:[%s1652 + $0x78] sm:$0xff]
      %1669 = vmatprep.subr.mxu0 0.0
      %1670 = vmatpush1.msra.mxu0 %v1653
      %1671 = vmatprep.subr.mxu0 0.0
      %1672 = vmatpush1.msra.mxu0 %v1654
      %1673 = vmatprep.subr.mxu0 0.0
      %1674 = vmatpush1.msra.mxu0 %v1655
      %1675 = vmatprep.subr.mxu0 0.0
      %1676 = vmatpush1.msra.mxu0 %v1656
      %1677 = vmatprep.subr.mxu0 0.0
      %1678 = vmatpush1.msra.mxu0 %v1657
      %1679 = vmatprep.subr.mxu0 0.0
      %1680 = vmatpush1.msra.mxu0 %v1658
      %1681 = vmatprep.subr.mxu0 0.0
      %1682 = vmatpush1.msra.mxu0 %v1659
      %1683 = vmatprep.subr.mxu0 0.0
      %1684 = vmatpush1.msra.mxu0 %v1660
      %1685 = vmatprep.subr.mxu0 0.0
      %1686 = vmatpush1.msra.mxu0 %v1661
      %1687 = vmatprep.subr.mxu0 0.0
      %1688 = vmatpush1.msra.mxu0 %v1662
      %1689 = vmatprep.subr.mxu0 0.0
      %1690 = vmatpush1.msra.mxu0 %v1663
      %1691 = vmatprep.subr.mxu0 0.0
      %1692 = vmatpush1.msra.mxu0 %v1664
      %1693 = vmatprep.subr.mxu0 0.0
      %1694 = vmatpush1.msra.mxu0 %v1665
      %1695 = vmatprep.subr.mxu0 0.0
      %1696 = vmatpush1.msra.mxu0 %v1666
      %1697 = vmatprep.subr.mxu0 0.0
      %1698 = vmatpush1.msra.mxu0 %v1667
      %1699 = vmatprep.subr.mxu0 0.0
      %1700 = vmatpush1.msra.mxu0 %v1668
      %1701 = vmatprep.subr.mxu0 0.0
      %1702 = vmatpush1.msra.mxu0 0.0
      %1703 = vmatprep.subr.mxu0 0.0
      %1704 = vmatpush1.msra.mxu0 0.0
      %1705 = vmatprep.subr.mxu0 0.0
      %1706 = vmatpush1.msra.mxu0 0.0
      %1707 = vmatprep.subr.mxu0 0.0
      %1708 = vmatpush1.msra.mxu0 0.0
      %1709 = vmatprep.subr.mxu0 0.0
      %1710 = vmatpush1.msra.mxu0 0.0
      %1711 = vmatprep.subr.mxu0 0.0
      %1712 = vmatpush1.msra.mxu0 0.0
      %1713 = vmatprep.subr.mxu0 0.0
      %1714 = vmatpush1.msra.mxu0 0.0
      %1715 = vmatprep.subr.mxu0 0.0
      %1716 = vmatpush1.msra.mxu0 0.0
      %1717 = vmatprep.subr.mxu0 0.0
      %1718 = vmatpush1.msra.mxu0 0.0
      %1719 = vmatprep.subr.mxu0 0.0
      %1720 = vmatpush1.msra.mxu0 0.0
      %1721 = vmatprep.subr.mxu0 0.0
      %1722 = vmatpush1.msra.mxu0 0.0
      %1723 = vmatprep.subr.mxu0 0.0
      %1724 = vmatpush1.msra.mxu0 0.0
      %1725 = vmatprep.subr.mxu0 0.0
      %1726 = vmatpush1.msra.mxu0 0.0
      %1727 = vmatprep.subr.mxu0 0.0
      %1728 = vmatpush1.msra.mxu0 0.0
      %1729 = vmatprep.subr.mxu0 0.0
      %1730 = vmatpush1.msra.mxu0 0.0
      %1731 = vmatprep.subr.mxu0 0.0
      %1732 = vmatpush1.msra.mxu0 0.0
      %1733 = vmatprep.mubr.f32.mxu0 0.0
      %1734 = vmatmul.mubr.f32.gmra.mrb[0].mxu0 %v1370
      %v1735 = vpop.f32.mrb[0].mxu0
      %v1736 = vadd.f32 0.0, %v1735
      %v1737 = vpop.f32.mrb[0].mxu0
      %1738 = vmatprep.mubr.f32.mxu0 0.0
      %1739 = vmatmul.mubr.f32.gmra.mrb[0].mxu0 %v1371
      %v1740 = vpop.f32.mrb[0].mxu0
      %v1741 = vadd.f32 0.0, %v1740
      %v1742 = vpop.f32.mrb[0].mxu0
      %1743 = vmatprep.mubr.f32.mxu0 0.0
      %1744 = vmatmul.mubr.f32.gmra.mrb[0].mxu0 %v1372
      %v1745 = vpop.f32.mrb[0].mxu0
      %v1746 = vpop.f32.mrb[0].mxu0
      %1747 = vmatprep.mubr.f32.mxu0 0.0
      %1748 = vmatmul.mubr.f32.gmra.mrb[0].mxu0 %v1373
      %v1749 = vpop.f32.mrb[0].mxu0
      %v1750 = vadd.f32 0.0, %v1749
      %v1751 = vpop.f32.mrb[0].mxu0
      %1752 = vmatprep.mubr.f32.mxu0 0.0
      %1753 = vmatmul.mubr.f32.gmra.mrb[0].mxu0 %v1374
      %v1754 = vpop.f32.mrb[0].mxu0
      %v1755 = vadd.f32 0.0, %v1754
      %v1756 = vpop.f32.mrb[0].mxu0
      %1757 = vmatprep.mubr.f32.mxu0 0.0
      %1758 = vmatmul.mubr.f32.gmra.mrb[0].mxu0 %v1375
      %v1759 = vpop.f32.mrb[0].mxu0
      %v1760 = vpop.f32.mrb[0].mxu0
      %1761 = vmatprep.mubr.f32.mxu0 0.0
      %1762 = vmatmul.mubr.f32.gmra.mrb[0].mxu0 %v1376
      %v1763 = vpop.f32.mrb[0].mxu0
      %v1764 = vadd.f32 0.0, %v1763
      %v1765 = vpop.f32.mrb[0].mxu0
      %1766 = vmatprep.mubr.f32.mxu0 0.0
      %1767 = vmatmul.mubr.f32.gmra.mrb[0].mxu0 %v1377
      %v1768 = vpop.f32.mrb[0].mxu0
      %v1769 = vadd.f32 0.0, %v1768
      %v1770 = vpop.f32.mrb[0].mxu0
      %1771 = vmatprep.mubr.f32.mxu0 0.0
      %1772 = vmatmul.mubr.f32.gmra.mrb[0].mxu0 %v1378
      %v1773 = vpop.f32.mrb[0].mxu0
      %v1774 = vpop.f32.mrb[0].mxu0
      %1775 = vmatprep.mubr.f32.mxu0 0.0
      %1776 = vmatmul.mubr.f32.gmra.mrb[0].mxu0 %v1379
      %v1777 = vpop.f32.mrb[0].mxu0
      %v1778 = vadd.f32 0.0, %v1777
      %v1779 = vpop.f32.mrb[0].mxu0
      %1780 = vmatprep.mubr.f32.mxu0 0.0
      %1781 = vmatmul.mubr.f32.gmra.mrb[0].mxu0 %v1380
      %v1782 = vpop.f32.mrb[0].mxu0
      %v1783 = vadd.f32 0.0, %v1782
      %v1784 = vpop.f32.mrb[0].mxu0
      %1785 = vmatprep.mubr.f32.mxu0 0.0
      %1786 = vmatmul.mubr.f32.gmra.mrb[0].mxu0 %v1381
      %v1787 = vpop.f32.mrb[0].mxu0
      %v1788 = vpop.f32.mrb[0].mxu0
      %1789 = vmatprep.mubr.f32.mxu0 0.0
      %1790 = vmatmul.mubr.f32.gmra.mrb[0].mxu0 %v1382
      %v1791 = vpop.f32.mrb[0].mxu0
      %v1792 = vadd.f32 0.0, %v1791
      %v1793 = vpop.f32.mrb[0].mxu0
      %1794 = vmatprep.mubr.f32.mxu0 0.0
      %1795 = vmatmul.mubr.f32.gmra.mrb[0].mxu0 %v1383
      %v1796 = vpop.f32.mrb[0].mxu0
      %v1797 = vadd.f32 0.0, %v1796
      %v1798 = vpop.f32.mrb[0].mxu0
      %1799 = vmatprep.mubr.f32.mxu0 0.0
      %1800 = vmatmul.mubr.f32.gmra.mrb[0].mxu0 %v1384
      %v1801 = vpop.f32.mrb[0].mxu0
      %v1802 = vpop.f32.mrb[0].mxu0
      %1803 = vmatprep.mubr.f32.mxu0 0.0
      %1804 = vmatmul.mubr.f32.gmra.mrb[0].mxu0 %v1385
      %v1805 = vpop.f32.mrb[0].mxu0
      %v1806 = vadd.f32 0.0, %v1805
      %v1807 = vpop.f32.mrb[0].mxu0
      %1808 = vmatprep.mubr.f32.mxu0 0.0
      %1809 = vmatmul.mubr.f32.gmra.mrb[0].mxu0 %v1386
      %v1810 = vpop.f32.mrb[0].mxu0
      %v1811 = vadd.f32 0.0, %v1810
      %v1812 = vpop.f32.mrb[0].mxu0
      %1813 = vmatprep.mubr.f32.mxu0 0.0
      %1814 = vmatmul.mubr.f32.gmra.mrb[0].mxu0 %v1387
      %v1815 = vpop.f32.mrb[0].mxu0
      %v1816 = vpop.f32.mrb[0].mxu0
      %1817 = vmatprep.mubr.f32.mxu0 0.0
      %1818 = vmatmul.mubr.f32.gmra.mrb[0].mxu0 %v1388
      %v1819 = vpop.f32.mrb[0].mxu0
      %v1820 = vadd.f32 0.0, %v1819
      %v1821 = vpop.f32.mrb[0].mxu0
      %1822 = vmatprep.mubr.f32.mxu0 0.0
      %1823 = vmatmul.mubr.f32.gmra.mrb[0].mxu0 %v1389
      %v1824 = vpop.f32.mrb[0].mxu0
      %v1825 = vadd.f32 0.0, %v1824
      %v1826 = vpop.f32.mrb[0].mxu0
      %1827 = vmatprep.mubr.f32.mxu0 0.0
      %1828 = vmatmul.mubr.f32.gmra.mrb[0].mxu0 %v1390
      %v1829 = vpop.f32.mrb[0].mxu0
      %v1830 = vpop.f32.mrb[0].mxu0
      %1831 = vmatprep.mubr.f32.mxu0 0.0
      %1832 = vmatmul.mubr.f32.gmra.mrb[0].mxu0 %v1391
      %v1833 = vpop.f32.mrb[0].mxu0
      %v1834 = vadd.f32 0.0, %v1833
      %v1835 = vpop.f32.mrb[0].mxu0
      %1836 = vmatprep.mubr.f32.mxu0 0.0
      %1837 = vmatmul.mubr.f32.gmra.mrb[0].mxu0 %v1392
      %v1838 = vpop.f32.mrb[0].mxu0
      %v1839 = vadd.f32 0.0, %v1838
      %v1840 = vpop.f32.mrb[0].mxu0
      %1841 = vmatprep.mubr.f32.mxu0 0.0
      %1842 = vmatmul.mubr.f32.gmra.mrb[0].mxu0 %v1393
      %v1843 = vpop.f32.mrb[0].mxu0
      %v1844 = vpop.f32.mrb[0].mxu0
      %1845 = vdwg.mxu0
      %v1846 = vadd.f32 %v1636, %v1736
      %v1847 = vadd.f32 %v1637, %v1741
      %v1848 = vadd.f32 %v1638, %v1750
      %v1849 = vadd.f32 %v1639, %v1755
      %v1850 = vadd.f32 %v1640, %v1764
      %v1851 = vadd.f32 %v1641, %v1769
      %v1852 = vadd.f32 %v1642, %v1778
      %v1853 = vadd.f32 %v1643, %v1783
      %v1854 = vadd.f32 %v1644, %v1792
      %v1855 = vadd.f32 %v1645, %v1797
      %v1856 = vadd.f32 %v1646, %v1806
      %v1857 = vadd.f32 %v1647, %v1811
      %v1858 = vadd.f32 %v1648, %v1820
      %v1859 = vadd.f32 %v1649, %v1825
      %v1860 = vadd.f32 %v1650, %v1834
      %v1861 = vadd.f32 %v1651, %v1839
      %s1862 = scalar_lea.vmem %s1, 640
      %v1863 = vld [vmem:[%s1862] sm:$0xff]
      %v1864 = vld [vmem:[%s1862 + $0x8] sm:$0xff]
      %v1865 = vld [vmem:[%s1862 + $0x10] sm:$0xff]
      %v1866 = vld [vmem:[%s1862 + $0x18] sm:$0xff]
      %v1867 = vld [vmem:[%s1862 + $0x20] sm:$0xff]
      %v1868 = vld [vmem:[%s1862 + $0x28] sm:$0xff]
      %v1869 = vld [vmem:[%s1862 + $0x30] sm:$0xff]
      %v1870 = vld [vmem:[%s1862 + $0x38] sm:$0xff]
      %v1871 = vld [vmem:[%s1862 + $0x40] sm:$0xff]
      %v1872 = vld [vmem:[%s1862 + $0x48] sm:$0xff]
      %v1873 = vld [vmem:[%s1862 + $0x50] sm:$0xff]
      %v1874 = vld [vmem:[%s1862 + $0x58] sm:$0xff]
      %v1875 = vld [vmem:[%s1862 + $0x60] sm:$0xff]
      %v1876 = vld [vmem:[%s1862 + $0x68] sm:$0xff]
      %v1877 = vld [vmem:[%s1862 + $0x70] sm:$0xff]
      %v1878 = vld [vmem:[%s1862 + $0x78] sm:$0xff]
      %1879 = vmatprep.subr.mxu0 0.0
      %1880 = vmatpush1.msra.mxu0 %v1863
      %1881 = vmatprep.subr.mxu0 0.0
      %1882 = vmatpush1.msra.mxu0 %v1864
      %1883 = vmatprep.subr.mxu0 0.0
      %1884 = vmatpush1.msra.mxu0 %v1865
      %1885 = vmatprep.subr.mxu0 0.0
      %1886 = vmatpush1.msra.mxu0 %v1866
      %1887 = vmatprep.subr.mxu0 0.0
      %1888 = vmatpush1.msra.mxu0 %v1867
      %1889 = vmatprep.subr.mxu0 0.0
      %1890 = vmatpush1.msra.mxu0 %v1868
      %1891 = vmatprep.subr.mxu0 0.0
      %1892 = vmatpush1.msra.mxu0 %v1869
      %1893 = vmatprep.subr.mxu0 0.0
      %1894 = vmatpush1.msra.mxu0 %v1870
      %1895 = vmatprep.subr.mxu0 0.0
      %1896 = vmatpush1.msra.mxu0 %v1871
      %1897 = vmatprep.subr.mxu0 0.0
      %1898 = vmatpush1.msra.mxu0 %v1872
      %1899 = vmatprep.subr.mxu0 0.0
      %1900 = vmatpush1.msra.mxu0 %v1873
      %1901 = vmatprep.subr.mxu0 0.0
      %1902 = vmatpush1.msra.mxu0 %v1874
      %1903 = vmatprep.subr.mxu0 0.0
      %1904 = vmatpush1.msra.mxu0 %v1875
      %1905 = vmatprep.subr.mxu0 0.0
      %1906 = vmatpush1.msra.mxu0 %v1876
      %1907 = vmatprep.subr.mxu0 0.0
      %1908 = vmatpush1.msra.mxu0 %v1877
      %1909 = vmatprep.subr.mxu0 0.0
      %1910 = vmatpush1.msra.mxu0 %v1878
      %1911 = vmatprep.subr.mxu0 0.0
      %1912 = vmatpush1.msra.mxu0 0.0
      %1913 = vmatprep.subr.mxu0 0.0
      %1914 = vmatpush1.msra.mxu0 0.0
      %1915 = vmatprep.subr.mxu0 0.0
      %1916 = vmatpush1.msra.mxu0 0.0
      %1917 = vmatprep.subr.mxu0 0.0
      %1918 = vmatpush1.msra.mxu0 0.0
      %1919 = vmatprep.subr.mxu0 0.0
      %1920 = vmatpush1.msra.mxu0 0.0
      %1921 = vmatprep.subr.mxu0 0.0
      %1922 = vmatpush1.msra.mxu0 0.0
      %1923 = vmatprep.subr.mxu0 0.0
      %1924 = vmatpush1.msra.mxu0 0.0
      %1925 = vmatprep.subr.mxu0 0.0
      %1926 = vmatpush1.msra.mxu0 0.0
      %1927 = vmatprep.subr.mxu0 0.0
      %1928 = vmatpush1.msra.mxu0 0.0
      %1929 = vmatprep.subr.mxu0 0.0
      %1930 = vmatpush1.msra.mxu0 0.0
      %1931 = vmatprep.subr.mxu0 0.0
      %1932 = vmatpush1.msra.mxu0 0.0
      %1933 = vmatprep.subr.mxu0 0.0
      %1934 = vmatpush1.msra.mxu0 0.0
      %1935 = vmatprep.subr.mxu0 0.0
      %1936 = vmatpush1.msra.mxu0 0.0
      %1937 = vmatprep.subr.mxu0 0.0
      %1938 = vmatpush1.msra.mxu0 0.0
      %1939 = vmatprep.subr.mxu0 0.0
      %1940 = vmatpush1.msra.mxu0 0.0
      %1941 = vmatprep.subr.mxu0 0.0
      %1942 = vmatpush1.msra.mxu0 0.0
      %1943 = vmatprep.mubr.f32.mxu0 0.0
      %1944 = vmatmul.mubr.f32.gmra.mrb[0].mxu0 %v1370
      %v1945 = vpop.f32.mrb[0].mxu0
      %v1946 = vadd.f32 0.0, %v1945
      %v1947 = vpop.f32.mrb[0].mxu0
      %1948 = vmatprep.mubr.f32.mxu0 0.0
      %1949 = vmatmul.mubr.f32.gmra.mrb[0].mxu0 %v1371
      %v1950 = vpop.f32.mrb[0].mxu0
      %v1951 = vadd.f32 0.0, %v1950
      %v1952 = vpop.f32.mrb[0].mxu0
      %1953 = vmatprep.mubr.f32.mxu0 0.0
      %1954 = vmatmul.mubr.f32.gmra.mrb[0].mxu0 %v1372
      %v1955 = vpop.f32.mrb[0].mxu0
      %v1956 = vadd.f32 0.0, %v1955
      %v1957 = vpop.f32.mrb[0].mxu0
      %1958 = vmatprep.mubr.f32.mxu0 0.0
      %1959 = vmatmul.mubr.f32.gmra.mrb[0].mxu0 %v1373
      %v1960 = vpop.f32.mrb[0].mxu0
      %v1961 = vadd.f32 0.0, %v1960
      %v1962 = vpop.f32.mrb[0].mxu0
      %1963 = vmatprep.mubr.f32.mxu0 0.0
      %1964 = vmatmul.mubr.f32.gmra.mrb[0].mxu0 %v1374
      %v1965 = vpop.f32.mrb[0].mxu0
      %v1966 = vadd.f32 0.0, %v1965
      %v1967 = vpop.f32.mrb[0].mxu0
      %1968 = vmatprep.mubr.f32.mxu0 0.0
      %1969 = vmatmul.mubr.f32.gmra.mrb[0].mxu0 %v1375
      %v1970 = vpop.f32.mrb[0].mxu0
      %v1971 = vadd.f32 0.0, %v1970
      %v1972 = vpop.f32.mrb[0].mxu0
      %1973 = vmatprep.mubr.f32.mxu0 0.0
      %1974 = vmatmul.mubr.f32.gmra.mrb[0].mxu0 %v1376
      %v1975 = vpop.f32.mrb[0].mxu0
      %v1976 = vadd.f32 0.0, %v1975
      %v1977 = vpop.f32.mrb[0].mxu0
      %1978 = vmatprep.mubr.f32.mxu0 0.0
      %1979 = vmatmul.mubr.f32.gmra.mrb[0].mxu0 %v1377
      %v1980 = vpop.f32.mrb[0].mxu0
      %v1981 = vadd.f32 0.0, %v1980
      %v1982 = vpop.f32.mrb[0].mxu0
      %1983 = vmatprep.mubr.f32.mxu0 0.0
      %1984 = vmatmul.mubr.f32.gmra.mrb[0].mxu0 %v1378
      %v1985 = vpop.f32.mrb[0].mxu0
      %v1986 = vadd.f32 0.0, %v1985
      %v1987 = vpop.f32.mrb[0].mxu0
      %1988 = vmatprep.mubr.f32.mxu0 0.0
      %1989 = vmatmul.mubr.f32.gmra.mrb[0].mxu0 %v1379
      %v1990 = vpop.f32.mrb[0].mxu0
      %v1991 = vadd.f32 0.0, %v1990
      %v1992 = vpop.f32.mrb[0].mxu0
      %1993 = vmatprep.mubr.f32.mxu0 0.0
      %1994 = vmatmul.mubr.f32.gmra.mrb[0].mxu0 %v1380
      %v1995 = vpop.f32.mrb[0].mxu0
      %v1996 = vadd.f32 0.0, %v1995
      %v1997 = vpop.f32.mrb[0].mxu0
      %1998 = vmatprep.mubr.f32.mxu0 0.0
      %1999 = vmatmul.mubr.f32.gmra.mrb[0].mxu0 %v1381
      %v2000 = vpop.f32.mrb[0].mxu0
      %v2001 = vadd.f32 0.0, %v2000
      %v2002 = vpop.f32.mrb[0].mxu0
      %2003 = vmatprep.mubr.f32.mxu0 0.0
      %2004 = vmatmul.mubr.f32.gmra.mrb[0].mxu0 %v1382
      %v2005 = vpop.f32.mrb[0].mxu0
      %v2006 = vadd.f32 0.0, %v2005
      %v2007 = vpop.f32.mrb[0].mxu0
      %2008 = vmatprep.mubr.f32.mxu0 0.0
      %2009 = vmatmul.mubr.f32.gmra.mrb[0].mxu0 %v1383
      %v2010 = vpop.f32.mrb[0].mxu0
      %v2011 = vadd.f32 0.0, %v2010
      %v2012 = vpop.f32.mrb[0].mxu0
      %2013 = vmatprep.mubr.f32.mxu0 0.0
      %2014 = vmatmul.mubr.f32.gmra.mrb[0].mxu0 %v1384
      %v2015 = vpop.f32.mrb[0].mxu0
      %v2016 = vadd.f32 0.0, %v2015
      %v2017 = vpop.f32.mrb[0].mxu0
      %2018 = vmatprep.mubr.f32.mxu0 0.0
      %2019 = vmatmul.mubr.f32.gmra.mrb[0].mxu0 %v1385
      %v2020 = vpop.f32.mrb[0].mxu0
      %v2021 = vadd.f32 0.0, %v2020
      %v2022 = vpop.f32.mrb[0].mxu0
      %2023 = vmatprep.mubr.f32.mxu0 0.0
      %2024 = vmatmul.mubr.f32.gmra.mrb[0].mxu0 %v1386
      %v2025 = vpop.f32.mrb[0].mxu0
      %v2026 = vadd.f32 0.0, %v2025
      %v2027 = vpop.f32.mrb[0].mxu0
      %2028 = vmatprep.mubr.f32.mxu0 0.0
      %2029 = vmatmul.mubr.f32.gmra.mrb[0].mxu0 %v1387
      %v2030 = vpop.f32.mrb[0].mxu0
      %v2031 = vadd.f32 0.0, %v2030
      %v2032 = vpop.f32.mrb[0].mxu0
      %2033 = vmatprep.mubr.f32.mxu0 0.0
      %2034 = vmatmul.mubr.f32.gmra.mrb[0].mxu0 %v1388
      %v2035 = vpop.f32.mrb[0].mxu0
      %v2036 = vadd.f32 0.0, %v2035
      %v2037 = vpop.f32.mrb[0].mxu0
      %2038 = vmatprep.mubr.f32.mxu0 0.0
      %2039 = vmatmul.mubr.f32.gmra.mrb[0].mxu0 %v1389
      %v2040 = vpop.f32.mrb[0].mxu0
      %v2041 = vadd.f32 0.0, %v2040
      %v2042 = vpop.f32.mrb[0].mxu0
      %2043 = vmatprep.mubr.f32.mxu0 0.0
      %2044 = vmatmul.mubr.f32.gmra.mrb[0].mxu0 %v1390
      %v2045 = vpop.f32.mrb[0].mxu0
      %v2046 = vadd.f32 0.0, %v2045
      %v2047 = vpop.f32.mrb[0].mxu0
      %2048 = vmatprep.mubr.f32.mxu0 0.0
      %2049 = vmatmul.mubr.f32.gmra.mrb[0].mxu0 %v1391
      %v2050 = vpop.f32.mrb[0].mxu0
      %v2051 = vadd.f32 0.0, %v2050
      %v2052 = vpop.f32.mrb[0].mxu0
      %2053 = vmatprep.mubr.f32.mxu0 0.0
      %2054 = vmatmul.mubr.f32.gmra.mrb[0].mxu0 %v1392
      %v2055 = vpop.f32.mrb[0].mxu0
      %v2056 = vadd.f32 0.0, %v2055
      %v2057 = vpop.f32.mrb[0].mxu0
      %2058 = vmatprep.mubr.f32.mxu0 0.0
      %2059 = vmatmul.mubr.f32.gmra.mrb[0].mxu0 %v1393
      %v2060 = vpop.f32.mrb[0].mxu0
      %v2061 = vadd.f32 0.0, %v2060
      %v2062 = vpop.f32.mrb[0].mxu0
      %2063 = vdwg.mxu0
      %v2064 = vrot.slane %v1946, 1
      %v2065 = vrot.slane %v1951, 1
      %v2066 = vrot.slane %v1956, 1
      %v2067 = vrot.slane %v1961, 1
      %v2068 = vrot.slane %v1966, 1
      %v2069 = vrot.slane %v1971, 1
      %v2070 = vrot.slane %v1976, 1
      %v2071 = vrot.slane %v1981, 1
      %v2072 = vrot.slane %v1986, 1
      %v2073 = vrot.slane %v1991, 1
      %v2074 = vrot.slane %v1996, 1
      %v2075 = vrot.slane %v2001, 1
      %v2076 = vrot.slane %v2006, 1
      %v2077 = vrot.slane %v2011, 1
      %v2078 = vrot.slane %v2016, 1
      %v2079 = vrot.slane %v2021, 1
      %v2080 = vrot.slane %v2026, 1
      %v2081 = vrot.slane %v2031, 1
      %v2082 = vrot.slane %v2036, 1
      %v2083 = vrot.slane %v2041, 1
      %v2084 = vrot.slane %v2046, 1
      %v2085 = vrot.slane %v2051, 1
      %v2086 = vrot.slane %v2056, 1
      %v2087 = vrot.slane %v2061, 1
      %v2088 = vsel %vm1337, %v2086, %v2087
      %v2089 = vsel %vm1337, %v2085, %v2086
      %v2090 = vsel %vm1337, %v2083, %v2084
      %v2091 = vsel %vm1337, %v2082, %v2083
      %v2092 = vsel %vm1337, %v2080, %v2081
      %v2093 = vsel %vm1337, %v2079, %v2080
      %v2094 = vsel %vm1337, %v2077, %v2078
      %v2095 = vsel %vm1337, %v2076, %v2077
      %v2096 = vsel %vm1337, %v2074, %v2075
      %v2097 = vsel %vm1337, %v2073, %v2074
      %v2098 = vsel %vm1337, %v2071, %v2072
      %v2099 = vsel %vm1337, %v2070, %v2071
      %v2100 = vsel %vm1337, %v2068, %v2069
      %v2101 = vsel %vm1337, %v2067, %v2068
      %v2102 = vsel %vm1337, %v2065, %v2066
      %v2103 = vsel %vm1337, %v2064, %v2065
      %v2104 = vadd.f32 %v1846, %v2103
      %v2105 = vadd.f32 %v1847, %v2102
      %v2106 = vadd.f32 %v1848, %v2101
      %v2107 = vadd.f32 %v1849, %v2100
      %v2108 = vadd.f32 %v1850, %v2099
      %v2109 = vadd.f32 %v1851, %v2098
      %v2110 = vadd.f32 %v1852, %v2097
      %v2111 = vadd.f32 %v1853, %v2096
      %v2112 = vadd.f32 %v1854, %v2095
      %v2113 = vadd.f32 %v1855, %v2094
      %v2114 = vadd.f32 %v1856, %v2093
      %v2115 = vadd.f32 %v1857, %v2092
      %v2116 = vadd.f32 %v1858, %v2091
      %v2117 = vadd.f32 %v1859, %v2090
      %v2118 = vadd.f32 %v1860, %v2089
      %v2119 = vadd.f32 %v1861, %v2088
      %s2120 = scalar_lea.vmem [#allocation2], 48
      %v2121 = vld [vmem:[%s2120] sm:$0xff]
      %v2122 = vld [vmem:[%s2120 + $0x8] sm:$0xff]
      %v2123 = vld [vmem:[%s2120 + $0x10] sm:$0xff]
      %v2124 = vld [vmem:[%s2120 + $0x18] sm:$0xff]
      %v2125 = vld [vmem:[%s2120 + $0x20] sm:$0xff]
      %v2126 = vld [vmem:[%s2120 + $0x28] sm:$0xff]
      %v2127 = vld [vmem:[%s2120 + $0x30] sm:$0xff]
      %v2128 = vld [vmem:[%s2120 + $0x38] sm:$0xff]
      %v2129 = vld [vmem:[%s2120 + $0x40] sm:$0xff]
      %v2130 = vld [vmem:[%s2120 + $0x48] sm:$0xff]
      %v2131 = vld [vmem:[%s2120 + $0x50] sm:$0xff]
      %v2132 = vld [vmem:[%s2120 + $0x58] sm:$0xff]
      %v2133 = vld [vmem:[%s2120 + $0x60] sm:$0xff]
      %v2134 = vld [vmem:[%s2120 + $0x68] sm:$0xff]
      %v2135 = vld [vmem:[%s2120 + $0x70] sm:$0xff]
      %v2136 = vld [vmem:[%s2120 + $0x78] sm:$0xff]
      %v2137 = vld [vmem:[%s2120 + $0x80] sm:$0xff]
      %v2138 = vld [vmem:[%s2120 + $0x88] sm:$0xff]
      %v2139 = vld [vmem:[%s2120 + $0x90] sm:$0xff]
      %v2140 = vld [vmem:[%s2120 + $0x98] sm:$0xff]
      %v2141 = vld [vmem:[%s2120 + $0xa0] sm:$0xff]
      %v2142 = vld [vmem:[%s2120 + $0xa8] sm:$0xff]
      %v2143 = vld [vmem:[%s2120 + $0xb0] sm:$0xff]
      %v2144 = vld [vmem:[%s2120 + $0xb8] sm:$0xff]
      %s2145 = scalar_lea.vmem %s1, 768
      %v2146 = vld [vmem:[%s2145] sm:$0xff]
      %v2147 = vld [vmem:[%s2145 + $0x8] sm:$0xff]
      %v2148 = vld [vmem:[%s2145 + $0x10] sm:$0xff]
      %v2149 = vld [vmem:[%s2145 + $0x18] sm:$0xff]
      %v2150 = vld [vmem:[%s2145 + $0x20] sm:$0xff]
      %v2151 = vld [vmem:[%s2145 + $0x28] sm:$0xff]
      %v2152 = vld [vmem:[%s2145 + $0x30] sm:$0xff]
      %v2153 = vld [vmem:[%s2145 + $0x38] sm:$0xff]
      %v2154 = vld [vmem:[%s2145 + $0x40] sm:$0xff]
      %v2155 = vld [vmem:[%s2145 + $0x48] sm:$0xff]
      %v2156 = vld [vmem:[%s2145 + $0x50] sm:$0xff]
      %v2157 = vld [vmem:[%s2145 + $0x58] sm:$0xff]
      %v2158 = vld [vmem:[%s2145 + $0x60] sm:$0xff]
      %v2159 = vld [vmem:[%s2145 + $0x68] sm:$0xff]
      %v2160 = vld [vmem:[%s2145 + $0x70] sm:$0xff]
      %v2161 = vld [vmem:[%s2145 + $0x78] sm:$0xff]
      %2162 = vmatprep.subr.mxu0 0.0
      %2163 = vmatpush1.msra.mxu0 %v2146
      %2164 = vmatprep.subr.mxu0 0.0
      %2165 = vmatpush1.msra.mxu0 %v2147
      %2166 = vmatprep.subr.mxu0 0.0
      %2167 = vmatpush1.msra.mxu0 %v2148
      %2168 = vmatprep.subr.mxu0 0.0
      %2169 = vmatpush1.msra.mxu0 %v2149
      %2170 = vmatprep.subr.mxu0 0.0
      %2171 = vmatpush1.msra.mxu0 %v2150
      %2172 = vmatprep.subr.mxu0 0.0
      %2173 = vmatpush1.msra.mxu0 %v2151
      %2174 = vmatprep.subr.mxu0 0.0
      %2175 = vmatpush1.msra.mxu0 %v2152
      %2176 = vmatprep.subr.mxu0 0.0
      %2177 = vmatpush1.msra.mxu0 %v2153
      %2178 = vmatprep.subr.mxu0 0.0
      %2179 = vmatpush1.msra.mxu0 %v2154
      %2180 = vmatprep.subr.mxu0 0.0
      %2181 = vmatpush1.msra.mxu0 %v2155
      %2182 = vmatprep.subr.mxu0 0.0
      %2183 = vmatpush1.msra.mxu0 %v2156
      %2184 = vmatprep.subr.mxu0 0.0
      %2185 = vmatpush1.msra.mxu0 %v2157
      %2186 = vmatprep.subr.mxu0 0.0
      %2187 = vmatpush1.msra.mxu0 %v2158
      %2188 = vmatprep.subr.mxu0 0.0
      %2189 = vmatpush1.msra.mxu0 %v2159
      %2190 = vmatprep.subr.mxu0 0.0
      %2191 = vmatpush1.msra.mxu0 %v2160
      %2192 = vmatprep.subr.mxu0 0.0
      %2193 = vmatpush1.msra.mxu0 %v2161
      %2194 = vmatprep.subr.mxu0 0.0
      %2195 = vmatpush1.msra.mxu0 0.0
      %2196 = vmatprep.subr.mxu0 0.0
      %2197 = vmatpush1.msra.mxu0 0.0
      %2198 = vmatprep.subr.mxu0 0.0
      %2199 = vmatpush1.msra.mxu0 0.0
      %2200 = vmatprep.subr.mxu0 0.0
      %2201 = vmatpush1.msra.mxu0 0.0
      %2202 = vmatprep.subr.mxu0 0.0
      %2203 = vmatpush1.msra.mxu0 0.0
      %2204 = vmatprep.subr.mxu0 0.0
      %2205 = vmatpush1.msra.mxu0 0.0
      %2206 = vmatprep.subr.mxu0 0.0
      %2207 = vmatpush1.msra.mxu0 0.0
      %2208 = vmatprep.subr.mxu0 0.0
      %2209 = vmatpush1.msra.mxu0 0.0
      %2210 = vmatprep.subr.mxu0 0.0
      %2211 = vmatpush1.msra.mxu0 0.0
      %2212 = vmatprep.subr.mxu0 0.0
      %2213 = vmatpush1.msra.mxu0 0.0
      %2214 = vmatprep.subr.mxu0 0.0
      %2215 = vmatpush1.msra.mxu0 0.0
      %2216 = vmatprep.subr.mxu0 0.0
      %2217 = vmatpush1.msra.mxu0 0.0
      %2218 = vmatprep.subr.mxu0 0.0
      %2219 = vmatpush1.msra.mxu0 0.0
      %2220 = vmatprep.subr.mxu0 0.0
      %2221 = vmatpush1.msra.mxu0 0.0
      %2222 = vmatprep.subr.mxu0 0.0
      %2223 = vmatpush1.msra.mxu0 0.0
      %2224 = vmatprep.subr.mxu0 0.0
      %2225 = vmatpush1.msra.mxu0 0.0
      %2226 = vmatprep.mubr.f32.mxu0 0.0
      %2227 = vmatmul.mubr.f32.gmra.mrb[0].mxu0 %v2121
      %v2228 = vpop.f32.mrb[0].mxu0
      %v2229 = vadd.f32 0.0, %v2228
      %v2230 = vpop.f32.mrb[0].mxu0
      %2231 = vmatprep.mubr.f32.mxu0 0.0
      %2232 = vmatmul.mubr.f32.gmra.mrb[0].mxu0 %v2122
      %v2233 = vpop.f32.mrb[0].mxu0
      %v2234 = vadd.f32 0.0, %v2233
      %v2235 = vpop.f32.mrb[0].mxu0
      %2236 = vmatprep.mubr.f32.mxu0 0.0
      %2237 = vmatmul.mubr.f32.gmra.mrb[0].mxu0 %v2123
      %v2238 = vpop.f32.mrb[0].mxu0
      %v2239 = vadd.f32 0.0, %v2238
      %v2240 = vpop.f32.mrb[0].mxu0
      %2241 = vmatprep.mubr.f32.mxu0 0.0
      %2242 = vmatmul.mubr.f32.gmra.mrb[0].mxu0 %v2124
      %v2243 = vpop.f32.mrb[0].mxu0
      %v2244 = vadd.f32 0.0, %v2243
      %v2245 = vpop.f32.mrb[0].mxu0
      %2246 = vmatprep.mubr.f32.mxu0 0.0
      %2247 = vmatmul.mubr.f32.gmra.mrb[0].mxu0 %v2125
      %v2248 = vpop.f32.mrb[0].mxu0
      %v2249 = vadd.f32 0.0, %v2248
      %v2250 = vpop.f32.mrb[0].mxu0
      %2251 = vmatprep.mubr.f32.mxu0 0.0
      %2252 = vmatmul.mubr.f32.gmra.mrb[0].mxu0 %v2126
      %v2253 = vpop.f32.mrb[0].mxu0
      %v2254 = vadd.f32 0.0, %v2253
      %v2255 = vpop.f32.mrb[0].mxu0
      %2256 = vmatprep.mubr.f32.mxu0 0.0
      %2257 = vmatmul.mubr.f32.gmra.mrb[0].mxu0 %v2127
      %v2258 = vpop.f32.mrb[0].mxu0
      %v2259 = vadd.f32 0.0, %v2258
      %v2260 = vpop.f32.mrb[0].mxu0
      %2261 = vmatprep.mubr.f32.mxu0 0.0
      %2262 = vmatmul.mubr.f32.gmra.mrb[0].mxu0 %v2128
      %v2263 = vpop.f32.mrb[0].mxu0
      %v2264 = vadd.f32 0.0, %v2263
      %v2265 = vpop.f32.mrb[0].mxu0
      %2266 = vmatprep.mubr.f32.mxu0 0.0
      %2267 = vmatmul.mubr.f32.gmra.mrb[0].mxu0 %v2129
      %v2268 = vpop.f32.mrb[0].mxu0
      %v2269 = vadd.f32 0.0, %v2268
      %v2270 = vpop.f32.mrb[0].mxu0
      %2271 = vmatprep.mubr.f32.mxu0 0.0
      %2272 = vmatmul.mubr.f32.gmra.mrb[0].mxu0 %v2130
      %v2273 = vpop.f32.mrb[0].mxu0
      %v2274 = vadd.f32 0.0, %v2273
      %v2275 = vpop.f32.mrb[0].mxu0
      %2276 = vmatprep.mubr.f32.mxu0 0.0
      %2277 = vmatmul.mubr.f32.gmra.mrb[0].mxu0 %v2131
      %v2278 = vpop.f32.mrb[0].mxu0
      %v2279 = vadd.f32 0.0, %v2278
      %v2280 = vpop.f32.mrb[0].mxu0
      %2281 = vmatprep.mubr.f32.mxu0 0.0
      %2282 = vmatmul.mubr.f32.gmra.mrb[0].mxu0 %v2132
      %v2283 = vpop.f32.mrb[0].mxu0
      %v2284 = vadd.f32 0.0, %v2283
      %v2285 = vpop.f32.mrb[0].mxu0
      %2286 = vmatprep.mubr.f32.mxu0 0.0
      %2287 = vmatmul.mubr.f32.gmra.mrb[0].mxu0 %v2133
      %v2288 = vpop.f32.mrb[0].mxu0
      %v2289 = vadd.f32 0.0, %v2288
      %v2290 = vpop.f32.mrb[0].mxu0
      %2291 = vmatprep.mubr.f32.mxu0 0.0
      %2292 = vmatmul.mubr.f32.gmra.mrb[0].mxu0 %v2134
      %v2293 = vpop.f32.mrb[0].mxu0
      %v2294 = vadd.f32 0.0, %v2293
      %v2295 = vpop.f32.mrb[0].mxu0
      %2296 = vmatprep.mubr.f32.mxu0 0.0
      %2297 = vmatmul.mubr.f32.gmra.mrb[0].mxu0 %v2135
      %v2298 = vpop.f32.mrb[0].mxu0
      %v2299 = vadd.f32 0.0, %v2298
      %v2300 = vpop.f32.mrb[0].mxu0
      %2301 = vmatprep.mubr.f32.mxu0 0.0
      %2302 = vmatmul.mubr.f32.gmra.mrb[0].mxu0 %v2136
      %v2303 = vpop.f32.mrb[0].mxu0
      %v2304 = vadd.f32 0.0, %v2303
      %v2305 = vpop.f32.mrb[0].mxu0
      %2306 = vmatprep.mubr.f32.mxu0 0.0
      %2307 = vmatmul.mubr.f32.gmra.mrb[0].mxu0 %v2137
      %v2308 = vpop.f32.mrb[0].mxu0
      %v2309 = vadd.f32 0.0, %v2308
      %v2310 = vpop.f32.mrb[0].mxu0
      %2311 = vmatprep.mubr.f32.mxu0 0.0
      %2312 = vmatmul.mubr.f32.gmra.mrb[0].mxu0 %v2138
      %v2313 = vpop.f32.mrb[0].mxu0
      %v2314 = vadd.f32 0.0, %v2313
      %v2315 = vpop.f32.mrb[0].mxu0
      %2316 = vmatprep.mubr.f32.mxu0 0.0
      %2317 = vmatmul.mubr.f32.gmra.mrb[0].mxu0 %v2139
      %v2318 = vpop.f32.mrb[0].mxu0
      %v2319 = vadd.f32 0.0, %v2318
      %v2320 = vpop.f32.mrb[0].mxu0
      %2321 = vmatprep.mubr.f32.mxu0 0.0
      %2322 = vmatmul.mubr.f32.gmra.mrb[0].mxu0 %v2140
      %v2323 = vpop.f32.mrb[0].mxu0
      %v2324 = vadd.f32 0.0, %v2323
      %v2325 = vpop.f32.mrb[0].mxu0
      %2326 = vmatprep.mubr.f32.mxu0 0.0
      %2327 = vmatmul.mubr.f32.gmra.mrb[0].mxu0 %v2141
      %v2328 = vpop.f32.mrb[0].mxu0
      %v2329 = vadd.f32 0.0, %v2328
      %v2330 = vpop.f32.mrb[0].mxu0
      %2331 = vmatprep.mubr.f32.mxu0 0.0
      %2332 = vmatmul.mubr.f32.gmra.mrb[0].mxu0 %v2142
      %v2333 = vpop.f32.mrb[0].mxu0
      %v2334 = vadd.f32 0.0, %v2333
      %v2335 = vpop.f32.mrb[0].mxu0
      %2336 = vmatprep.mubr.f32.mxu0 0.0
      %2337 = vmatmul.mubr.f32.gmra.mrb[0].mxu0 %v2143
      %v2338 = vpop.f32.mrb[0].mxu0
      %v2339 = vadd.f32 0.0, %v2338
      %v2340 = vpop.f32.mrb[0].mxu0
      %2341 = vmatprep.mubr.f32.mxu0 0.0
      %2342 = vmatmul.mubr.f32.gmra.mrb[0].mxu0 %v2144
      %v2343 = vpop.f32.mrb[0].mxu0
      %v2344 = vadd.f32 0.0, %v2343
      %v2345 = vpop.f32.mrb[0].mxu0
      %2346 = vdwg.mxu0
      %v2347 = vrot.slane %v2229, 7
      %v2348 = vrot.slane %v2234, 7
      %v2349 = vrot.slane %v2239, 7
      %v2350 = vrot.slane %v2244, 7
      %v2351 = vrot.slane %v2249, 7
      %v2352 = vrot.slane %v2254, 7
      %v2353 = vrot.slane %v2259, 7
      %v2354 = vrot.slane %v2264, 7
      %v2355 = vrot.slane %v2269, 7
      %v2356 = vrot.slane %v2274, 7
      %v2357 = vrot.slane %v2279, 7
      %v2358 = vrot.slane %v2284, 7
      %v2359 = vrot.slane %v2289, 7
      %v2360 = vrot.slane %v2294, 7
      %v2361 = vrot.slane %v2299, 7
      %v2362 = vrot.slane %v2304, 7
      %v2363 = vrot.slane %v2309, 7
      %v2364 = vrot.slane %v2314, 7
      %v2365 = vrot.slane %v2319, 7
      %v2366 = vrot.slane %v2324, 7
      %v2367 = vrot.slane %v2329, 7
      %v2368 = vrot.slane %v2334, 7
      %v2369 = vrot.slane %v2339, 7
      %v2370 = vrot.slane %v2344, 7
      %v2371 = vsel %vm884, %v2368, %v2369
      %v2372 = vsel %vm884, %v2367, %v2368
      %v2373 = vsel %vm884, %v2365, %v2366
      %v2374 = vsel %vm884, %v2364, %v2365
      %v2375 = vsel %vm884, %v2362, %v2363
      %v2376 = vsel %vm884, %v2361, %v2362
      %v2377 = vsel %vm884, %v2359, %v2360
      %v2378 = vsel %vm884, %v2358, %v2359
      %v2379 = vsel %vm884, %v2356, %v2357
      %v2380 = vsel %vm884, %v2355, %v2356
      %v2381 = vsel %vm884, %v2353, %v2354
      %v2382 = vsel %vm884, %v2352, %v2353
      %v2383 = vsel %vm884, %v2350, %v2351
      %v2384 = vsel %vm884, %v2349, %v2350
      %v2385 = vsel %vm884, %v2347, %v2348
      %v2386 = vsel %vm884, %v2370, %v2347
      %v2387 = vadd.f32 %v2104, %v2386
      %v2388 = vadd.f32 %v2105, %v2385
      %v2389 = vadd.f32 %v2106, %v2384
      %v2390 = vadd.f32 %v2107, %v2383
      %v2391 = vadd.f32 %v2108, %v2382
      %v2392 = vadd.f32 %v2109, %v2381
      %v2393 = vadd.f32 %v2110, %v2380
      %v2394 = vadd.f32 %v2111, %v2379
      %v2395 = vadd.f32 %v2112, %v2378
      %v2396 = vadd.f32 %v2113, %v2377
      %v2397 = vadd.f32 %v2114, %v2376
      %v2398 = vadd.f32 %v2115, %v2375
      %v2399 = vadd.f32 %v2116, %v2374
      %v2400 = vadd.f32 %v2117, %v2373
      %v2401 = vadd.f32 %v2118, %v2372
      %v2402 = vadd.f32 %v2119, %v2371
      %s2403 = scalar_lea.vmem %s1, 896
      %v2404 = vld [vmem:[%s2403] sm:$0xff]
      %v2405 = vld [vmem:[%s2403 + $0x8] sm:$0xff]
      %v2406 = vld [vmem:[%s2403 + $0x10] sm:$0xff]
      %v2407 = vld [vmem:[%s2403 + $0x18] sm:$0xff]
      %v2408 = vld [vmem:[%s2403 + $0x20] sm:$0xff]
      %v2409 = vld [vmem:[%s2403 + $0x28] sm:$0xff]
      %v2410 = vld [vmem:[%s2403 + $0x30] sm:$0xff]
      %v2411 = vld [vmem:[%s2403 + $0x38] sm:$0xff]
      %v2412 = vld [vmem:[%s2403 + $0x40] sm:$0xff]
      %v2413 = vld [vmem:[%s2403 + $0x48] sm:$0xff]
      %v2414 = vld [vmem:[%s2403 + $0x50] sm:$0xff]
      %v2415 = vld [vmem:[%s2403 + $0x58] sm:$0xff]
      %v2416 = vld [vmem:[%s2403 + $0x60] sm:$0xff]
      %v2417 = vld [vmem:[%s2403 + $0x68] sm:$0xff]
      %v2418 = vld [vmem:[%s2403 + $0x70] sm:$0xff]
      %v2419 = vld [vmem:[%s2403 + $0x78] sm:$0xff]
      %2420 = vmatprep.subr.mxu0 0.0
      %2421 = vmatpush1.msra.mxu0 %v2404
      %2422 = vmatprep.subr.mxu0 0.0
      %2423 = vmatpush1.msra.mxu0 %v2405
      %2424 = vmatprep.subr.mxu0 0.0
      %2425 = vmatpush1.msra.mxu0 %v2406
      %2426 = vmatprep.subr.mxu0 0.0
      %2427 = vmatpush1.msra.mxu0 %v2407
      %2428 = vmatprep.subr.mxu0 0.0
      %2429 = vmatpush1.msra.mxu0 %v2408
      %2430 = vmatprep.subr.mxu0 0.0
      %2431 = vmatpush1.msra.mxu0 %v2409
      %2432 = vmatprep.subr.mxu0 0.0
      %2433 = vmatpush1.msra.mxu0 %v2410
      %2434 = vmatprep.subr.mxu0 0.0
      %2435 = vmatpush1.msra.mxu0 %v2411
      %2436 = vmatprep.subr.mxu0 0.0
      %2437 = vmatpush1.msra.mxu0 %v2412
      %2438 = vmatprep.subr.mxu0 0.0
      %2439 = vmatpush1.msra.mxu0 %v2413
      %2440 = vmatprep.subr.mxu0 0.0
      %2441 = vmatpush1.msra.mxu0 %v2414
      %2442 = vmatprep.subr.mxu0 0.0
      %2443 = vmatpush1.msra.mxu0 %v2415
      %2444 = vmatprep.subr.mxu0 0.0
      %2445 = vmatpush1.msra.mxu0 %v2416
      %2446 = vmatprep.subr.mxu0 0.0
      %2447 = vmatpush1.msra.mxu0 %v2417
      %2448 = vmatprep.subr.mxu0 0.0
      %2449 = vmatpush1.msra.mxu0 %v2418
      %2450 = vmatprep.subr.mxu0 0.0
      %2451 = vmatpush1.msra.mxu0 %v2419
      %2452 = vmatprep.subr.mxu0 0.0
      %2453 = vmatpush1.msra.mxu0 0.0
      %2454 = vmatprep.subr.mxu0 0.0
      %2455 = vmatpush1.msra.mxu0 0.0
      %2456 = vmatprep.subr.mxu0 0.0
      %2457 = vmatpush1.msra.mxu0 0.0
      %2458 = vmatprep.subr.mxu0 0.0
      %2459 = vmatpush1.msra.mxu0 0.0
      %2460 = vmatprep.subr.mxu0 0.0
      %2461 = vmatpush1.msra.mxu0 0.0
      %2462 = vmatprep.subr.mxu0 0.0
      %2463 = vmatpush1.msra.mxu0 0.0
      %2464 = vmatprep.subr.mxu0 0.0
      %2465 = vmatpush1.msra.mxu0 0.0
      %2466 = vmatprep.subr.mxu0 0.0
      %2467 = vmatpush1.msra.mxu0 0.0
      %2468 = vmatprep.subr.mxu0 0.0
      %2469 = vmatpush1.msra.mxu0 0.0
      %2470 = vmatprep.subr.mxu0 0.0
      %2471 = vmatpush1.msra.mxu0 0.0
      %2472 = vmatprep.subr.mxu0 0.0
      %2473 = vmatpush1.msra.mxu0 0.0
      %2474 = vmatprep.subr.mxu0 0.0
      %2475 = vmatpush1.msra.mxu0 0.0
      %2476 = vmatprep.subr.mxu0 0.0
      %2477 = vmatpush1.msra.mxu0 0.0
      %2478 = vmatprep.subr.mxu0 0.0
      %2479 = vmatpush1.msra.mxu0 0.0
      %2480 = vmatprep.subr.mxu0 0.0
      %2481 = vmatpush1.msra.mxu0 0.0
      %2482 = vmatprep.subr.mxu0 0.0
      %2483 = vmatpush1.msra.mxu0 0.0
      %2484 = vmatprep.mubr.f32.mxu0 0.0
      %2485 = vmatmul.mubr.f32.gmra.mrb[0].mxu0 %v2121
      %v2486 = vpop.f32.mrb[0].mxu0
      %v2487 = vadd.f32 0.0, %v2486
      %v2488 = vpop.f32.mrb[0].mxu0
      %2489 = vmatprep.mubr.f32.mxu0 0.0
      %2490 = vmatmul.mubr.f32.gmra.mrb[0].mxu0 %v2122
      %v2491 = vpop.f32.mrb[0].mxu0
      %v2492 = vadd.f32 0.0, %v2491
      %v2493 = vpop.f32.mrb[0].mxu0
      %2494 = vmatprep.mubr.f32.mxu0 0.0
      %2495 = vmatmul.mubr.f32.gmra.mrb[0].mxu0 %v2123
      %v2496 = vpop.f32.mrb[0].mxu0
      %v2497 = vpop.f32.mrb[0].mxu0
      %2498 = vmatprep.mubr.f32.mxu0 0.0
      %2499 = vmatmul.mubr.f32.gmra.mrb[0].mxu0 %v2124
      %v2500 = vpop.f32.mrb[0].mxu0
      %v2501 = vadd.f32 0.0, %v2500
      %v2502 = vpop.f32.mrb[0].mxu0
      %2503 = vmatprep.mubr.f32.mxu0 0.0
      %2504 = vmatmul.mubr.f32.gmra.mrb[0].mxu0 %v2125
      %v2505 = vpop.f32.mrb[0].mxu0
      %v2506 = vadd.f32 0.0, %v2505
      %v2507 = vpop.f32.mrb[0].mxu0
      %2508 = vmatprep.mubr.f32.mxu0 0.0
      %2509 = vmatmul.mubr.f32.gmra.mrb[0].mxu0 %v2126
      %v2510 = vpop.f32.mrb[0].mxu0
      %v2511 = vpop.f32.mrb[0].mxu0
      %2512 = vmatprep.mubr.f32.mxu0 0.0
      %2513 = vmatmul.mubr.f32.gmra.mrb[0].mxu0 %v2127
      %v2514 = vpop.f32.mrb[0].mxu0
      %v2515 = vadd.f32 0.0, %v2514
      %v2516 = vpop.f32.mrb[0].mxu0
      %2517 = vmatprep.mubr.f32.mxu0 0.0
      %2518 = vmatmul.mubr.f32.gmra.mrb[0].mxu0 %v2128
      %v2519 = vpop.f32.mrb[0].mxu0
      %v2520 = vadd.f32 0.0, %v2519
      %v2521 = vpop.f32.mrb[0].mxu0
      %2522 = vmatprep.mubr.f32.mxu0 0.0
      %2523 = vmatmul.mubr.f32.gmra.mrb[0].mxu0 %v2129
      %v2524 = vpop.f32.mrb[0].mxu0
      %v2525 = vpop.f32.mrb[0].mxu0
      %2526 = vmatprep.mubr.f32.mxu0 0.0
      %2527 = vmatmul.mubr.f32.gmra.mrb[0].mxu0 %v2130
      %v2528 = vpop.f32.mrb[0].mxu0
      %v2529 = vadd.f32 0.0, %v2528
      %v2530 = vpop.f32.mrb[0].mxu0
      %2531 = vmatprep.mubr.f32.mxu0 0.0
      %2532 = vmatmul.mubr.f32.gmra.mrb[0].mxu0 %v2131
      %v2533 = vpop.f32.mrb[0].mxu0
      %v2534 = vadd.f32 0.0, %v2533
      %v2535 = vpop.f32.mrb[0].mxu0
      %2536 = vmatprep.mubr.f32.mxu0 0.0
      %2537 = vmatmul.mubr.f32.gmra.mrb[0].mxu0 %v2132
      %v2538 = vpop.f32.mrb[0].mxu0
      %v2539 = vpop.f32.mrb[0].mxu0
      %2540 = vmatprep.mubr.f32.mxu0 0.0
      %2541 = vmatmul.mubr.f32.gmra.mrb[0].mxu0 %v2133
      %v2542 = vpop.f32.mrb[0].mxu0
      %v2543 = vadd.f32 0.0, %v2542
      %v2544 = vpop.f32.mrb[0].mxu0
      %2545 = vmatprep.mubr.f32.mxu0 0.0
      %2546 = vmatmul.mubr.f32.gmra.mrb[0].mxu0 %v2134
      %v2547 = vpop.f32.mrb[0].mxu0
      %v2548 = vadd.f32 0.0, %v2547
      %v2549 = vpop.f32.mrb[0].mxu0
      %2550 = vmatprep.mubr.f32.mxu0 0.0
      %2551 = vmatmul.mubr.f32.gmra.mrb[0].mxu0 %v2135
      %v2552 = vpop.f32.mrb[0].mxu0
      %v2553 = vpop.f32.mrb[0].mxu0
      %2554 = vmatprep.mubr.f32.mxu0 0.0
      %2555 = vmatmul.mubr.f32.gmra.mrb[0].mxu0 %v2136
      %v2556 = vpop.f32.mrb[0].mxu0
      %v2557 = vadd.f32 0.0, %v2556
      %v2558 = vpop.f32.mrb[0].mxu0
      %2559 = vmatprep.mubr.f32.mxu0 0.0
      %2560 = vmatmul.mubr.f32.gmra.mrb[0].mxu0 %v2137
      %v2561 = vpop.f32.mrb[0].mxu0
      %v2562 = vadd.f32 0.0, %v2561
      %v2563 = vpop.f32.mrb[0].mxu0
      %2564 = vmatprep.mubr.f32.mxu0 0.0
      %2565 = vmatmul.mubr.f32.gmra.mrb[0].mxu0 %v2138
      %v2566 = vpop.f32.mrb[0].mxu0
      %v2567 = vpop.f32.mrb[0].mxu0
      %2568 = vmatprep.mubr.f32.mxu0 0.0
      %2569 = vmatmul.mubr.f32.gmra.mrb[0].mxu0 %v2139
      %v2570 = vpop.f32.mrb[0].mxu0
      %v2571 = vadd.f32 0.0, %v2570
      %v2572 = vpop.f32.mrb[0].mxu0
      %2573 = vmatprep.mubr.f32.mxu0 0.0
      %2574 = vmatmul.mubr.f32.gmra.mrb[0].mxu0 %v2140
      %v2575 = vpop.f32.mrb[0].mxu0
      %v2576 = vadd.f32 0.0, %v2575
      %v2577 = vpop.f32.mrb[0].mxu0
      %2578 = vmatprep.mubr.f32.mxu0 0.0
      %2579 = vmatmul.mubr.f32.gmra.mrb[0].mxu0 %v2141
      %v2580 = vpop.f32.mrb[0].mxu0
      %v2581 = vpop.f32.mrb[0].mxu0
      %2582 = vmatprep.mubr.f32.mxu0 0.0
      %2583 = vmatmul.mubr.f32.gmra.mrb[0].mxu0 %v2142
      %v2584 = vpop.f32.mrb[0].mxu0
      %v2585 = vadd.f32 0.0, %v2584
      %v2586 = vpop.f32.mrb[0].mxu0
      %2587 = vmatprep.mubr.f32.mxu0 0.0
      %2588 = vmatmul.mubr.f32.gmra.mrb[0].mxu0 %v2143
      %v2589 = vpop.f32.mrb[0].mxu0
      %v2590 = vadd.f32 0.0, %v2589
      %v2591 = vpop.f32.mrb[0].mxu0
      %2592 = vmatprep.mubr.f32.mxu0 0.0
      %2593 = vmatmul.mubr.f32.gmra.mrb[0].mxu0 %v2144
      %v2594 = vpop.f32.mrb[0].mxu0
      %v2595 = vpop.f32.mrb[0].mxu0
      %2596 = vdwg.mxu0
      %v2597 = vadd.f32 %v2387, %v2487
      %v2598 = vadd.f32 %v2388, %v2492
      %v2599 = vadd.f32 %v2389, %v2501
      %v2600 = vadd.f32 %v2390, %v2506
      %v2601 = vadd.f32 %v2391, %v2515
      %v2602 = vadd.f32 %v2392, %v2520
      %v2603 = vadd.f32 %v2393, %v2529
      %v2604 = vadd.f32 %v2394, %v2534
      %v2605 = vadd.f32 %v2395, %v2543
      %v2606 = vadd.f32 %v2396, %v2548
      %v2607 = vadd.f32 %v2397, %v2557
      %v2608 = vadd.f32 %v2398, %v2562
      %v2609 = vadd.f32 %v2399, %v2571
      %v2610 = vadd.f32 %v2400, %v2576
      %v2611 = vadd.f32 %v2401, %v2585
      %v2612 = vadd.f32 %v2402, %v2590
      %s2613 = scalar_lea.vmem %s1, 1024
      %v2614 = vld [vmem:[%s2613] sm:$0xff]
      %v2615 = vld [vmem:[%s2613 + $0x8] sm:$0xff]
      %v2616 = vld [vmem:[%s2613 + $0x10] sm:$0xff]
      %v2617 = vld [vmem:[%s2613 + $0x18] sm:$0xff]
      %v2618 = vld [vmem:[%s2613 + $0x20] sm:$0xff]
      %v2619 = vld [vmem:[%s2613 + $0x28] sm:$0xff]
      %v2620 = vld [vmem:[%s2613 + $0x30] sm:$0xff]
      %v2621 = vld [vmem:[%s2613 + $0x38] sm:$0xff]
      %v2622 = vld [vmem:[%s2613 + $0x40] sm:$0xff]
      %v2623 = vld [vmem:[%s2613 + $0x48] sm:$0xff]
      %v2624 = vld [vmem:[%s2613 + $0x50] sm:$0xff]
      %v2625 = vld [vmem:[%s2613 + $0x58] sm:$0xff]
      %v2626 = vld [vmem:[%s2613 + $0x60] sm:$0xff]
      %v2627 = vld [vmem:[%s2613 + $0x68] sm:$0xff]
      %v2628 = vld [vmem:[%s2613 + $0x70] sm:$0xff]
      %v2629 = vld [vmem:[%s2613 + $0x78] sm:$0xff]
      %2630 = vmatprep.subr.mxu0 0.0
      %2631 = vmatpush1.msra.mxu0 %v2614
      %2632 = vmatprep.subr.mxu0 0.0
      %2633 = vmatpush1.msra.mxu0 %v2615
      %2634 = vmatprep.subr.mxu0 0.0
      %2635 = vmatpush1.msra.mxu0 %v2616
      %2636 = vmatprep.subr.mxu0 0.0
      %2637 = vmatpush1.msra.mxu0 %v2617
      %2638 = vmatprep.subr.mxu0 0.0
      %2639 = vmatpush1.msra.mxu0 %v2618
      %2640 = vmatprep.subr.mxu0 0.0
      %2641 = vmatpush1.msra.mxu0 %v2619
      %2642 = vmatprep.subr.mxu0 0.0
      %2643 = vmatpush1.msra.mxu0 %v2620
      %2644 = vmatprep.subr.mxu0 0.0
      %2645 = vmatpush1.msra.mxu0 %v2621
      %2646 = vmatprep.subr.mxu0 0.0
      %2647 = vmatpush1.msra.mxu0 %v2622
      %2648 = vmatprep.subr.mxu0 0.0
      %2649 = vmatpush1.msra.mxu0 %v2623
      %2650 = vmatprep.subr.mxu0 0.0
      %2651 = vmatpush1.msra.mxu0 %v2624
      %2652 = vmatprep.subr.mxu0 0.0
      %2653 = vmatpush1.msra.mxu0 %v2625
      %2654 = vmatprep.subr.mxu0 0.0
      %2655 = vmatpush1.msra.mxu0 %v2626
      %2656 = vmatprep.subr.mxu0 0.0
      %2657 = vmatpush1.msra.mxu0 %v2627
      %2658 = vmatprep.subr.mxu0 0.0
      %2659 = vmatpush1.msra.mxu0 %v2628
      %2660 = vmatprep.subr.mxu0 0.0
      %2661 = vmatpush1.msra.mxu0 %v2629
      %2662 = vmatprep.subr.mxu0 0.0
      %2663 = vmatpush1.msra.mxu0 0.0
      %2664 = vmatprep.subr.mxu0 0.0
      %2665 = vmatpush1.msra.mxu0 0.0
      %2666 = vmatprep.subr.mxu0 0.0
      %2667 = vmatpush1.msra.mxu0 0.0
      %2668 = vmatprep.subr.mxu0 0.0
      %2669 = vmatpush1.msra.mxu0 0.0
      %2670 = vmatprep.subr.mxu0 0.0
      %2671 = vmatpush1.msra.mxu0 0.0
      %2672 = vmatprep.subr.mxu0 0.0
      %2673 = vmatpush1.msra.mxu0 0.0
      %2674 = vmatprep.subr.mxu0 0.0
      %2675 = vmatpush1.msra.mxu0 0.0
      %2676 = vmatprep.subr.mxu0 0.0
      %2677 = vmatpush1.msra.mxu0 0.0
      %2678 = vmatprep.subr.mxu0 0.0
      %2679 = vmatpush1.msra.mxu0 0.0
      %2680 = vmatprep.subr.mxu0 0.0
      %2681 = vmatpush1.msra.mxu0 0.0
      %2682 = vmatprep.subr.mxu0 0.0
      %2683 = vmatpush1.msra.mxu0 0.0
      %2684 = vmatprep.subr.mxu0 0.0
      %2685 = vmatpush1.msra.mxu0 0.0
      %2686 = vmatprep.subr.mxu0 0.0
      %2687 = vmatpush1.msra.mxu0 0.0
      %2688 = vmatprep.subr.mxu0 0.0
      %2689 = vmatpush1.msra.mxu0 0.0
      %2690 = vmatprep.subr.mxu0 0.0
      %2691 = vmatpush1.msra.mxu0 0.0
      %2692 = vmatprep.subr.mxu0 0.0
      %2693 = vmatpush1.msra.mxu0 0.0
      %2694 = vmatprep.mubr.f32.mxu0 0.0
      %2695 = vmatmul.mubr.f32.gmra.mrb[0].mxu0 %v2121
      %v2696 = vpop.f32.mrb[0].mxu0
      %v2697 = vadd.f32 0.0, %v2696
      %v2698 = vpop.f32.mrb[0].mxu0
      %2699 = vmatprep.mubr.f32.mxu0 0.0
      %2700 = vmatmul.mubr.f32.gmra.mrb[0].mxu0 %v2122
      %v2701 = vpop.f32.mrb[0].mxu0
      %v2702 = vadd.f32 0.0, %v2701
      %v2703 = vpop.f32.mrb[0].mxu0
      %2704 = vmatprep.mubr.f32.mxu0 0.0
      %2705 = vmatmul.mubr.f32.gmra.mrb[0].mxu0 %v2123
      %v2706 = vpop.f32.mrb[0].mxu0
      %v2707 = vadd.f32 0.0, %v2706
      %v2708 = vpop.f32.mrb[0].mxu0
      %2709 = vmatprep.mubr.f32.mxu0 0.0
      %2710 = vmatmul.mubr.f32.gmra.mrb[0].mxu0 %v2124
      %v2711 = vpop.f32.mrb[0].mxu0
      %v2712 = vadd.f32 0.0, %v2711
      %v2713 = vpop.f32.mrb[0].mxu0
      %2714 = vmatprep.mubr.f32.mxu0 0.0
      %2715 = vmatmul.mubr.f32.gmra.mrb[0].mxu0 %v2125
      %v2716 = vpop.f32.mrb[0].mxu0
      %v2717 = vadd.f32 0.0, %v2716
      %v2718 = vpop.f32.mrb[0].mxu0
      %2719 = vmatprep.mubr.f32.mxu0 0.0
      %2720 = vmatmul.mubr.f32.gmra.mrb[0].mxu0 %v2126
      %v2721 = vpop.f32.mrb[0].mxu0
      %v2722 = vadd.f32 0.0, %v2721
      %v2723 = vpop.f32.mrb[0].mxu0
      %2724 = vmatprep.mubr.f32.mxu0 0.0
      %2725 = vmatmul.mubr.f32.gmra.mrb[0].mxu0 %v2127
      %v2726 = vpop.f32.mrb[0].mxu0
      %v2727 = vadd.f32 0.0, %v2726
      %v2728 = vpop.f32.mrb[0].mxu0
      %2729 = vmatprep.mubr.f32.mxu0 0.0
      %2730 = vmatmul.mubr.f32.gmra.mrb[0].mxu0 %v2128
      %v2731 = vpop.f32.mrb[0].mxu0
      %v2732 = vadd.f32 0.0, %v2731
      %v2733 = vpop.f32.mrb[0].mxu0
      %2734 = vmatprep.mubr.f32.mxu0 0.0
      %2735 = vmatmul.mubr.f32.gmra.mrb[0].mxu0 %v2129
      %v2736 = vpop.f32.mrb[0].mxu0
      %v2737 = vadd.f32 0.0, %v2736
      %v2738 = vpop.f32.mrb[0].mxu0
      %2739 = vmatprep.mubr.f32.mxu0 0.0
      %2740 = vmatmul.mubr.f32.gmra.mrb[0].mxu0 %v2130
      %v2741 = vpop.f32.mrb[0].mxu0
      %v2742 = vadd.f32 0.0, %v2741
      %v2743 = vpop.f32.mrb[0].mxu0
      %2744 = vmatprep.mubr.f32.mxu0 0.0
      %2745 = vmatmul.mubr.f32.gmra.mrb[0].mxu0 %v2131
      %v2746 = vpop.f32.mrb[0].mxu0
      %v2747 = vadd.f32 0.0, %v2746
      %v2748 = vpop.f32.mrb[0].mxu0
      %2749 = vmatprep.mubr.f32.mxu0 0.0
      %2750 = vmatmul.mubr.f32.gmra.mrb[0].mxu0 %v2132
      %v2751 = vpop.f32.mrb[0].mxu0
      %v2752 = vadd.f32 0.0, %v2751
      %v2753 = vpop.f32.mrb[0].mxu0
      %2754 = vmatprep.mubr.f32.mxu0 0.0
      %2755 = vmatmul.mubr.f32.gmra.mrb[0].mxu0 %v2133
      %v2756 = vpop.f32.mrb[0].mxu0
      %v2757 = vadd.f32 0.0, %v2756
      %v2758 = vpop.f32.mrb[0].mxu0
      %2759 = vmatprep.mubr.f32.mxu0 0.0
      %2760 = vmatmul.mubr.f32.gmra.mrb[0].mxu0 %v2134
      %v2761 = vpop.f32.mrb[0].mxu0
      %v2762 = vadd.f32 0.0, %v2761
      %v2763 = vpop.f32.mrb[0].mxu0
      %2764 = vmatprep.mubr.f32.mxu0 0.0
      %2765 = vmatmul.mubr.f32.gmra.mrb[0].mxu0 %v2135
      %v2766 = vpop.f32.mrb[0].mxu0
      %v2767 = vadd.f32 0.0, %v2766
      %v2768 = vpop.f32.mrb[0].mxu0
      %2769 = vmatprep.mubr.f32.mxu0 0.0
      %2770 = vmatmul.mubr.f32.gmra.mrb[0].mxu0 %v2136
      %v2771 = vpop.f32.mrb[0].mxu0
      %v2772 = vadd.f32 0.0, %v2771
      %v2773 = vpop.f32.mrb[0].mxu0
      %2774 = vmatprep.mubr.f32.mxu0 0.0
      %2775 = vmatmul.mubr.f32.gmra.mrb[0].mxu0 %v2137
      %v2776 = vpop.f32.mrb[0].mxu0
      %v2777 = vadd.f32 0.0, %v2776
      %v2778 = vpop.f32.mrb[0].mxu0
      %2779 = vmatprep.mubr.f32.mxu0 0.0
      %2780 = vmatmul.mubr.f32.gmra.mrb[0].mxu0 %v2138
      %v2781 = vpop.f32.mrb[0].mxu0
      %v2782 = vadd.f32 0.0, %v2781
      %v2783 = vpop.f32.mrb[0].mxu0
      %2784 = vmatprep.mubr.f32.mxu0 0.0
      %2785 = vmatmul.mubr.f32.gmra.mrb[0].mxu0 %v2139
      %v2786 = vpop.f32.mrb[0].mxu0
      %v2787 = vadd.f32 0.0, %v2786
      %v2788 = vpop.f32.mrb[0].mxu0
      %2789 = vmatprep.mubr.f32.mxu0 0.0
      %2790 = vmatmul.mubr.f32.gmra.mrb[0].mxu0 %v2140
      %v2791 = vpop.f32.mrb[0].mxu0
      %v2792 = vadd.f32 0.0, %v2791
      %v2793 = vpop.f32.mrb[0].mxu0
      %2794 = vmatprep.mubr.f32.mxu0 0.0
      %2795 = vmatmul.mubr.f32.gmra.mrb[0].mxu0 %v2141
      %v2796 = vpop.f32.mrb[0].mxu0
      %v2797 = vadd.f32 0.0, %v2796
      %v2798 = vpop.f32.mrb[0].mxu0
      %2799 = vmatprep.mubr.f32.mxu0 0.0
      %2800 = vmatmul.mubr.f32.gmra.mrb[0].mxu0 %v2142
      %v2801 = vpop.f32.mrb[0].mxu0
      %v2802 = vadd.f32 0.0, %v2801
      %v2803 = vpop.f32.mrb[0].mxu0
      %2804 = vmatprep.mubr.f32.mxu0 0.0
      %2805 = vmatmul.mubr.f32.gmra.mrb[0].mxu0 %v2143
      %v2806 = vpop.f32.mrb[0].mxu0
      %v2807 = vadd.f32 0.0, %v2806
      %v2808 = vpop.f32.mrb[0].mxu0
      %2809 = vmatprep.mubr.f32.mxu0 0.0
      %2810 = vmatmul.mubr.f32.gmra.mrb[0].mxu0 %v2144
      %v2811 = vpop.f32.mrb[0].mxu0
      %v2812 = vadd.f32 0.0, %v2811
      %v2813 = vpop.f32.mrb[0].mxu0
      %2814 = vdwg.mxu0
      %v2815 = vrot.slane %v2697, 1
      %v2816 = vrot.slane %v2702, 1
      %v2817 = vrot.slane %v2707, 1
      %v2818 = vrot.slane %v2712, 1
      %v2819 = vrot.slane %v2717, 1
      %v2820 = vrot.slane %v2722, 1
      %v2821 = vrot.slane %v2727, 1
      %v2822 = vrot.slane %v2732, 1
      %v2823 = vrot.slane %v2737, 1
      %v2824 = vrot.slane %v2742, 1
      %v2825 = vrot.slane %v2747, 1
      %v2826 = vrot.slane %v2752, 1
      %v2827 = vrot.slane %v2757, 1
      %v2828 = vrot.slane %v2762, 1
      %v2829 = vrot.slane %v2767, 1
      %v2830 = vrot.slane %v2772, 1
      %v2831 = vrot.slane %v2777, 1
      %v2832 = vrot.slane %v2782, 1
      %v2833 = vrot.slane %v2787, 1
      %v2834 = vrot.slane %v2792, 1
      %v2835 = vrot.slane %v2797, 1
      %v2836 = vrot.slane %v2802, 1
      %v2837 = vrot.slane %v2807, 1
      %v2838 = vrot.slane %v2812, 1
      %v2839 = vsel %vm1337, %v2837, %v2838
      %v2840 = vsel %vm1337, %v2836, %v2837
      %v2841 = vsel %vm1337, %v2834, %v2835
      %v2842 = vsel %vm1337, %v2833, %v2834
      %v2843 = vsel %vm1337, %v2831, %v2832
      %v2844 = vsel %vm1337, %v2830, %v2831
      %v2845 = vsel %vm1337, %v2828, %v2829
      %v2846 = vsel %vm1337, %v2827, %v2828
      %v2847 = vsel %vm1337, %v2825, %v2826
      %v2848 = vsel %vm1337, %v2824, %v2825
      %v2849 = vsel %vm1337, %v2822, %v2823
      %v2850 = vsel %vm1337, %v2821, %v2822
      %v2851 = vsel %vm1337, %v2819, %v2820
      %v2852 = vsel %vm1337, %v2818, %v2819
      %v2853 = vsel %vm1337, %v2816, %v2817
      %v2854 = vsel %vm1337, %v2815, %v2816
      %v2855 = vadd.f32 %v2597, %v2854
      %v2856 = vadd.f32 %v2598, %v2853
      %v2857 = vadd.f32 %v2599, %v2852
      %v2858 = vadd.f32 %v2600, %v2851
      %v2859 = vadd.f32 %v2601, %v2850
      %v2860 = vadd.f32 %v2602, %v2849
      %v2861 = vadd.f32 %v2603, %v2848
      %v2862 = vadd.f32 %v2604, %v2847
      %v2863 = vadd.f32 %v2605, %v2846
      %v2864 = vadd.f32 %v2606, %v2845
      %v2865 = vadd.f32 %v2607, %v2844
      %v2866 = vadd.f32 %v2608, %v2843
      %v2867 = vadd.f32 %v2609, %v2842
      %v2868 = vadd.f32 %v2610, %v2841
      %v2869 = vadd.f32 %v2611, %v2840
      %v2870 = vadd.f32 %v2612, %v2839
      %2871 = vst [vmem:[%s215] sm:$0xff] %v2855
      %2872 = vst [vmem:[%s215 + $0x8] sm:$0xff] %v2856
      %2873 = vst [vmem:[%s215 + $0x10] sm:$0xff] %v2857
      %2874 = vst [vmem:[%s215 + $0x18] sm:$0xff] %v2858
      %2875 = vst [vmem:[%s215 + $0x20] sm:$0xff] %v2859
      %2876 = vst [vmem:[%s215 + $0x28] sm:$0xff] %v2860
      %2877 = vst [vmem:[%s215 + $0x30] sm:$0xff] %v2861
      %2878 = vst [vmem:[%s215 + $0x38] sm:$0xff] %v2862
      %2879 = vst [vmem:[%s215 + $0x40] sm:$0xff] %v2863
      %2880 = vst [vmem:[%s215 + $0x48] sm:$0xff] %v2864
      %2881 = vst [vmem:[%s215 + $0x50] sm:$0xff] %v2865
      %2882 = vst [vmem:[%s215 + $0x58] sm:$0xff] %v2866
      %2883 = vst [vmem:[%s215 + $0x60] sm:$0xff] %v2867
      %2884 = vst [vmem:[%s215 + $0x68] sm:$0xff] %v2868
      %2885 = vst [vmem:[%s215 + $0x70] sm:$0xff] %v2869
      %2886 = vst [vmem:[%s215 + $0x78] sm:$0xff] %v2870
      %v2887 = vadd.f32 %v2855, %v2856
      %v2888 = vadd.f32 %v2887, %v2857
      %v2889 = vadd.f32 %v2888, %v2858
      %v2890 = vadd.f32 %v2889, %v2859
      %v2891 = vadd.f32 %v2890, %v2860
      %v2892 = vadd.f32 %v2891, %v2861
      %v2893 = vadd.f32 %v2892, %v2862
      %v2894 = vadd.f32 %v2893, %v2863
      %v2895 = vadd.f32 %v2894, %v2864
      %v2896 = vadd.f32 %v2895, %v2865
      %v2897 = vadd.f32 %v2896, %v2866
      %v2898 = vadd.f32 %v2897, %v2867
      %v2899 = vadd.f32 %v2898, %v2868
      %v2900 = vadd.f32 %v2899, %v2869
      %v2901 = vadd.f32 %v2900, %v2870
      %v2902 = vrot.slane %v2901, 4
      %v2903 = vadd.f32 %v2901, %v2902
      %v2904 = vrot.slane %v2903, 2
      %v2905 = vadd.f32 %v2903, %v2904
      %v2906 = vrot.slane %v2905, 1
      %v2907 = vadd.f32 %v2905, %v2906
      %v2908 = vmul.f32 %v2907, 0.0078125
      %v2909 = vsub.f32 %v2855, %v2908
      %v2910 = vsub.f32 %v2856, %v2908
      %v2911 = vsub.f32 %v2857, %v2908
      %v2912 = vsub.f32 %v2858, %v2908
      %v2913 = vsub.f32 %v2859, %v2908
      %v2914 = vsub.f32 %v2860, %v2908
      %v2915 = vsub.f32 %v2861, %v2908
      %v2916 = vsub.f32 %v2862, %v2908
      %v2917 = vsub.f32 %v2863, %v2908
      %v2918 = vsub.f32 %v2864, %v2908
      %v2919 = vsub.f32 %v2865, %v2908
      %v2920 = vsub.f32 %v2866, %v2908
      %v2921 = vsub.f32 %v2867, %v2908
      %v2922 = vsub.f32 %v2868, %v2908
      %v2923 = vsub.f32 %v2869, %v2908
      %v2924 = vsub.f32 %v2870, %v2908
      %v2925 = vmul.f32 %v2909, %v2909
      %v2926 = vmul.f32 %v2910, %v2910
      %v2927 = vmul.f32 %v2911, %v2911
      %v2928 = vmul.f32 %v2912, %v2912
      %v2929 = vmul.f32 %v2913, %v2913
      %v2930 = vmul.f32 %v2914, %v2914
      %v2931 = vmul.f32 %v2915, %v2915
      %v2932 = vmul.f32 %v2916, %v2916
      %v2933 = vmul.f32 %v2917, %v2917
      %v2934 = vmul.f32 %v2918, %v2918
      %v2935 = vmul.f32 %v2919, %v2919
      %v2936 = vmul.f32 %v2920, %v2920
      %v2937 = vmul.f32 %v2921, %v2921
      %v2938 = vmul.f32 %v2922, %v2922
      %v2939 = vmul.f32 %v2923, %v2923
      %v2940 = vmul.f32 %v2924, %v2924
      %v2941 = vadd.f32 %v2925, %v2926
      %v2942 = vadd.f32 %v2941, %v2927
      %v2943 = vadd.f32 %v2942, %v2928
      %v2944 = vadd.f32 %v2943, %v2929
      %v2945 = vadd.f32 %v2944, %v2930
      %v2946 = vadd.f32 %v2945, %v2931
      %v2947 = vadd.f32 %v2946, %v2932
      %v2948 = vadd.f32 %v2947, %v2933
      %v2949 = vadd.f32 %v2948, %v2934
      %v2950 = vadd.f32 %v2949, %v2935
      %v2951 = vadd.f32 %v2950, %v2936
      %v2952 = vadd.f32 %v2951, %v2937
      %v2953 = vadd.f32 %v2952, %v2938
      %v2954 = vadd.f32 %v2953, %v2939
      %v2955 = vadd.f32 %v2954, %v2940
      %v2956 = vrot.slane %v2955, 4
      %v2957 = vadd.f32 %v2955, %v2956
      %v2958 = vrot.slane %v2957, 2
      %v2959 = vadd.f32 %v2957, %v2958
      %v2960 = vrot.slane %v2959, 1
      %v2961 = vadd.f32 %v2959, %v2960
      %vm2962 = vcmask 1040384
      %v2963 = vsel %vm2962, %v2907, %v2961
      %2964 = vst [vmem:[%s224] sm:$0x3] %v2963
      %s2965 = smul.u32 8, %s22
      %p2966 = scmp.lt.s32.totalorder %s21, 1
      %s2967 = scalar_select %p2966, %s21, 1
      %p2968 = scmp.lt.s32.totalorder %s2965, 15
      %s2969 = scalar_select %p2968, %s2965, 15
      %s2970 = smul.addr %s2969, 2
      %s2971 = smul.addr %s2967, 32
      %s2972 = sadd.s32 %s2970, %s2971
      %s2973 = smul.addr %s2972, 8
      %s2974 = scalar_lea.vmem %s4, %s2973
      %p2975 = scmp.lt.s32.totalorder %s21, 1
      %s2976 = scalar_select %p2975, %s21, 1
      %p2977 = scmp.lt.s32.totalorder %s22, 1
      %s2978 = scalar_select %p2977, %s22, 1
      %s2979 = smul.addr %s2976, 2
      %s2980 = sadd.s32 %s2978, %s2979
      %s2981 = smul.addr %s2980, 2
      %s2982 = scalar_lea.vmem %s5, %s2981
      // Predicated region
      $region159: #{unet_conv_block.4} parent=31 // pred_check
        %p2983 = pneg %p112
      $region160: #{unet_conv_block.4} parent=31 // pred_check_branch
        %2985 = sbr.rel (%p2983) target = $region162
      $region161: #{unet_conv_block.4} parent=31 // pred_region
        %s2986 = smul.u32 8, %s22
      $region162: #{unet_conv_block.4} parent=31 // pred_fallthru
        _
      // Predicated region
      $region163: #{unet_conv_block.4} parent=31 // pred_check
        %p2987 = pneg %p140
      $region164: #{unet_conv_block.4} parent=31 // pred_check_branch
        %2989 = sbr.rel (%p2987) target = $region166
      $region165: #{unet_conv_block.4} parent=31 // pred_region
        _
      $region166: #{unet_conv_block.4} parent=31 // pred_fallthru
        _
    $region32: #{unet_conv_block.4} parent=5 // pred_fallthru
      _
    %p2990 = scmp.le.s32.totalorder 2, %s12
    // Predicated region
    $region167: #{unet_conv_block.4} parent=5 // pred_check
      %p2991 = pneg %p2990
    $region168: #{unet_conv_block.4} parent=5 // pred_check_branch
      %2993 = sbr.rel (%p2991) target = $region170
    $region169: #{unet_conv_block.4} parent=5 // pred_region
      %s2994 = ssub.s32 %s12, 2
      // Predicated region
      $region171: #{unet_conv_block.4} parent=169 // pred_check
        %p2995 = pneg %p118
      $region172: #{unet_conv_block.4} parent=169 // pred_check_branch
        %2997 = sbr.rel (%p2995) target = $region174
      $region173: #{unet_conv_block.4} parent=169 // pred_region
        %s2998 = smul.u32 8, %s24
        %p2999 = scmp.lt.s32.totalorder %s23, 1
        %s3000 = scalar_select %p2999, %s23, 1
        %p3001 = scmp.lt.s32.totalorder %s2998, 15
        %s3002 = scalar_select %p3001, %s2998, 15
        %s3003 = smul.addr %s3002, 2
        %s3004 = smul.addr %s3000, 32
        %s3005 = sadd.s32 %s3003, %s3004
        %s3006 = smul.addr %s3005, 8
        %s3007 = scalar_lea.vmem %s4, %s3006
      $region174: #{unet_conv_block.4} parent=169 // pred_fallthru
        _
      // Predicated region
      $region175: #{unet_conv_block.4} parent=169 // pred_check
        %p3008 = pneg %p146
      $region176: #{unet_conv_block.4} parent=169 // pred_check_branch
        %3010 = sbr.rel (%p3008) target = $region178
      $region177: #{unet_conv_block.4} parent=169 // pred_region
        %p3011 = scmp.lt.s32.totalorder %s23, 1
        %s3012 = scalar_select %p3011, %s23, 1
        %p3013 = scmp.lt.s32.totalorder %s24, 1
        %s3014 = scalar_select %p3013, %s24, 1
        %s3015 = smul.addr %s3012, 2
        %s3016 = sadd.s32 %s3014, %s3015
        %s3017 = smul.addr %s3016, 2
        %s3018 = scalar_lea.vmem %s5, %s3017
      $region178: #{unet_conv_block.4} parent=169 // pred_fallthru
        _
    $region170: #{unet_conv_block.4} parent=5 // pred_fallthru
      _
  $region6: #{unet_conv_block.4} parent=0 // loop_footer
    %s16 = sadd.s32 1, %s12
  $region7: #{unet_conv_block.4} parent=0 // loop_footer_branch
    %11 = sbr.rel target = $region3
  $region8: #{unet_conv_block.4} parent=0 // loop_exit
    _
  %3019 = vsyncmov [#allocation3]
  %s3020 = vpop.sfrf %3019
  %p3021 = scmp.eq.s32.totalorder %s3020, 0
  %p3022 = pneg %p3021
  %3024 = shalt.err (%p3022)
  %s3025 = scalar_lea.sflag [#allocation3], 1
  %3026 = vsyncmov %s3025
  %s3027 = vpop.sfrf %3026
  %p3028 = scmp.eq.s32.totalorder %s3027, 0
  %p3029 = pneg %p3028
  %3031 = shalt.err (%p3029)
  %s3032 = scalar_lea.sflag [#allocation3], 2
  %3033 = vsyncmov %s3032
  %s3034 = vpop.sfrf %3033
  %p3035 = scmp.eq.s32.totalorder %s3034, 0
  %p3036 = pneg %p3035
  %3038 = shalt.err (%p3036)

</llo_original>
